<compile_context>
chip_gen: v5e
topology: v5e:2x2
jax: 0.10.0
libtpu: 0.0.40
codegen_flags: <defaults>
</compile_context>

<pallas_src>
import functools

import jax
import jax.numpy as jnp
from jax.experimental import pallas as pl
from jax.experimental.pallas import tpu as pltpu

BN_EPS = 1e-5


# ----------------------------------------------------------------------------
# helper math
# ----------------------------------------------------------------------------
def _entmoid15(x):
    """Exact equivalent of Entmoid15._forward (entmax15([x, 0])[0])."""
    ax = jnp.abs(x)
    is_pos = x >= 0
    tau = (ax + jnp.sqrt(jnp.maximum(8.0 - ax * ax, 0.0))) * 0.5
    tau = jnp.where(tau <= ax, 2.0, tau)
    y_neg = 0.25 * jnp.maximum(tau - ax, 0.0) ** 2
    return jnp.where(is_pos, 1.0 - y_neg, y_neg)


def entmax15_jax(x, axis=0):
    """Plain-JAX entmax15 (sort-based). Used only on *parameter* logits
    (data-independent preprocessing), so it stays outside the kernel."""
    x = x - jnp.max(x, axis=axis, keepdims=True)
    x = x / 2.0
    d = x.shape[axis]
    x_srt = jnp.flip(jnp.sort(x, axis=axis), axis=axis)  # descending
    rho_shape = [1] * x.ndim
    rho_shape[axis] = d
    rho = jnp.arange(1, d + 1, dtype=x.dtype).reshape(rho_shape)
    mean = jnp.cumsum(x_srt, axis=axis) / rho
    mean_sq = jnp.cumsum(x_srt ** 2, axis=axis) / rho
    ss = rho * (mean_sq - mean ** 2)
    delta = (1.0 - ss) / rho
    delta_nz = jnp.maximum(delta, 0.0)
    tau = mean - jnp.sqrt(delta_nz)
    support_size = jnp.sum((tau <= x_srt).astype(jnp.int32), axis=axis, keepdims=True)
    tau_star = jnp.take_along_axis(tau, support_size - 1, axis=axis)
    return jnp.maximum(x - tau_star, 0.0) ** 2


# ----------------------------------------------------------------------------
# fused NODE kernel (all ODST layers + head, one batch tile per grid step)
# ----------------------------------------------------------------------------
def make_node_kernel(*, input_dim, num_trees, depth, num_layers, tb, use_bf16):
    T, D, L = num_trees, depth, num_layers
    H = L * T                    # hidden width fed to the head
    D1 = D // 2
    C1 = 2 ** D1                 # leaves indexed by the low  D1      bits
    C2 = 2 ** (D - D1)           # leaves indexed by the high D - D1  bits
    mxu_dtype = jnp.bfloat16 if use_bf16 else jnp.float32

    def kernel(x_ref, sel_ref, thr_ref, m_ref, s_ref, w_ref, b_ref,
               out_ref, feats_ref, wlo_ref, whi_ref):
        # Stage the input tile; zero the not-yet-computed tree slots so the padded
        # (zero) selector rows never meet stale VMEM (0 * NaN == NaN).
        feats_ref[:, :H] = jnp.zeros((tb, H), jnp.float32)
        feats_ref[:, H:] = x_ref[...]

        s_mat = s_ref[...]                               # [C2*T, T] segmented-sum matrix

        for l in range(L):
            feats = feats_ref[...].astype(mxu_dtype)
            # One fused MXU matmul over every (tree, depth) pair of this layer.
            # BatchNorm b0 and exp(-log_temperature) are pre-folded into sel/thr.
            fv = jnp.dot(feats, sel_ref[l], preferred_element_type=jnp.float32)
            tl = fv - thr_ref[l]                         # [tb, D*T]
            bp = _entmoid15(tl)                          # bins for code-bit==0
            # bins for code-bit==1 == entmoid(-tl) == 1 - bp (exact identity)

            def partial_products(d_lo, d_hi):
                prods = None
                for d in range(d_lo, d_hi):
                    pd = bp[:, d * T:(d + 1) * T]        # [tb, T]
                    nd = 1.0 - pd
                    prods = ([pd, nd] if prods is None
                             else [q * pd for q in prods] + [q * nd for q in prods])
                return prods if prods is not None else [jnp.ones((tb, T), jnp.float32)]

            # split-depth contraction: 2**D1 + 2**(D-D1) live tiles instead of 2**D
            p_lo = partial_products(0, D1)               # leaf-index bits [0, D1)
            p_hi = partial_products(D1, D)               # leaf-index bits [D1, D)

            # Lay the partial products out lane-dense in VMEM so the response
            # contraction runs on the MXU / full-width VPU instead of 16-lane tiles.
            for cl in range(C1):
                wlo_ref[:, cl * T:(cl + 1) * T] = p_lo[cl]
            for ch in range(C2):
                whi_ref[:, ch * T:(ch + 1) * T] = p_hi[ch]

            # inner[b, ch*T+t] = sum_cl p_lo[cl][b,t] * response[ch*C1+cl, t]
            inner = jnp.dot(wlo_ref[...], m_ref[l], preferred_element_type=jnp.float32)
            prod = whi_ref[...] * inner                  # full-width [tb, C2*T] multiply
            # h[b, t] = sum_ch prod[b, ch*T+t]   (segmented sum as a tiny matmul)
            h = jnp.dot(prod, s_mat, preferred_element_type=jnp.float32)

            feats_ref[:, l * T:(l + 1) * T] = h          # append this layer's output

        # head: BatchNorm1d(eval) + Dropout(identity) + weight-norm Linear,
        # all pre-folded into (w_ref, b_ref) in the wrapper.
        hidden = feats_ref[:, :H].astype(mxu_dtype)
        out_ref[...] = (jnp.dot(hidden, w_ref[...], preferred_element_type=jnp.float32)
                        + b_ref[...]).astype(out_ref.dtype)

    return kernel


# ----------------------------------------------------------------------------
# wrapper: parameter-only preprocessing + pallas_call plumbing
# ----------------------------------------------------------------------------
def node_forward(params, x, *, depth, num_trees, tb=128, use_bf16=True):
    B, input_dim = x.shape
    L = len(params["odst_layers"])
    T, D = num_trees, depth
    DT = D * T
    D1 = D // 2
    C1 = 2 ** D1
    C2 = 2 ** (D - D1)
    H = L * T
    F_total = H + input_dim      # feats layout: [h_0 | h_1 | ... | h_{L-1} | x]
    O = params["out"]["bias"].shape[-1]

    # ---- parameter-only preprocessing (plain JAX glue, data independent) ----
    bn0 = params["bn0"]
    s0 = bn0["gamma"] / jnp.sqrt(bn0["var"] + BN_EPS)          # [1, input_dim]
    b0 = bn0["beta"] - bn0["mean"] * s0                         # [1, input_dim]

    eyeT = jnp.eye(T, dtype=jnp.float32)

    sel_list, thr_list, m_list = [], [], []
    for l, lp in enumerate(params["odst_layers"]):
        # entmax15 choice_function over the feature axis of the logits
        sel = entmax15_jax(lp["feature_selection_logits"], axis=0)        # [in_feat, T, D]
        in_feat = sel.shape[0]
        sel_flat = jnp.transpose(sel, (0, 2, 1)).reshape(in_feat, DT)     # depth-major columns
        thr_flat = jnp.transpose(lp["feature_thresholds"], (1, 0)).reshape(1, DT)
        it_flat = jnp.exp(-jnp.transpose(lp["log_temperatures"], (1, 0)).reshape(1, DT))

        # fold eval-mode BatchNorm b0 (x*s0 + b0) into the x rows / thresholds,
        # and exp(-log_temperature) into both.
        sel_x = sel_flat[:input_dim]
        sel_h = sel_flat[input_dim:]
        thr_flat = (thr_flat - b0 @ sel_x) * it_flat     # uses ORIGINAL x selector rows
        sel_x = sel_x * jnp.transpose(s0)                # scale x selector rows

        # pad to the kernel's feats layout [h_0 | ... | h_{L-1} | x] (zero rows for future layers)
        sel_pad = jnp.zeros((F_total, DT), jnp.float32)
        if l > 0:
            sel_pad = sel_pad.at[:l * T].set(sel_h)
        sel_pad = sel_pad.at[H:].set(sel_x)
        sel_pad = sel_pad * it_flat                      # fold exp(-log_temperature)

        sel_list.append(sel_pad)
        thr_list.append(thr_flat)

        # block-diagonal per-tree response matrix for the MXU contraction:
        #   M[cl*T + t, ch*T + t] = response[ch*C1 + cl, t], zero elsewhere.
        resp_ct = jnp.transpose(lp["response"][:, 0, :], (1, 0))          # [2**D, T]
        resp3 = resp_ct.reshape(C2, C1, T)                                # [ch, cl, t]
        m = jnp.einsum('hlt,ts->lths', resp3, eyeT).reshape(C1 * T, C2 * T)
        m_list.append(m)

    sel_s = jnp.stack(sel_list)       # [L, F_total, D*T]
    thr_s = jnp.stack(thr_list)       # [L, 1, D*T]
    m_s = jnp.stack(m_list)           # [L, C1*T, C2*T]
    s_mat = jnp.tile(eyeT, (C2, 1))   # [C2*T, T]  segmented sum over the ch groups

    # head: weight_norm Linear with BatchNorm b1 folded in (Dropout = identity in eval)
    outp, bn1 = params["out"], params["bn1"]
    w = outp["g"] * outp["v"] / jnp.sqrt(jnp.sum(outp["v"] ** 2, axis=1, keepdims=True))  # [O, H]
    wT = jnp.transpose(w)                                       # [H, O]
    s1 = bn1["gamma"] / jnp.sqrt(bn1["var"] + BN_EPS)           # [1, H]
    sh1 = bn1["beta"] - bn1["mean"] * s1                        # [1, H]
    w_eff = jnp.transpose(s1) * wT                              # [H, O]
    b_eff = outp["bias"] + sh1 @ wT                             # [1, O]

    mxu_dtype = jnp.bfloat16 if use_bf16 else jnp.float32
    sel_s = sel_s.astype(mxu_dtype)
    w_eff = w_eff.astype(mxu_dtype)

    # pad batch to a multiple of tb (remainder rows sliced off afterwards)
    B_pad = pl.cdiv(B, tb) * tb
    if B_pad != B:
        x = jnp.pad(x, ((0, B_pad - B), (0, 0)))

    kernel = make_node_kernel(input_dim=input_dim, num_trees=T, depth=D,
                              num_layers=L, tb=tb, use_bf16=use_bf16)

    zero3 = lambda b: (0, 0, 0)
    zero2 = lambda b: (0, 0)
    out = pl.pallas_call(
        kernel,
        out_shape=jax.ShapeDtypeStruct((B_pad, O), jnp.float32),
        grid=(B_pad // tb,),
        in_specs=[
            pl.BlockSpec((tb, input_dim), lambda b: (b, 0)),
            pl.BlockSpec((L, F_total, DT), zero3),
            pl.BlockSpec((L, 1, DT), zero3),
            pl.BlockSpec((L, C1 * T, C2 * T), zero3),
            pl.BlockSpec((C2 * T, T), zero2),
            pl.BlockSpec((H, O), zero2),
            pl.BlockSpec((1, O), zero2),
        ],
        out_specs=pl.BlockSpec((tb, O), lambda b: (b, 0)),
        scratch_shapes=[pltpu.VMEM((tb, F_total), jnp.float32),
                        pltpu.VMEM((tb, C1 * T), jnp.float32),
                        pltpu.VMEM((tb, C2 * T), jnp.float32)],
        compiler_params=pltpu.CompilerParams(
            dimension_semantics=("parallel",)),   # batch tiles shard across TCs (v7x megacore)
    )(x, sel_s, thr_s, m_s, s_mat, w_eff, b_eff)
    return out[:B]


# ----------------------------------------------------------------------------
# deterministic parameter init (mirrors shapes of NODE.__init__)
# ----------------------------------------------------------------------------
def init_node_params(key, input_dim, out_dim, layer_dim, num_layers, tree_dim, depth):
    assert tree_dim == 1, "kernel written for tree_dim == 1 (NODE default)"
    T, D, C = layer_dim, depth, 2 ** depth
    keys = iter(jax.random.split(key, 3 * num_layers + 4))

    params = {
        "bn0": dict(gamma=jnp.ones((1, input_dim), jnp.float32),
                    beta=jnp.zeros((1, input_dim), jnp.float32),
                    mean=jnp.zeros((1, input_dim), jnp.float32),
                    var=jnp.ones((1, input_dim), jnp.float32))
    }

    layers = []
    in_feat = input_dim
    for _ in range(num_layers):
        resp = jax.random.normal(next(keys), (T, tree_dim, C), dtype=jnp.float32)   # normal_
        fsl = jax.random.uniform(next(keys), (in_feat, T, D), dtype=jnp.float32)    # uniform_
        thr = 0.5 * jax.random.normal(next(keys), (T, D), dtype=jnp.float32)
        logtemp = jnp.zeros((T, D), dtype=jnp.float32)
        layers.append(dict(feature_selection_logits=fsl, feature_thresholds=thr,
                           log_temperatures=logtemp, response=resp))
        in_feat += layer_dim * tree_dim
    params["odst_layers"] = layers

    H = layer_dim * num_layers * tree_dim
    params["bn1"] = dict(gamma=jnp.ones((1, H), jnp.float32),
                         beta=jnp.zeros((1, H), jnp.float32),
                         mean=jnp.zeros((1, H), jnp.float32),
                         var=jnp.ones((1, H), jnp.float32))

    k = 1.0 / float(H) ** 0.5
    v = jax.random.uniform(next(keys), (out_dim, H), minval=-k, maxval=k, dtype=jnp.float32)
    g = jnp.sqrt(jnp.sum(v * v, axis=1, keepdims=True))        # weight_norm init: g = ||v||
    bias = jax.random.uniform(next(keys), (1, out_dim), minval=-k, maxval=k, dtype=jnp.float32)
    params["out"] = dict(v=v, g=g, bias=bias)
    return params


# ----------------------------------------------------------------------------
if __name__ == "__main__":
    key = jax.random.PRNGKey(0)
    pkey, xkey = jax.random.split(key)

    # small shapes consistent with NODE defaults; B deliberately not a multiple of tile_b
    B, input_dim, out_dim = 200, 24, 8
    layer_dim, num_layers, tree_dim, depth = 16, 4, 1, 6
    tile_b = 128

    params = init_node_params(pkey, input_dim, out_dim, layer_dim, num_layers, tree_dim, depth)
    x = jax.random.normal(xkey, (B, input_dim), dtype=jnp.float32)

    fwd = jax.jit(functools.partial(node_forward, depth=depth, num_trees=layer_dim,
                                    tb=tile_b, use_bf16=True))
    y = jax.block_until_ready(fwd(params, x))

    assert y.shape == (B, out_dim), y.shape
    assert bool(jnp.all(jnp.isfinite(y)))
    print("KERNEL_OK")
</pallas_src>

<mosaic_0001>
module attributes {stable_mosaic.version = 11 : i64} {
  func.func @kernel(%arg0: i32, %arg1: memref<128x24xf32, #tpu.memory_space<vmem>>, %arg2: memref<4x88x96xbf16, #tpu.memory_space<vmem>>, %arg3: memref<4x1x96xf32, #tpu.memory_space<vmem>>, %arg4: memref<4x128x128xf32, #tpu.memory_space<vmem>>, %arg5: memref<128x16xf32, #tpu.memory_space<vmem>>, %arg6: memref<64x8xbf16, #tpu.memory_space<vmem>>, %arg7: memref<1x8xf32, #tpu.memory_space<vmem>>, %arg8: memref<128x8xf32, #tpu.memory_space<vmem>>, %arg9: memref<128x88xf32, #tpu.memory_space<vmem>>, %arg10: memref<128x128xf32, #tpu.memory_space<vmem>>, %arg11: memref<128x128xf32, #tpu.memory_space<vmem>>) attributes {dimension_semantics = [#tpu.dimension_semantics<parallel>], iteration_bounds = array<i64: 2>, scalar_prefetch = 0 : i64, scratch_operands = 3 : i64, tpu.core_type = #tpu.core_type<tc>, window_params = [{transform_indices = @transform_0, window_bounds = array<i64: 128, 24>}, {pipeline_mode = #tpu.pipeline_mode<synchronous>, transform_indices = @transform_1, window_bounds = array<i64: 4, 88, 96>}, {pipeline_mode = #tpu.pipeline_mode<synchronous>, transform_indices = @transform_2, window_bounds = array<i64: 4, 1, 96>}, {pipeline_mode = #tpu.pipeline_mode<synchronous>, transform_indices = @transform_3, window_bounds = array<i64: 4, 128, 128>}, {pipeline_mode = #tpu.pipeline_mode<synchronous>, transform_indices = @transform_4, window_bounds = array<i64: 128, 16>}, {pipeline_mode = #tpu.pipeline_mode<synchronous>, transform_indices = @transform_5, window_bounds = array<i64: 64, 8>}, {pipeline_mode = #tpu.pipeline_mode<synchronous>, transform_indices = @transform_6, window_bounds = array<i64: 1, 8>}, {transform_indices = @transform_7, window_bounds = array<i64: 128, 8>}]} {
    %cst = arith.constant 0.000000e+00 : f32
    %0 = vector.broadcast %cst : f32 to vector<128x64xf32>
    %c0 = arith.constant 0 : index
    %c0_0 = arith.constant 0 : index
    %1 = vector.load %arg9[%c0, %c0_0] : memref<128x88xf32, #tpu.memory_space<vmem>>, vector<128x64xf32>
    tpu.vector_store %arg9[%c0, %c0_0], %0 {strides = array<i32>} : memref<128x88xf32, #tpu.memory_space<vmem>>, vector<128x64xf32>,
    %c0_1 = arith.constant 0 : index
    %c0_2 = arith.constant 0 : index
    %2 = vector.load %arg1[%c0_1, %c0_2] : memref<128x24xf32, #tpu.memory_space<vmem>>, vector<128x24xf32>
    %c0_3 = arith.constant 0 : index
    %c64 = arith.constant 64 : index
    %3 = vector.load %arg9[%c0_3, %c64] : memref<128x88xf32, #tpu.memory_space<vmem>>, vector<128x24xf32>
    tpu.vector_store %arg9[%c0_3, %c64], %2 {strides = array<i32>} : memref<128x88xf32, #tpu.memory_space<vmem>>, vector<128x24xf32>,
    %c0_4 = arith.constant 0 : index
    %c0_5 = arith.constant 0 : index
    %4 = vector.load %arg5[%c0_4, %c0_5] : memref<128x16xf32, #tpu.memory_space<vmem>>, vector<128x16xf32>
    %c0_6 = arith.constant 0 : index
    %c0_7 = arith.constant 0 : index
    %5 = vector.load %arg9[%c0_6, %c0_7] : memref<128x88xf32, #tpu.memory_space<vmem>>, vector<128x88xf32>
    %6 = arith.truncf %5 : vector<128x88xf32> to vector<128x88xbf16>
    %c0_8 = arith.constant 0 : index
    %c0_9 = arith.constant 0 : index
    %c0_10 = arith.constant 0 : index
    %7 = vector.load %arg2[%c0_8, %c0_9, %c0_10] : memref<4x88x96xbf16, #tpu.memory_space<vmem>>, vector<1x88x96xbf16>
    %8 = vector.shape_cast %7 : vector<1x88x96xbf16> to vector<88x96xbf16>
    %cst_11 = arith.constant dense<0.000000e+00> : vector<128x96xf32>
    %9 = tpu.matmul %6, %8, %cst_11 {dimension_numbers = #tpu.dot_dimension_numbers<[1], [0], [0], [1], [0, 0, 1, 1], [], []>} : vector<128x88xbf16>, vector<88x96xbf16>, vector<128x96xf32> -> vector<128x96xf32>
    %c0_12 = arith.constant 0 : index
    %c0_13 = arith.constant 0 : index
    %c0_14 = arith.constant 0 : index
    %10 = vector.load %arg3[%c0_12, %c0_13, %c0_14] : memref<4x1x96xf32, #tpu.memory_space<vmem>>, vector<1x1x96xf32>
    %11 = vector.shape_cast %10 : vector<1x1x96xf32> to vector<1x96xf32>
    %12 = vector.broadcast %11 : vector<1x96xf32> to vector<128x96xf32>
    %13 = arith.subf %9, %12 : vector<128x96xf32>
    %14 = math.absf %13 : vector<128x96xf32>
    %cst_15 = arith.constant 0.000000e+00 : f32
    %15 = vector.broadcast %cst_15 : f32 to vector<128x96xf32>
    %16 = arith.cmpf oge, %13, %15 : vector<128x96xf32>
    %17 = arith.mulf %14, %14 : vector<128x96xf32>
    %cst_16 = arith.constant 8.000000e+00 : f32
    %18 = vector.broadcast %cst_16 : f32 to vector<128x96xf32>
    %19 = arith.subf %18, %17 : vector<128x96xf32>
    %cst_17 = arith.constant 0.000000e+00 : f32
    %20 = vector.broadcast %cst_17 : f32 to vector<128x96xf32>
    %21 = arith.maximumf %19, %20 : vector<128x96xf32>
    %22 = math.sqrt %21 : vector<128x96xf32>
    %23 = arith.addf %14, %22 : vector<128x96xf32>
    %cst_18 = arith.constant 5.000000e-01 : f32
    %24 = vector.broadcast %cst_18 : f32 to vector<128x96xf32>
    %25 = arith.mulf %23, %24 : vector<128x96xf32>
    %26 = arith.cmpf ole, %25, %14 : vector<128x96xf32>
    %cst_19 = arith.constant 2.000000e+00 : f32
    %27 = vector.broadcast %cst_19 : f32 to vector<128x96xf32>
    %28 = arith.select %26, %27, %25 : vector<128x96xi1>, vector<128x96xf32>
    %29 = arith.subf %28, %14 : vector<128x96xf32>
    %cst_20 = arith.constant 0.000000e+00 : f32
    %30 = vector.broadcast %cst_20 : f32 to vector<128x96xf32>
    %31 = arith.maximumf %29, %30 : vector<128x96xf32>
    %32 = arith.mulf %31, %31 : vector<128x96xf32>
    %cst_21 = arith.constant 2.500000e-01 : f32
    %33 = vector.broadcast %cst_21 : f32 to vector<128x96xf32>
    %34 = arith.mulf %33, %32 : vector<128x96xf32>
    %cst_22 = arith.constant 1.000000e+00 : f32
    %35 = vector.broadcast %cst_22 : f32 to vector<128x96xf32>
    %36 = arith.subf %35, %34 : vector<128x96xf32>
    %37 = arith.select %16, %36, %34 : vector<128x96xi1>, vector<128x96xf32>
    %38 = vector.extract_strided_slice %37 {offsets = [0, 0], sizes = [128, 16], strides = [1, 1]} : vector<128x96xf32> to vector<128x16xf32>
    %cst_23 = arith.constant 1.000000e+00 : f32
    %39 = vector.broadcast %cst_23 : f32 to vector<128x16xf32>
    %40 = arith.subf %39, %38 : vector<128x16xf32>
    %41 = vector.extract_strided_slice %37 {offsets = [0, 16], sizes = [128, 16], strides = [1, 1]} : vector<128x96xf32> to vector<128x16xf32>
    %cst_24 = arith.constant 1.000000e+00 : f32
    %42 = vector.broadcast %cst_24 : f32 to vector<128x16xf32>
    %43 = arith.subf %42, %41 : vector<128x16xf32>
    %44 = arith.mulf %38, %41 : vector<128x16xf32>
    %45 = arith.mulf %40, %41 : vector<128x16xf32>
    %46 = arith.mulf %38, %43 : vector<128x16xf32>
    %47 = arith.mulf %40, %43 : vector<128x16xf32>
    %48 = vector.extract_strided_slice %37 {offsets = [0, 32], sizes = [128, 16], strides = [1, 1]} : vector<128x96xf32> to vector<128x16xf32>
    %cst_25 = arith.constant 1.000000e+00 : f32
    %49 = vector.broadcast %cst_25 : f32 to vector<128x16xf32>
    %50 = arith.subf %49, %48 : vector<128x16xf32>
    %51 = arith.mulf %44, %48 : vector<128x16xf32>
    %52 = arith.mulf %45, %48 : vector<128x16xf32>
    %53 = arith.mulf %46, %48 : vector<128x16xf32>
    %54 = arith.mulf %47, %48 : vector<128x16xf32>
    %55 = arith.mulf %44, %50 : vector<128x16xf32>
    %56 = arith.mulf %45, %50 : vector<128x16xf32>
    %57 = arith.mulf %46, %50 : vector<128x16xf32>
    %58 = arith.mulf %47, %50 : vector<128x16xf32>
    %59 = vector.extract_strided_slice %37 {offsets = [0, 48], sizes = [128, 16], strides = [1, 1]} : vector<128x96xf32> to vector<128x16xf32>
    %cst_26 = arith.constant 1.000000e+00 : f32
    %60 = vector.broadcast %cst_26 : f32 to vector<128x16xf32>
    %61 = arith.subf %60, %59 : vector<128x16xf32>
    %62 = vector.extract_strided_slice %37 {offsets = [0, 64], sizes = [128, 16], strides = [1, 1]} : vector<128x96xf32> to vector<128x16xf32>
    %cst_27 = arith.constant 1.000000e+00 : f32
    %63 = vector.broadcast %cst_27 : f32 to vector<128x16xf32>
    %64 = arith.subf %63, %62 : vector<128x16xf32>
    %65 = arith.mulf %59, %62 : vector<128x16xf32>
    %66 = arith.mulf %61, %62 : vector<128x16xf32>
    %67 = arith.mulf %59, %64 : vector<128x16xf32>
    %68 = arith.mulf %61, %64 : vector<128x16xf32>
    %69 = vector.extract_strided_slice %37 {offsets = [0, 80], sizes = [128, 16], strides = [1, 1]} : vector<128x96xf32> to vector<128x16xf32>
    %cst_28 = arith.constant 1.000000e+00 : f32
    %70 = vector.broadcast %cst_28 : f32 to vector<128x16xf32>
    %71 = arith.subf %70, %69 : vector<128x16xf32>
    %72 = arith.mulf %65, %69 : vector<128x16xf32>
    %73 = arith.mulf %66, %69 : vector<128x16xf32>
    %74 = arith.mulf %67, %69 : vector<128x16xf32>
    %75 = arith.mulf %68, %69 : vector<128x16xf32>
    %76 = arith.mulf %65, %71 : vector<128x16xf32>
    %77 = arith.mulf %66, %71 : vector<128x16xf32>
    %78 = arith.mulf %67, %71 : vector<128x16xf32>
    %79 = arith.mulf %68, %71 : vector<128x16xf32>
    %c0_29 = arith.constant 0 : index
    %c0_30 = arith.constant 0 : index
    %80 = vector.load %arg10[%c0_29, %c0_30] : memref<128x128xf32, #tpu.memory_space<vmem>>, vector<128x16xf32>
    tpu.vector_store %arg10[%c0_29, %c0_30], %51 {strides = array<i32>} : memref<128x128xf32, #tpu.memory_space<vmem>>, vector<128x16xf32>,
    %c0_31 = arith.constant 0 : index
    %c16 = arith.constant 16 : index
    %81 = vector.load %arg10[%c0_31, %c16] : memref<128x128xf32, #tpu.memory_space<vmem>>, vector<128x16xf32>
    tpu.vector_store %arg10[%c0_31, %c16], %52 {strides = array<i32>} : memref<128x128xf32, #tpu.memory_space<vmem>>, vector<128x16xf32>,
    %c0_32 = arith.constant 0 : index
    %c32 = arith.constant 32 : index
    %82 = vector.load %arg10[%c0_32, %c32] : memref<128x128xf32, #tpu.memory_space<vmem>>, vector<128x16xf32>
    tpu.vector_store %arg10[%c0_32, %c32], %53 {strides = array<i32>} : memref<128x128xf32, #tpu.memory_space<vmem>>, vector<128x16xf32>,
    %c0_33 = arith.constant 0 : index
    %c48 = arith.constant 48 : index
    %83 = vector.load %arg10[%c0_33, %c48] : memref<128x128xf32, #tpu.memory_space<vmem>>, vector<128x16xf32>
    tpu.vector_store %arg10[%c0_33, %c48], %54 {strides = array<i32>} : memref<128x128xf32, #tpu.memory_space<vmem>>, vector<128x16xf32>,
    %c0_34 = arith.constant 0 : index
    %c64_35 = arith.constant 64 : index
    %84 = vector.load %arg10[%c0_34, %c64_35] : memref<128x128xf32, #tpu.memory_space<vmem>>, vector<128x16xf32>
    tpu.vector_store %arg10[%c0_34, %c64_35], %55 {strides = array<i32>} : memref<128x128xf32, #tpu.memory_space<vmem>>, vector<128x16xf32>,
    %c0_36 = arith.constant 0 : index
    %c80 = arith.constant 80 : index
    %85 = vector.load %arg10[%c0_36, %c80] : memref<128x128xf32, #tpu.memory_space<vmem>>, vector<128x16xf32>
    tpu.vector_store %arg10[%c0_36, %c80], %56 {strides = array<i32>} : memref<128x128xf32, #tpu.memory_space<vmem>>, vector<128x16xf32>,
    %c0_37 = arith.constant 0 : index
    %c96 = arith.constant 96 : index
    %86 = vector.load %arg10[%c0_37, %c96] : memref<128x128xf32, #tpu.memory_space<vmem>>, vector<128x16xf32>
    tpu.vector_store %arg10[%c0_37, %c96], %57 {strides = array<i32>} : memref<128x128xf32, #tpu.memory_space<vmem>>, vector<128x16xf32>,
    %c0_38 = arith.constant 0 : index
    %c112 = arith.constant 112 : index
    %87 = vector.load %arg10[%c0_38, %c112] : memref<128x128xf32, #tpu.memory_space<vmem>>, vector<128x16xf32>
    tpu.vector_store %arg10[%c0_38, %c112], %58 {strides = array<i32>} : memref<128x128xf32, #tpu.memory_space<vmem>>, vector<128x16xf32>,
    %c0_39 = arith.constant 0 : index
    %c0_40 = arith.constant 0 : index
    %88 = vector.load %arg11[%c0_39, %c0_40] : memref<128x128xf32, #tpu.memory_space<vmem>>, vector<128x16xf32>
    tpu.vector_store %arg11[%c0_39, %c0_40], %72 {strides = array<i32>} : memref<128x128xf32, #tpu.memory_space<vmem>>, vector<128x16xf32>,
    %c0_41 = arith.constant 0 : index
    %c16_42 = arith.constant 16 : index
    %89 = vector.load %arg11[%c0_41, %c16_42] : memref<128x128xf32, #tpu.memory_space<vmem>>, vector<128x16xf32>
    tpu.vector_store %arg11[%c0_41, %c16_42], %73 {strides = array<i32>} : memref<128x128xf32, #tpu.memory_space<vmem>>, vector<128x16xf32>,
    %c0_43 = arith.constant 0 : index
    %c32_44 = arith.constant 32 : index
    %90 = vector.load %arg11[%c0_43, %c32_44] : memref<128x128xf32, #tpu.memory_space<vmem>>, vector<128x16xf32>
    tpu.vector_store %arg11[%c0_43, %c32_44], %74 {strides = array<i32>} : memref<128x128xf32, #tpu.memory_space<vmem>>, vector<128x16xf32>,
    %c0_45 = arith.constant 0 : index
    %c48_46 = arith.constant 48 : index
    %91 = vector.load %arg11[%c0_45, %c48_46] : memref<128x128xf32, #tpu.memory_space<vmem>>, vector<128x16xf32>
    tpu.vector_store %arg11[%c0_45, %c48_46], %75 {strides = array<i32>} : memref<128x128xf32, #tpu.memory_space<vmem>>, vector<128x16xf32>,
    %c0_47 = arith.constant 0 : index
    %c64_48 = arith.constant 64 : index
    %92 = vector.load %arg11[%c0_47, %c64_48] : memref<128x128xf32, #tpu.memory_space<vmem>>, vector<128x16xf32>
    tpu.vector_store %arg11[%c0_47, %c64_48], %76 {strides = array<i32>} : memref<128x128xf32, #tpu.memory_space<vmem>>, vector<128x16xf32>,
    %c0_49 = arith.constant 0 : index
    %c80_50 = arith.constant 80 : index
    %93 = vector.load %arg11[%c0_49, %c80_50] : memref<128x128xf32, #tpu.memory_space<vmem>>, vector<128x16xf32>
    tpu.vector_store %arg11[%c0_49, %c80_50], %77 {strides = array<i32>} : memref<128x128xf32, #tpu.memory_space<vmem>>, vector<128x16xf32>,
    %c0_51 = arith.constant 0 : index
    %c96_52 = arith.constant 96 : index
    %94 = vector.load %arg11[%c0_51, %c96_52] : memref<128x128xf32, #tpu.memory_space<vmem>>, vector<128x16xf32>
    tpu.vector_store %arg11[%c0_51, %c96_52], %78 {strides = array<i32>} : memref<128x128xf32, #tpu.memory_space<vmem>>, vector<128x16xf32>,
    %c0_53 = arith.constant 0 : index
    %c112_54 = arith.constant 112 : index
    %95 = vector.load %arg11[%c0_53, %c112_54] : memref<128x128xf32, #tpu.memory_space<vmem>>, vector<128x16xf32>
    tpu.vector_store %arg11[%c0_53, %c112_54], %79 {strides = array<i32>} : memref<128x128xf32, #tpu.memory_space<vmem>>, vector<128x16xf32>,
    %c0_55 = arith.constant 0 : index
    %c0_56 = arith.constant 0 : index
    %96 = vector.load %arg10[%c0_55, %c0_56] : memref<128x128xf32, #tpu.memory_space<vmem>>, vector<128x128xf32>
    %c0_57 = arith.constant 0 : index
    %c0_58 = arith.constant 0 : index
    %c0_59 = arith.constant 0 : index
    %97 = vector.load %arg4[%c0_57, %c0_58, %c0_59] : memref<4x128x128xf32, #tpu.memory_space<vmem>>, vector<1x128x128xf32>
    %98 = vector.shape_cast %97 : vector<1x128x128xf32> to vector<128x128xf32>
    %cst_60 = arith.constant dense<0.000000e+00> : vector<128x128xf32>
    %99 = tpu.matmul %96, %98, %cst_60 {dimension_numbers = #tpu.dot_dimension_numbers<[1], [0], [0], [1], [0, 0, 1, 1], [], []>} : vector<128x128xf32>, vector<128x128xf32>, vector<128x128xf32> -> vector<128x128xf32>
    %c0_61 = arith.constant 0 : index
    %c0_62 = arith.constant 0 : index
    %100 = vector.load %arg11[%c0_61, %c0_62] : memref<128x128xf32, #tpu.memory_space<vmem>>, vector<128x128xf32>
    %101 = arith.mulf %100, %99 : vector<128x128xf32>
    %cst_63 = arith.constant dense<0.000000e+00> : vector<128x16xf32>
    %102 = tpu.matmul %101, %4, %cst_63 {dimension_numbers = #tpu.dot_dimension_numbers<[1], [0], [0], [1], [0, 0, 1, 1], [], []>} : vector<128x128xf32>, vector<128x16xf32>, vector<128x16xf32> -> vector<128x16xf32>
    %c0_64 = arith.constant 0 : index
    %c0_65 = arith.constant 0 : index
    %103 = vector.load %arg9[%c0_64, %c0_65] : memref<128x88xf32, #tpu.memory_space<vmem>>, vector<128x16xf32>
    tpu.vector_store %arg9[%c0_64, %c0_65], %102 {strides = array<i32>} : memref<128x88xf32, #tpu.memory_space<vmem>>, vector<128x16xf32>,
    %c0_66 = arith.constant 0 : index
    %c0_67 = arith.constant 0 : index
    %104 = vector.load %arg9[%c0_66, %c0_67] : memref<128x88xf32, #tpu.memory_space<vmem>>, vector<128x88xf32>
    %105 = arith.truncf %104 : vector<128x88xf32> to vector<128x88xbf16>
    %c1 = arith.constant 1 : index
    %c0_68 = arith.constant 0 : index
    %c0_69 = arith.constant 0 : index
    %106 = vector.load %arg2[%c1, %c0_68, %c0_69] : memref<4x88x96xbf16, #tpu.memory_space<vmem>>, vector<1x88x96xbf16>
    %107 = vector.shape_cast %106 : vector<1x88x96xbf16> to vector<88x96xbf16>
    %cst_70 = arith.constant dense<0.000000e+00> : vector<128x96xf32>
    %108 = tpu.matmul %105, %107, %cst_70 {dimension_numbers = #tpu.dot_dimension_numbers<[1], [0], [0], [1], [0, 0, 1, 1], [], []>} : vector<128x88xbf16>, vector<88x96xbf16>, vector<128x96xf32> -> vector<128x96xf32>
    %c1_71 = arith.constant 1 : index
    %c0_72 = arith.constant 0 : index
    %c0_73 = arith.constant 0 : index
    %109 = vector.load %arg3[%c1_71, %c0_72, %c0_73] : memref<4x1x96xf32, #tpu.memory_space<vmem>>, vector<1x1x96xf32>
    %110 = vector.shape_cast %109 : vector<1x1x96xf32> to vector<1x96xf32>
    %111 = vector.broadcast %110 : vector<1x96xf32> to vector<128x96xf32>
    %112 = arith.subf %108, %111 : vector<128x96xf32>
    %113 = math.absf %112 : vector<128x96xf32>
    %cst_74 = arith.constant 0.000000e+00 : f32
    %114 = vector.broadcast %cst_74 : f32 to vector<128x96xf32>
    %115 = arith.cmpf oge, %112, %114 : vector<128x96xf32>
    %116 = arith.mulf %113, %113 : vector<128x96xf32>
    %cst_75 = arith.constant 8.000000e+00 : f32
    %117 = vector.broadcast %cst_75 : f32 to vector<128x96xf32>
    %118 = arith.subf %117, %116 : vector<128x96xf32>
    %cst_76 = arith.constant 0.000000e+00 : f32
    %119 = vector.broadcast %cst_76 : f32 to vector<128x96xf32>
    %120 = arith.maximumf %118, %119 : vector<128x96xf32>
    %121 = math.sqrt %120 : vector<128x96xf32>
    %122 = arith.addf %113, %121 : vector<128x96xf32>
    %cst_77 = arith.constant 5.000000e-01 : f32
    %123 = vector.broadcast %cst_77 : f32 to vector<128x96xf32>
    %124 = arith.mulf %122, %123 : vector<128x96xf32>
    %125 = arith.cmpf ole, %124, %113 : vector<128x96xf32>
    %cst_78 = arith.constant 2.000000e+00 : f32
    %126 = vector.broadcast %cst_78 : f32 to vector<128x96xf32>
    %127 = arith.select %125, %126, %124 : vector<128x96xi1>, vector<128x96xf32>
    %128 = arith.subf %127, %113 : vector<128x96xf32>
    %cst_79 = arith.constant 0.000000e+00 : f32
    %129 = vector.broadcast %cst_79 : f32 to vector<128x96xf32>
    %130 = arith.maximumf %128, %129 : vector<128x96xf32>
    %131 = arith.mulf %130, %130 : vector<128x96xf32>
    %cst_80 = arith.constant 2.500000e-01 : f32
    %132 = vector.broadcast %cst_80 : f32 to vector<128x96xf32>
    %133 = arith.mulf %132, %131 : vector<128x96xf32>
    %cst_81 = arith.constant 1.000000e+00 : f32
    %134 = vector.broadcast %cst_81 : f32 to vector<128x96xf32>
    %135 = arith.subf %134, %133 : vector<128x96xf32>
    %136 = arith.select %115, %135, %133 : vector<128x96xi1>, vector<128x96xf32>
    %137 = vector.extract_strided_slice %136 {offsets = [0, 0], sizes = [128, 16], strides = [1, 1]} : vector<128x96xf32> to vector<128x16xf32>
    %cst_82 = arith.constant 1.000000e+00 : f32
    %138 = vector.broadcast %cst_82 : f32 to vector<128x16xf32>
    %139 = arith.subf %138, %137 : vector<128x16xf32>
    %140 = vector.extract_strided_slice %136 {offsets = [0, 16], sizes = [128, 16], strides = [1, 1]} : vector<128x96xf32> to vector<128x16xf32>
    %cst_83 = arith.constant 1.000000e+00 : f32
    %141 = vector.broadcast %cst_83 : f32 to vector<128x16xf32>
    %142 = arith.subf %141, %140 : vector<128x16xf32>
    %143 = arith.mulf %137, %140 : vector<128x16xf32>
    %144 = arith.mulf %139, %140 : vector<128x16xf32>
    %145 = arith.mulf %137, %142 : vector<128x16xf32>
    %146 = arith.mulf %139, %142 : vector<128x16xf32>
    %147 = vector.extract_strided_slice %136 {offsets = [0, 32], sizes = [128, 16], strides = [1, 1]} : vector<128x96xf32> to vector<128x16xf32>
    %cst_84 = arith.constant 1.000000e+00 : f32
    %148 = vector.broadcast %cst_84 : f32 to vector<128x16xf32>
    %149 = arith.subf %148, %147 : vector<128x16xf32>
    %150 = arith.mulf %143, %147 : vector<128x16xf32>
    %151 = arith.mulf %144, %147 : vector<128x16xf32>
    %152 = arith.mulf %145, %147 : vector<128x16xf32>
    %153 = arith.mulf %146, %147 : vector<128x16xf32>
    %154 = arith.mulf %143, %149 : vector<128x16xf32>
    %155 = arith.mulf %144, %149 : vector<128x16xf32>
    %156 = arith.mulf %145, %149 : vector<128x16xf32>
    %157 = arith.mulf %146, %149 : vector<128x16xf32>
    %158 = vector.extract_strided_slice %136 {offsets = [0, 48], sizes = [128, 16], strides = [1, 1]} : vector<128x96xf32> to vector<128x16xf32>
    %cst_85 = arith.constant 1.000000e+00 : f32
    %159 = vector.broadcast %cst_85 : f32 to vector<128x16xf32>
    %160 = arith.subf %159, %158 : vector<128x16xf32>
    %161 = vector.extract_strided_slice %136 {offsets = [0, 64], sizes = [128, 16], strides = [1, 1]} : vector<128x96xf32> to vector<128x16xf32>
    %cst_86 = arith.constant 1.000000e+00 : f32
    %162 = vector.broadcast %cst_86 : f32 to vector<128x16xf32>
    %163 = arith.subf %162, %161 : vector<128x16xf32>
    %164 = arith.mulf %158, %161 : vector<128x16xf32>
    %165 = arith.mulf %160, %161 : vector<128x16xf32>
    %166 = arith.mulf %158, %163 : vector<128x16xf32>
    %167 = arith.mulf %160, %163 : vector<128x16xf32>
    %168 = vector.extract_strided_slice %136 {offsets = [0, 80], sizes = [128, 16], strides = [1, 1]} : vector<128x96xf32> to vector<128x16xf32>
    %cst_87 = arith.constant 1.000000e+00 : f32
    %169 = vector.broadcast %cst_87 : f32 to vector<128x16xf32>
    %170 = arith.subf %169, %168 : vector<128x16xf32>
    %171 = arith.mulf %164, %168 : vector<128x16xf32>
    %172 = arith.mulf %165, %168 : vector<128x16xf32>
    %173 = arith.mulf %166, %168 : vector<128x16xf32>
    %174 = arith.mulf %167, %168 : vector<128x16xf32>
    %175 = arith.mulf %164, %170 : vector<128x16xf32>
    %176 = arith.mulf %165, %170 : vector<128x16xf32>
    %177 = arith.mulf %166, %170 : vector<128x16xf32>
    %178 = arith.mulf %167, %170 : vector<128x16xf32>
    %c0_88 = arith.constant 0 : index
    %c0_89 = arith.constant 0 : index
    %179 = vector.load %arg10[%c0_88, %c0_89] : memref<128x128xf32, #tpu.memory_space<vmem>>, vector<128x16xf32>
    tpu.vector_store %arg10[%c0_88, %c0_89], %150 {strides = array<i32>} : memref<128x128xf32, #tpu.memory_space<vmem>>, vector<128x16xf32>,
    %c0_90 = arith.constant 0 : index
    %c16_91 = arith.constant 16 : index
    %180 = vector.load %arg10[%c0_90, %c16_91] : memref<128x128xf32, #tpu.memory_space<vmem>>, vector<128x16xf32>
    tpu.vector_store %arg10[%c0_90, %c16_91], %151 {strides = array<i32>} : memref<128x128xf32, #tpu.memory_space<vmem>>, vector<128x16xf32>,
    %c0_92 = arith.constant 0 : index
    %c32_93 = arith.constant 32 : index
    %181 = vector.load %arg10[%c0_92, %c32_93] : memref<128x128xf32, #tpu.memory_space<vmem>>, vector<128x16xf32>
    tpu.vector_store %arg10[%c0_92, %c32_93], %152 {strides = array<i32>} : memref<128x128xf32, #tpu.memory_space<vmem>>, vector<128x16xf32>,
    %c0_94 = arith.constant 0 : index
    %c48_95 = arith.constant 48 : index
    %182 = vector.load %arg10[%c0_94, %c48_95] : memref<128x128xf32, #tpu.memory_space<vmem>>, vector<128x16xf32>
    tpu.vector_store %arg10[%c0_94, %c48_95], %153 {strides = array<i32>} : memref<128x128xf32, #tpu.memory_space<vmem>>, vector<128x16xf32>,
    %c0_96 = arith.constant 0 : index
    %c64_97 = arith.constant 64 : index
    %183 = vector.load %arg10[%c0_96, %c64_97] : memref<128x128xf32, #tpu.memory_space<vmem>>, vector<128x16xf32>
    tpu.vector_store %arg10[%c0_96, %c64_97], %154 {strides = array<i32>} : memref<128x128xf32, #tpu.memory_space<vmem>>, vector<128x16xf32>,
    %c0_98 = arith.constant 0 : index
    %c80_99 = arith.constant 80 : index
    %184 = vector.load %arg10[%c0_98, %c80_99] : memref<128x128xf32, #tpu.memory_space<vmem>>, vector<128x16xf32>
    tpu.vector_store %arg10[%c0_98, %c80_99], %155 {strides = array<i32>} : memref<128x128xf32, #tpu.memory_space<vmem>>, vector<128x16xf32>,
    %c0_100 = arith.constant 0 : index
    %c96_101 = arith.constant 96 : index
    %185 = vector.load %arg10[%c0_100, %c96_101] : memref<128x128xf32, #tpu.memory_space<vmem>>, vector<128x16xf32>
    tpu.vector_store %arg10[%c0_100, %c96_101], %156 {strides = array<i32>} : memref<128x128xf32, #tpu.memory_space<vmem>>, vector<128x16xf32>,
    %c0_102 = arith.constant 0 : index
    %c112_103 = arith.constant 112 : index
    %186 = vector.load %arg10[%c0_102, %c112_103] : memref<128x128xf32, #tpu.memory_space<vmem>>, vector<128x16xf32>
    tpu.vector_store %arg10[%c0_102, %c112_103], %157 {strides = array<i32>} : memref<128x128xf32, #tpu.memory_space<vmem>>, vector<128x16xf32>,
    %c0_104 = arith.constant 0 : index
    %c0_105 = arith.constant 0 : index
    %187 = vector.load %arg11[%c0_104, %c0_105] : memref<128x128xf32, #tpu.memory_space<vmem>>, vector<128x16xf32>
    tpu.vector_store %arg11[%c0_104, %c0_105], %171 {strides = array<i32>} : memref<128x128xf32, #tpu.memory_space<vmem>>, vector<128x16xf32>,
    %c0_106 = arith.constant 0 : index
    %c16_107 = arith.constant 16 : index
    %188 = vector.load %arg11[%c0_106, %c16_107] : memref<128x128xf32, #tpu.memory_space<vmem>>, vector<128x16xf32>
    tpu.vector_store %arg11[%c0_106, %c16_107], %172 {strides = array<i32>} : memref<128x128xf32, #tpu.memory_space<vmem>>, vector<128x16xf32>,
    %c0_108 = arith.constant 0 : index
    %c32_109 = arith.constant 32 : index
    %189 = vector.load %arg11[%c0_108, %c32_109] : memref<128x128xf32, #tpu.memory_space<vmem>>, vector<128x16xf32>
    tpu.vector_store %arg11[%c0_108, %c32_109], %173 {strides = array<i32>} : memref<128x128xf32, #tpu.memory_space<vmem>>, vector<128x16xf32>,
    %c0_110 = arith.constant 0 : index
    %c48_111 = arith.constant 48 : index
    %190 = vector.load %arg11[%c0_110, %c48_111] : memref<128x128xf32, #tpu.memory_space<vmem>>, vector<128x16xf32>
    tpu.vector_store %arg11[%c0_110, %c48_111], %174 {strides = array<i32>} : memref<128x128xf32, #tpu.memory_space<vmem>>, vector<128x16xf32>,
    %c0_112 = arith.constant 0 : index
    %c64_113 = arith.constant 64 : index
    %191 = vector.load %arg11[%c0_112, %c64_113] : memref<128x128xf32, #tpu.memory_space<vmem>>, vector<128x16xf32>
    tpu.vector_store %arg11[%c0_112, %c64_113], %175 {strides = array<i32>} : memref<128x128xf32, #tpu.memory_space<vmem>>, vector<128x16xf32>,
    %c0_114 = arith.constant 0 : index
    %c80_115 = arith.constant 80 : index
    %192 = vector.load %arg11[%c0_114, %c80_115] : memref<128x128xf32, #tpu.memory_space<vmem>>, vector<128x16xf32>
    tpu.vector_store %arg11[%c0_114, %c80_115], %176 {strides = array<i32>} : memref<128x128xf32, #tpu.memory_space<vmem>>, vector<128x16xf32>,
    %c0_116 = arith.constant 0 : index
    %c96_117 = arith.constant 96 : index
    %193 = vector.load %arg11[%c0_116, %c96_117] : memref<128x128xf32, #tpu.memory_space<vmem>>, vector<128x16xf32>
    tpu.vector_store %arg11[%c0_116, %c96_117], %177 {strides = array<i32>} : memref<128x128xf32, #tpu.memory_space<vmem>>, vector<128x16xf32>,
    %c0_118 = arith.constant 0 : index
    %c112_119 = arith.constant 112 : index
    %194 = vector.load %arg11[%c0_118, %c112_119] : memref<128x128xf32, #tpu.memory_space<vmem>>, vector<128x16xf32>
    tpu.vector_store %arg11[%c0_118, %c112_119], %178 {strides = array<i32>} : memref<128x128xf32, #tpu.memory_space<vmem>>, vector<128x16xf32>,
    %c0_120 = arith.constant 0 : index
    %c0_121 = arith.constant 0 : index
    %195 = vector.load %arg10[%c0_120, %c0_121] : memref<128x128xf32, #tpu.memory_space<vmem>>, vector<128x128xf32>
    %c1_122 = arith.constant 1 : index
    %c0_123 = arith.constant 0 : index
    %c0_124 = arith.constant 0 : index
    %196 = vector.load %arg4[%c1_122, %c0_123, %c0_124] : memref<4x128x128xf32, #tpu.memory_space<vmem>>, vector<1x128x128xf32>
    %197 = vector.shape_cast %196 : vector<1x128x128xf32> to vector<128x128xf32>
    %cst_125 = arith.constant dense<0.000000e+00> : vector<128x128xf32>
    %198 = tpu.matmul %195, %197, %cst_125 {dimension_numbers = #tpu.dot_dimension_numbers<[1], [0], [0], [1], [0, 0, 1, 1], [], []>} : vector<128x128xf32>, vector<128x128xf32>, vector<128x128xf32> -> vector<128x128xf32>
    %c0_126 = arith.constant 0 : index
    %c0_127 = arith.constant 0 : index
    %199 = vector.load %arg11[%c0_126, %c0_127] : memref<128x128xf32, #tpu.memory_space<vmem>>, vector<128x128xf32>
    %200 = arith.mulf %199, %198 : vector<128x128xf32>
    %cst_128 = arith.constant dense<0.000000e+00> : vector<128x16xf32>
    %201 = tpu.matmul %200, %4, %cst_128 {dimension_numbers = #tpu.dot_dimension_numbers<[1], [0], [0], [1], [0, 0, 1, 1], [], []>} : vector<128x128xf32>, vector<128x16xf32>, vector<128x16xf32> -> vector<128x16xf32>
    %c0_129 = arith.constant 0 : index
    %c16_130 = arith.constant 16 : index
    %202 = vector.load %arg9[%c0_129, %c16_130] : memref<128x88xf32, #tpu.memory_space<vmem>>, vector<128x16xf32>
    tpu.vector_store %arg9[%c0_129, %c16_130], %201 {strides = array<i32>} : memref<128x88xf32, #tpu.memory_space<vmem>>, vector<128x16xf32>,
    %c0_131 = arith.constant 0 : index
    %c0_132 = arith.constant 0 : index
    %203 = vector.load %arg9[%c0_131, %c0_132] : memref<128x88xf32, #tpu.memory_space<vmem>>, vector<128x88xf32>
    %204 = arith.truncf %203 : vector<128x88xf32> to vector<128x88xbf16>
    %c2 = arith.constant 2 : index
    %c0_133 = arith.constant 0 : index
    %c0_134 = arith.constant 0 : index
    %205 = vector.load %arg2[%c2, %c0_133, %c0_134] : memref<4x88x96xbf16, #tpu.memory_space<vmem>>, vector<1x88x96xbf16>
    %206 = vector.shape_cast %205 : vector<1x88x96xbf16> to vector<88x96xbf16>
    %cst_135 = arith.constant dense<0.000000e+00> : vector<128x96xf32>
    %207 = tpu.matmul %204, %206, %cst_135 {dimension_numbers = #tpu.dot_dimension_numbers<[1], [0], [0], [1], [0, 0, 1, 1], [], []>} : vector<128x88xbf16>, vector<88x96xbf16>, vector<128x96xf32> -> vector<128x96xf32>
    %c2_136 = arith.constant 2 : index
    %c0_137 = arith.constant 0 : index
    %c0_138 = arith.constant 0 : index
    %208 = vector.load %arg3[%c2_136, %c0_137, %c0_138] : memref<4x1x96xf32, #tpu.memory_space<vmem>>, vector<1x1x96xf32>
    %209 = vector.shape_cast %208 : vector<1x1x96xf32> to vector<1x96xf32>
    %210 = vector.broadcast %209 : vector<1x96xf32> to vector<128x96xf32>
    %211 = arith.subf %207, %210 : vector<128x96xf32>
    %212 = math.absf %211 : vector<128x96xf32>
    %cst_139 = arith.constant 0.000000e+00 : f32
    %213 = vector.broadcast %cst_139 : f32 to vector<128x96xf32>
    %214 = arith.cmpf oge, %211, %213 : vector<128x96xf32>
    %215 = arith.mulf %212, %212 : vector<128x96xf32>
    %cst_140 = arith.constant 8.000000e+00 : f32
    %216 = vector.broadcast %cst_140 : f32 to vector<128x96xf32>
    %217 = arith.subf %216, %215 : vector<128x96xf32>
    %cst_141 = arith.constant 0.000000e+00 : f32
    %218 = vector.broadcast %cst_141 : f32 to vector<128x96xf32>
    %219 = arith.maximumf %217, %218 : vector<128x96xf32>
    %220 = math.sqrt %219 : vector<128x96xf32>
    %221 = arith.addf %212, %220 : vector<128x96xf32>
    %cst_142 = arith.constant 5.000000e-01 : f32
    %222 = vector.broadcast %cst_142 : f32 to vector<128x96xf32>
    %223 = arith.mulf %221, %222 : vector<128x96xf32>
    %224 = arith.cmpf ole, %223, %212 : vector<128x96xf32>
    %cst_143 = arith.constant 2.000000e+00 : f32
    %225 = vector.broadcast %cst_143 : f32 to vector<128x96xf32>
    %226 = arith.select %224, %225, %223 : vector<128x96xi1>, vector<128x96xf32>
    %227 = arith.subf %226, %212 : vector<128x96xf32>
    %cst_144 = arith.constant 0.000000e+00 : f32
    %228 = vector.broadcast %cst_144 : f32 to vector<128x96xf32>
    %229 = arith.maximumf %227, %228 : vector<128x96xf32>
    %230 = arith.mulf %229, %229 : vector<128x96xf32>
    %cst_145 = arith.constant 2.500000e-01 : f32
    %231 = vector.broadcast %cst_145 : f32 to vector<128x96xf32>
    %232 = arith.mulf %231, %230 : vector<128x96xf32>
    %cst_146 = arith.constant 1.000000e+00 : f32
    %233 = vector.broadcast %cst_146 : f32 to vector<128x96xf32>
    %234 = arith.subf %233, %232 : vector<128x96xf32>
    %235 = arith.select %214, %234, %232 : vector<128x96xi1>, vector<128x96xf32>
    %236 = vector.extract_strided_slice %235 {offsets = [0, 0], sizes = [128, 16], strides = [1, 1]} : vector<128x96xf32> to vector<128x16xf32>
    %cst_147 = arith.constant 1.000000e+00 : f32
    %237 = vector.broadcast %cst_147 : f32 to vector<128x16xf32>
    %238 = arith.subf %237, %236 : vector<128x16xf32>
    %239 = vector.extract_strided_slice %235 {offsets = [0, 16], sizes = [128, 16], strides = [1, 1]} : vector<128x96xf32> to vector<128x16xf32>
    %cst_148 = arith.constant 1.000000e+00 : f32
    %240 = vector.broadcast %cst_148 : f32 to vector<128x16xf32>
    %241 = arith.subf %240, %239 : vector<128x16xf32>
    %242 = arith.mulf %236, %239 : vector<128x16xf32>
    %243 = arith.mulf %238, %239 : vector<128x16xf32>
    %244 = arith.mulf %236, %241 : vector<128x16xf32>
    %245 = arith.mulf %238, %241 : vector<128x16xf32>
    %246 = vector.extract_strided_slice %235 {offsets = [0, 32], sizes = [128, 16], strides = [1, 1]} : vector<128x96xf32> to vector<128x16xf32>
    %cst_149 = arith.constant 1.000000e+00 : f32
    %247 = vector.broadcast %cst_149 : f32 to vector<128x16xf32>
    %248 = arith.subf %247, %246 : vector<128x16xf32>
    %249 = arith.mulf %242, %246 : vector<128x16xf32>
    %250 = arith.mulf %243, %246 : vector<128x16xf32>
    %251 = arith.mulf %244, %246 : vector<128x16xf32>
    %252 = arith.mulf %245, %246 : vector<128x16xf32>
    %253 = arith.mulf %242, %248 : vector<128x16xf32>
    %254 = arith.mulf %243, %248 : vector<128x16xf32>
    %255 = arith.mulf %244, %248 : vector<128x16xf32>
    %256 = arith.mulf %245, %248 : vector<128x16xf32>
    %257 = vector.extract_strided_slice %235 {offsets = [0, 48], sizes = [128, 16], strides = [1, 1]} : vector<128x96xf32> to vector<128x16xf32>
    %cst_150 = arith.constant 1.000000e+00 : f32
    %258 = vector.broadcast %cst_150 : f32 to vector<128x16xf32>
    %259 = arith.subf %258, %257 : vector<128x16xf32>
    %260 = vector.extract_strided_slice %235 {offsets = [0, 64], sizes = [128, 16], strides = [1, 1]} : vector<128x96xf32> to vector<128x16xf32>
    %cst_151 = arith.constant 1.000000e+00 : f32
    %261 = vector.broadcast %cst_151 : f32 to vector<128x16xf32>
    %262 = arith.subf %261, %260 : vector<128x16xf32>
    %263 = arith.mulf %257, %260 : vector<128x16xf32>
    %264 = arith.mulf %259, %260 : vector<128x16xf32>
    %265 = arith.mulf %257, %262 : vector<128x16xf32>
    %266 = arith.mulf %259, %262 : vector<128x16xf32>
    %267 = vector.extract_strided_slice %235 {offsets = [0, 80], sizes = [128, 16], strides = [1, 1]} : vector<128x96xf32> to vector<128x16xf32>
    %cst_152 = arith.constant 1.000000e+00 : f32
    %268 = vector.broadcast %cst_152 : f32 to vector<128x16xf32>
    %269 = arith.subf %268, %267 : vector<128x16xf32>
    %270 = arith.mulf %263, %267 : vector<128x16xf32>
    %271 = arith.mulf %264, %267 : vector<128x16xf32>
    %272 = arith.mulf %265, %267 : vector<128x16xf32>
    %273 = arith.mulf %266, %267 : vector<128x16xf32>
    %274 = arith.mulf %263, %269 : vector<128x16xf32>
    %275 = arith.mulf %264, %269 : vector<128x16xf32>
    %276 = arith.mulf %265, %269 : vector<128x16xf32>
    %277 = arith.mulf %266, %269 : vector<128x16xf32>
    %c0_153 = arith.constant 0 : index
    %c0_154 = arith.constant 0 : index
    %278 = vector.load %arg10[%c0_153, %c0_154] : memref<128x128xf32, #tpu.memory_space<vmem>>, vector<128x16xf32>
    tpu.vector_store %arg10[%c0_153, %c0_154], %249 {strides = array<i32>} : memref<128x128xf32, #tpu.memory_space<vmem>>, vector<128x16xf32>,
    %c0_155 = arith.constant 0 : index
    %c16_156 = arith.constant 16 : index
    %279 = vector.load %arg10[%c0_155, %c16_156] : memref<128x128xf32, #tpu.memory_space<vmem>>, vector<128x16xf32>
    tpu.vector_store %arg10[%c0_155, %c16_156], %250 {strides = array<i32>} : memref<128x128xf32, #tpu.memory_space<vmem>>, vector<128x16xf32>,
    %c0_157 = arith.constant 0 : index
    %c32_158 = arith.constant 32 : index
    %280 = vector.load %arg10[%c0_157, %c32_158] : memref<128x128xf32, #tpu.memory_space<vmem>>, vector<128x16xf32>
    tpu.vector_store %arg10[%c0_157, %c32_158], %251 {strides = array<i32>} : memref<128x128xf32, #tpu.memory_space<vmem>>, vector<128x16xf32>,
    %c0_159 = arith.constant 0 : index
    %c48_160 = arith.constant 48 : index
    %281 = vector.load %arg10[%c0_159, %c48_160] : memref<128x128xf32, #tpu.memory_space<vmem>>, vector<128x16xf32>
    tpu.vector_store %arg10[%c0_159, %c48_160], %252 {strides = array<i32>} : memref<128x128xf32, #tpu.memory_space<vmem>>, vector<128x16xf32>,
    %c0_161 = arith.constant 0 : index
    %c64_162 = arith.constant 64 : index
    %282 = vector.load %arg10[%c0_161, %c64_162] : memref<128x128xf32, #tpu.memory_space<vmem>>, vector<128x16xf32>
    tpu.vector_store %arg10[%c0_161, %c64_162], %253 {strides = array<i32>} : memref<128x128xf32, #tpu.memory_space<vmem>>, vector<128x16xf32>,
    %c0_163 = arith.constant 0 : index
    %c80_164 = arith.constant 80 : index
    %283 = vector.load %arg10[%c0_163, %c80_164] : memref<128x128xf32, #tpu.memory_space<vmem>>, vector<128x16xf32>
    tpu.vector_store %arg10[%c0_163, %c80_164], %254 {strides = array<i32>} : memref<128x128xf32, #tpu.memory_space<vmem>>, vector<128x16xf32>,
    %c0_165 = arith.constant 0 : index
    %c96_166 = arith.constant 96 : index
    %284 = vector.load %arg10[%c0_165, %c96_166] : memref<128x128xf32, #tpu.memory_space<vmem>>, vector<128x16xf32>
    tpu.vector_store %arg10[%c0_165, %c96_166], %255 {strides = array<i32>} : memref<128x128xf32, #tpu.memory_space<vmem>>, vector<128x16xf32>,
    %c0_167 = arith.constant 0 : index
    %c112_168 = arith.constant 112 : index
    %285 = vector.load %arg10[%c0_167, %c112_168] : memref<128x128xf32, #tpu.memory_space<vmem>>, vector<128x16xf32>
    tpu.vector_store %arg10[%c0_167, %c112_168], %256 {strides = array<i32>} : memref<128x128xf32, #tpu.memory_space<vmem>>, vector<128x16xf32>,
    %c0_169 = arith.constant 0 : index
    %c0_170 = arith.constant 0 : index
    %286 = vector.load %arg11[%c0_169, %c0_170] : memref<128x128xf32, #tpu.memory_space<vmem>>, vector<128x16xf32>
    tpu.vector_store %arg11[%c0_169, %c0_170], %270 {strides = array<i32>} : memref<128x128xf32, #tpu.memory_space<vmem>>, vector<128x16xf32>,
    %c0_171 = arith.constant 0 : index
    %c16_172 = arith.constant 16 : index
    %287 = vector.load %arg11[%c0_171, %c16_172] : memref<128x128xf32, #tpu.memory_space<vmem>>, vector<128x16xf32>
    tpu.vector_store %arg11[%c0_171, %c16_172], %271 {strides = array<i32>} : memref<128x128xf32, #tpu.memory_space<vmem>>, vector<128x16xf32>,
    %c0_173 = arith.constant 0 : index
    %c32_174 = arith.constant 32 : index
    %288 = vector.load %arg11[%c0_173, %c32_174] : memref<128x128xf32, #tpu.memory_space<vmem>>, vector<128x16xf32>
    tpu.vector_store %arg11[%c0_173, %c32_174], %272 {strides = array<i32>} : memref<128x128xf32, #tpu.memory_space<vmem>>, vector<128x16xf32>,
    %c0_175 = arith.constant 0 : index
    %c48_176 = arith.constant 48 : index
    %289 = vector.load %arg11[%c0_175, %c48_176] : memref<128x128xf32, #tpu.memory_space<vmem>>, vector<128x16xf32>
    tpu.vector_store %arg11[%c0_175, %c48_176], %273 {strides = array<i32>} : memref<128x128xf32, #tpu.memory_space<vmem>>, vector<128x16xf32>,
    %c0_177 = arith.constant 0 : index
    %c64_178 = arith.constant 64 : index
    %290 = vector.load %arg11[%c0_177, %c64_178] : memref<128x128xf32, #tpu.memory_space<vmem>>, vector<128x16xf32>
    tpu.vector_store %arg11[%c0_177, %c64_178], %274 {strides = array<i32>} : memref<128x128xf32, #tpu.memory_space<vmem>>, vector<128x16xf32>,
    %c0_179 = arith.constant 0 : index
    %c80_180 = arith.constant 80 : index
    %291 = vector.load %arg11[%c0_179, %c80_180] : memref<128x128xf32, #tpu.memory_space<vmem>>, vector<128x16xf32>
    tpu.vector_store %arg11[%c0_179, %c80_180], %275 {strides = array<i32>} : memref<128x128xf32, #tpu.memory_space<vmem>>, vector<128x16xf32>,
    %c0_181 = arith.constant 0 : index
    %c96_182 = arith.constant 96 : index
    %292 = vector.load %arg11[%c0_181, %c96_182] : memref<128x128xf32, #tpu.memory_space<vmem>>, vector<128x16xf32>
    tpu.vector_store %arg11[%c0_181, %c96_182], %276 {strides = array<i32>} : memref<128x128xf32, #tpu.memory_space<vmem>>, vector<128x16xf32>,
    %c0_183 = arith.constant 0 : index
    %c112_184 = arith.constant 112 : index
    %293 = vector.load %arg11[%c0_183, %c112_184] : memref<128x128xf32, #tpu.memory_space<vmem>>, vector<128x16xf32>
    tpu.vector_store %arg11[%c0_183, %c112_184], %277 {strides = array<i32>} : memref<128x128xf32, #tpu.memory_space<vmem>>, vector<128x16xf32>,
    %c0_185 = arith.constant 0 : index
    %c0_186 = arith.constant 0 : index
    %294 = vector.load %arg10[%c0_185, %c0_186] : memref<128x128xf32, #tpu.memory_space<vmem>>, vector<128x128xf32>
    %c2_187 = arith.constant 2 : index
    %c0_188 = arith.constant 0 : index
    %c0_189 = arith.constant 0 : index
    %295 = vector.load %arg4[%c2_187, %c0_188, %c0_189] : memref<4x128x128xf32, #tpu.memory_space<vmem>>, vector<1x128x128xf32>
    %296 = vector.shape_cast %295 : vector<1x128x128xf32> to vector<128x128xf32>
    %cst_190 = arith.constant dense<0.000000e+00> : vector<128x128xf32>
    %297 = tpu.matmul %294, %296, %cst_190 {dimension_numbers = #tpu.dot_dimension_numbers<[1], [0], [0], [1], [0, 0, 1, 1], [], []>} : vector<128x128xf32>, vector<128x128xf32>, vector<128x128xf32> -> vector<128x128xf32>
    %c0_191 = arith.constant 0 : index
    %c0_192 = arith.constant 0 : index
    %298 = vector.load %arg11[%c0_191, %c0_192] : memref<128x128xf32, #tpu.memory_space<vmem>>, vector<128x128xf32>
    %299 = arith.mulf %298, %297 : vector<128x128xf32>
    %cst_193 = arith.constant dense<0.000000e+00> : vector<128x16xf32>
    %300 = tpu.matmul %299, %4, %cst_193 {dimension_numbers = #tpu.dot_dimension_numbers<[1], [0], [0], [1], [0, 0, 1, 1], [], []>} : vector<128x128xf32>, vector<128x16xf32>, vector<128x16xf32> -> vector<128x16xf32>
    %c0_194 = arith.constant 0 : index
    %c32_195 = arith.constant 32 : index
    %301 = vector.load %arg9[%c0_194, %c32_195] : memref<128x88xf32, #tpu.memory_space<vmem>>, vector<128x16xf32>
    tpu.vector_store %arg9[%c0_194, %c32_195], %300 {strides = array<i32>} : memref<128x88xf32, #tpu.memory_space<vmem>>, vector<128x16xf32>,
    %c0_196 = arith.constant 0 : index
    %c0_197 = arith.constant 0 : index
    %302 = vector.load %arg9[%c0_196, %c0_197] : memref<128x88xf32, #tpu.memory_space<vmem>>, vector<128x88xf32>
    %303 = arith.truncf %302 : vector<128x88xf32> to vector<128x88xbf16>
    %c3 = arith.constant 3 : index
    %c0_198 = arith.constant 0 : index
    %c0_199 = arith.constant 0 : index
    %304 = vector.load %arg2[%c3, %c0_198, %c0_199] : memref<4x88x96xbf16, #tpu.memory_space<vmem>>, vector<1x88x96xbf16>
    %305 = vector.shape_cast %304 : vector<1x88x96xbf16> to vector<88x96xbf16>
    %cst_200 = arith.constant dense<0.000000e+00> : vector<128x96xf32>
    %306 = tpu.matmul %303, %305, %cst_200 {dimension_numbers = #tpu.dot_dimension_numbers<[1], [0], [0], [1], [0, 0, 1, 1], [], []>} : vector<128x88xbf16>, vector<88x96xbf16>, vector<128x96xf32> -> vector<128x96xf32>
    %c3_201 = arith.constant 3 : index
    %c0_202 = arith.constant 0 : index
    %c0_203 = arith.constant 0 : index
    %307 = vector.load %arg3[%c3_201, %c0_202, %c0_203] : memref<4x1x96xf32, #tpu.memory_space<vmem>>, vector<1x1x96xf32>
    %308 = vector.shape_cast %307 : vector<1x1x96xf32> to vector<1x96xf32>
    %309 = vector.broadcast %308 : vector<1x96xf32> to vector<128x96xf32>
    %310 = arith.subf %306, %309 : vector<128x96xf32>
    %311 = math.absf %310 : vector<128x96xf32>
    %cst_204 = arith.constant 0.000000e+00 : f32
    %312 = vector.broadcast %cst_204 : f32 to vector<128x96xf32>
    %313 = arith.cmpf oge, %310, %312 : vector<128x96xf32>
    %314 = arith.mulf %311, %311 : vector<128x96xf32>
    %cst_205 = arith.constant 8.000000e+00 : f32
    %315 = vector.broadcast %cst_205 : f32 to vector<128x96xf32>
    %316 = arith.subf %315, %314 : vector<128x96xf32>
    %cst_206 = arith.constant 0.000000e+00 : f32
    %317 = vector.broadcast %cst_206 : f32 to vector<128x96xf32>
    %318 = arith.maximumf %316, %317 : vector<128x96xf32>
    %319 = math.sqrt %318 : vector<128x96xf32>
    %320 = arith.addf %311, %319 : vector<128x96xf32>
    %cst_207 = arith.constant 5.000000e-01 : f32
    %321 = vector.broadcast %cst_207 : f32 to vector<128x96xf32>
    %322 = arith.mulf %320, %321 : vector<128x96xf32>
    %323 = arith.cmpf ole, %322, %311 : vector<128x96xf32>
    %cst_208 = arith.constant 2.000000e+00 : f32
    %324 = vector.broadcast %cst_208 : f32 to vector<128x96xf32>
    %325 = arith.select %323, %324, %322 : vector<128x96xi1>, vector<128x96xf32>
    %326 = arith.subf %325, %311 : vector<128x96xf32>
    %cst_209 = arith.constant 0.000000e+00 : f32
    %327 = vector.broadcast %cst_209 : f32 to vector<128x96xf32>
    %328 = arith.maximumf %326, %327 : vector<128x96xf32>
    %329 = arith.mulf %328, %328 : vector<128x96xf32>
    %cst_210 = arith.constant 2.500000e-01 : f32
    %330 = vector.broadcast %cst_210 : f32 to vector<128x96xf32>
    %331 = arith.mulf %330, %329 : vector<128x96xf32>
    %cst_211 = arith.constant 1.000000e+00 : f32
    %332 = vector.broadcast %cst_211 : f32 to vector<128x96xf32>
    %333 = arith.subf %332, %331 : vector<128x96xf32>
    %334 = arith.select %313, %333, %331 : vector<128x96xi1>, vector<128x96xf32>
    %335 = vector.extract_strided_slice %334 {offsets = [0, 0], sizes = [128, 16], strides = [1, 1]} : vector<128x96xf32> to vector<128x16xf32>
    %cst_212 = arith.constant 1.000000e+00 : f32
    %336 = vector.broadcast %cst_212 : f32 to vector<128x16xf32>
    %337 = arith.subf %336, %335 : vector<128x16xf32>
    %338 = vector.extract_strided_slice %334 {offsets = [0, 16], sizes = [128, 16], strides = [1, 1]} : vector<128x96xf32> to vector<128x16xf32>
    %cst_213 = arith.constant 1.000000e+00 : f32
    %339 = vector.broadcast %cst_213 : f32 to vector<128x16xf32>
    %340 = arith.subf %339, %338 : vector<128x16xf32>
    %341 = arith.mulf %335, %338 : vector<128x16xf32>
    %342 = arith.mulf %337, %338 : vector<128x16xf32>
    %343 = arith.mulf %335, %340 : vector<128x16xf32>
    %344 = arith.mulf %337, %340 : vector<128x16xf32>
    %345 = vector.extract_strided_slice %334 {offsets = [0, 32], sizes = [128, 16], strides = [1, 1]} : vector<128x96xf32> to vector<128x16xf32>
    %cst_214 = arith.constant 1.000000e+00 : f32
    %346 = vector.broadcast %cst_214 : f32 to vector<128x16xf32>
    %347 = arith.subf %346, %345 : vector<128x16xf32>
    %348 = arith.mulf %341, %345 : vector<128x16xf32>
    %349 = arith.mulf %342, %345 : vector<128x16xf32>
    %350 = arith.mulf %343, %345 : vector<128x16xf32>
    %351 = arith.mulf %344, %345 : vector<128x16xf32>
    %352 = arith.mulf %341, %347 : vector<128x16xf32>
    %353 = arith.mulf %342, %347 : vector<128x16xf32>
    %354 = arith.mulf %343, %347 : vector<128x16xf32>
    %355 = arith.mulf %344, %347 : vector<128x16xf32>
    %356 = vector.extract_strided_slice %334 {offsets = [0, 48], sizes = [128, 16], strides = [1, 1]} : vector<128x96xf32> to vector<128x16xf32>
    %cst_215 = arith.constant 1.000000e+00 : f32
    %357 = vector.broadcast %cst_215 : f32 to vector<128x16xf32>
    %358 = arith.subf %357, %356 : vector<128x16xf32>
    %359 = vector.extract_strided_slice %334 {offsets = [0, 64], sizes = [128, 16], strides = [1, 1]} : vector<128x96xf32> to vector<128x16xf32>
    %cst_216 = arith.constant 1.000000e+00 : f32
    %360 = vector.broadcast %cst_216 : f32 to vector<128x16xf32>
    %361 = arith.subf %360, %359 : vector<128x16xf32>
    %362 = arith.mulf %356, %359 : vector<128x16xf32>
    %363 = arith.mulf %358, %359 : vector<128x16xf32>
    %364 = arith.mulf %356, %361 : vector<128x16xf32>
    %365 = arith.mulf %358, %361 : vector<128x16xf32>
    %366 = vector.extract_strided_slice %334 {offsets = [0, 80], sizes = [128, 16], strides = [1, 1]} : vector<128x96xf32> to vector<128x16xf32>
    %cst_217 = arith.constant 1.000000e+00 : f32
    %367 = vector.broadcast %cst_217 : f32 to vector<128x16xf32>
    %368 = arith.subf %367, %366 : vector<128x16xf32>
    %369 = arith.mulf %362, %366 : vector<128x16xf32>
    %370 = arith.mulf %363, %366 : vector<128x16xf32>
    %371 = arith.mulf %364, %366 : vector<128x16xf32>
    %372 = arith.mulf %365, %366 : vector<128x16xf32>
    %373 = arith.mulf %362, %368 : vector<128x16xf32>
    %374 = arith.mulf %363, %368 : vector<128x16xf32>
    %375 = arith.mulf %364, %368 : vector<128x16xf32>
    %376 = arith.mulf %365, %368 : vector<128x16xf32>
    %c0_218 = arith.constant 0 : index
    %c0_219 = arith.constant 0 : index
    %377 = vector.load %arg10[%c0_218, %c0_219] : memref<128x128xf32, #tpu.memory_space<vmem>>, vector<128x16xf32>
    tpu.vector_store %arg10[%c0_218, %c0_219], %348 {strides = array<i32>} : memref<128x128xf32, #tpu.memory_space<vmem>>, vector<128x16xf32>,
    %c0_220 = arith.constant 0 : index
    %c16_221 = arith.constant 16 : index
    %378 = vector.load %arg10[%c0_220, %c16_221] : memref<128x128xf32, #tpu.memory_space<vmem>>, vector<128x16xf32>
    tpu.vector_store %arg10[%c0_220, %c16_221], %349 {strides = array<i32>} : memref<128x128xf32, #tpu.memory_space<vmem>>, vector<128x16xf32>,
    %c0_222 = arith.constant 0 : index
    %c32_223 = arith.constant 32 : index
    %379 = vector.load %arg10[%c0_222, %c32_223] : memref<128x128xf32, #tpu.memory_space<vmem>>, vector<128x16xf32>
    tpu.vector_store %arg10[%c0_222, %c32_223], %350 {strides = array<i32>} : memref<128x128xf32, #tpu.memory_space<vmem>>, vector<128x16xf32>,
    %c0_224 = arith.constant 0 : index
    %c48_225 = arith.constant 48 : index
    %380 = vector.load %arg10[%c0_224, %c48_225] : memref<128x128xf32, #tpu.memory_space<vmem>>, vector<128x16xf32>
    tpu.vector_store %arg10[%c0_224, %c48_225], %351 {strides = array<i32>} : memref<128x128xf32, #tpu.memory_space<vmem>>, vector<128x16xf32>,
    %c0_226 = arith.constant 0 : index
    %c64_227 = arith.constant 64 : index
    %381 = vector.load %arg10[%c0_226, %c64_227] : memref<128x128xf32, #tpu.memory_space<vmem>>, vector<128x16xf32>
    tpu.vector_store %arg10[%c0_226, %c64_227], %352 {strides = array<i32>} : memref<128x128xf32, #tpu.memory_space<vmem>>, vector<128x16xf32>,
    %c0_228 = arith.constant 0 : index
    %c80_229 = arith.constant 80 : index
    %382 = vector.load %arg10[%c0_228, %c80_229] : memref<128x128xf32, #tpu.memory_space<vmem>>, vector<128x16xf32>
    tpu.vector_store %arg10[%c0_228, %c80_229], %353 {strides = array<i32>} : memref<128x128xf32, #tpu.memory_space<vmem>>, vector<128x16xf32>,
    %c0_230 = arith.constant 0 : index
    %c96_231 = arith.constant 96 : index
    %383 = vector.load %arg10[%c0_230, %c96_231] : memref<128x128xf32, #tpu.memory_space<vmem>>, vector<128x16xf32>
    tpu.vector_store %arg10[%c0_230, %c96_231], %354 {strides = array<i32>} : memref<128x128xf32, #tpu.memory_space<vmem>>, vector<128x16xf32>,
    %c0_232 = arith.constant 0 : index
    %c112_233 = arith.constant 112 : index
    %384 = vector.load %arg10[%c0_232, %c112_233] : memref<128x128xf32, #tpu.memory_space<vmem>>, vector<128x16xf32>
    tpu.vector_store %arg10[%c0_232, %c112_233], %355 {strides = array<i32>} : memref<128x128xf32, #tpu.memory_space<vmem>>, vector<128x16xf32>,
    %c0_234 = arith.constant 0 : index
    %c0_235 = arith.constant 0 : index
    %385 = vector.load %arg11[%c0_234, %c0_235] : memref<128x128xf32, #tpu.memory_space<vmem>>, vector<128x16xf32>
    tpu.vector_store %arg11[%c0_234, %c0_235], %369 {strides = array<i32>} : memref<128x128xf32, #tpu.memory_space<vmem>>, vector<128x16xf32>,
    %c0_236 = arith.constant 0 : index
    %c16_237 = arith.constant 16 : index
    %386 = vector.load %arg11[%c0_236, %c16_237] : memref<128x128xf32, #tpu.memory_space<vmem>>, vector<128x16xf32>
    tpu.vector_store %arg11[%c0_236, %c16_237], %370 {strides = array<i32>} : memref<128x128xf32, #tpu.memory_space<vmem>>, vector<128x16xf32>,
    %c0_238 = arith.constant 0 : index
    %c32_239 = arith.constant 32 : index
    %387 = vector.load %arg11[%c0_238, %c32_239] : memref<128x128xf32, #tpu.memory_space<vmem>>, vector<128x16xf32>
    tpu.vector_store %arg11[%c0_238, %c32_239], %371 {strides = array<i32>} : memref<128x128xf32, #tpu.memory_space<vmem>>, vector<128x16xf32>,
    %c0_240 = arith.constant 0 : index
    %c48_241 = arith.constant 48 : index
    %388 = vector.load %arg11[%c0_240, %c48_241] : memref<128x128xf32, #tpu.memory_space<vmem>>, vector<128x16xf32>
    tpu.vector_store %arg11[%c0_240, %c48_241], %372 {strides = array<i32>} : memref<128x128xf32, #tpu.memory_space<vmem>>, vector<128x16xf32>,
    %c0_242 = arith.constant 0 : index
    %c64_243 = arith.constant 64 : index
    %389 = vector.load %arg11[%c0_242, %c64_243] : memref<128x128xf32, #tpu.memory_space<vmem>>, vector<128x16xf32>
    tpu.vector_store %arg11[%c0_242, %c64_243], %373 {strides = array<i32>} : memref<128x128xf32, #tpu.memory_space<vmem>>, vector<128x16xf32>,
    %c0_244 = arith.constant 0 : index
    %c80_245 = arith.constant 80 : index
    %390 = vector.load %arg11[%c0_244, %c80_245] : memref<128x128xf32, #tpu.memory_space<vmem>>, vector<128x16xf32>
    tpu.vector_store %arg11[%c0_244, %c80_245], %374 {strides = array<i32>} : memref<128x128xf32, #tpu.memory_space<vmem>>, vector<128x16xf32>,
    %c0_246 = arith.constant 0 : index
    %c96_247 = arith.constant 96 : index
    %391 = vector.load %arg11[%c0_246, %c96_247] : memref<128x128xf32, #tpu.memory_space<vmem>>, vector<128x16xf32>
    tpu.vector_store %arg11[%c0_246, %c96_247], %375 {strides = array<i32>} : memref<128x128xf32, #tpu.memory_space<vmem>>, vector<128x16xf32>,
    %c0_248 = arith.constant 0 : index
    %c112_249 = arith.constant 112 : index
    %392 = vector.load %arg11[%c0_248, %c112_249] : memref<128x128xf32, #tpu.memory_space<vmem>>, vector<128x16xf32>
    tpu.vector_store %arg11[%c0_248, %c112_249], %376 {strides = array<i32>} : memref<128x128xf32, #tpu.memory_space<vmem>>, vector<128x16xf32>,
    %c0_250 = arith.constant 0 : index
    %c0_251 = arith.constant 0 : index
    %393 = vector.load %arg10[%c0_250, %c0_251] : memref<128x128xf32, #tpu.memory_space<vmem>>, vector<128x128xf32>
    %c3_252 = arith.constant 3 : index
    %c0_253 = arith.constant 0 : index
    %c0_254 = arith.constant 0 : index
    %394 = vector.load %arg4[%c3_252, %c0_253, %c0_254] : memref<4x128x128xf32, #tpu.memory_space<vmem>>, vector<1x128x128xf32>
    %395 = vector.shape_cast %394 : vector<1x128x128xf32> to vector<128x128xf32>
    %cst_255 = arith.constant dense<0.000000e+00> : vector<128x128xf32>
    %396 = tpu.matmul %393, %395, %cst_255 {dimension_numbers = #tpu.dot_dimension_numbers<[1], [0], [0], [1], [0, 0, 1, 1], [], []>} : vector<128x128xf32>, vector<128x128xf32>, vector<128x128xf32> -> vector<128x128xf32>
    %c0_256 = arith.constant 0 : index
    %c0_257 = arith.constant 0 : index
    %397 = vector.load %arg11[%c0_256, %c0_257] : memref<128x128xf32, #tpu.memory_space<vmem>>, vector<128x128xf32>
    %398 = arith.mulf %397, %396 : vector<128x128xf32>
    %cst_258 = arith.constant dense<0.000000e+00> : vector<128x16xf32>
    %399 = tpu.matmul %398, %4, %cst_258 {dimension_numbers = #tpu.dot_dimension_numbers<[1], [0], [0], [1], [0, 0, 1, 1], [], []>} : vector<128x128xf32>, vector<128x16xf32>, vector<128x16xf32> -> vector<128x16xf32>
    %c0_259 = arith.constant 0 : index
    %c48_260 = arith.constant 48 : index
    %400 = vector.load %arg9[%c0_259, %c48_260] : memref<128x88xf32, #tpu.memory_space<vmem>>, vector<128x16xf32>
    tpu.vector_store %arg9[%c0_259, %c48_260], %399 {strides = array<i32>} : memref<128x88xf32, #tpu.memory_space<vmem>>, vector<128x16xf32>,
    %c0_261 = arith.constant 0 : index
    %c0_262 = arith.constant 0 : index
    %401 = vector.load %arg9[%c0_261, %c0_262] : memref<128x88xf32, #tpu.memory_space<vmem>>, vector<128x64xf32>
    %402 = arith.truncf %401 : vector<128x64xf32> to vector<128x64xbf16>
    %c0_263 = arith.constant 0 : index
    %c0_264 = arith.constant 0 : index
    %403 = vector.load %arg6[%c0_263, %c0_264] : memref<64x8xbf16, #tpu.memory_space<vmem>>, vector<64x8xbf16>
    %cst_265 = arith.constant dense<0.000000e+00> : vector<128x8xf32>
    %404 = tpu.matmul %402, %403, %cst_265 {dimension_numbers = #tpu.dot_dimension_numbers<[1], [0], [0], [1], [0, 0, 1, 1], [], []>} : vector<128x64xbf16>, vector<64x8xbf16>, vector<128x8xf32> -> vector<128x8xf32>
    %c0_266 = arith.constant 0 : index
    %c0_267 = arith.constant 0 : index
    %405 = vector.load %arg7[%c0_266, %c0_267] : memref<1x8xf32, #tpu.memory_space<vmem>>, vector<1x8xf32>
    %406 = vector.broadcast %405 : vector<1x8xf32> to vector<128x8xf32>
    %407 = arith.addf %404, %406 : vector<128x8xf32>
    %c0_268 = arith.constant 0 : index
    %c0_269 = arith.constant 0 : index
    %408 = vector.load %arg8[%c0_268, %c0_269] : memref<128x8xf32, #tpu.memory_space<vmem>>, vector<128x8xf32>
    tpu.vector_store %arg8[%c0_268, %c0_269], %407 {strides = array<i32>} : memref<128x8xf32, #tpu.memory_space<vmem>>, vector<128x8xf32>,
    return
  }
  func.func @transform_0(%arg0: i32) -> (i32, i32) {
    %c0_i32 = arith.constant 0 : i32
    %c0_i32_0 = arith.constant 0 : i32
    return %arg0, %c0_i32 : i32, i32
  }
  func.func @transform_1(%arg0: i32) -> (i32, i32, i32) {
    %c0_i32 = arith.constant 0 : i32
    %c0_i32_0 = arith.constant 0 : i32
    %c0_i32_1 = arith.constant 0 : i32
    %c0_i32_2 = arith.constant 0 : i32
    return %c0_i32, %c0_i32_0, %c0_i32_1 : i32, i32, i32
  }
  func.func @transform_2(%arg0: i32) -> (i32, i32, i32) {
    %c0_i32 = arith.constant 0 : i32
    %c0_i32_0 = arith.constant 0 : i32
    %c0_i32_1 = arith.constant 0 : i32
    %c0_i32_2 = arith.constant 0 : i32
    return %c0_i32, %c0_i32_0, %c0_i32_1 : i32, i32, i32
  }
  func.func @transform_3(%arg0: i32) -> (i32, i32, i32) {
    %c0_i32 = arith.constant 0 : i32
    %c0_i32_0 = arith.constant 0 : i32
    %c0_i32_1 = arith.constant 0 : i32
    %c0_i32_2 = arith.constant 0 : i32
    return %c0_i32, %c0_i32_0, %c0_i32_1 : i32, i32, i32
  }
  func.func @transform_4(%arg0: i32) -> (i32, i32) {
    %c0_i32 = arith.constant 0 : i32
    %c0_i32_0 = arith.constant 0 : i32
    %c0_i32_1 = arith.constant 0 : i32
    return %c0_i32, %c0_i32_0 : i32, i32
  }
  func.func @transform_5(%arg0: i32) -> (i32, i32) {
    %c0_i32 = arith.constant 0 : i32
    %c0_i32_0 = arith.constant 0 : i32
    %c0_i32_1 = arith.constant 0 : i32
    return %c0_i32, %c0_i32_0 : i32, i32
  }
  func.func @transform_6(%arg0: i32) -> (i32, i32) {
    %c0_i32 = arith.constant 0 : i32
    %c0_i32_0 = arith.constant 0 : i32
    %c0_i32_1 = arith.constant 0 : i32
    return %c0_i32, %c0_i32_0 : i32, i32
  }
  func.func @transform_7(%arg0: i32) -> (i32, i32) {
    %c0_i32 = arith.constant 0 : i32
    %c0_i32_0 = arith.constant 0 : i32
    return %arg0, %c0_i32 : i32, i32
  }
}

</mosaic_0001>

<llo_original>
// kernel: integer_pow.22
$region0: #{integer_pow.22}
  #allocation0 [shape = 's32[1]{0}', space=sflag, size = 0x4, scoped, tag = 'scoped memory for integer_pow.22']
  %s0 = inlined_call_operand.vmem [shape: f32[72,16,6], index: 0, kind: input, shape index: {}, may-alias: {0,1}]
  %s1 = inlined_call_operand.vmem [shape: f32[72,16,6], index: 1, kind: input, shape index: {}, may-alias: {0,1}]
  %s2 = inlined_call_operand.vmem [shape: f32[72,16,6], index: 2, kind: output, shape index: {}]
  %v3 = vld [vmem:[%s0] sm:$0xff]
  %v4 = vld [vmem:[%s1] sm:$0xff]
  %5 = xla_tuple %v3, %v4
  %6 = xla_tuple %5
  %v7 = vmul.f32 %v3, %v4
  %8 = xla_tuple %v7
  %9 = vst [vmem:[%s2] sm:$0xff] %v7
  %s10 = scalar_lea.vmem %s0, 16
  %v11 = vld [vmem:[%s10] sm:$0xff]
  %s12 = scalar_lea.vmem %s1, 16
  %v13 = vld [vmem:[%s12] sm:$0xff]
  %14 = xla_tuple %v11, %v13
  %15 = xla_tuple %14
  %v16 = vmul.f32 %v11, %v13
  %17 = xla_tuple %v16
  %s18 = scalar_lea.vmem %s2, 16
  %19 = vst [vmem:[%s18] sm:$0xff] %v16
  %s20 = scalar_lea.vmem %s0, 32
  %v21 = vld [vmem:[%s20] sm:$0xff]
  %s22 = scalar_lea.vmem %s1, 32
  %v23 = vld [vmem:[%s22] sm:$0xff]
  %24 = xla_tuple %v21, %v23
  %25 = xla_tuple %24
  %v26 = vmul.f32 %v21, %v23
  %27 = xla_tuple %v26
  %s28 = scalar_lea.vmem %s2, 32
  %29 = vst [vmem:[%s28] sm:$0xff] %v26
  %s30 = scalar_lea.vmem %s0, 48
  %v31 = vld [vmem:[%s30] sm:$0xff]
  %s32 = scalar_lea.vmem %s1, 48
  %v33 = vld [vmem:[%s32] sm:$0xff]
  %34 = xla_tuple %v31, %v33
  %35 = xla_tuple %34
  %v36 = vmul.f32 %v31, %v33
  %37 = xla_tuple %v36
  %s38 = scalar_lea.vmem %s2, 48
  %39 = vst [vmem:[%s38] sm:$0xff] %v36
  %s40 = scalar_lea.vmem %s0, 64
  %v41 = vld [vmem:[%s40] sm:$0xff]
  %s42 = scalar_lea.vmem %s1, 64
  %v43 = vld [vmem:[%s42] sm:$0xff]
  %44 = xla_tuple %v41, %v43
  %45 = xla_tuple %44
  %v46 = vmul.f32 %v41, %v43
  %47 = xla_tuple %v46
  %s48 = scalar_lea.vmem %s2, 64
  %49 = vst [vmem:[%s48] sm:$0xff] %v46
  %s50 = scalar_lea.vmem %s0, 80
  %v51 = vld [vmem:[%s50] sm:$0xff]
  %s52 = scalar_lea.vmem %s1, 80
  %v53 = vld [vmem:[%s52] sm:$0xff]
  %54 = xla_tuple %v51, %v53
  %55 = xla_tuple %54
  %v56 = vmul.f32 %v51, %v53
  %57 = xla_tuple %v56
  %s58 = scalar_lea.vmem %s2, 80
  %59 = vst [vmem:[%s58] sm:$0xff] %v56
  %s60 = scalar_lea.vmem %s0, 8
  %v61 = vld [vmem:[%s60] sm:$0xff]
  %s62 = scalar_lea.vmem %s1, 8
  %v63 = vld [vmem:[%s62] sm:$0xff]
  %64 = xla_tuple %v61, %v63
  %65 = xla_tuple %64
  %v66 = vmul.f32 %v61, %v63
  %67 = xla_tuple %v66
  %s68 = scalar_lea.vmem %s2, 8
  %69 = vst [vmem:[%s68] sm:$0xff] %v66
  %s70 = scalar_lea.vmem %s0, 24
  %v71 = vld [vmem:[%s70] sm:$0xff]
  %s72 = scalar_lea.vmem %s1, 24
  %v73 = vld [vmem:[%s72] sm:$0xff]
  %74 = xla_tuple %v71, %v73
  %75 = xla_tuple %74
  %v76 = vmul.f32 %v71, %v73
  %77 = xla_tuple %v76
  %s78 = scalar_lea.vmem %s2, 24
  %79 = vst [vmem:[%s78] sm:$0xff] %v76
  %s80 = scalar_lea.vmem %s0, 40
  %v81 = vld [vmem:[%s80] sm:$0xff]
  %s82 = scalar_lea.vmem %s1, 40
  %v83 = vld [vmem:[%s82] sm:$0xff]
  %84 = xla_tuple %v81, %v83
  %85 = xla_tuple %84
  %v86 = vmul.f32 %v81, %v83
  %87 = xla_tuple %v86
  %s88 = scalar_lea.vmem %s2, 40
  %89 = vst [vmem:[%s88] sm:$0xff] %v86
  %s90 = scalar_lea.vmem %s0, 56
  %v91 = vld [vmem:[%s90] sm:$0xff]
  %s92 = scalar_lea.vmem %s1, 56
  %v93 = vld [vmem:[%s92] sm:$0xff]
  %94 = xla_tuple %v91, %v93
  %95 = xla_tuple %94
  %v96 = vmul.f32 %v91, %v93
  %97 = xla_tuple %v96
  %s98 = scalar_lea.vmem %s2, 56
  %99 = vst [vmem:[%s98] sm:$0xff] %v96
  %s100 = scalar_lea.vmem %s0, 72
  %v101 = vld [vmem:[%s100] sm:$0xff]
  %s102 = scalar_lea.vmem %s1, 72
  %v103 = vld [vmem:[%s102] sm:$0xff]
  %104 = xla_tuple %v101, %v103
  %105 = xla_tuple %104
  %v106 = vmul.f32 %v101, %v103
  %107 = xla_tuple %v106
  %s108 = scalar_lea.vmem %s2, 72
  %109 = vst [vmem:[%s108] sm:$0xff] %v106
  %s110 = scalar_lea.vmem %s0, 88
  %v111 = vld [vmem:[%s110] sm:$0xff]
  %s112 = scalar_lea.vmem %s1, 88
  %v113 = vld [vmem:[%s112] sm:$0xff]
  %114 = xla_tuple %v111, %v113
  %115 = xla_tuple %114
  %v116 = vmul.f32 %v111, %v113
  %117 = xla_tuple %v116
  %s118 = scalar_lea.vmem %s2, 88
  %119 = vst [vmem:[%s118] sm:$0xff] %v116

// kernel: integer_pow.19
$region0: #{integer_pow.19}
  #allocation0 [shape = 's32[1]{0}', space=sflag, size = 0x4, scoped, tag = 'scoped memory for integer_pow.19']
  %s0 = inlined_call_operand.vmem [shape: f32[56,16,6], index: 0, kind: input, shape index: {}, may-alias: {0,1}]
  %s1 = inlined_call_operand.vmem [shape: f32[56,16,6], index: 1, kind: input, shape index: {}, may-alias: {0,1}]
  %s2 = inlined_call_operand.vmem [shape: f32[56,16,6], index: 2, kind: output, shape index: {}]
  %v3 = vld [vmem:[%s0] sm:$0xff]
  %v4 = vld [vmem:[%s1] sm:$0xff]
  %5 = xla_tuple %v3, %v4
  %6 = xla_tuple %5
  %v7 = vmul.f32 %v3, %v4
  %8 = xla_tuple %v7
  %9 = vst [vmem:[%s2] sm:$0xff] %v7
  %s10 = scalar_lea.vmem %s0, 16
  %v11 = vld [vmem:[%s10] sm:$0xff]
  %s12 = scalar_lea.vmem %s1, 16
  %v13 = vld [vmem:[%s12] sm:$0xff]
  %14 = xla_tuple %v11, %v13
  %15 = xla_tuple %14
  %v16 = vmul.f32 %v11, %v13
  %17 = xla_tuple %v16
  %s18 = scalar_lea.vmem %s2, 16
  %19 = vst [vmem:[%s18] sm:$0xff] %v16
  %s20 = scalar_lea.vmem %s0, 32
  %v21 = vld [vmem:[%s20] sm:$0xff]
  %s22 = scalar_lea.vmem %s1, 32
  %v23 = vld [vmem:[%s22] sm:$0xff]
  %24 = xla_tuple %v21, %v23
  %25 = xla_tuple %24
  %v26 = vmul.f32 %v21, %v23
  %27 = xla_tuple %v26
  %s28 = scalar_lea.vmem %s2, 32
  %29 = vst [vmem:[%s28] sm:$0xff] %v26
  %s30 = scalar_lea.vmem %s0, 48
  %v31 = vld [vmem:[%s30] sm:$0xff]
  %s32 = scalar_lea.vmem %s1, 48
  %v33 = vld [vmem:[%s32] sm:$0xff]
  %34 = xla_tuple %v31, %v33
  %35 = xla_tuple %34
  %v36 = vmul.f32 %v31, %v33
  %37 = xla_tuple %v36
  %s38 = scalar_lea.vmem %s2, 48
  %39 = vst [vmem:[%s38] sm:$0xff] %v36
  %s40 = scalar_lea.vmem %s0, 64
  %v41 = vld [vmem:[%s40] sm:$0xff]
  %s42 = scalar_lea.vmem %s1, 64
  %v43 = vld [vmem:[%s42] sm:$0xff]
  %44 = xla_tuple %v41, %v43
  %45 = xla_tuple %44
  %v46 = vmul.f32 %v41, %v43
  %47 = xla_tuple %v46
  %s48 = scalar_lea.vmem %s2, 64
  %49 = vst [vmem:[%s48] sm:$0xff] %v46
  %s50 = scalar_lea.vmem %s0, 80
  %v51 = vld [vmem:[%s50] sm:$0xff]
  %s52 = scalar_lea.vmem %s1, 80
  %v53 = vld [vmem:[%s52] sm:$0xff]
  %54 = xla_tuple %v51, %v53
  %55 = xla_tuple %54
  %v56 = vmul.f32 %v51, %v53
  %57 = xla_tuple %v56
  %s58 = scalar_lea.vmem %s2, 80
  %59 = vst [vmem:[%s58] sm:$0xff] %v56
  %s60 = scalar_lea.vmem %s0, 8
  %v61 = vld [vmem:[%s60] sm:$0xff]
  %s62 = scalar_lea.vmem %s1, 8
  %v63 = vld [vmem:[%s62] sm:$0xff]
  %64 = xla_tuple %v61, %v63
  %65 = xla_tuple %64
  %v66 = vmul.f32 %v61, %v63
  %67 = xla_tuple %v66
  %s68 = scalar_lea.vmem %s2, 8
  %69 = vst [vmem:[%s68] sm:$0xff] %v66
  %s70 = scalar_lea.vmem %s0, 24
  %v71 = vld [vmem:[%s70] sm:$0xff]
  %s72 = scalar_lea.vmem %s1, 24
  %v73 = vld [vmem:[%s72] sm:$0xff]
  %74 = xla_tuple %v71, %v73
  %75 = xla_tuple %74
  %v76 = vmul.f32 %v71, %v73
  %77 = xla_tuple %v76
  %s78 = scalar_lea.vmem %s2, 24
  %79 = vst [vmem:[%s78] sm:$0xff] %v76
  %s80 = scalar_lea.vmem %s0, 40
  %v81 = vld [vmem:[%s80] sm:$0xff]
  %s82 = scalar_lea.vmem %s1, 40
  %v83 = vld [vmem:[%s82] sm:$0xff]
  %84 = xla_tuple %v81, %v83
  %85 = xla_tuple %84
  %v86 = vmul.f32 %v81, %v83
  %87 = xla_tuple %v86
  %s88 = scalar_lea.vmem %s2, 40
  %89 = vst [vmem:[%s88] sm:$0xff] %v86
  %s90 = scalar_lea.vmem %s0, 56
  %v91 = vld [vmem:[%s90] sm:$0xff]
  %s92 = scalar_lea.vmem %s1, 56
  %v93 = vld [vmem:[%s92] sm:$0xff]
  %94 = xla_tuple %v91, %v93
  %95 = xla_tuple %94
  %v96 = vmul.f32 %v91, %v93
  %97 = xla_tuple %v96
  %s98 = scalar_lea.vmem %s2, 56
  %99 = vst [vmem:[%s98] sm:$0xff] %v96
  %s100 = scalar_lea.vmem %s0, 72
  %v101 = vld [vmem:[%s100] sm:$0xff]
  %s102 = scalar_lea.vmem %s1, 72
  %v103 = vld [vmem:[%s102] sm:$0xff]
  %104 = xla_tuple %v101, %v103
  %105 = xla_tuple %104
  %v106 = vmul.f32 %v101, %v103
  %107 = xla_tuple %v106
  %s108 = scalar_lea.vmem %s2, 72
  %109 = vst [vmem:[%s108] sm:$0xff] %v106
  %s110 = scalar_lea.vmem %s0, 88
  %v111 = vld [vmem:[%s110] sm:$0xff]
  %s112 = scalar_lea.vmem %s1, 88
  %v113 = vld [vmem:[%s112] sm:$0xff]
  %114 = xla_tuple %v111, %v113
  %115 = xla_tuple %114
  %v116 = vmul.f32 %v111, %v113
  %117 = xla_tuple %v116
  %s118 = scalar_lea.vmem %s2, 88
  %119 = vst [vmem:[%s118] sm:$0xff] %v116

// kernel: integer_pow.16
$region0: #{integer_pow.16}
  #allocation0 [shape = 's32[1]{0}', space=sflag, size = 0x4, scoped, tag = 'scoped memory for integer_pow.16']
  %s0 = inlined_call_operand.vmem [shape: f32[40,16,6], index: 0, kind: input, shape index: {}, may-alias: {0,1}]
  %s1 = inlined_call_operand.vmem [shape: f32[40,16,6], index: 1, kind: input, shape index: {}, may-alias: {0,1}]
  %s2 = inlined_call_operand.vmem [shape: f32[40,16,6], index: 2, kind: output, shape index: {}]
  %v3 = vld [vmem:[%s0] sm:$0xff]
  %v4 = vld [vmem:[%s1] sm:$0xff]
  %5 = xla_tuple %v3, %v4
  %6 = xla_tuple %5
  %v7 = vmul.f32 %v3, %v4
  %8 = xla_tuple %v7
  %9 = vst [vmem:[%s2] sm:$0xff] %v7
  %s10 = scalar_lea.vmem %s0, 16
  %v11 = vld [vmem:[%s10] sm:$0xff]
  %s12 = scalar_lea.vmem %s1, 16
  %v13 = vld [vmem:[%s12] sm:$0xff]
  %14 = xla_tuple %v11, %v13
  %15 = xla_tuple %14
  %v16 = vmul.f32 %v11, %v13
  %17 = xla_tuple %v16
  %s18 = scalar_lea.vmem %s2, 16
  %19 = vst [vmem:[%s18] sm:$0xff] %v16
  %s20 = scalar_lea.vmem %s0, 32
  %v21 = vld [vmem:[%s20] sm:$0xff]
  %s22 = scalar_lea.vmem %s1, 32
  %v23 = vld [vmem:[%s22] sm:$0xff]
  %24 = xla_tuple %v21, %v23
  %25 = xla_tuple %24
  %v26 = vmul.f32 %v21, %v23
  %27 = xla_tuple %v26
  %s28 = scalar_lea.vmem %s2, 32
  %29 = vst [vmem:[%s28] sm:$0xff] %v26
  %s30 = scalar_lea.vmem %s0, 48
  %v31 = vld [vmem:[%s30] sm:$0xff]
  %s32 = scalar_lea.vmem %s1, 48
  %v33 = vld [vmem:[%s32] sm:$0xff]
  %34 = xla_tuple %v31, %v33
  %35 = xla_tuple %34
  %v36 = vmul.f32 %v31, %v33
  %37 = xla_tuple %v36
  %s38 = scalar_lea.vmem %s2, 48
  %39 = vst [vmem:[%s38] sm:$0xff] %v36
  %s40 = scalar_lea.vmem %s0, 64
  %v41 = vld [vmem:[%s40] sm:$0xff]
  %s42 = scalar_lea.vmem %s1, 64
  %v43 = vld [vmem:[%s42] sm:$0xff]
  %44 = xla_tuple %v41, %v43
  %45 = xla_tuple %44
  %v46 = vmul.f32 %v41, %v43
  %47 = xla_tuple %v46
  %s48 = scalar_lea.vmem %s2, 64
  %49 = vst [vmem:[%s48] sm:$0xff] %v46
  %s50 = scalar_lea.vmem %s0, 80
  %v51 = vld [vmem:[%s50] sm:$0xff]
  %s52 = scalar_lea.vmem %s1, 80
  %v53 = vld [vmem:[%s52] sm:$0xff]
  %54 = xla_tuple %v51, %v53
  %55 = xla_tuple %54
  %v56 = vmul.f32 %v51, %v53
  %57 = xla_tuple %v56
  %s58 = scalar_lea.vmem %s2, 80
  %59 = vst [vmem:[%s58] sm:$0xff] %v56
  %s60 = scalar_lea.vmem %s0, 8
  %v61 = vld [vmem:[%s60] sm:$0xff]
  %s62 = scalar_lea.vmem %s1, 8
  %v63 = vld [vmem:[%s62] sm:$0xff]
  %64 = xla_tuple %v61, %v63
  %65 = xla_tuple %64
  %v66 = vmul.f32 %v61, %v63
  %67 = xla_tuple %v66
  %s68 = scalar_lea.vmem %s2, 8
  %69 = vst [vmem:[%s68] sm:$0xff] %v66
  %s70 = scalar_lea.vmem %s0, 24
  %v71 = vld [vmem:[%s70] sm:$0xff]
  %s72 = scalar_lea.vmem %s1, 24
  %v73 = vld [vmem:[%s72] sm:$0xff]
  %74 = xla_tuple %v71, %v73
  %75 = xla_tuple %74
  %v76 = vmul.f32 %v71, %v73
  %77 = xla_tuple %v76
  %s78 = scalar_lea.vmem %s2, 24
  %79 = vst [vmem:[%s78] sm:$0xff] %v76
  %s80 = scalar_lea.vmem %s0, 40
  %v81 = vld [vmem:[%s80] sm:$0xff]
  %s82 = scalar_lea.vmem %s1, 40
  %v83 = vld [vmem:[%s82] sm:$0xff]
  %84 = xla_tuple %v81, %v83
  %85 = xla_tuple %84
  %v86 = vmul.f32 %v81, %v83
  %87 = xla_tuple %v86
  %s88 = scalar_lea.vmem %s2, 40
  %89 = vst [vmem:[%s88] sm:$0xff] %v86
  %s90 = scalar_lea.vmem %s0, 56
  %v91 = vld [vmem:[%s90] sm:$0xff]
  %s92 = scalar_lea.vmem %s1, 56
  %v93 = vld [vmem:[%s92] sm:$0xff]
  %94 = xla_tuple %v91, %v93
  %95 = xla_tuple %94
  %v96 = vmul.f32 %v91, %v93
  %97 = xla_tuple %v96
  %s98 = scalar_lea.vmem %s2, 56
  %99 = vst [vmem:[%s98] sm:$0xff] %v96
  %s100 = scalar_lea.vmem %s0, 72
  %v101 = vld [vmem:[%s100] sm:$0xff]
  %s102 = scalar_lea.vmem %s1, 72
  %v103 = vld [vmem:[%s102] sm:$0xff]
  %104 = xla_tuple %v101, %v103
  %105 = xla_tuple %104
  %v106 = vmul.f32 %v101, %v103
  %107 = xla_tuple %v106
  %s108 = scalar_lea.vmem %s2, 72
  %109 = vst [vmem:[%s108] sm:$0xff] %v106
  %s110 = scalar_lea.vmem %s0, 88
  %v111 = vld [vmem:[%s110] sm:$0xff]
  %s112 = scalar_lea.vmem %s1, 88
  %v113 = vld [vmem:[%s112] sm:$0xff]
  %114 = xla_tuple %v111, %v113
  %115 = xla_tuple %114
  %v116 = vmul.f32 %v111, %v113
  %117 = xla_tuple %v116
  %s118 = scalar_lea.vmem %s2, 88
  %119 = vst [vmem:[%s118] sm:$0xff] %v116

// kernel: integer_pow.13
$region0: #{integer_pow.13}
  #allocation0 [shape = 's32[1]{0}', space=sflag, size = 0x4, scoped, tag = 'scoped memory for integer_pow.13']
  %s0 = inlined_call_operand.vmem [shape: f32[24,16,6], index: 0, kind: input, shape index: {}, may-alias: {0,1}]
  %s1 = inlined_call_operand.vmem [shape: f32[24,16,6], index: 1, kind: input, shape index: {}, may-alias: {0,1}]
  %s2 = inlined_call_operand.vmem [shape: f32[24,16,6], index: 2, kind: output, shape index: {}]
  %v3 = vld [vmem:[%s0] sm:$0xff]
  %v4 = vld [vmem:[%s1] sm:$0xff]
  %5 = xla_tuple %v3, %v4
  %6 = xla_tuple %5
  %v7 = vmul.f32 %v3, %v4
  %8 = xla_tuple %v7
  %9 = vst [vmem:[%s2] sm:$0xff] %v7
  %s10 = scalar_lea.vmem %s0, 16
  %v11 = vld [vmem:[%s10] sm:$0xff]
  %s12 = scalar_lea.vmem %s1, 16
  %v13 = vld [vmem:[%s12] sm:$0xff]
  %14 = xla_tuple %v11, %v13
  %15 = xla_tuple %14
  %v16 = vmul.f32 %v11, %v13
  %17 = xla_tuple %v16
  %s18 = scalar_lea.vmem %s2, 16
  %19 = vst [vmem:[%s18] sm:$0xff] %v16
  %s20 = scalar_lea.vmem %s0, 32
  %v21 = vld [vmem:[%s20] sm:$0xff]
  %s22 = scalar_lea.vmem %s1, 32
  %v23 = vld [vmem:[%s22] sm:$0xff]
  %24 = xla_tuple %v21, %v23
  %25 = xla_tuple %24
  %v26 = vmul.f32 %v21, %v23
  %27 = xla_tuple %v26
  %s28 = scalar_lea.vmem %s2, 32
  %29 = vst [vmem:[%s28] sm:$0xff] %v26
  %s30 = scalar_lea.vmem %s0, 48
  %v31 = vld [vmem:[%s30] sm:$0xff]
  %s32 = scalar_lea.vmem %s1, 48
  %v33 = vld [vmem:[%s32] sm:$0xff]
  %34 = xla_tuple %v31, %v33
  %35 = xla_tuple %34
  %v36 = vmul.f32 %v31, %v33
  %37 = xla_tuple %v36
  %s38 = scalar_lea.vmem %s2, 48
  %39 = vst [vmem:[%s38] sm:$0xff] %v36
  %s40 = scalar_lea.vmem %s0, 64
  %v41 = vld [vmem:[%s40] sm:$0xff]
  %s42 = scalar_lea.vmem %s1, 64
  %v43 = vld [vmem:[%s42] sm:$0xff]
  %44 = xla_tuple %v41, %v43
  %45 = xla_tuple %44
  %v46 = vmul.f32 %v41, %v43
  %47 = xla_tuple %v46
  %s48 = scalar_lea.vmem %s2, 64
  %49 = vst [vmem:[%s48] sm:$0xff] %v46
  %s50 = scalar_lea.vmem %s0, 80
  %v51 = vld [vmem:[%s50] sm:$0xff]
  %s52 = scalar_lea.vmem %s1, 80
  %v53 = vld [vmem:[%s52] sm:$0xff]
  %54 = xla_tuple %v51, %v53
  %55 = xla_tuple %54
  %v56 = vmul.f32 %v51, %v53
  %57 = xla_tuple %v56
  %s58 = scalar_lea.vmem %s2, 80
  %59 = vst [vmem:[%s58] sm:$0xff] %v56
  %s60 = scalar_lea.vmem %s0, 8
  %v61 = vld [vmem:[%s60] sm:$0xff]
  %s62 = scalar_lea.vmem %s1, 8
  %v63 = vld [vmem:[%s62] sm:$0xff]
  %64 = xla_tuple %v61, %v63
  %65 = xla_tuple %64
  %v66 = vmul.f32 %v61, %v63
  %67 = xla_tuple %v66
  %s68 = scalar_lea.vmem %s2, 8
  %69 = vst [vmem:[%s68] sm:$0xff] %v66
  %s70 = scalar_lea.vmem %s0, 24
  %v71 = vld [vmem:[%s70] sm:$0xff]
  %s72 = scalar_lea.vmem %s1, 24
  %v73 = vld [vmem:[%s72] sm:$0xff]
  %74 = xla_tuple %v71, %v73
  %75 = xla_tuple %74
  %v76 = vmul.f32 %v71, %v73
  %77 = xla_tuple %v76
  %s78 = scalar_lea.vmem %s2, 24
  %79 = vst [vmem:[%s78] sm:$0xff] %v76
  %s80 = scalar_lea.vmem %s0, 40
  %v81 = vld [vmem:[%s80] sm:$0xff]
  %s82 = scalar_lea.vmem %s1, 40
  %v83 = vld [vmem:[%s82] sm:$0xff]
  %84 = xla_tuple %v81, %v83
  %85 = xla_tuple %84
  %v86 = vmul.f32 %v81, %v83
  %87 = xla_tuple %v86
  %s88 = scalar_lea.vmem %s2, 40
  %89 = vst [vmem:[%s88] sm:$0xff] %v86
  %s90 = scalar_lea.vmem %s0, 56
  %v91 = vld [vmem:[%s90] sm:$0xff]
  %s92 = scalar_lea.vmem %s1, 56
  %v93 = vld [vmem:[%s92] sm:$0xff]
  %94 = xla_tuple %v91, %v93
  %95 = xla_tuple %94
  %v96 = vmul.f32 %v91, %v93
  %97 = xla_tuple %v96
  %s98 = scalar_lea.vmem %s2, 56
  %99 = vst [vmem:[%s98] sm:$0xff] %v96
  %s100 = scalar_lea.vmem %s0, 72
  %v101 = vld [vmem:[%s100] sm:$0xff]
  %s102 = scalar_lea.vmem %s1, 72
  %v103 = vld [vmem:[%s102] sm:$0xff]
  %104 = xla_tuple %v101, %v103
  %105 = xla_tuple %104
  %v106 = vmul.f32 %v101, %v103
  %107 = xla_tuple %v106
  %s108 = scalar_lea.vmem %s2, 72
  %109 = vst [vmem:[%s108] sm:$0xff] %v106
  %s110 = scalar_lea.vmem %s0, 88
  %v111 = vld [vmem:[%s110] sm:$0xff]
  %s112 = scalar_lea.vmem %s1, 88
  %v113 = vld [vmem:[%s112] sm:$0xff]
  %114 = xla_tuple %v111, %v113
  %115 = xla_tuple %114
  %v116 = vmul.f32 %v111, %v113
  %117 = xla_tuple %v116
  %s118 = scalar_lea.vmem %s2, 88
  %119 = vst [vmem:[%s118] sm:$0xff] %v116

// kernel: node_forward.1
$region0: #{node_forward.1}
  #allocation0 [shape = 'u32[]', space=smem, size = 0x4, offset = 0x4, fixed_abs, tag = 'smem constant byte address 0x4 - core index']
  #allocation1 [shape = 'u32[72,128]{1,0:T(1,128)}', space=vmem, size = 0x9000, scoped, tag = 'internal scratch']
  #allocation2 [shape = 'f32[128,88]{1,0:T(8,128)}', space=vmem, size = 0x10000, scoped, tag = 'scratch operand']
  #allocation3 [shape = 'f32[128,128]{1,0:T(8,128)}', space=vmem, size = 0x10000, scoped, tag = 'scratch operand']
  #allocation4 [shape = 'f32[128,128]{1,0:T(8,128)}', space=vmem, size = 0x10000, scoped, tag = 'scratch operand']
  %s0 = inlined_call_operand.vmem [shape: f32[256,24], index: 0, kind: input, shape index: {}]
  %s1 = inlined_call_operand.vmem [shape: bf16[4,88,96], index: 1, kind: input, shape index: {}]
  %s2 = inlined_call_operand.vmem [shape: f32[4,1,96], index: 2, kind: input, shape index: {}]
  %s3 = inlined_call_operand.vmem [shape: f32[4,128,128], index: 3, kind: input, shape index: {}]
  %s4 = inlined_call_operand.vmem [shape: f32[128,16], index: 4, kind: input, shape index: {}]
  %s5 = inlined_call_operand.vmem [shape: bf16[64,8], index: 5, kind: input, shape index: {}]
  %s6 = inlined_call_operand.vmem [shape: f32[1,8], index: 6, kind: input, shape index: {}]
  %s7 = inlined_call_operand.vmem [shape: f32[256,8], index: 7, kind: output, shape index: {}]
  %s8 = sld [smem:[#allocation0]]
  $region61: #{node_forward.1} parent=0
    _
  %s10 = ssub.s32 1, %s8
  %s11 = scalar_select 0, %s10, %s8
  loop: start=0, step=1, limit=4
  $region2: #{node_forward.1} parent=0 // loop_pre_header
    _
  $region3: #{node_forward.1} parent=0 // loop_header
    %s13 = sphi 0, %s17
    %p14 = scmp.ge.s32.totalorder %s13, 4
    %s23 = sphi 0, %s25
    %s26 = sphi 0, %s23
    %s27 = sphi 0, %s26
    %s43 = sphi 0, %s27
    %s47 = sphi 0, %s47
    %s49 = sphi 0, %s47
    %s50 = sphi 0, %s49
    %s64 = sphi 0, %s50
    %s68 = sphi 0, %s68
    %s70 = sphi 0, %s68
    %s71 = sphi 0, %s70
    %s85 = sphi 0, %s71
    %s89 = sphi 0, %s89
    %s91 = sphi 0, %s89
    %s92 = sphi 0, %s91
    %s106 = sphi 0, %s92
    %s110 = sphi 0, %s110
    %s112 = sphi 0, %s110
    %s113 = sphi 0, %s112
    %s127 = sphi 0, %s113
    %s131 = sphi 0, %s131
    %s133 = sphi 0, %s131
    %s134 = sphi 0, %s133
    %s148 = sphi 0, %s134
    %s152 = sphi 0, %s152
    %s154 = sphi 0, %s152
    %s155 = sphi 0, %s154
    %s169 = sphi 0, %s155
    %s175 = sphi 0, %s177
    %s178 = sphi 0, %s175
    %s179 = sphi 0, %s178
    %s195 = sphi 0, %s179
  $region4: #{node_forward.1} parent=0 // loop_header_branch
    %16 = sbr.rel (%p14) target = $region8
  $region5: #{node_forward.1} parent=0 // loop_body
    %s18 = ssub.s32 %s13, 1
    %s19 = ssub.s32 %s13, 2
    %s20 = sadd.s32 %s13, 1
    %s21 = ssub.s32 %s13, %s20
    %p22 = scmp.eq.s32.totalorder %s21, 0
    %s24 = sadd.s32 %s23, 1
    %s25 = scalar_select %p22, %s23, %s24
    %p28 = pneg %p22
    %p29 = scmp.eq.s32.totalorder %s13, 1
    %p30 = por %p28, %p29
    %p31 = scmp.ne.s32.totalorder %s23, %s26
    %p32 = scmp.eq.s32.totalorder %s13, 0
    %p33 = por %p31, %p32
    %p34 = scmp.ne.s32.totalorder %s23, %s26
    %p35 = scmp.eq.s32.totalorder %s18, 1
    %p36 = por %p34, %p35
    %p37 = scmp.ne.s32.totalorder %s26, %s27
    %p38 = scmp.eq.s32.totalorder %s18, 0
    %p39 = por %p37, %p38
    %p40 = scmp.ne.s32.totalorder %s26, %s27
    %p41 = scmp.eq.s32.totalorder %s19, 1
    %p42 = por %p40, %p41
    %p44 = scmp.ne.s32.totalorder %s27, %s43
    %p45 = scmp.eq.s32.totalorder %s19, 0
    %p46 = por %p44, %p45
    %s48 = sadd.s32 %s47, 1
    %p51 = scmp.eq.s32.totalorder %s13, 1
    %p52 = scmp.ne.s32.totalorder %s47, %s49
    %p53 = scmp.eq.s32.totalorder %s13, 0
    %p54 = por %p52, %p53
    %p55 = scmp.ne.s32.totalorder %s47, %s49
    %p56 = scmp.eq.s32.totalorder %s18, 1
    %p57 = por %p55, %p56
    %p58 = scmp.ne.s32.totalorder %s49, %s50
    %p59 = scmp.eq.s32.totalorder %s18, 0
    %p60 = por %p58, %p59
    %p61 = scmp.ne.s32.totalorder %s49, %s50
    %p62 = scmp.eq.s32.totalorder %s19, 1
    %p63 = por %p61, %p62
    %p65 = scmp.ne.s32.totalorder %s50, %s64
    %p66 = scmp.eq.s32.totalorder %s19, 0
    %p67 = por %p65, %p66
    %s69 = sadd.s32 %s68, 1
    %p72 = scmp.eq.s32.totalorder %s13, 1
    %p73 = scmp.ne.s32.totalorder %s68, %s70
    %p74 = scmp.eq.s32.totalorder %s13, 0
    %p75 = por %p73, %p74
    %p76 = scmp.ne.s32.totalorder %s68, %s70
    %p77 = scmp.eq.s32.totalorder %s18, 1
    %p78 = por %p76, %p77
    %p79 = scmp.ne.s32.totalorder %s70, %s71
    %p80 = scmp.eq.s32.totalorder %s18, 0
    %p81 = por %p79, %p80
    %p82 = scmp.ne.s32.totalorder %s70, %s71
    %p83 = scmp.eq.s32.totalorder %s19, 1
    %p84 = por %p82, %p83
    %p86 = scmp.ne.s32.totalorder %s71, %s85
    %p87 = scmp.eq.s32.totalorder %s19, 0
    %p88 = por %p86, %p87
    %s90 = sadd.s32 %s89, 1
    %p93 = scmp.eq.s32.totalorder %s13, 1
    %p94 = scmp.ne.s32.totalorder %s89, %s91
    %p95 = scmp.eq.s32.totalorder %s13, 0
    %p96 = por %p94, %p95
    %p97 = scmp.ne.s32.totalorder %s89, %s91
    %p98 = scmp.eq.s32.totalorder %s18, 1
    %p99 = por %p97, %p98
    %p100 = scmp.ne.s32.totalorder %s91, %s92
    %p101 = scmp.eq.s32.totalorder %s18, 0
    %p102 = por %p100, %p101
    %p103 = scmp.ne.s32.totalorder %s91, %s92
    %p104 = scmp.eq.s32.totalorder %s19, 1
    %p105 = por %p103, %p104
    %p107 = scmp.ne.s32.totalorder %s92, %s106
    %p108 = scmp.eq.s32.totalorder %s19, 0
    %p109 = por %p107, %p108
    %s111 = sadd.s32 %s110, 1
    %p114 = scmp.eq.s32.totalorder %s13, 1
    %p115 = scmp.ne.s32.totalorder %s110, %s112
    %p116 = scmp.eq.s32.totalorder %s13, 0
    %p117 = por %p115, %p116
    %p118 = scmp.ne.s32.totalorder %s110, %s112
    %p119 = scmp.eq.s32.totalorder %s18, 1
    %p120 = por %p118, %p119
    %p121 = scmp.ne.s32.totalorder %s112, %s113
    %p122 = scmp.eq.s32.totalorder %s18, 0
    %p123 = por %p121, %p122
    %p124 = scmp.ne.s32.totalorder %s112, %s113
    %p125 = scmp.eq.s32.totalorder %s19, 1
    %p126 = por %p124, %p125
    %p128 = scmp.ne.s32.totalorder %s113, %s127
    %p129 = scmp.eq.s32.totalorder %s19, 0
    %p130 = por %p128, %p129
    %s132 = sadd.s32 %s131, 1
    %p135 = scmp.eq.s32.totalorder %s13, 1
    %p136 = scmp.ne.s32.totalorder %s131, %s133
    %p137 = scmp.eq.s32.totalorder %s13, 0
    %p138 = por %p136, %p137
    %p139 = scmp.ne.s32.totalorder %s131, %s133
    %p140 = scmp.eq.s32.totalorder %s18, 1
    %p141 = por %p139, %p140
    %p142 = scmp.ne.s32.totalorder %s133, %s134
    %p143 = scmp.eq.s32.totalorder %s18, 0
    %p144 = por %p142, %p143
    %p145 = scmp.ne.s32.totalorder %s133, %s134
    %p146 = scmp.eq.s32.totalorder %s19, 1
    %p147 = por %p145, %p146
    %p149 = scmp.ne.s32.totalorder %s134, %s148
    %p150 = scmp.eq.s32.totalorder %s19, 0
    %p151 = por %p149, %p150
    %s153 = sadd.s32 %s152, 1
    %p156 = scmp.eq.s32.totalorder %s13, 1
    %p157 = scmp.ne.s32.totalorder %s152, %s154
    %p158 = scmp.eq.s32.totalorder %s13, 0
    %p159 = por %p157, %p158
    %p160 = scmp.ne.s32.totalorder %s152, %s154
    %p161 = scmp.eq.s32.totalorder %s18, 1
    %p162 = por %p160, %p161
    %p163 = scmp.ne.s32.totalorder %s154, %s155
    %p164 = scmp.eq.s32.totalorder %s18, 0
    %p165 = por %p163, %p164
    %p166 = scmp.ne.s32.totalorder %s154, %s155
    %p167 = scmp.eq.s32.totalorder %s19, 1
    %p168 = por %p166, %p167
    %p170 = scmp.ne.s32.totalorder %s155, %s169
    %p171 = scmp.eq.s32.totalorder %s19, 0
    %p172 = por %p170, %p171
    %s173 = ssub.s32 %s13, %s20
    %p174 = scmp.eq.s32.totalorder %s173, 0
    %s176 = sadd.s32 %s175, 1
    %s177 = scalar_select %p174, %s175, %s176
    %p180 = pneg %p174
    %p181 = scmp.eq.s32.totalorder %s13, 1
    %p182 = por %p180, %p181
    %p183 = scmp.ne.s32.totalorder %s175, %s178
    %p184 = scmp.eq.s32.totalorder %s13, 0
    %p185 = por %p183, %p184
    %p186 = scmp.ne.s32.totalorder %s175, %s178
    %p187 = scmp.eq.s32.totalorder %s18, 1
    %p188 = por %p186, %p187
    %p189 = scmp.ne.s32.totalorder %s178, %s179
    %p190 = scmp.eq.s32.totalorder %s18, 0
    %p191 = por %p189, %p190
    %p192 = scmp.ne.s32.totalorder %s178, %s179
    %p193 = scmp.eq.s32.totalorder %s19, 1
    %p194 = por %p192, %p193
    %p196 = scmp.ne.s32.totalorder %s179, %s195
    %p197 = scmp.eq.s32.totalorder %s19, 0
    %p198 = por %p196, %p197
    %p199 = scmp.le.s32.totalorder 1, %s13
    %p200 = scmp.lt.s32.totalorder %s13, 3
    %p201 = pnand %p199, %p200
    %p202 = pneg %p201
    // Predicated region
    $region9: #{node_forward.1} parent=5 // pred_check
      _
    $region10: #{node_forward.1} parent=5 // pred_check_branch
      %204 = sbr.rel (%p201) target = $region12
    $region11: #{node_forward.1} parent=5 // pred_region
      %s205 = ssub.s32 %s13, 1
      // Predicated region
      $region13: #{node_forward.1} parent=11 // pred_check
        %p206 = pneg %p60
      $region14: #{node_forward.1} parent=11 // pred_check_branch
        %208 = sbr.rel (%p206) target = $region16
      $region15: #{node_forward.1} parent=11 // pred_region
        _
      $region16: #{node_forward.1} parent=11 // pred_fallthru
        _
      // Predicated region
      $region17: #{node_forward.1} parent=11 // pred_check
        %p209 = pneg %p81
      $region18: #{node_forward.1} parent=11 // pred_check_branch
        %211 = sbr.rel (%p209) target = $region20
      $region19: #{node_forward.1} parent=11 // pred_region
        _
      $region20: #{node_forward.1} parent=11 // pred_fallthru
        _
      // Predicated region
      $region21: #{node_forward.1} parent=11 // pred_check
        %p212 = pneg %p102
      $region22: #{node_forward.1} parent=11 // pred_check_branch
        %214 = sbr.rel (%p212) target = $region24
      $region23: #{node_forward.1} parent=11 // pred_region
        _
      $region24: #{node_forward.1} parent=11 // pred_fallthru
        _
      // Predicated region
      $region25: #{node_forward.1} parent=11 // pred_check
        %p215 = pneg %p123
      $region26: #{node_forward.1} parent=11 // pred_check_branch
        %217 = sbr.rel (%p215) target = $region28
      $region27: #{node_forward.1} parent=11 // pred_region
        _
      $region28: #{node_forward.1} parent=11 // pred_fallthru
        _
      // Predicated region
      $region29: #{node_forward.1} parent=11 // pred_check
        %p218 = pneg %p144
      $region30: #{node_forward.1} parent=11 // pred_check_branch
        %220 = sbr.rel (%p218) target = $region32
      $region31: #{node_forward.1} parent=11 // pred_region
        _
      $region32: #{node_forward.1} parent=11 // pred_fallthru
        _
      // Predicated region
      $region33: #{node_forward.1} parent=11 // pred_check
        %p221 = pneg %p165
      $region34: #{node_forward.1} parent=11 // pred_check_branch
        %223 = sbr.rel (%p221) target = $region36
      $region35: #{node_forward.1} parent=11 // pred_region
        _
      $region36: #{node_forward.1} parent=11 // pred_fallthru
        _
    $region12: #{node_forward.1} parent=5 // pred_fallthru
      _
    %p224 = scmp.lt.s32.totalorder %s13, 2
    // Predicated region
    $region37: #{node_forward.1} parent=5 // pred_check
      %p225 = pneg %p224
    $region38: #{node_forward.1} parent=5 // pred_check_branch
      %227 = sbr.rel (%p225) target = $region40
    $region39: #{node_forward.1} parent=5 // pred_region
      // Predicated region
      $region41: #{node_forward.1} parent=39 // pred_check
        %p228 = pneg %p33
      $region42: #{node_forward.1} parent=39 // pred_check_branch
        %230 = sbr.rel (%p228) target = $region44
      $region43: #{node_forward.1} parent=39 // pred_region
        %s231 = smul.u32 16, %s13
        %p232 = scmp.lt.s32.totalorder %s231, 31
        %s233 = scalar_select %p232, %s231, 31
        %s234 = smul.addr %s233, 8
        %s235 = scalar_lea.vmem %s0, %s234
        %s236 = smul.u32 16, %s13
      $region44: #{node_forward.1} parent=39 // pred_fallthru
        _
    $region40: #{node_forward.1} parent=5 // pred_fallthru
      _
    %p237 = scmp.le.s32.totalorder 1, %s13
    %p238 = scmp.lt.s32.totalorder %s13, 3
    %p239 = pnand %p237, %p238
    %p240 = pneg %p239
    // Predicated region
    $region45: #{node_forward.1} parent=5 // pred_check
      _
    $region46: #{node_forward.1} parent=5 // pred_check_branch
      %242 = sbr.rel (%p239) target = $region48
    $region47: #{node_forward.1} parent=5 // pred_region
      %s243 = ssub.s32 %s13, 1
      %s244 = smul.u32 16, %s18
      %p245 = scmp.lt.s32.totalorder %s244, 31
      %s246 = scalar_select %p245, %s244, 31
      %s247 = smul.addr %s246, 8
      %s248 = scalar_lea.vmem %s0, %s247
      %p249 = pneg %p39
      %p250 = pneg %p36
      %p251 = pneg %p60
      %p252 = pneg %p57
      %p253 = pneg %p81
      %p254 = pneg %p78
      %p255 = pneg %p102
      %p256 = pneg %p99
      %p257 = pneg %p123
      %p258 = pneg %p120
      %p259 = pneg %p144
      %p260 = pneg %p141
      %p261 = pneg %p165
      %p262 = pneg %p162
      %p263 = pneg %p191
      %p264 = pneg %p188
      %s265 = smul.u32 16, %s18
      %p266 = scmp.lt.s32.totalorder %s265, 31
      %s267 = scalar_select %p266, %s265, 31
      %s268 = smul.addr %s267, 8
      %s269 = scalar_lea.vmem %s7, %s268
      %s270 = smul.u32 16, %s18
      %p271 = scmp.lt.s32.totalorder %s270, 31
      %s272 = scalar_select %p271, %s270, 31
      %s273 = smul.addr %s272, 8
      %s274 = scalar_lea.vmem %s0, %s273
      %s275 = smul.u32 16, %s18
      %s276 = smul.u32 16, %s18
      %p277 = scmp.lt.s32.totalorder %s276, 31
      %s278 = scalar_select %p277, %s276, 31
      %s279 = smul.addr %s278, 8
      %s280 = scalar_lea.vmem %s7, %s279
      %s281 = smul.u32 16, %s18
      %vm283 = vcmask 523264
      %284 = vst.msk [vmem:[#allocation2] sm:$0xff] %vm283, 0.0
      %285 = vst.msk [vmem:[#allocation2 + $0x8] sm:$0xff] %vm283, 0.0
      %286 = vst.msk [vmem:[#allocation2 + $0x10] sm:$0xff] %vm283, 0.0
      %287 = vst.msk [vmem:[#allocation2 + $0x18] sm:$0xff] %vm283, 0.0
      %288 = vst.msk [vmem:[#allocation2 + $0x20] sm:$0xff] %vm283, 0.0
      %289 = vst.msk [vmem:[#allocation2 + $0x28] sm:$0xff] %vm283, 0.0
      %290 = vst.msk [vmem:[#allocation2 + $0x30] sm:$0xff] %vm283, 0.0
      %291 = vst.msk [vmem:[#allocation2 + $0x38] sm:$0xff] %vm283, 0.0
      %292 = vst.msk [vmem:[#allocation2 + $0x40] sm:$0xff] %vm283, 0.0
      %293 = vst.msk [vmem:[#allocation2 + $0x48] sm:$0xff] %vm283, 0.0
      %294 = vst.msk [vmem:[#allocation2 + $0x50] sm:$0xff] %vm283, 0.0
      %295 = vst.msk [vmem:[#allocation2 + $0x58] sm:$0xff] %vm283, 0.0
      %296 = vst.msk [vmem:[#allocation2 + $0x60] sm:$0xff] %vm283, 0.0
      %297 = vst.msk [vmem:[#allocation2 + $0x68] sm:$0xff] %vm283, 0.0
      %298 = vst.msk [vmem:[#allocation2 + $0x70] sm:$0xff] %vm283, 0.0
      %299 = vst.msk [vmem:[#allocation2 + $0x78] sm:$0xff] %vm283, 0.0
      %v300 = vld [vmem:[%s274] sm:$0xff]
      %v301 = vld [vmem:[%s274 + $0x8] sm:$0xff]
      %v302 = vld [vmem:[%s274 + $0x10] sm:$0xff]
      %v303 = vld [vmem:[%s274 + $0x18] sm:$0xff]
      %v304 = vld [vmem:[%s274 + $0x20] sm:$0xff]
      %v305 = vld [vmem:[%s274 + $0x28] sm:$0xff]
      %v306 = vld [vmem:[%s274 + $0x30] sm:$0xff]
      %v307 = vld [vmem:[%s274 + $0x38] sm:$0xff]
      %v308 = vld [vmem:[%s274 + $0x40] sm:$0xff]
      %v309 = vld [vmem:[%s274 + $0x48] sm:$0xff]
      %v310 = vld [vmem:[%s274 + $0x50] sm:$0xff]
      %v311 = vld [vmem:[%s274 + $0x58] sm:$0xff]
      %v312 = vld [vmem:[%s274 + $0x60] sm:$0xff]
      %v313 = vld [vmem:[%s274 + $0x68] sm:$0xff]
      %v314 = vld [vmem:[%s274 + $0x70] sm:$0xff]
      %v315 = vld [vmem:[%s274 + $0x78] sm:$0xff]
      %332 = vrot.lane.b32.xlu0 %v300, 64
      %v333 = vpop.permute.xlu0 %332
      %334 = vrot.lane.b32.xlu0 %v301, 64
      %v335 = vpop.permute.xlu0 %334
      %336 = vrot.lane.b32.xlu0 %v302, 64
      %v337 = vpop.permute.xlu0 %336
      %338 = vrot.lane.b32.xlu0 %v303, 64
      %v339 = vpop.permute.xlu0 %338
      %340 = vrot.lane.b32.xlu0 %v304, 64
      %v341 = vpop.permute.xlu0 %340
      %342 = vrot.lane.b32.xlu0 %v305, 64
      %v343 = vpop.permute.xlu0 %342
      %344 = vrot.lane.b32.xlu0 %v306, 64
      %v345 = vpop.permute.xlu0 %344
      %346 = vrot.lane.b32.xlu0 %v307, 64
      %v347 = vpop.permute.xlu0 %346
      %348 = vrot.lane.b32.xlu0 %v308, 64
      %v349 = vpop.permute.xlu0 %348
      %350 = vrot.lane.b32.xlu0 %v309, 64
      %v351 = vpop.permute.xlu0 %350
      %352 = vrot.lane.b32.xlu0 %v310, 64
      %v353 = vpop.permute.xlu0 %352
      %354 = vrot.lane.b32.xlu0 %v311, 64
      %v355 = vpop.permute.xlu0 %354
      %356 = vrot.lane.b32.xlu0 %v312, 64
      %v357 = vpop.permute.xlu0 %356
      %358 = vrot.lane.b32.xlu0 %v313, 64
      %v359 = vpop.permute.xlu0 %358
      %360 = vrot.lane.b32.xlu0 %v314, 64
      %v361 = vpop.permute.xlu0 %360
      %362 = vrot.lane.b32.xlu0 %v315, 64
      %v363 = vpop.permute.xlu0 %362
      %vm380 = vcmask 720384
      %381 = vst.msk [vmem:[#allocation2] sm:$0xff] %vm380, %v333
      %382 = vst.msk [vmem:[#allocation2 + $0x8] sm:$0xff] %vm380, %v335
      %383 = vst.msk [vmem:[#allocation2 + $0x10] sm:$0xff] %vm380, %v337
      %384 = vst.msk [vmem:[#allocation2 + $0x18] sm:$0xff] %vm380, %v339
      %385 = vst.msk [vmem:[#allocation2 + $0x20] sm:$0xff] %vm380, %v341
      %386 = vst.msk [vmem:[#allocation2 + $0x28] sm:$0xff] %vm380, %v343
      %387 = vst.msk [vmem:[#allocation2 + $0x30] sm:$0xff] %vm380, %v345
      %388 = vst.msk [vmem:[#allocation2 + $0x38] sm:$0xff] %vm380, %v347
      %389 = vst.msk [vmem:[#allocation2 + $0x40] sm:$0xff] %vm380, %v349
      %390 = vst.msk [vmem:[#allocation2 + $0x48] sm:$0xff] %vm380, %v351
      %391 = vst.msk [vmem:[#allocation2 + $0x50] sm:$0xff] %vm380, %v353
      %392 = vst.msk [vmem:[#allocation2 + $0x58] sm:$0xff] %vm380, %v355
      %393 = vst.msk [vmem:[#allocation2 + $0x60] sm:$0xff] %vm380, %v357
      %394 = vst.msk [vmem:[#allocation2 + $0x68] sm:$0xff] %vm380, %v359
      %395 = vst.msk [vmem:[#allocation2 + $0x70] sm:$0xff] %vm380, %v361
      %396 = vst.msk [vmem:[#allocation2 + $0x78] sm:$0xff] %vm380, %v363
      %v397 = vld [vmem:[%s4] sm:$0xff]
      %v398 = vld [vmem:[%s4 + $0x8] sm:$0xff]
      %v399 = vld [vmem:[%s4 + $0x10] sm:$0xff]
      %v400 = vld [vmem:[%s4 + $0x18] sm:$0xff]
      %v401 = vld [vmem:[%s4 + $0x20] sm:$0xff]
      %v402 = vld [vmem:[%s4 + $0x28] sm:$0xff]
      %v403 = vld [vmem:[%s4 + $0x30] sm:$0xff]
      %v404 = vld [vmem:[%s4 + $0x38] sm:$0xff]
      %v405 = vld [vmem:[%s4 + $0x40] sm:$0xff]
      %v406 = vld [vmem:[%s4 + $0x48] sm:$0xff]
      %v407 = vld [vmem:[%s4 + $0x50] sm:$0xff]
      %v408 = vld [vmem:[%s4 + $0x58] sm:$0xff]
      %v409 = vld [vmem:[%s4 + $0x60] sm:$0xff]
      %v410 = vld [vmem:[%s4 + $0x68] sm:$0xff]
      %v411 = vld [vmem:[%s4 + $0x70] sm:$0xff]
      %v412 = vld [vmem:[%s4 + $0x78] sm:$0xff]
      %v413 = vld [vmem:[#allocation2] sm:$0xff]
      %v414 = vld [vmem:[#allocation2 + $0x8] sm:$0xff]
      %v415 = vld [vmem:[#allocation2 + $0x10] sm:$0xff]
      %v416 = vld [vmem:[#allocation2 + $0x18] sm:$0xff]
      %v417 = vld [vmem:[#allocation2 + $0x20] sm:$0xff]
      %v418 = vld [vmem:[#allocation2 + $0x28] sm:$0xff]
      %v419 = vld [vmem:[#allocation2 + $0x30] sm:$0xff]
      %v420 = vld [vmem:[#allocation2 + $0x38] sm:$0xff]
      %v421 = vld [vmem:[#allocation2 + $0x40] sm:$0xff]
      %v422 = vld [vmem:[#allocation2 + $0x48] sm:$0xff]
      %v423 = vld [vmem:[#allocation2 + $0x50] sm:$0xff]
      %v424 = vld [vmem:[#allocation2 + $0x58] sm:$0xff]
      %v425 = vld [vmem:[#allocation2 + $0x60] sm:$0xff]
      %v426 = vld [vmem:[#allocation2 + $0x68] sm:$0xff]
      %v427 = vld [vmem:[#allocation2 + $0x70] sm:$0xff]
      %v428 = vld [vmem:[#allocation2 + $0x78] sm:$0xff]
      %v429 = vpack.c.bf16 %v414, %v413
      %v430 = vpack.c.bf16 %v416, %v415
      %v431 = vpack.c.bf16 %v418, %v417
      %v432 = vpack.c.bf16 %v420, %v419
      %v433 = vpack.c.bf16 %v422, %v421
      %v434 = vpack.c.bf16 %v424, %v423
      %v435 = vpack.c.bf16 %v426, %v425
      %v436 = vpack.c.bf16 %v428, %v427
      %v437 = vld [vmem:[%s1] sm:$0xf]
      %v438 = vld [vmem:[%s1 + $0x4] sm:$0xf]
      %v439 = vld [vmem:[%s1 + $0x8] sm:$0xf]
      %v440 = vld [vmem:[%s1 + $0xc] sm:$0xf]
      %v441 = vld [vmem:[%s1 + $0x10] sm:$0xf]
      %v442 = vld [vmem:[%s1 + $0x14] sm:$0xf]
      %v443 = vld [vmem:[%s1 + $0x18] sm:$0xf]
      %v444 = vld [vmem:[%s1 + $0x1c] sm:$0xf]
      %v445 = vld [vmem:[%s1 + $0x20] sm:$0xf]
      %v446 = vld [vmem:[%s1 + $0x24] sm:$0xf]
      %v447 = vld [vmem:[%s1 + $0x28] sm:$0xf]
      %v459 = vunpack.c.l.b16 %v437
      %v460 = vunpack.c.l.b16 %v438
      %v461 = vunpack.c.l.b16 %v439
      %v462 = vunpack.c.l.b16 %v440
      %v463 = vunpack.c.l.b16 %v441
      %v464 = vunpack.c.l.b16 %v442
      %v465 = vunpack.c.l.b16 %v443
      %v466 = vunpack.c.l.b16 %v444
      %v467 = vunpack.c.l.b16 %v445
      %v468 = vunpack.c.l.b16 %v446
      %v469 = vunpack.c.l.b16 %v447
      %v470 = vpack.c.b16 %v460, %v459
      %v471 = vpack.c.b16 %v462, %v461
      %v472 = vpack.c.b16 %v464, %v463
      %v473 = vpack.c.b16 %v466, %v465
      %v474 = vpack.c.b16 %v468, %v467
      %v475 = vpack.c.b16 %v469, %v469
      %vm481 = vcmask 719872
      %v483 = vsel %vm481, %v429, 0
      %v486 = vsel %vm481, %v430, 0
      %v489 = vsel %vm481, %v431, 0
      %v492 = vsel %vm481, %v432, 0
      %v495 = vsel %vm481, %v433, 0
      %v498 = vsel %vm481, %v434, 0
      %v501 = vsel %vm481, %v435, 0
      %v504 = vsel %vm481, %v436, 0
      %vm506 = vcmask 1043456
      %v508 = vsel %vm506, %v475, 0
      %510 = vmatpush.bf16.msra.mxu0 0
      %511 = vmatpush.bf16.msra.mxu0 0
      %512 = vmatpush.bf16.msra.mxu0 %v508
      %513 = vmatpush.bf16.msra.mxu0 %v474
      %514 = vmatpush.bf16.msra.mxu0 %v473
      %515 = vmatpush.bf16.msra.mxu0 %v472
      %516 = vmatpush.bf16.msra.mxu0 %v471
      %517 = vmatpush.bf16.msra.mxu0 %v470
      %518 = vmatmul.bf16.gmra.mxu0 %v483
      %v519 = vpop.f32.mrf.mxu0
      %v520 = vadd.f32 0.0, %v519
      %v521 = vpop.f32.mrf.mxu0
      %v522 = vadd.f32 0.0, %v521
      %523 = vmatmul.bf16.gmra.mxu0 %v486
      %v524 = vpop.f32.mrf.mxu0
      %v525 = vadd.f32 0.0, %v524
      %v526 = vpop.f32.mrf.mxu0
      %v527 = vadd.f32 0.0, %v526
      %528 = vmatmul.bf16.gmra.mxu0 %v489
      %v529 = vpop.f32.mrf.mxu0
      %v530 = vadd.f32 0.0, %v529
      %v531 = vpop.f32.mrf.mxu0
      %v532 = vadd.f32 0.0, %v531
      %533 = vmatmul.bf16.gmra.mxu0 %v492
      %v534 = vpop.f32.mrf.mxu0
      %v535 = vadd.f32 0.0, %v534
      %v536 = vpop.f32.mrf.mxu0
      %v537 = vadd.f32 0.0, %v536
      %538 = vmatmul.bf16.gmra.mxu0 %v495
      %v539 = vpop.f32.mrf.mxu0
      %v540 = vadd.f32 0.0, %v539
      %v541 = vpop.f32.mrf.mxu0
      %v542 = vadd.f32 0.0, %v541
      %543 = vmatmul.bf16.gmra.mxu0 %v498
      %v544 = vpop.f32.mrf.mxu0
      %v545 = vadd.f32 0.0, %v544
      %v546 = vpop.f32.mrf.mxu0
      %v547 = vadd.f32 0.0, %v546
      %548 = vmatmul.bf16.gmra.mxu0 %v501
      %v549 = vpop.f32.mrf.mxu0
      %v550 = vadd.f32 0.0, %v549
      %v551 = vpop.f32.mrf.mxu0
      %v552 = vadd.f32 0.0, %v551
      %553 = vmatmul.bf16.gmra.mxu0 %v504
      %v554 = vpop.f32.mrf.mxu0
      %v555 = vadd.f32 0.0, %v554
      %v556 = vpop.f32.mrf.mxu0
      %v557 = vadd.f32 0.0, %v556
      %558 = vdwg.mxu0
      %v559 = vld [vmem:[%s2] sm:$0x1]
      %v561 = vperm.slane %v559, 0
      %v563 = vsub.f32 %v520, %v561
      %v564 = vsub.f32 %v522, %v561
      %v565 = vsub.f32 %v525, %v561
      %v566 = vsub.f32 %v527, %v561
      %v567 = vsub.f32 %v530, %v561
      %v568 = vsub.f32 %v532, %v561
      %v569 = vsub.f32 %v535, %v561
      %v570 = vsub.f32 %v537, %v561
      %v571 = vsub.f32 %v540, %v561
      %v572 = vsub.f32 %v542, %v561
      %v573 = vsub.f32 %v545, %v561
      %v574 = vsub.f32 %v547, %v561
      %v575 = vsub.f32 %v550, %v561
      %v576 = vsub.f32 %v552, %v561
      %v577 = vsub.f32 %v555, %v561
      %v578 = vsub.f32 %v557, %v561
      %v579 = vand.u32 2147483647, %v563
      %v580 = vand.u32 2147483647, %v564
      %v581 = vand.u32 2147483647, %v565
      %v582 = vand.u32 2147483647, %v566
      %v583 = vand.u32 2147483647, %v567
      %v584 = vand.u32 2147483647, %v568
      %v585 = vand.u32 2147483647, %v569
      %v586 = vand.u32 2147483647, %v570
      %v587 = vand.u32 2147483647, %v571
      %v588 = vand.u32 2147483647, %v572
      %v589 = vand.u32 2147483647, %v573
      %v590 = vand.u32 2147483647, %v574
      %v591 = vand.u32 2147483647, %v575
      %v592 = vand.u32 2147483647, %v576
      %v593 = vand.u32 2147483647, %v577
      %v594 = vand.u32 2147483647, %v578
      %vm595 = vcmp.ge.f32.partialorder %v563, 0.0
      %vm596 = vcmp.ge.f32.partialorder %v564, 0.0
      %vm597 = vcmp.ge.f32.partialorder %v565, 0.0
      %vm598 = vcmp.ge.f32.partialorder %v566, 0.0
      %vm599 = vcmp.ge.f32.partialorder %v567, 0.0
      %vm600 = vcmp.ge.f32.partialorder %v568, 0.0
      %vm601 = vcmp.ge.f32.partialorder %v569, 0.0
      %vm602 = vcmp.ge.f32.partialorder %v570, 0.0
      %vm603 = vcmp.ge.f32.partialorder %v571, 0.0
      %vm604 = vcmp.ge.f32.partialorder %v572, 0.0
      %vm605 = vcmp.ge.f32.partialorder %v573, 0.0
      %vm606 = vcmp.ge.f32.partialorder %v574, 0.0
      %vm607 = vcmp.ge.f32.partialorder %v575, 0.0
      %vm608 = vcmp.ge.f32.partialorder %v576, 0.0
      %vm609 = vcmp.ge.f32.partialorder %v577, 0.0
      %vm610 = vcmp.ge.f32.partialorder %v578, 0.0
      %v611 = vmul.f32 %v579, %v579
      %v612 = vmul.f32 %v580, %v580
      %v613 = vmul.f32 %v581, %v581
      %v614 = vmul.f32 %v582, %v582
      %v615 = vmul.f32 %v583, %v583
      %v616 = vmul.f32 %v584, %v584
      %v617 = vmul.f32 %v585, %v585
      %v618 = vmul.f32 %v586, %v586
      %v619 = vmul.f32 %v587, %v587
      %v620 = vmul.f32 %v588, %v588
      %v621 = vmul.f32 %v589, %v589
      %v622 = vmul.f32 %v590, %v590
      %v623 = vmul.f32 %v591, %v591
      %v624 = vmul.f32 %v592, %v592
      %v625 = vmul.f32 %v593, %v593
      %v626 = vmul.f32 %v594, %v594
      %v627 = vsub.f32 8.0, %v611
      %v628 = vsub.f32 8.0, %v612
      %v629 = vsub.f32 8.0, %v613
      %v630 = vsub.f32 8.0, %v614
      %v631 = vsub.f32 8.0, %v615
      %v632 = vsub.f32 8.0, %v616
      %v633 = vsub.f32 8.0, %v617
      %v634 = vsub.f32 8.0, %v618
      %v635 = vsub.f32 8.0, %v619
      %v636 = vsub.f32 8.0, %v620
      %v637 = vsub.f32 8.0, %v621
      %v638 = vsub.f32 8.0, %v622
      %v639 = vsub.f32 8.0, %v623
      %v640 = vsub.f32 8.0, %v624
      %v641 = vsub.f32 8.0, %v625
      %v642 = vsub.f32 8.0, %v626
      %v643 = vmax.f32 %v627, 0.0
      %v644 = vmax.f32 %v628, 0.0
      %v645 = vmax.f32 %v629, 0.0
      %v646 = vmax.f32 %v630, 0.0
      %v647 = vmax.f32 %v631, 0.0
      %v648 = vmax.f32 %v632, 0.0
      %v649 = vmax.f32 %v633, 0.0
      %v650 = vmax.f32 %v634, 0.0
      %v651 = vmax.f32 %v635, 0.0
      %v652 = vmax.f32 %v636, 0.0
      %v653 = vmax.f32 %v637, 0.0
      %v654 = vmax.f32 %v638, 0.0
      %v655 = vmax.f32 %v639, 0.0
      %v656 = vmax.f32 %v640, 0.0
      %v657 = vmax.f32 %v641, 0.0
      %v658 = vmax.f32 %v642, 0.0
      %v659 = vrsqrt.pop %v643
      %v660 = vmul.f32 %v659, %v643
      %v661 = vmul.f32 %v660, %v659
      %v662 = vmul.f32 0.5, %v661
      %v663 = vsub.f32 1.5, %v662
      %v664 = vmul.f32 %v659, %v663
      %v665 = vmul.f32 %v643, %v664
      %vm666 = vcmp.eq.f32.partialorder %v643, inf
      %v667 = vsel %vm666, %v643, %v665
      %vm668 = vcmp.eq.f32.partialorder %v643, 0.0
      %v669 = vand.u32 %v643, 2147483648
      %v670 = vsel %vm668, %v669, %v667
      %v671 = vrsqrt.pop %v644
      %v672 = vmul.f32 %v671, %v644
      %v673 = vmul.f32 %v672, %v671
      %v674 = vmul.f32 0.5, %v673
      %v675 = vsub.f32 1.5, %v674
      %v676 = vmul.f32 %v671, %v675
      %v677 = vmul.f32 %v644, %v676
      %vm678 = vcmp.eq.f32.partialorder %v644, inf
      %v679 = vsel %vm678, %v644, %v677
      %vm680 = vcmp.eq.f32.partialorder %v644, 0.0
      %v681 = vand.u32 %v644, 2147483648
      %v682 = vsel %vm680, %v681, %v679
      %v683 = vrsqrt.pop %v645
      %v684 = vmul.f32 %v683, %v645
      %v685 = vmul.f32 %v684, %v683
      %v686 = vmul.f32 0.5, %v685
      %v687 = vsub.f32 1.5, %v686
      %v688 = vmul.f32 %v683, %v687
      %v689 = vmul.f32 %v645, %v688
      %vm690 = vcmp.eq.f32.partialorder %v645, inf
      %v691 = vsel %vm690, %v645, %v689
      %vm692 = vcmp.eq.f32.partialorder %v645, 0.0
      %v693 = vand.u32 %v645, 2147483648
      %v694 = vsel %vm692, %v693, %v691
      %v695 = vrsqrt.pop %v646
      %v696 = vmul.f32 %v695, %v646
      %v697 = vmul.f32 %v696, %v695
      %v698 = vmul.f32 0.5, %v697
      %v699 = vsub.f32 1.5, %v698
      %v700 = vmul.f32 %v695, %v699
      %v701 = vmul.f32 %v646, %v700
      %vm702 = vcmp.eq.f32.partialorder %v646, inf
      %v703 = vsel %vm702, %v646, %v701
      %vm704 = vcmp.eq.f32.partialorder %v646, 0.0
      %v705 = vand.u32 %v646, 2147483648
      %v706 = vsel %vm704, %v705, %v703
      %v707 = vrsqrt.pop %v647
      %v708 = vmul.f32 %v707, %v647
      %v709 = vmul.f32 %v708, %v707
      %v710 = vmul.f32 0.5, %v709
      %v711 = vsub.f32 1.5, %v710
      %v712 = vmul.f32 %v707, %v711
      %v713 = vmul.f32 %v647, %v712
      %vm714 = vcmp.eq.f32.partialorder %v647, inf
      %v715 = vsel %vm714, %v647, %v713
      %vm716 = vcmp.eq.f32.partialorder %v647, 0.0
      %v717 = vand.u32 %v647, 2147483648
      %v718 = vsel %vm716, %v717, %v715
      %v719 = vrsqrt.pop %v648
      %v720 = vmul.f32 %v719, %v648
      %v721 = vmul.f32 %v720, %v719
      %v722 = vmul.f32 0.5, %v721
      %v723 = vsub.f32 1.5, %v722
      %v724 = vmul.f32 %v719, %v723
      %v725 = vmul.f32 %v648, %v724
      %vm726 = vcmp.eq.f32.partialorder %v648, inf
      %v727 = vsel %vm726, %v648, %v725
      %vm728 = vcmp.eq.f32.partialorder %v648, 0.0
      %v729 = vand.u32 %v648, 2147483648
      %v730 = vsel %vm728, %v729, %v727
      %v731 = vrsqrt.pop %v649
      %v732 = vmul.f32 %v731, %v649
      %v733 = vmul.f32 %v732, %v731
      %v734 = vmul.f32 0.5, %v733
      %v735 = vsub.f32 1.5, %v734
      %v736 = vmul.f32 %v731, %v735
      %v737 = vmul.f32 %v649, %v736
      %vm738 = vcmp.eq.f32.partialorder %v649, inf
      %v739 = vsel %vm738, %v649, %v737
      %vm740 = vcmp.eq.f32.partialorder %v649, 0.0
      %v741 = vand.u32 %v649, 2147483648
      %v742 = vsel %vm740, %v741, %v739
      %v743 = vrsqrt.pop %v650
      %v744 = vmul.f32 %v743, %v650
      %v745 = vmul.f32 %v744, %v743
      %v746 = vmul.f32 0.5, %v745
      %v747 = vsub.f32 1.5, %v746
      %v748 = vmul.f32 %v743, %v747
      %v749 = vmul.f32 %v650, %v748
      %vm750 = vcmp.eq.f32.partialorder %v650, inf
      %v751 = vsel %vm750, %v650, %v749
      %vm752 = vcmp.eq.f32.partialorder %v650, 0.0
      %v753 = vand.u32 %v650, 2147483648
      %v754 = vsel %vm752, %v753, %v751
      %v755 = vrsqrt.pop %v651
      %v756 = vmul.f32 %v755, %v651
      %v757 = vmul.f32 %v756, %v755
      %v758 = vmul.f32 0.5, %v757
      %v759 = vsub.f32 1.5, %v758
      %v760 = vmul.f32 %v755, %v759
      %v761 = vmul.f32 %v651, %v760
      %vm762 = vcmp.eq.f32.partialorder %v651, inf
      %v763 = vsel %vm762, %v651, %v761
      %vm764 = vcmp.eq.f32.partialorder %v651, 0.0
      %v765 = vand.u32 %v651, 2147483648
      %v766 = vsel %vm764, %v765, %v763
      %v767 = vrsqrt.pop %v652
      %v768 = vmul.f32 %v767, %v652
      %v769 = vmul.f32 %v768, %v767
      %v770 = vmul.f32 0.5, %v769
      %v771 = vsub.f32 1.5, %v770
      %v772 = vmul.f32 %v767, %v771
      %v773 = vmul.f32 %v652, %v772
      %vm774 = vcmp.eq.f32.partialorder %v652, inf
      %v775 = vsel %vm774, %v652, %v773
      %vm776 = vcmp.eq.f32.partialorder %v652, 0.0
      %v777 = vand.u32 %v652, 2147483648
      %v778 = vsel %vm776, %v777, %v775
      %v779 = vrsqrt.pop %v653
      %v780 = vmul.f32 %v779, %v653
      %v781 = vmul.f32 %v780, %v779
      %v782 = vmul.f32 0.5, %v781
      %v783 = vsub.f32 1.5, %v782
      %v784 = vmul.f32 %v779, %v783
      %v785 = vmul.f32 %v653, %v784
      %vm786 = vcmp.eq.f32.partialorder %v653, inf
      %v787 = vsel %vm786, %v653, %v785
      %vm788 = vcmp.eq.f32.partialorder %v653, 0.0
      %v789 = vand.u32 %v653, 2147483648
      %v790 = vsel %vm788, %v789, %v787
      %v791 = vrsqrt.pop %v654
      %v792 = vmul.f32 %v791, %v654
      %v793 = vmul.f32 %v792, %v791
      %v794 = vmul.f32 0.5, %v793
      %v795 = vsub.f32 1.5, %v794
      %v796 = vmul.f32 %v791, %v795
      %v797 = vmul.f32 %v654, %v796
      %vm798 = vcmp.eq.f32.partialorder %v654, inf
      %v799 = vsel %vm798, %v654, %v797
      %vm800 = vcmp.eq.f32.partialorder %v654, 0.0
      %v801 = vand.u32 %v654, 2147483648
      %v802 = vsel %vm800, %v801, %v799
      %v803 = vrsqrt.pop %v655
      %v804 = vmul.f32 %v803, %v655
      %v805 = vmul.f32 %v804, %v803
      %v806 = vmul.f32 0.5, %v805
      %v807 = vsub.f32 1.5, %v806
      %v808 = vmul.f32 %v803, %v807
      %v809 = vmul.f32 %v655, %v808
      %vm810 = vcmp.eq.f32.partialorder %v655, inf
      %v811 = vsel %vm810, %v655, %v809
      %vm812 = vcmp.eq.f32.partialorder %v655, 0.0
      %v813 = vand.u32 %v655, 2147483648
      %v814 = vsel %vm812, %v813, %v811
      %v815 = vrsqrt.pop %v656
      %v816 = vmul.f32 %v815, %v656
      %v817 = vmul.f32 %v816, %v815
      %v818 = vmul.f32 0.5, %v817
      %v819 = vsub.f32 1.5, %v818
      %v820 = vmul.f32 %v815, %v819
      %v821 = vmul.f32 %v656, %v820
      %vm822 = vcmp.eq.f32.partialorder %v656, inf
      %v823 = vsel %vm822, %v656, %v821
      %vm824 = vcmp.eq.f32.partialorder %v656, 0.0
      %v825 = vand.u32 %v656, 2147483648
      %v826 = vsel %vm824, %v825, %v823
      %v827 = vrsqrt.pop %v657
      %v828 = vmul.f32 %v827, %v657
      %v829 = vmul.f32 %v828, %v827
      %v830 = vmul.f32 0.5, %v829
      %v831 = vsub.f32 1.5, %v830
      %v832 = vmul.f32 %v827, %v831
      %v833 = vmul.f32 %v657, %v832
      %vm834 = vcmp.eq.f32.partialorder %v657, inf
      %v835 = vsel %vm834, %v657, %v833
      %vm836 = vcmp.eq.f32.partialorder %v657, 0.0
      %v837 = vand.u32 %v657, 2147483648
      %v838 = vsel %vm836, %v837, %v835
      %v839 = vrsqrt.pop %v658
      %v840 = vmul.f32 %v839, %v658
      %v841 = vmul.f32 %v840, %v839
      %v842 = vmul.f32 0.5, %v841
      %v843 = vsub.f32 1.5, %v842
      %v844 = vmul.f32 %v839, %v843
      %v845 = vmul.f32 %v658, %v844
      %vm846 = vcmp.eq.f32.partialorder %v658, inf
      %v847 = vsel %vm846, %v658, %v845
      %vm848 = vcmp.eq.f32.partialorder %v658, 0.0
      %v849 = vand.u32 %v658, 2147483648
      %v850 = vsel %vm848, %v849, %v847
      %v851 = vadd.f32 %v579, %v670
      %v852 = vadd.f32 %v580, %v682
      %v853 = vadd.f32 %v581, %v694
      %v854 = vadd.f32 %v582, %v706
      %v855 = vadd.f32 %v583, %v718
      %v856 = vadd.f32 %v584, %v730
      %v857 = vadd.f32 %v585, %v742
      %v858 = vadd.f32 %v586, %v754
      %v859 = vadd.f32 %v587, %v766
      %v860 = vadd.f32 %v588, %v778
      %v861 = vadd.f32 %v589, %v790
      %v862 = vadd.f32 %v590, %v802
      %v863 = vadd.f32 %v591, %v814
      %v864 = vadd.f32 %v592, %v826
      %v865 = vadd.f32 %v593, %v838
      %v866 = vadd.f32 %v594, %v850
      %v867 = vmul.f32 %v851, 0.5
      %v868 = vmul.f32 %v852, 0.5
      %v869 = vmul.f32 %v853, 0.5
      %v870 = vmul.f32 %v854, 0.5
      %v871 = vmul.f32 %v855, 0.5
      %v872 = vmul.f32 %v856, 0.5
      %v873 = vmul.f32 %v857, 0.5
      %v874 = vmul.f32 %v858, 0.5
      %v875 = vmul.f32 %v859, 0.5
      %v876 = vmul.f32 %v860, 0.5
      %v877 = vmul.f32 %v861, 0.5
      %v878 = vmul.f32 %v862, 0.5
      %v879 = vmul.f32 %v863, 0.5
      %v880 = vmul.f32 %v864, 0.5
      %v881 = vmul.f32 %v865, 0.5
      %v882 = vmul.f32 %v866, 0.5
      %vm883 = vcmp.le.f32.partialorder %v867, %v579
      %vm884 = vcmp.le.f32.partialorder %v868, %v580
      %vm885 = vcmp.le.f32.partialorder %v869, %v581
      %vm886 = vcmp.le.f32.partialorder %v870, %v582
      %vm887 = vcmp.le.f32.partialorder %v871, %v583
      %vm888 = vcmp.le.f32.partialorder %v872, %v584
      %vm889 = vcmp.le.f32.partialorder %v873, %v585
      %vm890 = vcmp.le.f32.partialorder %v874, %v586
      %vm891 = vcmp.le.f32.partialorder %v875, %v587
      %vm892 = vcmp.le.f32.partialorder %v876, %v588
      %vm893 = vcmp.le.f32.partialorder %v877, %v589
      %vm894 = vcmp.le.f32.partialorder %v878, %v590
      %vm895 = vcmp.le.f32.partialorder %v879, %v591
      %vm896 = vcmp.le.f32.partialorder %v880, %v592
      %vm897 = vcmp.le.f32.partialorder %v881, %v593
      %vm898 = vcmp.le.f32.partialorder %v882, %v594
      %v899 = vsel %vm883, 2.0, %v867
      %v900 = vsel %vm884, 2.0, %v868
      %v901 = vsel %vm885, 2.0, %v869
      %v902 = vsel %vm886, 2.0, %v870
      %v903 = vsel %vm887, 2.0, %v871
      %v904 = vsel %vm888, 2.0, %v872
      %v905 = vsel %vm889, 2.0, %v873
      %v906 = vsel %vm890, 2.0, %v874
      %v907 = vsel %vm891, 2.0, %v875
      %v908 = vsel %vm892, 2.0, %v876
      %v909 = vsel %vm893, 2.0, %v877
      %v910 = vsel %vm894, 2.0, %v878
      %v911 = vsel %vm895, 2.0, %v879
      %v912 = vsel %vm896, 2.0, %v880
      %v913 = vsel %vm897, 2.0, %v881
      %v914 = vsel %vm898, 2.0, %v882
      %v915 = vsub.f32 %v899, %v579
      %v916 = vsub.f32 %v900, %v580
      %v917 = vsub.f32 %v901, %v581
      %v918 = vsub.f32 %v902, %v582
      %v919 = vsub.f32 %v903, %v583
      %v920 = vsub.f32 %v904, %v584
      %v921 = vsub.f32 %v905, %v585
      %v922 = vsub.f32 %v906, %v586
      %v923 = vsub.f32 %v907, %v587
      %v924 = vsub.f32 %v908, %v588
      %v925 = vsub.f32 %v909, %v589
      %v926 = vsub.f32 %v910, %v590
      %v927 = vsub.f32 %v911, %v591
      %v928 = vsub.f32 %v912, %v592
      %v929 = vsub.f32 %v913, %v593
      %v930 = vsub.f32 %v914, %v594
      %v931 = vmax.f32 %v915, 0.0
      %v932 = vmax.f32 %v916, 0.0
      %v933 = vmax.f32 %v917, 0.0
      %v934 = vmax.f32 %v918, 0.0
      %v935 = vmax.f32 %v919, 0.0
      %v936 = vmax.f32 %v920, 0.0
      %v937 = vmax.f32 %v921, 0.0
      %v938 = vmax.f32 %v922, 0.0
      %v939 = vmax.f32 %v923, 0.0
      %v940 = vmax.f32 %v924, 0.0
      %v941 = vmax.f32 %v925, 0.0
      %v942 = vmax.f32 %v926, 0.0
      %v943 = vmax.f32 %v927, 0.0
      %v944 = vmax.f32 %v928, 0.0
      %v945 = vmax.f32 %v929, 0.0
      %v946 = vmax.f32 %v930, 0.0
      %v947 = vmul.f32 %v931, %v931
      %v948 = vmul.f32 %v932, %v932
      %v949 = vmul.f32 %v933, %v933
      %v950 = vmul.f32 %v934, %v934
      %v951 = vmul.f32 %v935, %v935
      %v952 = vmul.f32 %v936, %v936
      %v953 = vmul.f32 %v937, %v937
      %v954 = vmul.f32 %v938, %v938
      %v955 = vmul.f32 %v939, %v939
      %v956 = vmul.f32 %v940, %v940
      %v957 = vmul.f32 %v941, %v941
      %v958 = vmul.f32 %v942, %v942
      %v959 = vmul.f32 %v943, %v943
      %v960 = vmul.f32 %v944, %v944
      %v961 = vmul.f32 %v945, %v945
      %v962 = vmul.f32 %v946, %v946
      %v963 = vmul.f32 %v947, 0.25
      %v964 = vmul.f32 %v948, 0.25
      %v965 = vmul.f32 %v949, 0.25
      %v966 = vmul.f32 %v950, 0.25
      %v967 = vmul.f32 %v951, 0.25
      %v968 = vmul.f32 %v952, 0.25
      %v969 = vmul.f32 %v953, 0.25
      %v970 = vmul.f32 %v954, 0.25
      %v971 = vmul.f32 %v955, 0.25
      %v972 = vmul.f32 %v956, 0.25
      %v973 = vmul.f32 %v957, 0.25
      %v974 = vmul.f32 %v958, 0.25
      %v975 = vmul.f32 %v959, 0.25
      %v976 = vmul.f32 %v960, 0.25
      %v977 = vmul.f32 %v961, 0.25
      %v978 = vmul.f32 %v962, 0.25
      %v979 = vsub.f32 1.0, %v963
      %v980 = vsub.f32 1.0, %v964
      %v981 = vsub.f32 1.0, %v965
      %v982 = vsub.f32 1.0, %v966
      %v983 = vsub.f32 1.0, %v967
      %v984 = vsub.f32 1.0, %v968
      %v985 = vsub.f32 1.0, %v969
      %v986 = vsub.f32 1.0, %v970
      %v987 = vsub.f32 1.0, %v971
      %v988 = vsub.f32 1.0, %v972
      %v989 = vsub.f32 1.0, %v973
      %v990 = vsub.f32 1.0, %v974
      %v991 = vsub.f32 1.0, %v975
      %v992 = vsub.f32 1.0, %v976
      %v993 = vsub.f32 1.0, %v977
      %v994 = vsub.f32 1.0, %v978
      %v995 = vsel %vm595, %v979, %v963
      %v996 = vsel %vm596, %v980, %v964
      %v997 = vsel %vm597, %v981, %v965
      %v998 = vsel %vm598, %v982, %v966
      %v999 = vsel %vm599, %v983, %v967
      %v1000 = vsel %vm600, %v984, %v968
      %v1001 = vsel %vm601, %v985, %v969
      %v1002 = vsel %vm602, %v986, %v970
      %v1003 = vsel %vm603, %v987, %v971
      %v1004 = vsel %vm604, %v988, %v972
      %v1005 = vsel %vm605, %v989, %v973
      %v1006 = vsel %vm606, %v990, %v974
      %v1007 = vsel %vm607, %v991, %v975
      %v1008 = vsel %vm608, %v992, %v976
      %v1009 = vsel %vm609, %v993, %v977
      %v1010 = vsel %vm610, %v994, %v978
      %v1011 = vsub.f32 1.0, %v995
      %v1012 = vsub.f32 1.0, %v996
      %v1013 = vsub.f32 1.0, %v997
      %v1014 = vsub.f32 1.0, %v998
      %v1015 = vsub.f32 1.0, %v999
      %v1016 = vsub.f32 1.0, %v1000
      %v1017 = vsub.f32 1.0, %v1001
      %v1018 = vsub.f32 1.0, %v1002
      %v1019 = vsub.f32 1.0, %v1003
      %v1020 = vsub.f32 1.0, %v1004
      %v1021 = vsub.f32 1.0, %v1005
      %v1022 = vsub.f32 1.0, %v1006
      %v1023 = vsub.f32 1.0, %v1007
      %v1024 = vsub.f32 1.0, %v1008
      %v1025 = vsub.f32 1.0, %v1009
      %v1026 = vsub.f32 1.0, %v1010
      %1043 = vrot.lane.b32.xlu0 %v995, 112
      %v1044 = vpop.permute.xlu0 %1043
      %1045 = vrot.lane.b32.xlu0 %v996, 112
      %v1046 = vpop.permute.xlu0 %1045
      %1047 = vrot.lane.b32.xlu0 %v997, 112
      %v1048 = vpop.permute.xlu0 %1047
      %1049 = vrot.lane.b32.xlu0 %v998, 112
      %v1050 = vpop.permute.xlu0 %1049
      %1051 = vrot.lane.b32.xlu0 %v999, 112
      %v1052 = vpop.permute.xlu0 %1051
      %1053 = vrot.lane.b32.xlu0 %v1000, 112
      %v1054 = vpop.permute.xlu0 %1053
      %1055 = vrot.lane.b32.xlu0 %v1001, 112
      %v1056 = vpop.permute.xlu0 %1055
      %1057 = vrot.lane.b32.xlu0 %v1002, 112
      %v1058 = vpop.permute.xlu0 %1057
      %1059 = vrot.lane.b32.xlu0 %v1003, 112
      %v1060 = vpop.permute.xlu0 %1059
      %1061 = vrot.lane.b32.xlu0 %v1004, 112
      %v1062 = vpop.permute.xlu0 %1061
      %1063 = vrot.lane.b32.xlu0 %v1005, 112
      %v1064 = vpop.permute.xlu0 %1063
      %1065 = vrot.lane.b32.xlu0 %v1006, 112
      %v1066 = vpop.permute.xlu0 %1065
      %1067 = vrot.lane.b32.xlu0 %v1007, 112
      %v1068 = vpop.permute.xlu0 %1067
      %1069 = vrot.lane.b32.xlu0 %v1008, 112
      %v1070 = vpop.permute.xlu0 %1069
      %1071 = vrot.lane.b32.xlu0 %v1009, 112
      %v1072 = vpop.permute.xlu0 %1071
      %1073 = vrot.lane.b32.xlu0 %v1010, 112
      %v1074 = vpop.permute.xlu0 %1073
      %v1091 = vmul.f32 %v995, %v1044
      %v1092 = vmul.f32 %v996, %v1046
      %v1093 = vmul.f32 %v997, %v1048
      %v1094 = vmul.f32 %v998, %v1050
      %v1095 = vmul.f32 %v999, %v1052
      %v1096 = vmul.f32 %v1000, %v1054
      %v1097 = vmul.f32 %v1001, %v1056
      %v1098 = vmul.f32 %v1002, %v1058
      %v1099 = vmul.f32 %v1003, %v1060
      %v1100 = vmul.f32 %v1004, %v1062
      %v1101 = vmul.f32 %v1005, %v1064
      %v1102 = vmul.f32 %v1006, %v1066
      %v1103 = vmul.f32 %v1007, %v1068
      %v1104 = vmul.f32 %v1008, %v1070
      %v1105 = vmul.f32 %v1009, %v1072
      %v1106 = vmul.f32 %v1010, %v1074
      %v1107 = vmul.f32 %v1011, %v1044
      %v1108 = vmul.f32 %v1012, %v1046
      %v1109 = vmul.f32 %v1013, %v1048
      %v1110 = vmul.f32 %v1014, %v1050
      %v1111 = vmul.f32 %v1015, %v1052
      %v1112 = vmul.f32 %v1016, %v1054
      %v1113 = vmul.f32 %v1017, %v1056
      %v1114 = vmul.f32 %v1018, %v1058
      %v1115 = vmul.f32 %v1019, %v1060
      %v1116 = vmul.f32 %v1020, %v1062
      %v1117 = vmul.f32 %v1021, %v1064
      %v1118 = vmul.f32 %v1022, %v1066
      %v1119 = vmul.f32 %v1023, %v1068
      %v1120 = vmul.f32 %v1024, %v1070
      %v1121 = vmul.f32 %v1025, %v1072
      %v1122 = vmul.f32 %v1026, %v1074
      %1139 = vrot.lane.b32.xlu0 %v1011, 112
      %v1140 = vpop.permute.xlu0 %1139
      %1141 = vrot.lane.b32.xlu0 %v1012, 112
      %v1142 = vpop.permute.xlu0 %1141
      %1143 = vrot.lane.b32.xlu0 %v1013, 112
      %v1144 = vpop.permute.xlu0 %1143
      %1145 = vrot.lane.b32.xlu0 %v1014, 112
      %v1146 = vpop.permute.xlu0 %1145
      %1147 = vrot.lane.b32.xlu0 %v1015, 112
      %v1148 = vpop.permute.xlu0 %1147
      %1149 = vrot.lane.b32.xlu0 %v1016, 112
      %v1150 = vpop.permute.xlu0 %1149
      %1151 = vrot.lane.b32.xlu0 %v1017, 112
      %v1152 = vpop.permute.xlu0 %1151
      %1153 = vrot.lane.b32.xlu0 %v1018, 112
      %v1154 = vpop.permute.xlu0 %1153
      %1155 = vrot.lane.b32.xlu0 %v1019, 112
      %v1156 = vpop.permute.xlu0 %1155
      %1157 = vrot.lane.b32.xlu0 %v1020, 112
      %v1158 = vpop.permute.xlu0 %1157
      %1159 = vrot.lane.b32.xlu0 %v1021, 112
      %v1160 = vpop.permute.xlu0 %1159
      %1161 = vrot.lane.b32.xlu0 %v1022, 112
      %v1162 = vpop.permute.xlu0 %1161
      %1163 = vrot.lane.b32.xlu0 %v1023, 112
      %v1164 = vpop.permute.xlu0 %1163
      %1165 = vrot.lane.b32.xlu0 %v1024, 112
      %v1166 = vpop.permute.xlu0 %1165
      %1167 = vrot.lane.b32.xlu0 %v1025, 112
      %v1168 = vpop.permute.xlu0 %1167
      %1169 = vrot.lane.b32.xlu0 %v1026, 112
      %v1170 = vpop.permute.xlu0 %1169
      %v1187 = vmul.f32 %v995, %v1140
      %v1188 = vmul.f32 %v996, %v1142
      %v1189 = vmul.f32 %v997, %v1144
      %v1190 = vmul.f32 %v998, %v1146
      %v1191 = vmul.f32 %v999, %v1148
      %v1192 = vmul.f32 %v1000, %v1150
      %v1193 = vmul.f32 %v1001, %v1152
      %v1194 = vmul.f32 %v1002, %v1154
      %v1195 = vmul.f32 %v1003, %v1156
      %v1196 = vmul.f32 %v1004, %v1158
      %v1197 = vmul.f32 %v1005, %v1160
      %v1198 = vmul.f32 %v1006, %v1162
      %v1199 = vmul.f32 %v1007, %v1164
      %v1200 = vmul.f32 %v1008, %v1166
      %v1201 = vmul.f32 %v1009, %v1168
      %v1202 = vmul.f32 %v1010, %v1170
      %v1203 = vmul.f32 %v1011, %v1140
      %v1204 = vmul.f32 %v1012, %v1142
      %v1205 = vmul.f32 %v1013, %v1144
      %v1206 = vmul.f32 %v1014, %v1146
      %v1207 = vmul.f32 %v1015, %v1148
      %v1208 = vmul.f32 %v1016, %v1150
      %v1209 = vmul.f32 %v1017, %v1152
      %v1210 = vmul.f32 %v1018, %v1154
      %v1211 = vmul.f32 %v1019, %v1156
      %v1212 = vmul.f32 %v1020, %v1158
      %v1213 = vmul.f32 %v1021, %v1160
      %v1214 = vmul.f32 %v1022, %v1162
      %v1215 = vmul.f32 %v1023, %v1164
      %v1216 = vmul.f32 %v1024, %v1166
      %v1217 = vmul.f32 %v1025, %v1168
      %v1218 = vmul.f32 %v1026, %v1170
      %1219 = vrot.lane.b32.xlu0 %v995, 96
      %v1220 = vpop.permute.xlu0 %1219
      %1221 = vrot.lane.b32.xlu0 %v996, 96
      %v1222 = vpop.permute.xlu0 %1221
      %1223 = vrot.lane.b32.xlu0 %v997, 96
      %v1224 = vpop.permute.xlu0 %1223
      %1225 = vrot.lane.b32.xlu0 %v998, 96
      %v1226 = vpop.permute.xlu0 %1225
      %1227 = vrot.lane.b32.xlu0 %v999, 96
      %v1228 = vpop.permute.xlu0 %1227
      %1229 = vrot.lane.b32.xlu0 %v1000, 96
      %v1230 = vpop.permute.xlu0 %1229
      %1231 = vrot.lane.b32.xlu0 %v1001, 96
      %v1232 = vpop.permute.xlu0 %1231
      %1233 = vrot.lane.b32.xlu0 %v1002, 96
      %v1234 = vpop.permute.xlu0 %1233
      %1235 = vrot.lane.b32.xlu0 %v1003, 96
      %v1236 = vpop.permute.xlu0 %1235
      %1237 = vrot.lane.b32.xlu0 %v1004, 96
      %v1238 = vpop.permute.xlu0 %1237
      %1239 = vrot.lane.b32.xlu0 %v1005, 96
      %v1240 = vpop.permute.xlu0 %1239
      %1241 = vrot.lane.b32.xlu0 %v1006, 96
      %v1242 = vpop.permute.xlu0 %1241
      %1243 = vrot.lane.b32.xlu0 %v1007, 96
      %v1244 = vpop.permute.xlu0 %1243
      %1245 = vrot.lane.b32.xlu0 %v1008, 96
      %v1246 = vpop.permute.xlu0 %1245
      %1247 = vrot.lane.b32.xlu0 %v1009, 96
      %v1248 = vpop.permute.xlu0 %1247
      %1249 = vrot.lane.b32.xlu0 %v1010, 96
      %v1250 = vpop.permute.xlu0 %1249
      %v1267 = vmul.f32 %v1091, %v1220
      %v1268 = vmul.f32 %v1092, %v1222
      %v1269 = vmul.f32 %v1093, %v1224
      %v1270 = vmul.f32 %v1094, %v1226
      %v1271 = vmul.f32 %v1095, %v1228
      %v1272 = vmul.f32 %v1096, %v1230
      %v1273 = vmul.f32 %v1097, %v1232
      %v1274 = vmul.f32 %v1098, %v1234
      %v1275 = vmul.f32 %v1099, %v1236
      %v1276 = vmul.f32 %v1100, %v1238
      %v1277 = vmul.f32 %v1101, %v1240
      %v1278 = vmul.f32 %v1102, %v1242
      %v1279 = vmul.f32 %v1103, %v1244
      %v1280 = vmul.f32 %v1104, %v1246
      %v1281 = vmul.f32 %v1105, %v1248
      %v1282 = vmul.f32 %v1106, %v1250
      %v1283 = vmul.f32 %v1107, %v1220
      %v1284 = vmul.f32 %v1108, %v1222
      %v1285 = vmul.f32 %v1109, %v1224
      %v1286 = vmul.f32 %v1110, %v1226
      %v1287 = vmul.f32 %v1111, %v1228
      %v1288 = vmul.f32 %v1112, %v1230
      %v1289 = vmul.f32 %v1113, %v1232
      %v1290 = vmul.f32 %v1114, %v1234
      %v1291 = vmul.f32 %v1115, %v1236
      %v1292 = vmul.f32 %v1116, %v1238
      %v1293 = vmul.f32 %v1117, %v1240
      %v1294 = vmul.f32 %v1118, %v1242
      %v1295 = vmul.f32 %v1119, %v1244
      %v1296 = vmul.f32 %v1120, %v1246
      %v1297 = vmul.f32 %v1121, %v1248
      %v1298 = vmul.f32 %v1122, %v1250
      %v1299 = vmul.f32 %v1187, %v1220
      %v1300 = vmul.f32 %v1188, %v1222
      %v1301 = vmul.f32 %v1189, %v1224
      %v1302 = vmul.f32 %v1190, %v1226
      %v1303 = vmul.f32 %v1191, %v1228
      %v1304 = vmul.f32 %v1192, %v1230
      %v1305 = vmul.f32 %v1193, %v1232
      %v1306 = vmul.f32 %v1194, %v1234
      %v1307 = vmul.f32 %v1195, %v1236
      %v1308 = vmul.f32 %v1196, %v1238
      %v1309 = vmul.f32 %v1197, %v1240
      %v1310 = vmul.f32 %v1198, %v1242
      %v1311 = vmul.f32 %v1199, %v1244
      %v1312 = vmul.f32 %v1200, %v1246
      %v1313 = vmul.f32 %v1201, %v1248
      %v1314 = vmul.f32 %v1202, %v1250
      %v1315 = vmul.f32 %v1203, %v1220
      %v1316 = vmul.f32 %v1204, %v1222
      %v1317 = vmul.f32 %v1205, %v1224
      %v1318 = vmul.f32 %v1206, %v1226
      %v1319 = vmul.f32 %v1207, %v1228
      %v1320 = vmul.f32 %v1208, %v1230
      %v1321 = vmul.f32 %v1209, %v1232
      %v1322 = vmul.f32 %v1210, %v1234
      %v1323 = vmul.f32 %v1211, %v1236
      %v1324 = vmul.f32 %v1212, %v1238
      %v1325 = vmul.f32 %v1213, %v1240
      %v1326 = vmul.f32 %v1214, %v1242
      %v1327 = vmul.f32 %v1215, %v1244
      %v1328 = vmul.f32 %v1216, %v1246
      %v1329 = vmul.f32 %v1217, %v1248
      %v1330 = vmul.f32 %v1218, %v1250
      %1331 = vrot.lane.b32.xlu0 %v1011, 96
      %v1332 = vpop.permute.xlu0 %1331
      %1333 = vrot.lane.b32.xlu0 %v1012, 96
      %v1334 = vpop.permute.xlu0 %1333
      %1335 = vrot.lane.b32.xlu0 %v1013, 96
      %v1336 = vpop.permute.xlu0 %1335
      %1337 = vrot.lane.b32.xlu0 %v1014, 96
      %v1338 = vpop.permute.xlu0 %1337
      %1339 = vrot.lane.b32.xlu0 %v1015, 96
      %v1340 = vpop.permute.xlu0 %1339
      %1341 = vrot.lane.b32.xlu0 %v1016, 96
      %v1342 = vpop.permute.xlu0 %1341
      %1343 = vrot.lane.b32.xlu0 %v1017, 96
      %v1344 = vpop.permute.xlu0 %1343
      %1345 = vrot.lane.b32.xlu0 %v1018, 96
      %v1346 = vpop.permute.xlu0 %1345
      %1347 = vrot.lane.b32.xlu0 %v1019, 96
      %v1348 = vpop.permute.xlu0 %1347
      %1349 = vrot.lane.b32.xlu0 %v1020, 96
      %v1350 = vpop.permute.xlu0 %1349
      %1351 = vrot.lane.b32.xlu0 %v1021, 96
      %v1352 = vpop.permute.xlu0 %1351
      %1353 = vrot.lane.b32.xlu0 %v1022, 96
      %v1354 = vpop.permute.xlu0 %1353
      %1355 = vrot.lane.b32.xlu0 %v1023, 96
      %v1356 = vpop.permute.xlu0 %1355
      %1357 = vrot.lane.b32.xlu0 %v1024, 96
      %v1358 = vpop.permute.xlu0 %1357
      %1359 = vrot.lane.b32.xlu0 %v1025, 96
      %v1360 = vpop.permute.xlu0 %1359
      %1361 = vrot.lane.b32.xlu0 %v1026, 96
      %v1362 = vpop.permute.xlu0 %1361
      %v1379 = vmul.f32 %v1091, %v1332
      %v1380 = vmul.f32 %v1092, %v1334
      %v1381 = vmul.f32 %v1093, %v1336
      %v1382 = vmul.f32 %v1094, %v1338
      %v1383 = vmul.f32 %v1095, %v1340
      %v1384 = vmul.f32 %v1096, %v1342
      %v1385 = vmul.f32 %v1097, %v1344
      %v1386 = vmul.f32 %v1098, %v1346
      %v1387 = vmul.f32 %v1099, %v1348
      %v1388 = vmul.f32 %v1100, %v1350
      %v1389 = vmul.f32 %v1101, %v1352
      %v1390 = vmul.f32 %v1102, %v1354
      %v1391 = vmul.f32 %v1103, %v1356
      %v1392 = vmul.f32 %v1104, %v1358
      %v1393 = vmul.f32 %v1105, %v1360
      %v1394 = vmul.f32 %v1106, %v1362
      %v1395 = vmul.f32 %v1107, %v1332
      %v1396 = vmul.f32 %v1108, %v1334
      %v1397 = vmul.f32 %v1109, %v1336
      %v1398 = vmul.f32 %v1110, %v1338
      %v1399 = vmul.f32 %v1111, %v1340
      %v1400 = vmul.f32 %v1112, %v1342
      %v1401 = vmul.f32 %v1113, %v1344
      %v1402 = vmul.f32 %v1114, %v1346
      %v1403 = vmul.f32 %v1115, %v1348
      %v1404 = vmul.f32 %v1116, %v1350
      %v1405 = vmul.f32 %v1117, %v1352
      %v1406 = vmul.f32 %v1118, %v1354
      %v1407 = vmul.f32 %v1119, %v1356
      %v1408 = vmul.f32 %v1120, %v1358
      %v1409 = vmul.f32 %v1121, %v1360
      %v1410 = vmul.f32 %v1122, %v1362
      %v1411 = vmul.f32 %v1187, %v1332
      %v1412 = vmul.f32 %v1188, %v1334
      %v1413 = vmul.f32 %v1189, %v1336
      %v1414 = vmul.f32 %v1190, %v1338
      %v1415 = vmul.f32 %v1191, %v1340
      %v1416 = vmul.f32 %v1192, %v1342
      %v1417 = vmul.f32 %v1193, %v1344
      %v1418 = vmul.f32 %v1194, %v1346
      %v1419 = vmul.f32 %v1195, %v1348
      %v1420 = vmul.f32 %v1196, %v1350
      %v1421 = vmul.f32 %v1197, %v1352
      %v1422 = vmul.f32 %v1198, %v1354
      %v1423 = vmul.f32 %v1199, %v1356
      %v1424 = vmul.f32 %v1200, %v1358
      %v1425 = vmul.f32 %v1201, %v1360
      %v1426 = vmul.f32 %v1202, %v1362
      %v1427 = vmul.f32 %v1203, %v1332
      %v1428 = vmul.f32 %v1204, %v1334
      %v1429 = vmul.f32 %v1205, %v1336
      %v1430 = vmul.f32 %v1206, %v1338
      %v1431 = vmul.f32 %v1207, %v1340
      %v1432 = vmul.f32 %v1208, %v1342
      %v1433 = vmul.f32 %v1209, %v1344
      %v1434 = vmul.f32 %v1210, %v1346
      %v1435 = vmul.f32 %v1211, %v1348
      %v1436 = vmul.f32 %v1212, %v1350
      %v1437 = vmul.f32 %v1213, %v1352
      %v1438 = vmul.f32 %v1214, %v1354
      %v1439 = vmul.f32 %v1215, %v1356
      %v1440 = vmul.f32 %v1216, %v1358
      %v1441 = vmul.f32 %v1217, %v1360
      %v1442 = vmul.f32 %v1218, %v1362
      %vm1443 = vcmask 130048
      %1444 = vst.msk [vmem:[#allocation3] sm:$0xff] %vm1443, %v1267
      %1445 = vst.msk [vmem:[#allocation3 + $0x8] sm:$0xff] %vm1443, %v1268
      %1446 = vst.msk [vmem:[#allocation3 + $0x10] sm:$0xff] %vm1443, %v1269
      %1447 = vst.msk [vmem:[#allocation3 + $0x18] sm:$0xff] %vm1443, %v1270
      %1448 = vst.msk [vmem:[#allocation3 + $0x20] sm:$0xff] %vm1443, %v1271
      %1449 = vst.msk [vmem:[#allocation3 + $0x28] sm:$0xff] %vm1443, %v1272
      %1450 = vst.msk [vmem:[#allocation3 + $0x30] sm:$0xff] %vm1443, %v1273
      %1451 = vst.msk [vmem:[#allocation3 + $0x38] sm:$0xff] %vm1443, %v1274
      %1452 = vst.msk [vmem:[#allocation3 + $0x40] sm:$0xff] %vm1443, %v1275
      %1453 = vst.msk [vmem:[#allocation3 + $0x48] sm:$0xff] %vm1443, %v1276
      %1454 = vst.msk [vmem:[#allocation3 + $0x50] sm:$0xff] %vm1443, %v1277
      %1455 = vst.msk [vmem:[#allocation3 + $0x58] sm:$0xff] %vm1443, %v1278
      %1456 = vst.msk [vmem:[#allocation3 + $0x60] sm:$0xff] %vm1443, %v1279
      %1457 = vst.msk [vmem:[#allocation3 + $0x68] sm:$0xff] %vm1443, %v1280
      %1458 = vst.msk [vmem:[#allocation3 + $0x70] sm:$0xff] %vm1443, %v1281
      %1459 = vst.msk [vmem:[#allocation3 + $0x78] sm:$0xff] %vm1443, %v1282
      %1476 = vrot.lane.b32.xlu0 %v1283, 16
      %v1477 = vpop.permute.xlu0 %1476
      %1478 = vrot.lane.b32.xlu0 %v1284, 16
      %v1479 = vpop.permute.xlu0 %1478
      %1480 = vrot.lane.b32.xlu0 %v1285, 16
      %v1481 = vpop.permute.xlu0 %1480
      %1482 = vrot.lane.b32.xlu0 %v1286, 16
      %v1483 = vpop.permute.xlu0 %1482
      %1484 = vrot.lane.b32.xlu0 %v1287, 16
      %v1485 = vpop.permute.xlu0 %1484
      %1486 = vrot.lane.b32.xlu0 %v1288, 16
      %v1487 = vpop.permute.xlu0 %1486
      %1488 = vrot.lane.b32.xlu0 %v1289, 16
      %v1489 = vpop.permute.xlu0 %1488
      %1490 = vrot.lane.b32.xlu0 %v1290, 16
      %v1491 = vpop.permute.xlu0 %1490
      %1492 = vrot.lane.b32.xlu0 %v1291, 16
      %v1493 = vpop.permute.xlu0 %1492
      %1494 = vrot.lane.b32.xlu0 %v1292, 16
      %v1495 = vpop.permute.xlu0 %1494
      %1496 = vrot.lane.b32.xlu0 %v1293, 16
      %v1497 = vpop.permute.xlu0 %1496
      %1498 = vrot.lane.b32.xlu0 %v1294, 16
      %v1499 = vpop.permute.xlu0 %1498
      %1500 = vrot.lane.b32.xlu0 %v1295, 16
      %v1501 = vpop.permute.xlu0 %1500
      %1502 = vrot.lane.b32.xlu0 %v1296, 16
      %v1503 = vpop.permute.xlu0 %1502
      %1504 = vrot.lane.b32.xlu0 %v1297, 16
      %v1505 = vpop.permute.xlu0 %1504
      %1506 = vrot.lane.b32.xlu0 %v1298, 16
      %v1507 = vpop.permute.xlu0 %1506
      %vm1524 = vcmask 261248
      %1525 = vst.msk [vmem:[#allocation3] sm:$0xff] %vm1524, %v1477
      %1526 = vst.msk [vmem:[#allocation3 + $0x8] sm:$0xff] %vm1524, %v1479
      %1527 = vst.msk [vmem:[#allocation3 + $0x10] sm:$0xff] %vm1524, %v1481
      %1528 = vst.msk [vmem:[#allocation3 + $0x18] sm:$0xff] %vm1524, %v1483
      %1529 = vst.msk [vmem:[#allocation3 + $0x20] sm:$0xff] %vm1524, %v1485
      %1530 = vst.msk [vmem:[#allocation3 + $0x28] sm:$0xff] %vm1524, %v1487
      %1531 = vst.msk [vmem:[#allocation3 + $0x30] sm:$0xff] %vm1524, %v1489
      %1532 = vst.msk [vmem:[#allocation3 + $0x38] sm:$0xff] %vm1524, %v1491
      %1533 = vst.msk [vmem:[#allocation3 + $0x40] sm:$0xff] %vm1524, %v1493
      %1534 = vst.msk [vmem:[#allocation3 + $0x48] sm:$0xff] %vm1524, %v1495
      %1535 = vst.msk [vmem:[#allocation3 + $0x50] sm:$0xff] %vm1524, %v1497
      %1536 = vst.msk [vmem:[#allocation3 + $0x58] sm:$0xff] %vm1524, %v1499
      %1537 = vst.msk [vmem:[#allocation3 + $0x60] sm:$0xff] %vm1524, %v1501
      %1538 = vst.msk [vmem:[#allocation3 + $0x68] sm:$0xff] %vm1524, %v1503
      %1539 = vst.msk [vmem:[#allocation3 + $0x70] sm:$0xff] %vm1524, %v1505
      %1540 = vst.msk [vmem:[#allocation3 + $0x78] sm:$0xff] %vm1524, %v1507
      %1557 = vrot.lane.b32.xlu0 %v1299, 32
      %v1558 = vpop.permute.xlu0 %1557
      %1559 = vrot.lane.b32.xlu0 %v1300, 32
      %v1560 = vpop.permute.xlu0 %1559
      %1561 = vrot.lane.b32.xlu0 %v1301, 32
      %v1562 = vpop.permute.xlu0 %1561
      %1563 = vrot.lane.b32.xlu0 %v1302, 32
      %v1564 = vpop.permute.xlu0 %1563
      %1565 = vrot.lane.b32.xlu0 %v1303, 32
      %v1566 = vpop.permute.xlu0 %1565
      %1567 = vrot.lane.b32.xlu0 %v1304, 32
      %v1568 = vpop.permute.xlu0 %1567
      %1569 = vrot.lane.b32.xlu0 %v1305, 32
      %v1570 = vpop.permute.xlu0 %1569
      %1571 = vrot.lane.b32.xlu0 %v1306, 32
      %v1572 = vpop.permute.xlu0 %1571
      %1573 = vrot.lane.b32.xlu0 %v1307, 32
      %v1574 = vpop.permute.xlu0 %1573
      %1575 = vrot.lane.b32.xlu0 %v1308, 32
      %v1576 = vpop.permute.xlu0 %1575
      %1577 = vrot.lane.b32.xlu0 %v1309, 32
      %v1578 = vpop.permute.xlu0 %1577
      %1579 = vrot.lane.b32.xlu0 %v1310, 32
      %v1580 = vpop.permute.xlu0 %1579
      %1581 = vrot.lane.b32.xlu0 %v1311, 32
      %v1582 = vpop.permute.xlu0 %1581
      %1583 = vrot.lane.b32.xlu0 %v1312, 32
      %v1584 = vpop.permute.xlu0 %1583
      %1585 = vrot.lane.b32.xlu0 %v1313, 32
      %v1586 = vpop.permute.xlu0 %1585
      %1587 = vrot.lane.b32.xlu0 %v1314, 32
      %v1588 = vpop.permute.xlu0 %1587
      %vm1605 = vcmask 392448
      %1606 = vst.msk [vmem:[#allocation3] sm:$0xff] %vm1605, %v1558
      %1607 = vst.msk [vmem:[#allocation3 + $0x8] sm:$0xff] %vm1605, %v1560
      %1608 = vst.msk [vmem:[#allocation3 + $0x10] sm:$0xff] %vm1605, %v1562
      %1609 = vst.msk [vmem:[#allocation3 + $0x18] sm:$0xff] %vm1605, %v1564
      %1610 = vst.msk [vmem:[#allocation3 + $0x20] sm:$0xff] %vm1605, %v1566
      %1611 = vst.msk [vmem:[#allocation3 + $0x28] sm:$0xff] %vm1605, %v1568
      %1612 = vst.msk [vmem:[#allocation3 + $0x30] sm:$0xff] %vm1605, %v1570
      %1613 = vst.msk [vmem:[#allocation3 + $0x38] sm:$0xff] %vm1605, %v1572
      %1614 = vst.msk [vmem:[#allocation3 + $0x40] sm:$0xff] %vm1605, %v1574
      %1615 = vst.msk [vmem:[#allocation3 + $0x48] sm:$0xff] %vm1605, %v1576
      %1616 = vst.msk [vmem:[#allocation3 + $0x50] sm:$0xff] %vm1605, %v1578
      %1617 = vst.msk [vmem:[#allocation3 + $0x58] sm:$0xff] %vm1605, %v1580
      %1618 = vst.msk [vmem:[#allocation3 + $0x60] sm:$0xff] %vm1605, %v1582
      %1619 = vst.msk [vmem:[#allocation3 + $0x68] sm:$0xff] %vm1605, %v1584
      %1620 = vst.msk [vmem:[#allocation3 + $0x70] sm:$0xff] %vm1605, %v1586
      %1621 = vst.msk [vmem:[#allocation3 + $0x78] sm:$0xff] %vm1605, %v1588
      %1638 = vrot.lane.b32.xlu0 %v1315, 48
      %v1639 = vpop.permute.xlu0 %1638
      %1640 = vrot.lane.b32.xlu0 %v1316, 48
      %v1641 = vpop.permute.xlu0 %1640
      %1642 = vrot.lane.b32.xlu0 %v1317, 48
      %v1643 = vpop.permute.xlu0 %1642
      %1644 = vrot.lane.b32.xlu0 %v1318, 48
      %v1645 = vpop.permute.xlu0 %1644
      %1646 = vrot.lane.b32.xlu0 %v1319, 48
      %v1647 = vpop.permute.xlu0 %1646
      %1648 = vrot.lane.b32.xlu0 %v1320, 48
      %v1649 = vpop.permute.xlu0 %1648
      %1650 = vrot.lane.b32.xlu0 %v1321, 48
      %v1651 = vpop.permute.xlu0 %1650
      %1652 = vrot.lane.b32.xlu0 %v1322, 48
      %v1653 = vpop.permute.xlu0 %1652
      %1654 = vrot.lane.b32.xlu0 %v1323, 48
      %v1655 = vpop.permute.xlu0 %1654
      %1656 = vrot.lane.b32.xlu0 %v1324, 48
      %v1657 = vpop.permute.xlu0 %1656
      %1658 = vrot.lane.b32.xlu0 %v1325, 48
      %v1659 = vpop.permute.xlu0 %1658
      %1660 = vrot.lane.b32.xlu0 %v1326, 48
      %v1661 = vpop.permute.xlu0 %1660
      %1662 = vrot.lane.b32.xlu0 %v1327, 48
      %v1663 = vpop.permute.xlu0 %1662
      %1664 = vrot.lane.b32.xlu0 %v1328, 48
      %v1665 = vpop.permute.xlu0 %1664
      %1666 = vrot.lane.b32.xlu0 %v1329, 48
      %v1667 = vpop.permute.xlu0 %1666
      %1668 = vrot.lane.b32.xlu0 %v1330, 48
      %v1669 = vpop.permute.xlu0 %1668
      %vm1686 = vcmask 523648
      %1687 = vst.msk [vmem:[#allocation3] sm:$0xff] %vm1686, %v1639
      %1688 = vst.msk [vmem:[#allocation3 + $0x8] sm:$0xff] %vm1686, %v1641
      %1689 = vst.msk [vmem:[#allocation3 + $0x10] sm:$0xff] %vm1686, %v1643
      %1690 = vst.msk [vmem:[#allocation3 + $0x18] sm:$0xff] %vm1686, %v1645
      %1691 = vst.msk [vmem:[#allocation3 + $0x20] sm:$0xff] %vm1686, %v1647
      %1692 = vst.msk [vmem:[#allocation3 + $0x28] sm:$0xff] %vm1686, %v1649
      %1693 = vst.msk [vmem:[#allocation3 + $0x30] sm:$0xff] %vm1686, %v1651
      %1694 = vst.msk [vmem:[#allocation3 + $0x38] sm:$0xff] %vm1686, %v1653
      %1695 = vst.msk [vmem:[#allocation3 + $0x40] sm:$0xff] %vm1686, %v1655
      %1696 = vst.msk [vmem:[#allocation3 + $0x48] sm:$0xff] %vm1686, %v1657
      %1697 = vst.msk [vmem:[#allocation3 + $0x50] sm:$0xff] %vm1686, %v1659
      %1698 = vst.msk [vmem:[#allocation3 + $0x58] sm:$0xff] %vm1686, %v1661
      %1699 = vst.msk [vmem:[#allocation3 + $0x60] sm:$0xff] %vm1686, %v1663
      %1700 = vst.msk [vmem:[#allocation3 + $0x68] sm:$0xff] %vm1686, %v1665
      %1701 = vst.msk [vmem:[#allocation3 + $0x70] sm:$0xff] %vm1686, %v1667
      %1702 = vst.msk [vmem:[#allocation3 + $0x78] sm:$0xff] %vm1686, %v1669
      %1719 = vrot.lane.b32.xlu0 %v1379, 64
      %v1720 = vpop.permute.xlu0 %1719
      %1721 = vrot.lane.b32.xlu0 %v1380, 64
      %v1722 = vpop.permute.xlu0 %1721
      %1723 = vrot.lane.b32.xlu0 %v1381, 64
      %v1724 = vpop.permute.xlu0 %1723
      %1725 = vrot.lane.b32.xlu0 %v1382, 64
      %v1726 = vpop.permute.xlu0 %1725
      %1727 = vrot.lane.b32.xlu0 %v1383, 64
      %v1728 = vpop.permute.xlu0 %1727
      %1729 = vrot.lane.b32.xlu0 %v1384, 64
      %v1730 = vpop.permute.xlu0 %1729
      %1731 = vrot.lane.b32.xlu0 %v1385, 64
      %v1732 = vpop.permute.xlu0 %1731
      %1733 = vrot.lane.b32.xlu0 %v1386, 64
      %v1734 = vpop.permute.xlu0 %1733
      %1735 = vrot.lane.b32.xlu0 %v1387, 64
      %v1736 = vpop.permute.xlu0 %1735
      %1737 = vrot.lane.b32.xlu0 %v1388, 64
      %v1738 = vpop.permute.xlu0 %1737
      %1739 = vrot.lane.b32.xlu0 %v1389, 64
      %v1740 = vpop.permute.xlu0 %1739
      %1741 = vrot.lane.b32.xlu0 %v1390, 64
      %v1742 = vpop.permute.xlu0 %1741
      %1743 = vrot.lane.b32.xlu0 %v1391, 64
      %v1744 = vpop.permute.xlu0 %1743
      %1745 = vrot.lane.b32.xlu0 %v1392, 64
      %v1746 = vpop.permute.xlu0 %1745
      %1747 = vrot.lane.b32.xlu0 %v1393, 64
      %v1748 = vpop.permute.xlu0 %1747
      %1749 = vrot.lane.b32.xlu0 %v1394, 64
      %v1750 = vpop.permute.xlu0 %1749
      %vm1767 = vcmask 654848
      %1768 = vst.msk [vmem:[#allocation3] sm:$0xff] %vm1767, %v1720
      %1769 = vst.msk [vmem:[#allocation3 + $0x8] sm:$0xff] %vm1767, %v1722
      %1770 = vst.msk [vmem:[#allocation3 + $0x10] sm:$0xff] %vm1767, %v1724
      %1771 = vst.msk [vmem:[#allocation3 + $0x18] sm:$0xff] %vm1767, %v1726
      %1772 = vst.msk [vmem:[#allocation3 + $0x20] sm:$0xff] %vm1767, %v1728
      %1773 = vst.msk [vmem:[#allocation3 + $0x28] sm:$0xff] %vm1767, %v1730
      %1774 = vst.msk [vmem:[#allocation3 + $0x30] sm:$0xff] %vm1767, %v1732
      %1775 = vst.msk [vmem:[#allocation3 + $0x38] sm:$0xff] %vm1767, %v1734
      %1776 = vst.msk [vmem:[#allocation3 + $0x40] sm:$0xff] %vm1767, %v1736
      %1777 = vst.msk [vmem:[#allocation3 + $0x48] sm:$0xff] %vm1767, %v1738
      %1778 = vst.msk [vmem:[#allocation3 + $0x50] sm:$0xff] %vm1767, %v1740
      %1779 = vst.msk [vmem:[#allocation3 + $0x58] sm:$0xff] %vm1767, %v1742
      %1780 = vst.msk [vmem:[#allocation3 + $0x60] sm:$0xff] %vm1767, %v1744
      %1781 = vst.msk [vmem:[#allocation3 + $0x68] sm:$0xff] %vm1767, %v1746
      %1782 = vst.msk [vmem:[#allocation3 + $0x70] sm:$0xff] %vm1767, %v1748
      %1783 = vst.msk [vmem:[#allocation3 + $0x78] sm:$0xff] %vm1767, %v1750
      %1800 = vrot.lane.b32.xlu0 %v1395, 80
      %v1801 = vpop.permute.xlu0 %1800
      %1802 = vrot.lane.b32.xlu0 %v1396, 80
      %v1803 = vpop.permute.xlu0 %1802
      %1804 = vrot.lane.b32.xlu0 %v1397, 80
      %v1805 = vpop.permute.xlu0 %1804
      %1806 = vrot.lane.b32.xlu0 %v1398, 80
      %v1807 = vpop.permute.xlu0 %1806
      %1808 = vrot.lane.b32.xlu0 %v1399, 80
      %v1809 = vpop.permute.xlu0 %1808
      %1810 = vrot.lane.b32.xlu0 %v1400, 80
      %v1811 = vpop.permute.xlu0 %1810
      %1812 = vrot.lane.b32.xlu0 %v1401, 80
      %v1813 = vpop.permute.xlu0 %1812
      %1814 = vrot.lane.b32.xlu0 %v1402, 80
      %v1815 = vpop.permute.xlu0 %1814
      %1816 = vrot.lane.b32.xlu0 %v1403, 80
      %v1817 = vpop.permute.xlu0 %1816
      %1818 = vrot.lane.b32.xlu0 %v1404, 80
      %v1819 = vpop.permute.xlu0 %1818
      %1820 = vrot.lane.b32.xlu0 %v1405, 80
      %v1821 = vpop.permute.xlu0 %1820
      %1822 = vrot.lane.b32.xlu0 %v1406, 80
      %v1823 = vpop.permute.xlu0 %1822
      %1824 = vrot.lane.b32.xlu0 %v1407, 80
      %v1825 = vpop.permute.xlu0 %1824
      %1826 = vrot.lane.b32.xlu0 %v1408, 80
      %v1827 = vpop.permute.xlu0 %1826
      %1828 = vrot.lane.b32.xlu0 %v1409, 80
      %v1829 = vpop.permute.xlu0 %1828
      %1830 = vrot.lane.b32.xlu0 %v1410, 80
      %v1831 = vpop.permute.xlu0 %1830
      %vm1848 = vcmask 786048
      %1849 = vst.msk [vmem:[#allocation3] sm:$0xff] %vm1848, %v1801
      %1850 = vst.msk [vmem:[#allocation3 + $0x8] sm:$0xff] %vm1848, %v1803
      %1851 = vst.msk [vmem:[#allocation3 + $0x10] sm:$0xff] %vm1848, %v1805
      %1852 = vst.msk [vmem:[#allocation3 + $0x18] sm:$0xff] %vm1848, %v1807
      %1853 = vst.msk [vmem:[#allocation3 + $0x20] sm:$0xff] %vm1848, %v1809
      %1854 = vst.msk [vmem:[#allocation3 + $0x28] sm:$0xff] %vm1848, %v1811
      %1855 = vst.msk [vmem:[#allocation3 + $0x30] sm:$0xff] %vm1848, %v1813
      %1856 = vst.msk [vmem:[#allocation3 + $0x38] sm:$0xff] %vm1848, %v1815
      %1857 = vst.msk [vmem:[#allocation3 + $0x40] sm:$0xff] %vm1848, %v1817
      %1858 = vst.msk [vmem:[#allocation3 + $0x48] sm:$0xff] %vm1848, %v1819
      %1859 = vst.msk [vmem:[#allocation3 + $0x50] sm:$0xff] %vm1848, %v1821
      %1860 = vst.msk [vmem:[#allocation3 + $0x58] sm:$0xff] %vm1848, %v1823
      %1861 = vst.msk [vmem:[#allocation3 + $0x60] sm:$0xff] %vm1848, %v1825
      %1862 = vst.msk [vmem:[#allocation3 + $0x68] sm:$0xff] %vm1848, %v1827
      %1863 = vst.msk [vmem:[#allocation3 + $0x70] sm:$0xff] %vm1848, %v1829
      %1864 = vst.msk [vmem:[#allocation3 + $0x78] sm:$0xff] %vm1848, %v1831
      %1881 = vrot.lane.b32.xlu0 %v1411, 96
      %v1882 = vpop.permute.xlu0 %1881
      %1883 = vrot.lane.b32.xlu0 %v1412, 96
      %v1884 = vpop.permute.xlu0 %1883
      %1885 = vrot.lane.b32.xlu0 %v1413, 96
      %v1886 = vpop.permute.xlu0 %1885
      %1887 = vrot.lane.b32.xlu0 %v1414, 96
      %v1888 = vpop.permute.xlu0 %1887
      %1889 = vrot.lane.b32.xlu0 %v1415, 96
      %v1890 = vpop.permute.xlu0 %1889
      %1891 = vrot.lane.b32.xlu0 %v1416, 96
      %v1892 = vpop.permute.xlu0 %1891
      %1893 = vrot.lane.b32.xlu0 %v1417, 96
      %v1894 = vpop.permute.xlu0 %1893
      %1895 = vrot.lane.b32.xlu0 %v1418, 96
      %v1896 = vpop.permute.xlu0 %1895
      %1897 = vrot.lane.b32.xlu0 %v1419, 96
      %v1898 = vpop.permute.xlu0 %1897
      %1899 = vrot.lane.b32.xlu0 %v1420, 96
      %v1900 = vpop.permute.xlu0 %1899
      %1901 = vrot.lane.b32.xlu0 %v1421, 96
      %v1902 = vpop.permute.xlu0 %1901
      %1903 = vrot.lane.b32.xlu0 %v1422, 96
      %v1904 = vpop.permute.xlu0 %1903
      %1905 = vrot.lane.b32.xlu0 %v1423, 96
      %v1906 = vpop.permute.xlu0 %1905
      %1907 = vrot.lane.b32.xlu0 %v1424, 96
      %v1908 = vpop.permute.xlu0 %1907
      %1909 = vrot.lane.b32.xlu0 %v1425, 96
      %v1910 = vpop.permute.xlu0 %1909
      %1911 = vrot.lane.b32.xlu0 %v1426, 96
      %v1912 = vpop.permute.xlu0 %1911
      %vm1929 = vcmask 917248
      %1930 = vst.msk [vmem:[#allocation3] sm:$0xff] %vm1929, %v1882
      %1931 = vst.msk [vmem:[#allocation3 + $0x8] sm:$0xff] %vm1929, %v1884
      %1932 = vst.msk [vmem:[#allocation3 + $0x10] sm:$0xff] %vm1929, %v1886
      %1933 = vst.msk [vmem:[#allocation3 + $0x18] sm:$0xff] %vm1929, %v1888
      %1934 = vst.msk [vmem:[#allocation3 + $0x20] sm:$0xff] %vm1929, %v1890
      %1935 = vst.msk [vmem:[#allocation3 + $0x28] sm:$0xff] %vm1929, %v1892
      %1936 = vst.msk [vmem:[#allocation3 + $0x30] sm:$0xff] %vm1929, %v1894
      %1937 = vst.msk [vmem:[#allocation3 + $0x38] sm:$0xff] %vm1929, %v1896
      %1938 = vst.msk [vmem:[#allocation3 + $0x40] sm:$0xff] %vm1929, %v1898
      %1939 = vst.msk [vmem:[#allocation3 + $0x48] sm:$0xff] %vm1929, %v1900
      %1940 = vst.msk [vmem:[#allocation3 + $0x50] sm:$0xff] %vm1929, %v1902
      %1941 = vst.msk [vmem:[#allocation3 + $0x58] sm:$0xff] %vm1929, %v1904
      %1942 = vst.msk [vmem:[#allocation3 + $0x60] sm:$0xff] %vm1929, %v1906
      %1943 = vst.msk [vmem:[#allocation3 + $0x68] sm:$0xff] %vm1929, %v1908
      %1944 = vst.msk [vmem:[#allocation3 + $0x70] sm:$0xff] %vm1929, %v1910
      %1945 = vst.msk [vmem:[#allocation3 + $0x78] sm:$0xff] %vm1929, %v1912
      %1962 = vrot.lane.b32.xlu0 %v1427, 112
      %v1963 = vpop.permute.xlu0 %1962
      %1964 = vrot.lane.b32.xlu0 %v1428, 112
      %v1965 = vpop.permute.xlu0 %1964
      %1966 = vrot.lane.b32.xlu0 %v1429, 112
      %v1967 = vpop.permute.xlu0 %1966
      %1968 = vrot.lane.b32.xlu0 %v1430, 112
      %v1969 = vpop.permute.xlu0 %1968
      %1970 = vrot.lane.b32.xlu0 %v1431, 112
      %v1971 = vpop.permute.xlu0 %1970
      %1972 = vrot.lane.b32.xlu0 %v1432, 112
      %v1973 = vpop.permute.xlu0 %1972
      %1974 = vrot.lane.b32.xlu0 %v1433, 112
      %v1975 = vpop.permute.xlu0 %1974
      %1976 = vrot.lane.b32.xlu0 %v1434, 112
      %v1977 = vpop.permute.xlu0 %1976
      %1978 = vrot.lane.b32.xlu0 %v1435, 112
      %v1979 = vpop.permute.xlu0 %1978
      %1980 = vrot.lane.b32.xlu0 %v1436, 112
      %v1981 = vpop.permute.xlu0 %1980
      %1982 = vrot.lane.b32.xlu0 %v1437, 112
      %v1983 = vpop.permute.xlu0 %1982
      %1984 = vrot.lane.b32.xlu0 %v1438, 112
      %v1985 = vpop.permute.xlu0 %1984
      %1986 = vrot.lane.b32.xlu0 %v1439, 112
      %v1987 = vpop.permute.xlu0 %1986
      %1988 = vrot.lane.b32.xlu0 %v1440, 112
      %v1989 = vpop.permute.xlu0 %1988
      %1990 = vrot.lane.b32.xlu0 %v1441, 112
      %v1991 = vpop.permute.xlu0 %1990
      %1992 = vrot.lane.b32.xlu0 %v1442, 112
      %v1993 = vpop.permute.xlu0 %1992
      %vm2010 = vcmask 1048448
      %2011 = vst.msk [vmem:[#allocation3] sm:$0xff] %vm2010, %v1963
      %2012 = vst.msk [vmem:[#allocation3 + $0x8] sm:$0xff] %vm2010, %v1965
      %2013 = vst.msk [vmem:[#allocation3 + $0x10] sm:$0xff] %vm2010, %v1967
      %2014 = vst.msk [vmem:[#allocation3 + $0x18] sm:$0xff] %vm2010, %v1969
      %2015 = vst.msk [vmem:[#allocation3 + $0x20] sm:$0xff] %vm2010, %v1971
      %2016 = vst.msk [vmem:[#allocation3 + $0x28] sm:$0xff] %vm2010, %v1973
      %2017 = vst.msk [vmem:[#allocation3 + $0x30] sm:$0xff] %vm2010, %v1975
      %2018 = vst.msk [vmem:[#allocation3 + $0x38] sm:$0xff] %vm2010, %v1977
      %2019 = vst.msk [vmem:[#allocation3 + $0x40] sm:$0xff] %vm2010, %v1979
      %2020 = vst.msk [vmem:[#allocation3 + $0x48] sm:$0xff] %vm2010, %v1981
      %2021 = vst.msk [vmem:[#allocation3 + $0x50] sm:$0xff] %vm2010, %v1983
      %2022 = vst.msk [vmem:[#allocation3 + $0x58] sm:$0xff] %vm2010, %v1985
      %2023 = vst.msk [vmem:[#allocation3 + $0x60] sm:$0xff] %vm2010, %v1987
      %2024 = vst.msk [vmem:[#allocation3 + $0x68] sm:$0xff] %vm2010, %v1989
      %2025 = vst.msk [vmem:[#allocation3 + $0x70] sm:$0xff] %vm2010, %v1991
      %2026 = vst.msk [vmem:[#allocation3 + $0x78] sm:$0xff] %vm2010, %v1993
      %2043 = vrot.lane.b32.xlu0 %v1267, 80
      %v2044 = vpop.permute.xlu0 %2043
      %2045 = vrot.lane.b32.xlu0 %v1268, 80
      %v2046 = vpop.permute.xlu0 %2045
      %2047 = vrot.lane.b32.xlu0 %v1269, 80
      %v2048 = vpop.permute.xlu0 %2047
      %2049 = vrot.lane.b32.xlu0 %v1270, 80
      %v2050 = vpop.permute.xlu0 %2049
      %2051 = vrot.lane.b32.xlu0 %v1271, 80
      %v2052 = vpop.permute.xlu0 %2051
      %2053 = vrot.lane.b32.xlu0 %v1272, 80
      %v2054 = vpop.permute.xlu0 %2053
      %2055 = vrot.lane.b32.xlu0 %v1273, 80
      %v2056 = vpop.permute.xlu0 %2055
      %2057 = vrot.lane.b32.xlu0 %v1274, 80
      %v2058 = vpop.permute.xlu0 %2057
      %2059 = vrot.lane.b32.xlu0 %v1275, 80
      %v2060 = vpop.permute.xlu0 %2059
      %2061 = vrot.lane.b32.xlu0 %v1276, 80
      %v2062 = vpop.permute.xlu0 %2061
      %2063 = vrot.lane.b32.xlu0 %v1277, 80
      %v2064 = vpop.permute.xlu0 %2063
      %2065 = vrot.lane.b32.xlu0 %v1278, 80
      %v2066 = vpop.permute.xlu0 %2065
      %2067 = vrot.lane.b32.xlu0 %v1279, 80
      %v2068 = vpop.permute.xlu0 %2067
      %2069 = vrot.lane.b32.xlu0 %v1280, 80
      %v2070 = vpop.permute.xlu0 %2069
      %2071 = vrot.lane.b32.xlu0 %v1281, 80
      %v2072 = vpop.permute.xlu0 %2071
      %2073 = vrot.lane.b32.xlu0 %v1282, 80
      %v2074 = vpop.permute.xlu0 %2073
      %2091 = vst.msk [vmem:[#allocation4] sm:$0xff] %vm1443, %v2044
      %2092 = vst.msk [vmem:[#allocation4 + $0x8] sm:$0xff] %vm1443, %v2046
      %2093 = vst.msk [vmem:[#allocation4 + $0x10] sm:$0xff] %vm1443, %v2048
      %2094 = vst.msk [vmem:[#allocation4 + $0x18] sm:$0xff] %vm1443, %v2050
      %2095 = vst.msk [vmem:[#allocation4 + $0x20] sm:$0xff] %vm1443, %v2052
      %2096 = vst.msk [vmem:[#allocation4 + $0x28] sm:$0xff] %vm1443, %v2054
      %2097 = vst.msk [vmem:[#allocation4 + $0x30] sm:$0xff] %vm1443, %v2056
      %2098 = vst.msk [vmem:[#allocation4 + $0x38] sm:$0xff] %vm1443, %v2058
      %2099 = vst.msk [vmem:[#allocation4 + $0x40] sm:$0xff] %vm1443, %v2060
      %2100 = vst.msk [vmem:[#allocation4 + $0x48] sm:$0xff] %vm1443, %v2062
      %2101 = vst.msk [vmem:[#allocation4 + $0x50] sm:$0xff] %vm1443, %v2064
      %2102 = vst.msk [vmem:[#allocation4 + $0x58] sm:$0xff] %vm1443, %v2066
      %2103 = vst.msk [vmem:[#allocation4 + $0x60] sm:$0xff] %vm1443, %v2068
      %2104 = vst.msk [vmem:[#allocation4 + $0x68] sm:$0xff] %vm1443, %v2070
      %2105 = vst.msk [vmem:[#allocation4 + $0x70] sm:$0xff] %vm1443, %v2072
      %2106 = vst.msk [vmem:[#allocation4 + $0x78] sm:$0xff] %vm1443, %v2074
      %2107 = vrot.lane.b32.xlu0 %v1283, 96
      %v2108 = vpop.permute.xlu0 %2107
      %2109 = vrot.lane.b32.xlu0 %v1284, 96
      %v2110 = vpop.permute.xlu0 %2109
      %2111 = vrot.lane.b32.xlu0 %v1285, 96
      %v2112 = vpop.permute.xlu0 %2111
      %2113 = vrot.lane.b32.xlu0 %v1286, 96
      %v2114 = vpop.permute.xlu0 %2113
      %2115 = vrot.lane.b32.xlu0 %v1287, 96
      %v2116 = vpop.permute.xlu0 %2115
      %2117 = vrot.lane.b32.xlu0 %v1288, 96
      %v2118 = vpop.permute.xlu0 %2117
      %2119 = vrot.lane.b32.xlu0 %v1289, 96
      %v2120 = vpop.permute.xlu0 %2119
      %2121 = vrot.lane.b32.xlu0 %v1290, 96
      %v2122 = vpop.permute.xlu0 %2121
      %2123 = vrot.lane.b32.xlu0 %v1291, 96
      %v2124 = vpop.permute.xlu0 %2123
      %2125 = vrot.lane.b32.xlu0 %v1292, 96
      %v2126 = vpop.permute.xlu0 %2125
      %2127 = vrot.lane.b32.xlu0 %v1293, 96
      %v2128 = vpop.permute.xlu0 %2127
      %2129 = vrot.lane.b32.xlu0 %v1294, 96
      %v2130 = vpop.permute.xlu0 %2129
      %2131 = vrot.lane.b32.xlu0 %v1295, 96
      %v2132 = vpop.permute.xlu0 %2131
      %2133 = vrot.lane.b32.xlu0 %v1296, 96
      %v2134 = vpop.permute.xlu0 %2133
      %2135 = vrot.lane.b32.xlu0 %v1297, 96
      %v2136 = vpop.permute.xlu0 %2135
      %2137 = vrot.lane.b32.xlu0 %v1298, 96
      %v2138 = vpop.permute.xlu0 %2137
      %2155 = vst.msk [vmem:[#allocation4] sm:$0xff] %vm1524, %v2108
      %2156 = vst.msk [vmem:[#allocation4 + $0x8] sm:$0xff] %vm1524, %v2110
      %2157 = vst.msk [vmem:[#allocation4 + $0x10] sm:$0xff] %vm1524, %v2112
      %2158 = vst.msk [vmem:[#allocation4 + $0x18] sm:$0xff] %vm1524, %v2114
      %2159 = vst.msk [vmem:[#allocation4 + $0x20] sm:$0xff] %vm1524, %v2116
      %2160 = vst.msk [vmem:[#allocation4 + $0x28] sm:$0xff] %vm1524, %v2118
      %2161 = vst.msk [vmem:[#allocation4 + $0x30] sm:$0xff] %vm1524, %v2120
      %2162 = vst.msk [vmem:[#allocation4 + $0x38] sm:$0xff] %vm1524, %v2122
      %2163 = vst.msk [vmem:[#allocation4 + $0x40] sm:$0xff] %vm1524, %v2124
      %2164 = vst.msk [vmem:[#allocation4 + $0x48] sm:$0xff] %vm1524, %v2126
      %2165 = vst.msk [vmem:[#allocation4 + $0x50] sm:$0xff] %vm1524, %v2128
      %2166 = vst.msk [vmem:[#allocation4 + $0x58] sm:$0xff] %vm1524, %v2130
      %2167 = vst.msk [vmem:[#allocation4 + $0x60] sm:$0xff] %vm1524, %v2132
      %2168 = vst.msk [vmem:[#allocation4 + $0x68] sm:$0xff] %vm1524, %v2134
      %2169 = vst.msk [vmem:[#allocation4 + $0x70] sm:$0xff] %vm1524, %v2136
      %2170 = vst.msk [vmem:[#allocation4 + $0x78] sm:$0xff] %vm1524, %v2138
      %2171 = vrot.lane.b32.xlu0 %v1299, 112
      %v2172 = vpop.permute.xlu0 %2171
      %2173 = vrot.lane.b32.xlu0 %v1300, 112
      %v2174 = vpop.permute.xlu0 %2173
      %2175 = vrot.lane.b32.xlu0 %v1301, 112
      %v2176 = vpop.permute.xlu0 %2175
      %2177 = vrot.lane.b32.xlu0 %v1302, 112
      %v2178 = vpop.permute.xlu0 %2177
      %2179 = vrot.lane.b32.xlu0 %v1303, 112
      %v2180 = vpop.permute.xlu0 %2179
      %2181 = vrot.lane.b32.xlu0 %v1304, 112
      %v2182 = vpop.permute.xlu0 %2181
      %2183 = vrot.lane.b32.xlu0 %v1305, 112
      %v2184 = vpop.permute.xlu0 %2183
      %2185 = vrot.lane.b32.xlu0 %v1306, 112
      %v2186 = vpop.permute.xlu0 %2185
      %2187 = vrot.lane.b32.xlu0 %v1307, 112
      %v2188 = vpop.permute.xlu0 %2187
      %2189 = vrot.lane.b32.xlu0 %v1308, 112
      %v2190 = vpop.permute.xlu0 %2189
      %2191 = vrot.lane.b32.xlu0 %v1309, 112
      %v2192 = vpop.permute.xlu0 %2191
      %2193 = vrot.lane.b32.xlu0 %v1310, 112
      %v2194 = vpop.permute.xlu0 %2193
      %2195 = vrot.lane.b32.xlu0 %v1311, 112
      %v2196 = vpop.permute.xlu0 %2195
      %2197 = vrot.lane.b32.xlu0 %v1312, 112
      %v2198 = vpop.permute.xlu0 %2197
      %2199 = vrot.lane.b32.xlu0 %v1313, 112
      %v2200 = vpop.permute.xlu0 %2199
      %2201 = vrot.lane.b32.xlu0 %v1314, 112
      %v2202 = vpop.permute.xlu0 %2201
      %2219 = vst.msk [vmem:[#allocation4] sm:$0xff] %vm1605, %v2172
      %2220 = vst.msk [vmem:[#allocation4 + $0x8] sm:$0xff] %vm1605, %v2174
      %2221 = vst.msk [vmem:[#allocation4 + $0x10] sm:$0xff] %vm1605, %v2176
      %2222 = vst.msk [vmem:[#allocation4 + $0x18] sm:$0xff] %vm1605, %v2178
      %2223 = vst.msk [vmem:[#allocation4 + $0x20] sm:$0xff] %vm1605, %v2180
      %2224 = vst.msk [vmem:[#allocation4 + $0x28] sm:$0xff] %vm1605, %v2182
      %2225 = vst.msk [vmem:[#allocation4 + $0x30] sm:$0xff] %vm1605, %v2184
      %2226 = vst.msk [vmem:[#allocation4 + $0x38] sm:$0xff] %vm1605, %v2186
      %2227 = vst.msk [vmem:[#allocation4 + $0x40] sm:$0xff] %vm1605, %v2188
      %2228 = vst.msk [vmem:[#allocation4 + $0x48] sm:$0xff] %vm1605, %v2190
      %2229 = vst.msk [vmem:[#allocation4 + $0x50] sm:$0xff] %vm1605, %v2192
      %2230 = vst.msk [vmem:[#allocation4 + $0x58] sm:$0xff] %vm1605, %v2194
      %2231 = vst.msk [vmem:[#allocation4 + $0x60] sm:$0xff] %vm1605, %v2196
      %2232 = vst.msk [vmem:[#allocation4 + $0x68] sm:$0xff] %vm1605, %v2198
      %2233 = vst.msk [vmem:[#allocation4 + $0x70] sm:$0xff] %vm1605, %v2200
      %2234 = vst.msk [vmem:[#allocation4 + $0x78] sm:$0xff] %vm1605, %v2202
      %2235 = vst.msk [vmem:[#allocation4] sm:$0xff] %vm1686, %v1315
      %2236 = vst.msk [vmem:[#allocation4 + $0x8] sm:$0xff] %vm1686, %v1316
      %2237 = vst.msk [vmem:[#allocation4 + $0x10] sm:$0xff] %vm1686, %v1317
      %2238 = vst.msk [vmem:[#allocation4 + $0x18] sm:$0xff] %vm1686, %v1318
      %2239 = vst.msk [vmem:[#allocation4 + $0x20] sm:$0xff] %vm1686, %v1319
      %2240 = vst.msk [vmem:[#allocation4 + $0x28] sm:$0xff] %vm1686, %v1320
      %2241 = vst.msk [vmem:[#allocation4 + $0x30] sm:$0xff] %vm1686, %v1321
      %2242 = vst.msk [vmem:[#allocation4 + $0x38] sm:$0xff] %vm1686, %v1322
      %2243 = vst.msk [vmem:[#allocation4 + $0x40] sm:$0xff] %vm1686, %v1323
      %2244 = vst.msk [vmem:[#allocation4 + $0x48] sm:$0xff] %vm1686, %v1324
      %2245 = vst.msk [vmem:[#allocation4 + $0x50] sm:$0xff] %vm1686, %v1325
      %2246 = vst.msk [vmem:[#allocation4 + $0x58] sm:$0xff] %vm1686, %v1326
      %2247 = vst.msk [vmem:[#allocation4 + $0x60] sm:$0xff] %vm1686, %v1327
      %2248 = vst.msk [vmem:[#allocation4 + $0x68] sm:$0xff] %vm1686, %v1328
      %2249 = vst.msk [vmem:[#allocation4 + $0x70] sm:$0xff] %vm1686, %v1329
      %2250 = vst.msk [vmem:[#allocation4 + $0x78] sm:$0xff] %vm1686, %v1330
      %2251 = vrot.lane.b32.xlu0 %v1379, 16
      %v2252 = vpop.permute.xlu0 %2251
      %2253 = vrot.lane.b32.xlu0 %v1380, 16
      %v2254 = vpop.permute.xlu0 %2253
      %2255 = vrot.lane.b32.xlu0 %v1381, 16
      %v2256 = vpop.permute.xlu0 %2255
      %2257 = vrot.lane.b32.xlu0 %v1382, 16
      %v2258 = vpop.permute.xlu0 %2257
      %2259 = vrot.lane.b32.xlu0 %v1383, 16
      %v2260 = vpop.permute.xlu0 %2259
      %2261 = vrot.lane.b32.xlu0 %v1384, 16
      %v2262 = vpop.permute.xlu0 %2261
      %2263 = vrot.lane.b32.xlu0 %v1385, 16
      %v2264 = vpop.permute.xlu0 %2263
      %2265 = vrot.lane.b32.xlu0 %v1386, 16
      %v2266 = vpop.permute.xlu0 %2265
      %2267 = vrot.lane.b32.xlu0 %v1387, 16
      %v2268 = vpop.permute.xlu0 %2267
      %2269 = vrot.lane.b32.xlu0 %v1388, 16
      %v2270 = vpop.permute.xlu0 %2269
      %2271 = vrot.lane.b32.xlu0 %v1389, 16
      %v2272 = vpop.permute.xlu0 %2271
      %2273 = vrot.lane.b32.xlu0 %v1390, 16
      %v2274 = vpop.permute.xlu0 %2273
      %2275 = vrot.lane.b32.xlu0 %v1391, 16
      %v2276 = vpop.permute.xlu0 %2275
      %2277 = vrot.lane.b32.xlu0 %v1392, 16
      %v2278 = vpop.permute.xlu0 %2277
      %2279 = vrot.lane.b32.xlu0 %v1393, 16
      %v2280 = vpop.permute.xlu0 %2279
      %2281 = vrot.lane.b32.xlu0 %v1394, 16
      %v2282 = vpop.permute.xlu0 %2281
      %2299 = vst.msk [vmem:[#allocation4] sm:$0xff] %vm1767, %v2252
      %2300 = vst.msk [vmem:[#allocation4 + $0x8] sm:$0xff] %vm1767, %v2254
      %2301 = vst.msk [vmem:[#allocation4 + $0x10] sm:$0xff] %vm1767, %v2256
      %2302 = vst.msk [vmem:[#allocation4 + $0x18] sm:$0xff] %vm1767, %v2258
      %2303 = vst.msk [vmem:[#allocation4 + $0x20] sm:$0xff] %vm1767, %v2260
      %2304 = vst.msk [vmem:[#allocation4 + $0x28] sm:$0xff] %vm1767, %v2262
      %2305 = vst.msk [vmem:[#allocation4 + $0x30] sm:$0xff] %vm1767, %v2264
      %2306 = vst.msk [vmem:[#allocation4 + $0x38] sm:$0xff] %vm1767, %v2266
      %2307 = vst.msk [vmem:[#allocation4 + $0x40] sm:$0xff] %vm1767, %v2268
      %2308 = vst.msk [vmem:[#allocation4 + $0x48] sm:$0xff] %vm1767, %v2270
      %2309 = vst.msk [vmem:[#allocation4 + $0x50] sm:$0xff] %vm1767, %v2272
      %2310 = vst.msk [vmem:[#allocation4 + $0x58] sm:$0xff] %vm1767, %v2274
      %2311 = vst.msk [vmem:[#allocation4 + $0x60] sm:$0xff] %vm1767, %v2276
      %2312 = vst.msk [vmem:[#allocation4 + $0x68] sm:$0xff] %vm1767, %v2278
      %2313 = vst.msk [vmem:[#allocation4 + $0x70] sm:$0xff] %vm1767, %v2280
      %2314 = vst.msk [vmem:[#allocation4 + $0x78] sm:$0xff] %vm1767, %v2282
      %2315 = vrot.lane.b32.xlu0 %v1395, 32
      %v2316 = vpop.permute.xlu0 %2315
      %2317 = vrot.lane.b32.xlu0 %v1396, 32
      %v2318 = vpop.permute.xlu0 %2317
      %2319 = vrot.lane.b32.xlu0 %v1397, 32
      %v2320 = vpop.permute.xlu0 %2319
      %2321 = vrot.lane.b32.xlu0 %v1398, 32
      %v2322 = vpop.permute.xlu0 %2321
      %2323 = vrot.lane.b32.xlu0 %v1399, 32
      %v2324 = vpop.permute.xlu0 %2323
      %2325 = vrot.lane.b32.xlu0 %v1400, 32
      %v2326 = vpop.permute.xlu0 %2325
      %2327 = vrot.lane.b32.xlu0 %v1401, 32
      %v2328 = vpop.permute.xlu0 %2327
      %2329 = vrot.lane.b32.xlu0 %v1402, 32
      %v2330 = vpop.permute.xlu0 %2329
      %2331 = vrot.lane.b32.xlu0 %v1403, 32
      %v2332 = vpop.permute.xlu0 %2331
      %2333 = vrot.lane.b32.xlu0 %v1404, 32
      %v2334 = vpop.permute.xlu0 %2333
      %2335 = vrot.lane.b32.xlu0 %v1405, 32
      %v2336 = vpop.permute.xlu0 %2335
      %2337 = vrot.lane.b32.xlu0 %v1406, 32
      %v2338 = vpop.permute.xlu0 %2337
      %2339 = vrot.lane.b32.xlu0 %v1407, 32
      %v2340 = vpop.permute.xlu0 %2339
      %2341 = vrot.lane.b32.xlu0 %v1408, 32
      %v2342 = vpop.permute.xlu0 %2341
      %2343 = vrot.lane.b32.xlu0 %v1409, 32
      %v2344 = vpop.permute.xlu0 %2343
      %2345 = vrot.lane.b32.xlu0 %v1410, 32
      %v2346 = vpop.permute.xlu0 %2345
      %2363 = vst.msk [vmem:[#allocation4] sm:$0xff] %vm1848, %v2316
      %2364 = vst.msk [vmem:[#allocation4 + $0x8] sm:$0xff] %vm1848, %v2318
      %2365 = vst.msk [vmem:[#allocation4 + $0x10] sm:$0xff] %vm1848, %v2320
      %2366 = vst.msk [vmem:[#allocation4 + $0x18] sm:$0xff] %vm1848, %v2322
      %2367 = vst.msk [vmem:[#allocation4 + $0x20] sm:$0xff] %vm1848, %v2324
      %2368 = vst.msk [vmem:[#allocation4 + $0x28] sm:$0xff] %vm1848, %v2326
      %2369 = vst.msk [vmem:[#allocation4 + $0x30] sm:$0xff] %vm1848, %v2328
      %2370 = vst.msk [vmem:[#allocation4 + $0x38] sm:$0xff] %vm1848, %v2330
      %2371 = vst.msk [vmem:[#allocation4 + $0x40] sm:$0xff] %vm1848, %v2332
      %2372 = vst.msk [vmem:[#allocation4 + $0x48] sm:$0xff] %vm1848, %v2334
      %2373 = vst.msk [vmem:[#allocation4 + $0x50] sm:$0xff] %vm1848, %v2336
      %2374 = vst.msk [vmem:[#allocation4 + $0x58] sm:$0xff] %vm1848, %v2338
      %2375 = vst.msk [vmem:[#allocation4 + $0x60] sm:$0xff] %vm1848, %v2340
      %2376 = vst.msk [vmem:[#allocation4 + $0x68] sm:$0xff] %vm1848, %v2342
      %2377 = vst.msk [vmem:[#allocation4 + $0x70] sm:$0xff] %vm1848, %v2344
      %2378 = vst.msk [vmem:[#allocation4 + $0x78] sm:$0xff] %vm1848, %v2346
      %2379 = vrot.lane.b32.xlu0 %v1411, 48
      %v2380 = vpop.permute.xlu0 %2379
      %2381 = vrot.lane.b32.xlu0 %v1412, 48
      %v2382 = vpop.permute.xlu0 %2381
      %2383 = vrot.lane.b32.xlu0 %v1413, 48
      %v2384 = vpop.permute.xlu0 %2383
      %2385 = vrot.lane.b32.xlu0 %v1414, 48
      %v2386 = vpop.permute.xlu0 %2385
      %2387 = vrot.lane.b32.xlu0 %v1415, 48
      %v2388 = vpop.permute.xlu0 %2387
      %2389 = vrot.lane.b32.xlu0 %v1416, 48
      %v2390 = vpop.permute.xlu0 %2389
      %2391 = vrot.lane.b32.xlu0 %v1417, 48
      %v2392 = vpop.permute.xlu0 %2391
      %2393 = vrot.lane.b32.xlu0 %v1418, 48
      %v2394 = vpop.permute.xlu0 %2393
      %2395 = vrot.lane.b32.xlu0 %v1419, 48
      %v2396 = vpop.permute.xlu0 %2395
      %2397 = vrot.lane.b32.xlu0 %v1420, 48
      %v2398 = vpop.permute.xlu0 %2397
      %2399 = vrot.lane.b32.xlu0 %v1421, 48
      %v2400 = vpop.permute.xlu0 %2399
      %2401 = vrot.lane.b32.xlu0 %v1422, 48
      %v2402 = vpop.permute.xlu0 %2401
      %2403 = vrot.lane.b32.xlu0 %v1423, 48
      %v2404 = vpop.permute.xlu0 %2403
      %2405 = vrot.lane.b32.xlu0 %v1424, 48
      %v2406 = vpop.permute.xlu0 %2405
      %2407 = vrot.lane.b32.xlu0 %v1425, 48
      %v2408 = vpop.permute.xlu0 %2407
      %2409 = vrot.lane.b32.xlu0 %v1426, 48
      %v2410 = vpop.permute.xlu0 %2409
      %2427 = vst.msk [vmem:[#allocation4] sm:$0xff] %vm1929, %v2380
      %2428 = vst.msk [vmem:[#allocation4 + $0x8] sm:$0xff] %vm1929, %v2382
      %2429 = vst.msk [vmem:[#allocation4 + $0x10] sm:$0xff] %vm1929, %v2384
      %2430 = vst.msk [vmem:[#allocation4 + $0x18] sm:$0xff] %vm1929, %v2386
      %2431 = vst.msk [vmem:[#allocation4 + $0x20] sm:$0xff] %vm1929, %v2388
      %2432 = vst.msk [vmem:[#allocation4 + $0x28] sm:$0xff] %vm1929, %v2390
      %2433 = vst.msk [vmem:[#allocation4 + $0x30] sm:$0xff] %vm1929, %v2392
      %2434 = vst.msk [vmem:[#allocation4 + $0x38] sm:$0xff] %vm1929, %v2394
      %2435 = vst.msk [vmem:[#allocation4 + $0x40] sm:$0xff] %vm1929, %v2396
      %2436 = vst.msk [vmem:[#allocation4 + $0x48] sm:$0xff] %vm1929, %v2398
      %2437 = vst.msk [vmem:[#allocation4 + $0x50] sm:$0xff] %vm1929, %v2400
      %2438 = vst.msk [vmem:[#allocation4 + $0x58] sm:$0xff] %vm1929, %v2402
      %2439 = vst.msk [vmem:[#allocation4 + $0x60] sm:$0xff] %vm1929, %v2404
      %2440 = vst.msk [vmem:[#allocation4 + $0x68] sm:$0xff] %vm1929, %v2406
      %2441 = vst.msk [vmem:[#allocation4 + $0x70] sm:$0xff] %vm1929, %v2408
      %2442 = vst.msk [vmem:[#allocation4 + $0x78] sm:$0xff] %vm1929, %v2410
      %2443 = vrot.lane.b32.xlu0 %v1427, 64
      %v2444 = vpop.permute.xlu0 %2443
      %2445 = vrot.lane.b32.xlu0 %v1428, 64
      %v2446 = vpop.permute.xlu0 %2445
      %2447 = vrot.lane.b32.xlu0 %v1429, 64
      %v2448 = vpop.permute.xlu0 %2447
      %2449 = vrot.lane.b32.xlu0 %v1430, 64
      %v2450 = vpop.permute.xlu0 %2449
      %2451 = vrot.lane.b32.xlu0 %v1431, 64
      %v2452 = vpop.permute.xlu0 %2451
      %2453 = vrot.lane.b32.xlu0 %v1432, 64
      %v2454 = vpop.permute.xlu0 %2453
      %2455 = vrot.lane.b32.xlu0 %v1433, 64
      %v2456 = vpop.permute.xlu0 %2455
      %2457 = vrot.lane.b32.xlu0 %v1434, 64
      %v2458 = vpop.permute.xlu0 %2457
      %2459 = vrot.lane.b32.xlu0 %v1435, 64
      %v2460 = vpop.permute.xlu0 %2459
      %2461 = vrot.lane.b32.xlu0 %v1436, 64
      %v2462 = vpop.permute.xlu0 %2461
      %2463 = vrot.lane.b32.xlu0 %v1437, 64
      %v2464 = vpop.permute.xlu0 %2463
      %2465 = vrot.lane.b32.xlu0 %v1438, 64
      %v2466 = vpop.permute.xlu0 %2465
      %2467 = vrot.lane.b32.xlu0 %v1439, 64
      %v2468 = vpop.permute.xlu0 %2467
      %2469 = vrot.lane.b32.xlu0 %v1440, 64
      %v2470 = vpop.permute.xlu0 %2469
      %2471 = vrot.lane.b32.xlu0 %v1441, 64
      %v2472 = vpop.permute.xlu0 %2471
      %2473 = vrot.lane.b32.xlu0 %v1442, 64
      %v2474 = vpop.permute.xlu0 %2473
      %2491 = vst.msk [vmem:[#allocation4] sm:$0xff] %vm2010, %v2444
      %2492 = vst.msk [vmem:[#allocation4 + $0x8] sm:$0xff] %vm2010, %v2446
      %2493 = vst.msk [vmem:[#allocation4 + $0x10] sm:$0xff] %vm2010, %v2448
      %2494 = vst.msk [vmem:[#allocation4 + $0x18] sm:$0xff] %vm2010, %v2450
      %2495 = vst.msk [vmem:[#allocation4 + $0x20] sm:$0xff] %vm2010, %v2452
      %2496 = vst.msk [vmem:[#allocation4 + $0x28] sm:$0xff] %vm2010, %v2454
      %2497 = vst.msk [vmem:[#allocation4 + $0x30] sm:$0xff] %vm2010, %v2456
      %2498 = vst.msk [vmem:[#allocation4 + $0x38] sm:$0xff] %vm2010, %v2458
      %2499 = vst.msk [vmem:[#allocation4 + $0x40] sm:$0xff] %vm2010, %v2460
      %2500 = vst.msk [vmem:[#allocation4 + $0x48] sm:$0xff] %vm2010, %v2462
      %2501 = vst.msk [vmem:[#allocation4 + $0x50] sm:$0xff] %vm2010, %v2464
      %2502 = vst.msk [vmem:[#allocation4 + $0x58] sm:$0xff] %vm2010, %v2466
      %2503 = vst.msk [vmem:[#allocation4 + $0x60] sm:$0xff] %vm2010, %v2468
      %2504 = vst.msk [vmem:[#allocation4 + $0x68] sm:$0xff] %vm2010, %v2470
      %2505 = vst.msk [vmem:[#allocation4 + $0x70] sm:$0xff] %vm2010, %v2472
      %2506 = vst.msk [vmem:[#allocation4 + $0x78] sm:$0xff] %vm2010, %v2474
      %v2507 = vld [vmem:[#allocation3] sm:$0xff]
      %v2508 = vld [vmem:[#allocation3 + $0x8] sm:$0xff]
      %v2509 = vld [vmem:[#allocation3 + $0x10] sm:$0xff]
      %v2510 = vld [vmem:[#allocation3 + $0x18] sm:$0xff]
      %v2511 = vld [vmem:[#allocation3 + $0x20] sm:$0xff]
      %v2512 = vld [vmem:[#allocation3 + $0x28] sm:$0xff]
      %v2513 = vld [vmem:[#allocation3 + $0x30] sm:$0xff]
      %v2514 = vld [vmem:[#allocation3 + $0x38] sm:$0xff]
      %v2515 = vld [vmem:[#allocation3 + $0x40] sm:$0xff]
      %v2516 = vld [vmem:[#allocation3 + $0x48] sm:$0xff]
      %v2517 = vld [vmem:[#allocation3 + $0x50] sm:$0xff]
      %v2518 = vld [vmem:[#allocation3 + $0x58] sm:$0xff]
      %v2519 = vld [vmem:[#allocation3 + $0x60] sm:$0xff]
      %v2520 = vld [vmem:[#allocation3 + $0x68] sm:$0xff]
      %v2521 = vld [vmem:[#allocation3 + $0x70] sm:$0xff]
      %v2522 = vld [vmem:[#allocation3 + $0x78] sm:$0xff]
      %v2523 = vld [vmem:[%s3] sm:$0xff]
      %v2524 = vld [vmem:[%s3 + $0x8] sm:$0xff]
      %v2525 = vld [vmem:[%s3 + $0x10] sm:$0xff]
      %v2526 = vld [vmem:[%s3 + $0x18] sm:$0xff]
      %v2527 = vld [vmem:[%s3 + $0x20] sm:$0xff]
      %v2528 = vld [vmem:[%s3 + $0x28] sm:$0xff]
      %v2529 = vld [vmem:[%s3 + $0x30] sm:$0xff]
      %v2530 = vld [vmem:[%s3 + $0x38] sm:$0xff]
      %v2531 = vld [vmem:[%s3 + $0x40] sm:$0xff]
      %v2532 = vld [vmem:[%s3 + $0x48] sm:$0xff]
      %v2533 = vld [vmem:[%s3 + $0x50] sm:$0xff]
      %v2534 = vld [vmem:[%s3 + $0x58] sm:$0xff]
      %v2535 = vld [vmem:[%s3 + $0x60] sm:$0xff]
      %v2536 = vld [vmem:[%s3 + $0x68] sm:$0xff]
      %v2537 = vld [vmem:[%s3 + $0x70] sm:$0xff]
      %v2538 = vld [vmem:[%s3 + $0x78] sm:$0xff]
      %2539 = vmatpush.msra.mxu0 %v2538
      %2540 = vmatpush.msra.mxu0 %v2537
      %2541 = vmatpush.msra.mxu0 %v2536
      %2542 = vmatpush.msra.mxu0 %v2535
      %2543 = vmatpush.msra.mxu0 %v2534
      %2544 = vmatpush.msra.mxu0 %v2533
      %2545 = vmatpush.msra.mxu0 %v2532
      %2546 = vmatpush.msra.mxu0 %v2531
      %2547 = vmatpush.msra.mxu0 %v2530
      %2548 = vmatpush.msra.mxu0 %v2529
      %2549 = vmatpush.msra.mxu0 %v2528
      %2550 = vmatpush.msra.mxu0 %v2527
      %2551 = vmatpush.msra.mxu0 %v2526
      %2552 = vmatpush.msra.mxu0 %v2525
      %2553 = vmatpush.msra.mxu0 %v2524
      %2554 = vmatpush.msra.mxu0 %v2523
      %2555 = vmatmul.f32.gmra.mxu0 %v2507
      %v2556 = vpop.f32.mrf.mxu0
      %v2557 = vadd.f32 0.0, %v2556
      %2558 = vmatmul.f32.gmra.mxu0 %v2508
      %v2559 = vpop.f32.mrf.mxu0
      %v2560 = vadd.f32 0.0, %v2559
      %2561 = vmatmul.f32.gmra.mxu0 %v2509
      %v2562 = vpop.f32.mrf.mxu0
      %v2563 = vadd.f32 0.0, %v2562
      %2564 = vmatmul.f32.gmra.mxu0 %v2510
      %v2565 = vpop.f32.mrf.mxu0
      %v2566 = vadd.f32 0.0, %v2565
      %2567 = vmatmul.f32.gmra.mxu0 %v2511
      %v2568 = vpop.f32.mrf.mxu0
      %v2569 = vadd.f32 0.0, %v2568
      %2570 = vmatmul.f32.gmra.mxu0 %v2512
      %v2571 = vpop.f32.mrf.mxu0
      %v2572 = vadd.f32 0.0, %v2571
      %2573 = vmatmul.f32.gmra.mxu0 %v2513
      %v2574 = vpop.f32.mrf.mxu0
      %v2575 = vadd.f32 0.0, %v2574
      %2576 = vmatmul.f32.gmra.mxu0 %v2514
      %v2577 = vpop.f32.mrf.mxu0
      %v2578 = vadd.f32 0.0, %v2577
      %2579 = vmatmul.f32.gmra.mxu0 %v2515
      %v2580 = vpop.f32.mrf.mxu0
      %v2581 = vadd.f32 0.0, %v2580
      %2582 = vmatmul.f32.gmra.mxu0 %v2516
      %v2583 = vpop.f32.mrf.mxu0
      %v2584 = vadd.f32 0.0, %v2583
      %2585 = vmatmul.f32.gmra.mxu0 %v2517
      %v2586 = vpop.f32.mrf.mxu0
      %v2587 = vadd.f32 0.0, %v2586
      %2588 = vmatmul.f32.gmra.mxu0 %v2518
      %v2589 = vpop.f32.mrf.mxu0
      %v2590 = vadd.f32 0.0, %v2589
      %2591 = vmatmul.f32.gmra.mxu0 %v2519
      %v2592 = vpop.f32.mrf.mxu0
      %v2593 = vadd.f32 0.0, %v2592
      %2594 = vmatmul.f32.gmra.mxu0 %v2520
      %v2595 = vpop.f32.mrf.mxu0
      %v2596 = vadd.f32 0.0, %v2595
      %2597 = vmatmul.f32.gmra.mxu0 %v2521
      %v2598 = vpop.f32.mrf.mxu0
      %v2599 = vadd.f32 0.0, %v2598
      %2600 = vmatmul.f32.gmra.mxu0 %v2522
      %v2601 = vpop.f32.mrf.mxu0
      %v2602 = vadd.f32 0.0, %v2601
      %2603 = vdwg.mxu0
      %v2604 = vld [vmem:[#allocation4] sm:$0xff]
      %v2605 = vld [vmem:[#allocation4 + $0x8] sm:$0xff]
      %v2606 = vld [vmem:[#allocation4 + $0x10] sm:$0xff]
      %v2607 = vld [vmem:[#allocation4 + $0x18] sm:$0xff]
      %v2608 = vld [vmem:[#allocation4 + $0x20] sm:$0xff]
      %v2609 = vld [vmem:[#allocation4 + $0x28] sm:$0xff]
      %v2610 = vld [vmem:[#allocation4 + $0x30] sm:$0xff]
      %v2611 = vld [vmem:[#allocation4 + $0x38] sm:$0xff]
      %v2612 = vld [vmem:[#allocation4 + $0x40] sm:$0xff]
      %v2613 = vld [vmem:[#allocation4 + $0x48] sm:$0xff]
      %v2614 = vld [vmem:[#allocation4 + $0x50] sm:$0xff]
      %v2615 = vld [vmem:[#allocation4 + $0x58] sm:$0xff]
      %v2616 = vld [vmem:[#allocation4 + $0x60] sm:$0xff]
      %v2617 = vld [vmem:[#allocation4 + $0x68] sm:$0xff]
      %v2618 = vld [vmem:[#allocation4 + $0x70] sm:$0xff]
      %v2619 = vld [vmem:[#allocation4 + $0x78] sm:$0xff]
      %v2620 = vmul.f32 %v2604, %v2557
      %v2621 = vmul.f32 %v2605, %v2560
      %v2622 = vmul.f32 %v2606, %v2563
      %v2623 = vmul.f32 %v2607, %v2566
      %v2624 = vmul.f32 %v2608, %v2569
      %v2625 = vmul.f32 %v2609, %v2572
      %v2626 = vmul.f32 %v2610, %v2575
      %v2627 = vmul.f32 %v2611, %v2578
      %v2628 = vmul.f32 %v2612, %v2581
      %v2629 = vmul.f32 %v2613, %v2584
      %v2630 = vmul.f32 %v2614, %v2587
      %v2631 = vmul.f32 %v2615, %v2590
      %v2632 = vmul.f32 %v2616, %v2593
      %v2633 = vmul.f32 %v2617, %v2596
      %v2634 = vmul.f32 %v2618, %v2599
      %v2635 = vmul.f32 %v2619, %v2602
      %2636 = vmatpush.msra.mxu0 %v412
      %2637 = vmatpush.msra.mxu0 %v411
      %2638 = vmatpush.msra.mxu0 %v410
      %2639 = vmatpush.msra.mxu0 %v409
      %2640 = vmatpush.msra.mxu0 %v408
      %2641 = vmatpush.msra.mxu0 %v407
      %2642 = vmatpush.msra.mxu0 %v406
      %2643 = vmatpush.msra.mxu0 %v405
      %2644 = vmatpush.msra.mxu0 %v404
      %2645 = vmatpush.msra.mxu0 %v403
      %2646 = vmatpush.msra.mxu0 %v402
      %2647 = vmatpush.msra.mxu0 %v401
      %2648 = vmatpush.msra.mxu0 %v400
      %2649 = vmatpush.msra.mxu0 %v399
      %2650 = vmatpush.msra.mxu0 %v398
      %2651 = vmatpush.msra.mxu0 %v397
      %2652 = vmatmul.f32.gmra.mxu0 %v2620
      %v2653 = vpop.f32.mrf.mxu0
      %v2654 = vadd.f32 0.0, %v2653
      %2655 = vmatmul.f32.gmra.mxu0 %v2621
      %v2656 = vpop.f32.mrf.mxu0
      %v2657 = vadd.f32 0.0, %v2656
      %2658 = vmatmul.f32.gmra.mxu0 %v2622
      %v2659 = vpop.f32.mrf.mxu0
      %v2660 = vadd.f32 0.0, %v2659
      %2661 = vmatmul.f32.gmra.mxu0 %v2623
      %v2662 = vpop.f32.mrf.mxu0
      %v2663 = vadd.f32 0.0, %v2662
      %2664 = vmatmul.f32.gmra.mxu0 %v2624
      %v2665 = vpop.f32.mrf.mxu0
      %v2666 = vadd.f32 0.0, %v2665
      %2667 = vmatmul.f32.gmra.mxu0 %v2625
      %v2668 = vpop.f32.mrf.mxu0
      %v2669 = vadd.f32 0.0, %v2668
      %2670 = vmatmul.f32.gmra.mxu0 %v2626
      %v2671 = vpop.f32.mrf.mxu0
      %v2672 = vadd.f32 0.0, %v2671
      %2673 = vmatmul.f32.gmra.mxu0 %v2627
      %v2674 = vpop.f32.mrf.mxu0
      %v2675 = vadd.f32 0.0, %v2674
      %2676 = vmatmul.f32.gmra.mxu0 %v2628
      %v2677 = vpop.f32.mrf.mxu0
      %v2678 = vadd.f32 0.0, %v2677
      %2679 = vmatmul.f32.gmra.mxu0 %v2629
      %v2680 = vpop.f32.mrf.mxu0
      %v2681 = vadd.f32 0.0, %v2680
      %2682 = vmatmul.f32.gmra.mxu0 %v2630
      %v2683 = vpop.f32.mrf.mxu0
      %v2684 = vadd.f32 0.0, %v2683
      %2685 = vmatmul.f32.gmra.mxu0 %v2631
      %v2686 = vpop.f32.mrf.mxu0
      %v2687 = vadd.f32 0.0, %v2686
      %2688 = vmatmul.f32.gmra.mxu0 %v2632
      %v2689 = vpop.f32.mrf.mxu0
      %v2690 = vadd.f32 0.0, %v2689
      %2691 = vmatmul.f32.gmra.mxu0 %v2633
      %v2692 = vpop.f32.mrf.mxu0
      %v2693 = vadd.f32 0.0, %v2692
      %2694 = vmatmul.f32.gmra.mxu0 %v2634
      %v2695 = vpop.f32.mrf.mxu0
      %v2696 = vadd.f32 0.0, %v2695
      %2697 = vmatmul.f32.gmra.mxu0 %v2635
      %v2698 = vpop.f32.mrf.mxu0
      %v2699 = vadd.f32 0.0, %v2698
      %2700 = vdwg.mxu0
      %2701 = vst.msk [vmem:[#allocation2] sm:$0xff] %vm1443, %v2654
      %2702 = vst.msk [vmem:[#allocation2 + $0x8] sm:$0xff] %vm1443, %v2657
      %2703 = vst.msk [vmem:[#allocation2 + $0x10] sm:$0xff] %vm1443, %v2660
      %2704 = vst.msk [vmem:[#allocation2 + $0x18] sm:$0xff] %vm1443, %v2663
      %2705 = vst.msk [vmem:[#allocation2 + $0x20] sm:$0xff] %vm1443, %v2666
      %2706 = vst.msk [vmem:[#allocation2 + $0x28] sm:$0xff] %vm1443, %v2669
      %2707 = vst.msk [vmem:[#allocation2 + $0x30] sm:$0xff] %vm1443, %v2672
      %2708 = vst.msk [vmem:[#allocation2 + $0x38] sm:$0xff] %vm1443, %v2675
      %2709 = vst.msk [vmem:[#allocation2 + $0x40] sm:$0xff] %vm1443, %v2678
      %2710 = vst.msk [vmem:[#allocation2 + $0x48] sm:$0xff] %vm1443, %v2681
      %2711 = vst.msk [vmem:[#allocation2 + $0x50] sm:$0xff] %vm1443, %v2684
      %2712 = vst.msk [vmem:[#allocation2 + $0x58] sm:$0xff] %vm1443, %v2687
      %2713 = vst.msk [vmem:[#allocation2 + $0x60] sm:$0xff] %vm1443, %v2690
      %2714 = vst.msk [vmem:[#allocation2 + $0x68] sm:$0xff] %vm1443, %v2693
      %2715 = vst.msk [vmem:[#allocation2 + $0x70] sm:$0xff] %vm1443, %v2696
      %2716 = vst.msk [vmem:[#allocation2 + $0x78] sm:$0xff] %vm1443, %v2699
      %v2717 = vld [vmem:[#allocation2] sm:$0xff]
      %v2718 = vld [vmem:[#allocation2 + $0x8] sm:$0xff]
      %v2719 = vld [vmem:[#allocation2 + $0x10] sm:$0xff]
      %v2720 = vld [vmem:[#allocation2 + $0x18] sm:$0xff]
      %v2721 = vld [vmem:[#allocation2 + $0x20] sm:$0xff]
      %v2722 = vld [vmem:[#allocation2 + $0x28] sm:$0xff]
      %v2723 = vld [vmem:[#allocation2 + $0x30] sm:$0xff]
      %v2724 = vld [vmem:[#allocation2 + $0x38] sm:$0xff]
      %v2725 = vld [vmem:[#allocation2 + $0x40] sm:$0xff]
      %v2726 = vld [vmem:[#allocation2 + $0x48] sm:$0xff]
      %v2727 = vld [vmem:[#allocation2 + $0x50] sm:$0xff]
      %v2728 = vld [vmem:[#allocation2 + $0x58] sm:$0xff]
      %v2729 = vld [vmem:[#allocation2 + $0x60] sm:$0xff]
      %v2730 = vld [vmem:[#allocation2 + $0x68] sm:$0xff]
      %v2731 = vld [vmem:[#allocation2 + $0x70] sm:$0xff]
      %v2732 = vld [vmem:[#allocation2 + $0x78] sm:$0xff]
      %v2733 = vpack.c.bf16 %v2718, %v2717
      %v2734 = vpack.c.bf16 %v2720, %v2719
      %v2735 = vpack.c.bf16 %v2722, %v2721
      %v2736 = vpack.c.bf16 %v2724, %v2723
      %v2737 = vpack.c.bf16 %v2726, %v2725
      %v2738 = vpack.c.bf16 %v2728, %v2727
      %v2739 = vpack.c.bf16 %v2730, %v2729
      %v2740 = vpack.c.bf16 %v2732, %v2731
      %s2741 = scalar_lea.vmem %s1, 44
      %v2742 = vld [vmem:[%s2741] sm:$0xf]
      %v2743 = vld [vmem:[%s2741 + $0x4] sm:$0xf]
      %v2744 = vld [vmem:[%s2741 + $0x8] sm:$0xf]
      %v2745 = vld [vmem:[%s2741 + $0xc] sm:$0xf]
      %v2746 = vld [vmem:[%s2741 + $0x10] sm:$0xf]
      %v2747 = vld [vmem:[%s2741 + $0x14] sm:$0xf]
      %v2748 = vld [vmem:[%s2741 + $0x18] sm:$0xf]
      %v2749 = vld [vmem:[%s2741 + $0x1c] sm:$0xf]
      %v2750 = vld [vmem:[%s2741 + $0x20] sm:$0xf]
      %v2751 = vld [vmem:[%s2741 + $0x24] sm:$0xf]
      %v2752 = vld [vmem:[%s2741 + $0x28] sm:$0xf]
      %v2764 = vunpack.c.l.b16 %v2742
      %v2765 = vunpack.c.l.b16 %v2743
      %v2766 = vunpack.c.l.b16 %v2744
      %v2767 = vunpack.c.l.b16 %v2745
      %v2768 = vunpack.c.l.b16 %v2746
      %v2769 = vunpack.c.l.b16 %v2747
      %v2770 = vunpack.c.l.b16 %v2748
      %v2771 = vunpack.c.l.b16 %v2749
      %v2772 = vunpack.c.l.b16 %v2750
      %v2773 = vunpack.c.l.b16 %v2751
      %v2774 = vunpack.c.l.b16 %v2752
      %v2775 = vpack.c.b16 %v2765, %v2764
      %v2776 = vpack.c.b16 %v2767, %v2766
      %v2777 = vpack.c.b16 %v2769, %v2768
      %v2778 = vpack.c.b16 %v2771, %v2770
      %v2779 = vpack.c.b16 %v2773, %v2772
      %v2780 = vpack.c.b16 %v2774, %v2774
      %v2787 = vsel %vm481, %v2733, 0
      %v2790 = vsel %vm481, %v2734, 0
      %v2793 = vsel %vm481, %v2735, 0
      %v2796 = vsel %vm481, %v2736, 0
      %v2799 = vsel %vm481, %v2737, 0
      %v2802 = vsel %vm481, %v2738, 0
      %v2805 = vsel %vm481, %v2739, 0
      %v2808 = vsel %vm481, %v2740, 0
      %v2811 = vsel %vm506, %v2780, 0
      %2813 = vmatpush.bf16.msra.mxu0 0
      %2814 = vmatpush.bf16.msra.mxu0 0
      %2815 = vmatpush.bf16.msra.mxu0 %v2811
      %2816 = vmatpush.bf16.msra.mxu0 %v2779
      %2817 = vmatpush.bf16.msra.mxu0 %v2778
      %2818 = vmatpush.bf16.msra.mxu0 %v2777
      %2819 = vmatpush.bf16.msra.mxu0 %v2776
      %2820 = vmatpush.bf16.msra.mxu0 %v2775
      %2821 = vmatmul.bf16.gmra.mxu0 %v2787
      %v2822 = vpop.f32.mrf.mxu0
      %v2823 = vadd.f32 0.0, %v2822
      %v2824 = vpop.f32.mrf.mxu0
      %v2825 = vadd.f32 0.0, %v2824
      %2826 = vmatmul.bf16.gmra.mxu0 %v2790
      %v2827 = vpop.f32.mrf.mxu0
      %v2828 = vadd.f32 0.0, %v2827
      %v2829 = vpop.f32.mrf.mxu0
      %v2830 = vadd.f32 0.0, %v2829
      %2831 = vmatmul.bf16.gmra.mxu0 %v2793
      %v2832 = vpop.f32.mrf.mxu0
      %v2833 = vadd.f32 0.0, %v2832
      %v2834 = vpop.f32.mrf.mxu0
      %v2835 = vadd.f32 0.0, %v2834
      %2836 = vmatmul.bf16.gmra.mxu0 %v2796
      %v2837 = vpop.f32.mrf.mxu0
      %v2838 = vadd.f32 0.0, %v2837
      %v2839 = vpop.f32.mrf.mxu0
      %v2840 = vadd.f32 0.0, %v2839
      %2841 = vmatmul.bf16.gmra.mxu0 %v2799
      %v2842 = vpop.f32.mrf.mxu0
      %v2843 = vadd.f32 0.0, %v2842
      %v2844 = vpop.f32.mrf.mxu0
      %v2845 = vadd.f32 0.0, %v2844
      %2846 = vmatmul.bf16.gmra.mxu0 %v2802
      %v2847 = vpop.f32.mrf.mxu0
      %v2848 = vadd.f32 0.0, %v2847
      %v2849 = vpop.f32.mrf.mxu0
      %v2850 = vadd.f32 0.0, %v2849
      %2851 = vmatmul.bf16.gmra.mxu0 %v2805
      %v2852 = vpop.f32.mrf.mxu0
      %v2853 = vadd.f32 0.0, %v2852
      %v2854 = vpop.f32.mrf.mxu0
      %v2855 = vadd.f32 0.0, %v2854
      %2856 = vmatmul.bf16.gmra.mxu0 %v2808
      %v2857 = vpop.f32.mrf.mxu0
      %v2858 = vadd.f32 0.0, %v2857
      %v2859 = vpop.f32.mrf.mxu0
      %v2860 = vadd.f32 0.0, %v2859
      %2861 = vdwg.mxu0
      %s2862 = scalar_lea.vmem %s2, 1
      %v2863 = vld [vmem:[%s2862] sm:$0x1]
      %v2865 = vperm.slane %v2863, 0
      %v2867 = vsub.f32 %v2823, %v2865
      %v2868 = vsub.f32 %v2825, %v2865
      %v2869 = vsub.f32 %v2828, %v2865
      %v2870 = vsub.f32 %v2830, %v2865
      %v2871 = vsub.f32 %v2833, %v2865
      %v2872 = vsub.f32 %v2835, %v2865
      %v2873 = vsub.f32 %v2838, %v2865
      %v2874 = vsub.f32 %v2840, %v2865
      %v2875 = vsub.f32 %v2843, %v2865
      %v2876 = vsub.f32 %v2845, %v2865
      %v2877 = vsub.f32 %v2848, %v2865
      %v2878 = vsub.f32 %v2850, %v2865
      %v2879 = vsub.f32 %v2853, %v2865
      %v2880 = vsub.f32 %v2855, %v2865
      %v2881 = vsub.f32 %v2858, %v2865
      %v2882 = vsub.f32 %v2860, %v2865
      %v2883 = vand.u32 2147483647, %v2867
      %v2884 = vand.u32 2147483647, %v2868
      %v2885 = vand.u32 2147483647, %v2869
      %v2886 = vand.u32 2147483647, %v2870
      %v2887 = vand.u32 2147483647, %v2871
      %v2888 = vand.u32 2147483647, %v2872
      %v2889 = vand.u32 2147483647, %v2873
      %v2890 = vand.u32 2147483647, %v2874
      %v2891 = vand.u32 2147483647, %v2875
      %v2892 = vand.u32 2147483647, %v2876
      %v2893 = vand.u32 2147483647, %v2877
      %v2894 = vand.u32 2147483647, %v2878
      %v2895 = vand.u32 2147483647, %v2879
      %v2896 = vand.u32 2147483647, %v2880
      %v2897 = vand.u32 2147483647, %v2881
      %v2898 = vand.u32 2147483647, %v2882
      %vm2899 = vcmp.ge.f32.partialorder %v2867, 0.0
      %vm2900 = vcmp.ge.f32.partialorder %v2868, 0.0
      %vm2901 = vcmp.ge.f32.partialorder %v2869, 0.0
      %vm2902 = vcmp.ge.f32.partialorder %v2870, 0.0
      %vm2903 = vcmp.ge.f32.partialorder %v2871, 0.0
      %vm2904 = vcmp.ge.f32.partialorder %v2872, 0.0
      %vm2905 = vcmp.ge.f32.partialorder %v2873, 0.0
      %vm2906 = vcmp.ge.f32.partialorder %v2874, 0.0
      %vm2907 = vcmp.ge.f32.partialorder %v2875, 0.0
      %vm2908 = vcmp.ge.f32.partialorder %v2876, 0.0
      %vm2909 = vcmp.ge.f32.partialorder %v2877, 0.0
      %vm2910 = vcmp.ge.f32.partialorder %v2878, 0.0
      %vm2911 = vcmp.ge.f32.partialorder %v2879, 0.0
      %vm2912 = vcmp.ge.f32.partialorder %v2880, 0.0
      %vm2913 = vcmp.ge.f32.partialorder %v2881, 0.0
      %vm2914 = vcmp.ge.f32.partialorder %v2882, 0.0
      %v2915 = vmul.f32 %v2883, %v2883
      %v2916 = vmul.f32 %v2884, %v2884
      %v2917 = vmul.f32 %v2885, %v2885
      %v2918 = vmul.f32 %v2886, %v2886
      %v2919 = vmul.f32 %v2887, %v2887
      %v2920 = vmul.f32 %v2888, %v2888
      %v2921 = vmul.f32 %v2889, %v2889
      %v2922 = vmul.f32 %v2890, %v2890
      %v2923 = vmul.f32 %v2891, %v2891
      %v2924 = vmul.f32 %v2892, %v2892
      %v2925 = vmul.f32 %v2893, %v2893
      %v2926 = vmul.f32 %v2894, %v2894
      %v2927 = vmul.f32 %v2895, %v2895
      %v2928 = vmul.f32 %v2896, %v2896
      %v2929 = vmul.f32 %v2897, %v2897
      %v2930 = vmul.f32 %v2898, %v2898
      %v2931 = vsub.f32 8.0, %v2915
      %v2932 = vsub.f32 8.0, %v2916
      %v2933 = vsub.f32 8.0, %v2917
      %v2934 = vsub.f32 8.0, %v2918
      %v2935 = vsub.f32 8.0, %v2919
      %v2936 = vsub.f32 8.0, %v2920
      %v2937 = vsub.f32 8.0, %v2921
      %v2938 = vsub.f32 8.0, %v2922
      %v2939 = vsub.f32 8.0, %v2923
      %v2940 = vsub.f32 8.0, %v2924
      %v2941 = vsub.f32 8.0, %v2925
      %v2942 = vsub.f32 8.0, %v2926
      %v2943 = vsub.f32 8.0, %v2927
      %v2944 = vsub.f32 8.0, %v2928
      %v2945 = vsub.f32 8.0, %v2929
      %v2946 = vsub.f32 8.0, %v2930
      %v2947 = vmax.f32 %v2931, 0.0
      %v2948 = vmax.f32 %v2932, 0.0
      %v2949 = vmax.f32 %v2933, 0.0
      %v2950 = vmax.f32 %v2934, 0.0
      %v2951 = vmax.f32 %v2935, 0.0
      %v2952 = vmax.f32 %v2936, 0.0
      %v2953 = vmax.f32 %v2937, 0.0
      %v2954 = vmax.f32 %v2938, 0.0
      %v2955 = vmax.f32 %v2939, 0.0
      %v2956 = vmax.f32 %v2940, 0.0
      %v2957 = vmax.f32 %v2941, 0.0
      %v2958 = vmax.f32 %v2942, 0.0
      %v2959 = vmax.f32 %v2943, 0.0
      %v2960 = vmax.f32 %v2944, 0.0
      %v2961 = vmax.f32 %v2945, 0.0
      %v2962 = vmax.f32 %v2946, 0.0
      %v2963 = vrsqrt.pop %v2947
      %v2964 = vmul.f32 %v2963, %v2947
      %v2965 = vmul.f32 %v2964, %v2963
      %v2966 = vmul.f32 0.5, %v2965
      %v2967 = vsub.f32 1.5, %v2966
      %v2968 = vmul.f32 %v2963, %v2967
      %v2969 = vmul.f32 %v2947, %v2968
      %vm2970 = vcmp.eq.f32.partialorder %v2947, inf
      %v2971 = vsel %vm2970, %v2947, %v2969
      %vm2972 = vcmp.eq.f32.partialorder %v2947, 0.0
      %v2973 = vand.u32 %v2947, 2147483648
      %v2974 = vsel %vm2972, %v2973, %v2971
      %v2975 = vrsqrt.pop %v2948
      %v2976 = vmul.f32 %v2975, %v2948
      %v2977 = vmul.f32 %v2976, %v2975
      %v2978 = vmul.f32 0.5, %v2977
      %v2979 = vsub.f32 1.5, %v2978
      %v2980 = vmul.f32 %v2975, %v2979
      %v2981 = vmul.f32 %v2948, %v2980
      %vm2982 = vcmp.eq.f32.partialorder %v2948, inf
      %v2983 = vsel %vm2982, %v2948, %v2981
      %vm2984 = vcmp.eq.f32.partialorder %v2948, 0.0
      %v2985 = vand.u32 %v2948, 2147483648
      %v2986 = vsel %vm2984, %v2985, %v2983
      %v2987 = vrsqrt.pop %v2949
      %v2988 = vmul.f32 %v2987, %v2949
      %v2989 = vmul.f32 %v2988, %v2987
      %v2990 = vmul.f32 0.5, %v2989
      %v2991 = vsub.f32 1.5, %v2990
      %v2992 = vmul.f32 %v2987, %v2991
      %v2993 = vmul.f32 %v2949, %v2992
      %vm2994 = vcmp.eq.f32.partialorder %v2949, inf
      %v2995 = vsel %vm2994, %v2949, %v2993
      %vm2996 = vcmp.eq.f32.partialorder %v2949, 0.0
      %v2997 = vand.u32 %v2949, 2147483648
      %v2998 = vsel %vm2996, %v2997, %v2995
      %v2999 = vrsqrt.pop %v2950
      %v3000 = vmul.f32 %v2999, %v2950
      %v3001 = vmul.f32 %v3000, %v2999
      %v3002 = vmul.f32 0.5, %v3001
      %v3003 = vsub.f32 1.5, %v3002
      %v3004 = vmul.f32 %v2999, %v3003
      %v3005 = vmul.f32 %v2950, %v3004
      %vm3006 = vcmp.eq.f32.partialorder %v2950, inf
      %v3007 = vsel %vm3006, %v2950, %v3005
      %vm3008 = vcmp.eq.f32.partialorder %v2950, 0.0
      %v3009 = vand.u32 %v2950, 2147483648
      %v3010 = vsel %vm3008, %v3009, %v3007
      %v3011 = vrsqrt.pop %v2951
      %v3012 = vmul.f32 %v3011, %v2951
      %v3013 = vmul.f32 %v3012, %v3011
      %v3014 = vmul.f32 0.5, %v3013
      %v3015 = vsub.f32 1.5, %v3014
      %v3016 = vmul.f32 %v3011, %v3015
      %v3017 = vmul.f32 %v2951, %v3016
      %vm3018 = vcmp.eq.f32.partialorder %v2951, inf
      %v3019 = vsel %vm3018, %v2951, %v3017
      %vm3020 = vcmp.eq.f32.partialorder %v2951, 0.0
      %v3021 = vand.u32 %v2951, 2147483648
      %v3022 = vsel %vm3020, %v3021, %v3019
      %v3023 = vrsqrt.pop %v2952
      %v3024 = vmul.f32 %v3023, %v2952
      %v3025 = vmul.f32 %v3024, %v3023
      %v3026 = vmul.f32 0.5, %v3025
      %v3027 = vsub.f32 1.5, %v3026
      %v3028 = vmul.f32 %v3023, %v3027
      %v3029 = vmul.f32 %v2952, %v3028
      %vm3030 = vcmp.eq.f32.partialorder %v2952, inf
      %v3031 = vsel %vm3030, %v2952, %v3029
      %vm3032 = vcmp.eq.f32.partialorder %v2952, 0.0
      %v3033 = vand.u32 %v2952, 2147483648
      %v3034 = vsel %vm3032, %v3033, %v3031
      %v3035 = vrsqrt.pop %v2953
      %v3036 = vmul.f32 %v3035, %v2953
      %v3037 = vmul.f32 %v3036, %v3035
      %v3038 = vmul.f32 0.5, %v3037
      %v3039 = vsub.f32 1.5, %v3038
      %v3040 = vmul.f32 %v3035, %v3039
      %v3041 = vmul.f32 %v2953, %v3040
      %vm3042 = vcmp.eq.f32.partialorder %v2953, inf
      %v3043 = vsel %vm3042, %v2953, %v3041
      %vm3044 = vcmp.eq.f32.partialorder %v2953, 0.0
      %v3045 = vand.u32 %v2953, 2147483648
      %v3046 = vsel %vm3044, %v3045, %v3043
      %v3047 = vrsqrt.pop %v2954
      %v3048 = vmul.f32 %v3047, %v2954
      %v3049 = vmul.f32 %v3048, %v3047
      %v3050 = vmul.f32 0.5, %v3049
      %v3051 = vsub.f32 1.5, %v3050
      %v3052 = vmul.f32 %v3047, %v3051
      %v3053 = vmul.f32 %v2954, %v3052
      %vm3054 = vcmp.eq.f32.partialorder %v2954, inf
      %v3055 = vsel %vm3054, %v2954, %v3053
      %vm3056 = vcmp.eq.f32.partialorder %v2954, 0.0
      %v3057 = vand.u32 %v2954, 2147483648
      %v3058 = vsel %vm3056, %v3057, %v3055
      %v3059 = vrsqrt.pop %v2955
      %v3060 = vmul.f32 %v3059, %v2955
      %v3061 = vmul.f32 %v3060, %v3059
      %v3062 = vmul.f32 0.5, %v3061
      %v3063 = vsub.f32 1.5, %v3062
      %v3064 = vmul.f32 %v3059, %v3063
      %v3065 = vmul.f32 %v2955, %v3064
      %vm3066 = vcmp.eq.f32.partialorder %v2955, inf
      %v3067 = vsel %vm3066, %v2955, %v3065
      %vm3068 = vcmp.eq.f32.partialorder %v2955, 0.0
      %v3069 = vand.u32 %v2955, 2147483648
      %v3070 = vsel %vm3068, %v3069, %v3067
      %v3071 = vrsqrt.pop %v2956
      %v3072 = vmul.f32 %v3071, %v2956
      %v3073 = vmul.f32 %v3072, %v3071
      %v3074 = vmul.f32 0.5, %v3073
      %v3075 = vsub.f32 1.5, %v3074
      %v3076 = vmul.f32 %v3071, %v3075
      %v3077 = vmul.f32 %v2956, %v3076
      %vm3078 = vcmp.eq.f32.partialorder %v2956, inf
      %v3079 = vsel %vm3078, %v2956, %v3077
      %vm3080 = vcmp.eq.f32.partialorder %v2956, 0.0
      %v3081 = vand.u32 %v2956, 2147483648
      %v3082 = vsel %vm3080, %v3081, %v3079
      %v3083 = vrsqrt.pop %v2957
      %v3084 = vmul.f32 %v3083, %v2957
      %v3085 = vmul.f32 %v3084, %v3083
      %v3086 = vmul.f32 0.5, %v3085
      %v3087 = vsub.f32 1.5, %v3086
      %v3088 = vmul.f32 %v3083, %v3087
      %v3089 = vmul.f32 %v2957, %v3088
      %vm3090 = vcmp.eq.f32.partialorder %v2957, inf
      %v3091 = vsel %vm3090, %v2957, %v3089
      %vm3092 = vcmp.eq.f32.partialorder %v2957, 0.0
      %v3093 = vand.u32 %v2957, 2147483648
      %v3094 = vsel %vm3092, %v3093, %v3091
      %v3095 = vrsqrt.pop %v2958
      %v3096 = vmul.f32 %v3095, %v2958
      %v3097 = vmul.f32 %v3096, %v3095
      %v3098 = vmul.f32 0.5, %v3097
      %v3099 = vsub.f32 1.5, %v3098
      %v3100 = vmul.f32 %v3095, %v3099
      %v3101 = vmul.f32 %v2958, %v3100
      %vm3102 = vcmp.eq.f32.partialorder %v2958, inf
      %v3103 = vsel %vm3102, %v2958, %v3101
      %vm3104 = vcmp.eq.f32.partialorder %v2958, 0.0
      %v3105 = vand.u32 %v2958, 2147483648
      %v3106 = vsel %vm3104, %v3105, %v3103
      %v3107 = vrsqrt.pop %v2959
      %v3108 = vmul.f32 %v3107, %v2959
      %v3109 = vmul.f32 %v3108, %v3107
      %v3110 = vmul.f32 0.5, %v3109
      %v3111 = vsub.f32 1.5, %v3110
      %v3112 = vmul.f32 %v3107, %v3111
      %v3113 = vmul.f32 %v2959, %v3112
      %vm3114 = vcmp.eq.f32.partialorder %v2959, inf
      %v3115 = vsel %vm3114, %v2959, %v3113
      %vm3116 = vcmp.eq.f32.partialorder %v2959, 0.0
      %v3117 = vand.u32 %v2959, 2147483648
      %v3118 = vsel %vm3116, %v3117, %v3115
      %v3119 = vrsqrt.pop %v2960
      %v3120 = vmul.f32 %v3119, %v2960
      %v3121 = vmul.f32 %v3120, %v3119
      %v3122 = vmul.f32 0.5, %v3121
      %v3123 = vsub.f32 1.5, %v3122
      %v3124 = vmul.f32 %v3119, %v3123
      %v3125 = vmul.f32 %v2960, %v3124
      %vm3126 = vcmp.eq.f32.partialorder %v2960, inf
      %v3127 = vsel %vm3126, %v2960, %v3125
      %vm3128 = vcmp.eq.f32.partialorder %v2960, 0.0
      %v3129 = vand.u32 %v2960, 2147483648
      %v3130 = vsel %vm3128, %v3129, %v3127
      %v3131 = vrsqrt.pop %v2961
      %v3132 = vmul.f32 %v3131, %v2961
      %v3133 = vmul.f32 %v3132, %v3131
      %v3134 = vmul.f32 0.5, %v3133
      %v3135 = vsub.f32 1.5, %v3134
      %v3136 = vmul.f32 %v3131, %v3135
      %v3137 = vmul.f32 %v2961, %v3136
      %vm3138 = vcmp.eq.f32.partialorder %v2961, inf
      %v3139 = vsel %vm3138, %v2961, %v3137
      %vm3140 = vcmp.eq.f32.partialorder %v2961, 0.0
      %v3141 = vand.u32 %v2961, 2147483648
      %v3142 = vsel %vm3140, %v3141, %v3139
      %v3143 = vrsqrt.pop %v2962
      %v3144 = vmul.f32 %v3143, %v2962
      %v3145 = vmul.f32 %v3144, %v3143
      %v3146 = vmul.f32 0.5, %v3145
      %v3147 = vsub.f32 1.5, %v3146
      %v3148 = vmul.f32 %v3143, %v3147
      %v3149 = vmul.f32 %v2962, %v3148
      %vm3150 = vcmp.eq.f32.partialorder %v2962, inf
      %v3151 = vsel %vm3150, %v2962, %v3149
      %vm3152 = vcmp.eq.f32.partialorder %v2962, 0.0
      %v3153 = vand.u32 %v2962, 2147483648
      %v3154 = vsel %vm3152, %v3153, %v3151
      %v3155 = vadd.f32 %v2883, %v2974
      %v3156 = vadd.f32 %v2884, %v2986
      %v3157 = vadd.f32 %v2885, %v2998
      %v3158 = vadd.f32 %v2886, %v3010
      %v3159 = vadd.f32 %v2887, %v3022
      %v3160 = vadd.f32 %v2888, %v3034
      %v3161 = vadd.f32 %v2889, %v3046
      %v3162 = vadd.f32 %v2890, %v3058
      %v3163 = vadd.f32 %v2891, %v3070
      %v3164 = vadd.f32 %v2892, %v3082
      %v3165 = vadd.f32 %v2893, %v3094
      %v3166 = vadd.f32 %v2894, %v3106
      %v3167 = vadd.f32 %v2895, %v3118
      %v3168 = vadd.f32 %v2896, %v3130
      %v3169 = vadd.f32 %v2897, %v3142
      %v3170 = vadd.f32 %v2898, %v3154
      %v3171 = vmul.f32 %v3155, 0.5
      %v3172 = vmul.f32 %v3156, 0.5
      %v3173 = vmul.f32 %v3157, 0.5
      %v3174 = vmul.f32 %v3158, 0.5
      %v3175 = vmul.f32 %v3159, 0.5
      %v3176 = vmul.f32 %v3160, 0.5
      %v3177 = vmul.f32 %v3161, 0.5
      %v3178 = vmul.f32 %v3162, 0.5
      %v3179 = vmul.f32 %v3163, 0.5
      %v3180 = vmul.f32 %v3164, 0.5
      %v3181 = vmul.f32 %v3165, 0.5
      %v3182 = vmul.f32 %v3166, 0.5
      %v3183 = vmul.f32 %v3167, 0.5
      %v3184 = vmul.f32 %v3168, 0.5
      %v3185 = vmul.f32 %v3169, 0.5
      %v3186 = vmul.f32 %v3170, 0.5
      %vm3187 = vcmp.le.f32.partialorder %v3171, %v2883
      %vm3188 = vcmp.le.f32.partialorder %v3172, %v2884
      %vm3189 = vcmp.le.f32.partialorder %v3173, %v2885
      %vm3190 = vcmp.le.f32.partialorder %v3174, %v2886
      %vm3191 = vcmp.le.f32.partialorder %v3175, %v2887
      %vm3192 = vcmp.le.f32.partialorder %v3176, %v2888
      %vm3193 = vcmp.le.f32.partialorder %v3177, %v2889
      %vm3194 = vcmp.le.f32.partialorder %v3178, %v2890
      %vm3195 = vcmp.le.f32.partialorder %v3179, %v2891
      %vm3196 = vcmp.le.f32.partialorder %v3180, %v2892
      %vm3197 = vcmp.le.f32.partialorder %v3181, %v2893
      %vm3198 = vcmp.le.f32.partialorder %v3182, %v2894
      %vm3199 = vcmp.le.f32.partialorder %v3183, %v2895
      %vm3200 = vcmp.le.f32.partialorder %v3184, %v2896
      %vm3201 = vcmp.le.f32.partialorder %v3185, %v2897
      %vm3202 = vcmp.le.f32.partialorder %v3186, %v2898
      %v3203 = vsel %vm3187, 2.0, %v3171
      %v3204 = vsel %vm3188, 2.0, %v3172
      %v3205 = vsel %vm3189, 2.0, %v3173
      %v3206 = vsel %vm3190, 2.0, %v3174
      %v3207 = vsel %vm3191, 2.0, %v3175
      %v3208 = vsel %vm3192, 2.0, %v3176
      %v3209 = vsel %vm3193, 2.0, %v3177
      %v3210 = vsel %vm3194, 2.0, %v3178
      %v3211 = vsel %vm3195, 2.0, %v3179
      %v3212 = vsel %vm3196, 2.0, %v3180
      %v3213 = vsel %vm3197, 2.0, %v3181
      %v3214 = vsel %vm3198, 2.0, %v3182
      %v3215 = vsel %vm3199, 2.0, %v3183
      %v3216 = vsel %vm3200, 2.0, %v3184
      %v3217 = vsel %vm3201, 2.0, %v3185
      %v3218 = vsel %vm3202, 2.0, %v3186
      %v3219 = vsub.f32 %v3203, %v2883
      %v3220 = vsub.f32 %v3204, %v2884
      %v3221 = vsub.f32 %v3205, %v2885
      %v3222 = vsub.f32 %v3206, %v2886
      %v3223 = vsub.f32 %v3207, %v2887
      %v3224 = vsub.f32 %v3208, %v2888
      %v3225 = vsub.f32 %v3209, %v2889
      %v3226 = vsub.f32 %v3210, %v2890
      %v3227 = vsub.f32 %v3211, %v2891
      %v3228 = vsub.f32 %v3212, %v2892
      %v3229 = vsub.f32 %v3213, %v2893
      %v3230 = vsub.f32 %v3214, %v2894
      %v3231 = vsub.f32 %v3215, %v2895
      %v3232 = vsub.f32 %v3216, %v2896
      %v3233 = vsub.f32 %v3217, %v2897
      %v3234 = vsub.f32 %v3218, %v2898
      %v3235 = vmax.f32 %v3219, 0.0
      %v3236 = vmax.f32 %v3220, 0.0
      %v3237 = vmax.f32 %v3221, 0.0
      %v3238 = vmax.f32 %v3222, 0.0
      %v3239 = vmax.f32 %v3223, 0.0
      %v3240 = vmax.f32 %v3224, 0.0
      %v3241 = vmax.f32 %v3225, 0.0
      %v3242 = vmax.f32 %v3226, 0.0
      %v3243 = vmax.f32 %v3227, 0.0
      %v3244 = vmax.f32 %v3228, 0.0
      %v3245 = vmax.f32 %v3229, 0.0
      %v3246 = vmax.f32 %v3230, 0.0
      %v3247 = vmax.f32 %v3231, 0.0
      %v3248 = vmax.f32 %v3232, 0.0
      %v3249 = vmax.f32 %v3233, 0.0
      %v3250 = vmax.f32 %v3234, 0.0
      %v3251 = vmul.f32 %v3235, %v3235
      %v3252 = vmul.f32 %v3236, %v3236
      %v3253 = vmul.f32 %v3237, %v3237
      %v3254 = vmul.f32 %v3238, %v3238
      %v3255 = vmul.f32 %v3239, %v3239
      %v3256 = vmul.f32 %v3240, %v3240
      %v3257 = vmul.f32 %v3241, %v3241
      %v3258 = vmul.f32 %v3242, %v3242
      %v3259 = vmul.f32 %v3243, %v3243
      %v3260 = vmul.f32 %v3244, %v3244
      %v3261 = vmul.f32 %v3245, %v3245
      %v3262 = vmul.f32 %v3246, %v3246
      %v3263 = vmul.f32 %v3247, %v3247
      %v3264 = vmul.f32 %v3248, %v3248
      %v3265 = vmul.f32 %v3249, %v3249
      %v3266 = vmul.f32 %v3250, %v3250
      %v3267 = vmul.f32 %v3251, 0.25
      %v3268 = vmul.f32 %v3252, 0.25
      %v3269 = vmul.f32 %v3253, 0.25
      %v3270 = vmul.f32 %v3254, 0.25
      %v3271 = vmul.f32 %v3255, 0.25
      %v3272 = vmul.f32 %v3256, 0.25
      %v3273 = vmul.f32 %v3257, 0.25
      %v3274 = vmul.f32 %v3258, 0.25
      %v3275 = vmul.f32 %v3259, 0.25
      %v3276 = vmul.f32 %v3260, 0.25
      %v3277 = vmul.f32 %v3261, 0.25
      %v3278 = vmul.f32 %v3262, 0.25
      %v3279 = vmul.f32 %v3263, 0.25
      %v3280 = vmul.f32 %v3264, 0.25
      %v3281 = vmul.f32 %v3265, 0.25
      %v3282 = vmul.f32 %v3266, 0.25
      %v3283 = vsub.f32 1.0, %v3267
      %v3284 = vsub.f32 1.0, %v3268
      %v3285 = vsub.f32 1.0, %v3269
      %v3286 = vsub.f32 1.0, %v3270
      %v3287 = vsub.f32 1.0, %v3271
      %v3288 = vsub.f32 1.0, %v3272
      %v3289 = vsub.f32 1.0, %v3273
      %v3290 = vsub.f32 1.0, %v3274
      %v3291 = vsub.f32 1.0, %v3275
      %v3292 = vsub.f32 1.0, %v3276
      %v3293 = vsub.f32 1.0, %v3277
      %v3294 = vsub.f32 1.0, %v3278
      %v3295 = vsub.f32 1.0, %v3279
      %v3296 = vsub.f32 1.0, %v3280
      %v3297 = vsub.f32 1.0, %v3281
      %v3298 = vsub.f32 1.0, %v3282
      %v3299 = vsel %vm2899, %v3283, %v3267
      %v3300 = vsel %vm2900, %v3284, %v3268
      %v3301 = vsel %vm2901, %v3285, %v3269
      %v3302 = vsel %vm2902, %v3286, %v3270
      %v3303 = vsel %vm2903, %v3287, %v3271
      %v3304 = vsel %vm2904, %v3288, %v3272
      %v3305 = vsel %vm2905, %v3289, %v3273
      %v3306 = vsel %vm2906, %v3290, %v3274
      %v3307 = vsel %vm2907, %v3291, %v3275
      %v3308 = vsel %vm2908, %v3292, %v3276
      %v3309 = vsel %vm2909, %v3293, %v3277
      %v3310 = vsel %vm2910, %v3294, %v3278
      %v3311 = vsel %vm2911, %v3295, %v3279
      %v3312 = vsel %vm2912, %v3296, %v3280
      %v3313 = vsel %vm2913, %v3297, %v3281
      %v3314 = vsel %vm2914, %v3298, %v3282
      %v3315 = vsub.f32 1.0, %v3299
      %v3316 = vsub.f32 1.0, %v3300
      %v3317 = vsub.f32 1.0, %v3301
      %v3318 = vsub.f32 1.0, %v3302
      %v3319 = vsub.f32 1.0, %v3303
      %v3320 = vsub.f32 1.0, %v3304
      %v3321 = vsub.f32 1.0, %v3305
      %v3322 = vsub.f32 1.0, %v3306
      %v3323 = vsub.f32 1.0, %v3307
      %v3324 = vsub.f32 1.0, %v3308
      %v3325 = vsub.f32 1.0, %v3309
      %v3326 = vsub.f32 1.0, %v3310
      %v3327 = vsub.f32 1.0, %v3311
      %v3328 = vsub.f32 1.0, %v3312
      %v3329 = vsub.f32 1.0, %v3313
      %v3330 = vsub.f32 1.0, %v3314
      %3347 = vrot.lane.b32.xlu0 %v3299, 112
      %v3348 = vpop.permute.xlu0 %3347
      %3349 = vrot.lane.b32.xlu0 %v3300, 112
      %v3350 = vpop.permute.xlu0 %3349
      %3351 = vrot.lane.b32.xlu0 %v3301, 112
      %v3352 = vpop.permute.xlu0 %3351
      %3353 = vrot.lane.b32.xlu0 %v3302, 112
      %v3354 = vpop.permute.xlu0 %3353
      %3355 = vrot.lane.b32.xlu0 %v3303, 112
      %v3356 = vpop.permute.xlu0 %3355
      %3357 = vrot.lane.b32.xlu0 %v3304, 112
      %v3358 = vpop.permute.xlu0 %3357
      %3359 = vrot.lane.b32.xlu0 %v3305, 112
      %v3360 = vpop.permute.xlu0 %3359
      %3361 = vrot.lane.b32.xlu0 %v3306, 112
      %v3362 = vpop.permute.xlu0 %3361
      %3363 = vrot.lane.b32.xlu0 %v3307, 112
      %v3364 = vpop.permute.xlu0 %3363
      %3365 = vrot.lane.b32.xlu0 %v3308, 112
      %v3366 = vpop.permute.xlu0 %3365
      %3367 = vrot.lane.b32.xlu0 %v3309, 112
      %v3368 = vpop.permute.xlu0 %3367
      %3369 = vrot.lane.b32.xlu0 %v3310, 112
      %v3370 = vpop.permute.xlu0 %3369
      %3371 = vrot.lane.b32.xlu0 %v3311, 112
      %v3372 = vpop.permute.xlu0 %3371
      %3373 = vrot.lane.b32.xlu0 %v3312, 112
      %v3374 = vpop.permute.xlu0 %3373
      %3375 = vrot.lane.b32.xlu0 %v3313, 112
      %v3376 = vpop.permute.xlu0 %3375
      %3377 = vrot.lane.b32.xlu0 %v3314, 112
      %v3378 = vpop.permute.xlu0 %3377
      %v3395 = vmul.f32 %v3299, %v3348
      %v3396 = vmul.f32 %v3300, %v3350
      %v3397 = vmul.f32 %v3301, %v3352
      %v3398 = vmul.f32 %v3302, %v3354
      %v3399 = vmul.f32 %v3303, %v3356
      %v3400 = vmul.f32 %v3304, %v3358
      %v3401 = vmul.f32 %v3305, %v3360
      %v3402 = vmul.f32 %v3306, %v3362
      %v3403 = vmul.f32 %v3307, %v3364
      %v3404 = vmul.f32 %v3308, %v3366
      %v3405 = vmul.f32 %v3309, %v3368
      %v3406 = vmul.f32 %v3310, %v3370
      %v3407 = vmul.f32 %v3311, %v3372
      %v3408 = vmul.f32 %v3312, %v3374
      %v3409 = vmul.f32 %v3313, %v3376
      %v3410 = vmul.f32 %v3314, %v3378
      %v3411 = vmul.f32 %v3315, %v3348
      %v3412 = vmul.f32 %v3316, %v3350
      %v3413 = vmul.f32 %v3317, %v3352
      %v3414 = vmul.f32 %v3318, %v3354
      %v3415 = vmul.f32 %v3319, %v3356
      %v3416 = vmul.f32 %v3320, %v3358
      %v3417 = vmul.f32 %v3321, %v3360
      %v3418 = vmul.f32 %v3322, %v3362
      %v3419 = vmul.f32 %v3323, %v3364
      %v3420 = vmul.f32 %v3324, %v3366
      %v3421 = vmul.f32 %v3325, %v3368
      %v3422 = vmul.f32 %v3326, %v3370
      %v3423 = vmul.f32 %v3327, %v3372
      %v3424 = vmul.f32 %v3328, %v3374
      %v3425 = vmul.f32 %v3329, %v3376
      %v3426 = vmul.f32 %v3330, %v3378
      %3443 = vrot.lane.b32.xlu0 %v3315, 112
      %v3444 = vpop.permute.xlu0 %3443
      %3445 = vrot.lane.b32.xlu0 %v3316, 112
      %v3446 = vpop.permute.xlu0 %3445
      %3447 = vrot.lane.b32.xlu0 %v3317, 112
      %v3448 = vpop.permute.xlu0 %3447
      %3449 = vrot.lane.b32.xlu0 %v3318, 112
      %v3450 = vpop.permute.xlu0 %3449
      %3451 = vrot.lane.b32.xlu0 %v3319, 112
      %v3452 = vpop.permute.xlu0 %3451
      %3453 = vrot.lane.b32.xlu0 %v3320, 112
      %v3454 = vpop.permute.xlu0 %3453
      %3455 = vrot.lane.b32.xlu0 %v3321, 112
      %v3456 = vpop.permute.xlu0 %3455
      %3457 = vrot.lane.b32.xlu0 %v3322, 112
      %v3458 = vpop.permute.xlu0 %3457
      %3459 = vrot.lane.b32.xlu0 %v3323, 112
      %v3460 = vpop.permute.xlu0 %3459
      %3461 = vrot.lane.b32.xlu0 %v3324, 112
      %v3462 = vpop.permute.xlu0 %3461
      %3463 = vrot.lane.b32.xlu0 %v3325, 112
      %v3464 = vpop.permute.xlu0 %3463
      %3465 = vrot.lane.b32.xlu0 %v3326, 112
      %v3466 = vpop.permute.xlu0 %3465
      %3467 = vrot.lane.b32.xlu0 %v3327, 112
      %v3468 = vpop.permute.xlu0 %3467
      %3469 = vrot.lane.b32.xlu0 %v3328, 112
      %v3470 = vpop.permute.xlu0 %3469
      %3471 = vrot.lane.b32.xlu0 %v3329, 112
      %v3472 = vpop.permute.xlu0 %3471
      %3473 = vrot.lane.b32.xlu0 %v3330, 112
      %v3474 = vpop.permute.xlu0 %3473
      %v3491 = vmul.f32 %v3299, %v3444
      %v3492 = vmul.f32 %v3300, %v3446
      %v3493 = vmul.f32 %v3301, %v3448
      %v3494 = vmul.f32 %v3302, %v3450
      %v3495 = vmul.f32 %v3303, %v3452
      %v3496 = vmul.f32 %v3304, %v3454
      %v3497 = vmul.f32 %v3305, %v3456
      %v3498 = vmul.f32 %v3306, %v3458
      %v3499 = vmul.f32 %v3307, %v3460
      %v3500 = vmul.f32 %v3308, %v3462
      %v3501 = vmul.f32 %v3309, %v3464
      %v3502 = vmul.f32 %v3310, %v3466
      %v3503 = vmul.f32 %v3311, %v3468
      %v3504 = vmul.f32 %v3312, %v3470
      %v3505 = vmul.f32 %v3313, %v3472
      %v3506 = vmul.f32 %v3314, %v3474
      %v3507 = vmul.f32 %v3315, %v3444
      %v3508 = vmul.f32 %v3316, %v3446
      %v3509 = vmul.f32 %v3317, %v3448
      %v3510 = vmul.f32 %v3318, %v3450
      %v3511 = vmul.f32 %v3319, %v3452
      %v3512 = vmul.f32 %v3320, %v3454
      %v3513 = vmul.f32 %v3321, %v3456
      %v3514 = vmul.f32 %v3322, %v3458
      %v3515 = vmul.f32 %v3323, %v3460
      %v3516 = vmul.f32 %v3324, %v3462
      %v3517 = vmul.f32 %v3325, %v3464
      %v3518 = vmul.f32 %v3326, %v3466
      %v3519 = vmul.f32 %v3327, %v3468
      %v3520 = vmul.f32 %v3328, %v3470
      %v3521 = vmul.f32 %v3329, %v3472
      %v3522 = vmul.f32 %v3330, %v3474
      %3523 = vrot.lane.b32.xlu0 %v3299, 96
      %v3524 = vpop.permute.xlu0 %3523
      %3525 = vrot.lane.b32.xlu0 %v3300, 96
      %v3526 = vpop.permute.xlu0 %3525
      %3527 = vrot.lane.b32.xlu0 %v3301, 96
      %v3528 = vpop.permute.xlu0 %3527
      %3529 = vrot.lane.b32.xlu0 %v3302, 96
      %v3530 = vpop.permute.xlu0 %3529
      %3531 = vrot.lane.b32.xlu0 %v3303, 96
      %v3532 = vpop.permute.xlu0 %3531
      %3533 = vrot.lane.b32.xlu0 %v3304, 96
      %v3534 = vpop.permute.xlu0 %3533
      %3535 = vrot.lane.b32.xlu0 %v3305, 96
      %v3536 = vpop.permute.xlu0 %3535
      %3537 = vrot.lane.b32.xlu0 %v3306, 96
      %v3538 = vpop.permute.xlu0 %3537
      %3539 = vrot.lane.b32.xlu0 %v3307, 96
      %v3540 = vpop.permute.xlu0 %3539
      %3541 = vrot.lane.b32.xlu0 %v3308, 96
      %v3542 = vpop.permute.xlu0 %3541
      %3543 = vrot.lane.b32.xlu0 %v3309, 96
      %v3544 = vpop.permute.xlu0 %3543
      %3545 = vrot.lane.b32.xlu0 %v3310, 96
      %v3546 = vpop.permute.xlu0 %3545
      %3547 = vrot.lane.b32.xlu0 %v3311, 96
      %v3548 = vpop.permute.xlu0 %3547
      %3549 = vrot.lane.b32.xlu0 %v3312, 96
      %v3550 = vpop.permute.xlu0 %3549
      %3551 = vrot.lane.b32.xlu0 %v3313, 96
      %v3552 = vpop.permute.xlu0 %3551
      %3553 = vrot.lane.b32.xlu0 %v3314, 96
      %v3554 = vpop.permute.xlu0 %3553
      %v3571 = vmul.f32 %v3395, %v3524
      %v3572 = vmul.f32 %v3396, %v3526
      %v3573 = vmul.f32 %v3397, %v3528
      %v3574 = vmul.f32 %v3398, %v3530
      %v3575 = vmul.f32 %v3399, %v3532
      %v3576 = vmul.f32 %v3400, %v3534
      %v3577 = vmul.f32 %v3401, %v3536
      %v3578 = vmul.f32 %v3402, %v3538
      %v3579 = vmul.f32 %v3403, %v3540
      %v3580 = vmul.f32 %v3404, %v3542
      %v3581 = vmul.f32 %v3405, %v3544
      %v3582 = vmul.f32 %v3406, %v3546
      %v3583 = vmul.f32 %v3407, %v3548
      %v3584 = vmul.f32 %v3408, %v3550
      %v3585 = vmul.f32 %v3409, %v3552
      %v3586 = vmul.f32 %v3410, %v3554
      %v3587 = vmul.f32 %v3411, %v3524
      %v3588 = vmul.f32 %v3412, %v3526
      %v3589 = vmul.f32 %v3413, %v3528
      %v3590 = vmul.f32 %v3414, %v3530
      %v3591 = vmul.f32 %v3415, %v3532
      %v3592 = vmul.f32 %v3416, %v3534
      %v3593 = vmul.f32 %v3417, %v3536
      %v3594 = vmul.f32 %v3418, %v3538
      %v3595 = vmul.f32 %v3419, %v3540
      %v3596 = vmul.f32 %v3420, %v3542
      %v3597 = vmul.f32 %v3421, %v3544
      %v3598 = vmul.f32 %v3422, %v3546
      %v3599 = vmul.f32 %v3423, %v3548
      %v3600 = vmul.f32 %v3424, %v3550
      %v3601 = vmul.f32 %v3425, %v3552
      %v3602 = vmul.f32 %v3426, %v3554
      %v3603 = vmul.f32 %v3491, %v3524
      %v3604 = vmul.f32 %v3492, %v3526
      %v3605 = vmul.f32 %v3493, %v3528
      %v3606 = vmul.f32 %v3494, %v3530
      %v3607 = vmul.f32 %v3495, %v3532
      %v3608 = vmul.f32 %v3496, %v3534
      %v3609 = vmul.f32 %v3497, %v3536
      %v3610 = vmul.f32 %v3498, %v3538
      %v3611 = vmul.f32 %v3499, %v3540
      %v3612 = vmul.f32 %v3500, %v3542
      %v3613 = vmul.f32 %v3501, %v3544
      %v3614 = vmul.f32 %v3502, %v3546
      %v3615 = vmul.f32 %v3503, %v3548
      %v3616 = vmul.f32 %v3504, %v3550
      %v3617 = vmul.f32 %v3505, %v3552
      %v3618 = vmul.f32 %v3506, %v3554
      %v3619 = vmul.f32 %v3507, %v3524
      %v3620 = vmul.f32 %v3508, %v3526
      %v3621 = vmul.f32 %v3509, %v3528
      %v3622 = vmul.f32 %v3510, %v3530
      %v3623 = vmul.f32 %v3511, %v3532
      %v3624 = vmul.f32 %v3512, %v3534
      %v3625 = vmul.f32 %v3513, %v3536
      %v3626 = vmul.f32 %v3514, %v3538
      %v3627 = vmul.f32 %v3515, %v3540
      %v3628 = vmul.f32 %v3516, %v3542
      %v3629 = vmul.f32 %v3517, %v3544
      %v3630 = vmul.f32 %v3518, %v3546
      %v3631 = vmul.f32 %v3519, %v3548
      %v3632 = vmul.f32 %v3520, %v3550
      %v3633 = vmul.f32 %v3521, %v3552
      %v3634 = vmul.f32 %v3522, %v3554
      %3635 = vrot.lane.b32.xlu0 %v3315, 96
      %v3636 = vpop.permute.xlu0 %3635
      %3637 = vrot.lane.b32.xlu0 %v3316, 96
      %v3638 = vpop.permute.xlu0 %3637
      %3639 = vrot.lane.b32.xlu0 %v3317, 96
      %v3640 = vpop.permute.xlu0 %3639
      %3641 = vrot.lane.b32.xlu0 %v3318, 96
      %v3642 = vpop.permute.xlu0 %3641
      %3643 = vrot.lane.b32.xlu0 %v3319, 96
      %v3644 = vpop.permute.xlu0 %3643
      %3645 = vrot.lane.b32.xlu0 %v3320, 96
      %v3646 = vpop.permute.xlu0 %3645
      %3647 = vrot.lane.b32.xlu0 %v3321, 96
      %v3648 = vpop.permute.xlu0 %3647
      %3649 = vrot.lane.b32.xlu0 %v3322, 96
      %v3650 = vpop.permute.xlu0 %3649
      %3651 = vrot.lane.b32.xlu0 %v3323, 96
      %v3652 = vpop.permute.xlu0 %3651
      %3653 = vrot.lane.b32.xlu0 %v3324, 96
      %v3654 = vpop.permute.xlu0 %3653
      %3655 = vrot.lane.b32.xlu0 %v3325, 96
      %v3656 = vpop.permute.xlu0 %3655
      %3657 = vrot.lane.b32.xlu0 %v3326, 96
      %v3658 = vpop.permute.xlu0 %3657
      %3659 = vrot.lane.b32.xlu0 %v3327, 96
      %v3660 = vpop.permute.xlu0 %3659
      %3661 = vrot.lane.b32.xlu0 %v3328, 96
      %v3662 = vpop.permute.xlu0 %3661
      %3663 = vrot.lane.b32.xlu0 %v3329, 96
      %v3664 = vpop.permute.xlu0 %3663
      %3665 = vrot.lane.b32.xlu0 %v3330, 96
      %v3666 = vpop.permute.xlu0 %3665
      %v3683 = vmul.f32 %v3395, %v3636
      %v3684 = vmul.f32 %v3396, %v3638
      %v3685 = vmul.f32 %v3397, %v3640
      %v3686 = vmul.f32 %v3398, %v3642
      %v3687 = vmul.f32 %v3399, %v3644
      %v3688 = vmul.f32 %v3400, %v3646
      %v3689 = vmul.f32 %v3401, %v3648
      %v3690 = vmul.f32 %v3402, %v3650
      %v3691 = vmul.f32 %v3403, %v3652
      %v3692 = vmul.f32 %v3404, %v3654
      %v3693 = vmul.f32 %v3405, %v3656
      %v3694 = vmul.f32 %v3406, %v3658
      %v3695 = vmul.f32 %v3407, %v3660
      %v3696 = vmul.f32 %v3408, %v3662
      %v3697 = vmul.f32 %v3409, %v3664
      %v3698 = vmul.f32 %v3410, %v3666
      %v3699 = vmul.f32 %v3411, %v3636
      %v3700 = vmul.f32 %v3412, %v3638
      %v3701 = vmul.f32 %v3413, %v3640
      %v3702 = vmul.f32 %v3414, %v3642
      %v3703 = vmul.f32 %v3415, %v3644
      %v3704 = vmul.f32 %v3416, %v3646
      %v3705 = vmul.f32 %v3417, %v3648
      %v3706 = vmul.f32 %v3418, %v3650
      %v3707 = vmul.f32 %v3419, %v3652
      %v3708 = vmul.f32 %v3420, %v3654
      %v3709 = vmul.f32 %v3421, %v3656
      %v3710 = vmul.f32 %v3422, %v3658
      %v3711 = vmul.f32 %v3423, %v3660
      %v3712 = vmul.f32 %v3424, %v3662
      %v3713 = vmul.f32 %v3425, %v3664
      %v3714 = vmul.f32 %v3426, %v3666
      %v3715 = vmul.f32 %v3491, %v3636
      %v3716 = vmul.f32 %v3492, %v3638
      %v3717 = vmul.f32 %v3493, %v3640
      %v3718 = vmul.f32 %v3494, %v3642
      %v3719 = vmul.f32 %v3495, %v3644
      %v3720 = vmul.f32 %v3496, %v3646
      %v3721 = vmul.f32 %v3497, %v3648
      %v3722 = vmul.f32 %v3498, %v3650
      %v3723 = vmul.f32 %v3499, %v3652
      %v3724 = vmul.f32 %v3500, %v3654
      %v3725 = vmul.f32 %v3501, %v3656
      %v3726 = vmul.f32 %v3502, %v3658
      %v3727 = vmul.f32 %v3503, %v3660
      %v3728 = vmul.f32 %v3504, %v3662
      %v3729 = vmul.f32 %v3505, %v3664
      %v3730 = vmul.f32 %v3506, %v3666
      %v3731 = vmul.f32 %v3507, %v3636
      %v3732 = vmul.f32 %v3508, %v3638
      %v3733 = vmul.f32 %v3509, %v3640
      %v3734 = vmul.f32 %v3510, %v3642
      %v3735 = vmul.f32 %v3511, %v3644
      %v3736 = vmul.f32 %v3512, %v3646
      %v3737 = vmul.f32 %v3513, %v3648
      %v3738 = vmul.f32 %v3514, %v3650
      %v3739 = vmul.f32 %v3515, %v3652
      %v3740 = vmul.f32 %v3516, %v3654
      %v3741 = vmul.f32 %v3517, %v3656
      %v3742 = vmul.f32 %v3518, %v3658
      %v3743 = vmul.f32 %v3519, %v3660
      %v3744 = vmul.f32 %v3520, %v3662
      %v3745 = vmul.f32 %v3521, %v3664
      %v3746 = vmul.f32 %v3522, %v3666
      %3747 = vst.msk [vmem:[#allocation3] sm:$0xff] %vm1443, %v3571
      %3748 = vst.msk [vmem:[#allocation3 + $0x8] sm:$0xff] %vm1443, %v3572
      %3749 = vst.msk [vmem:[#allocation3 + $0x10] sm:$0xff] %vm1443, %v3573
      %3750 = vst.msk [vmem:[#allocation3 + $0x18] sm:$0xff] %vm1443, %v3574
      %3751 = vst.msk [vmem:[#allocation3 + $0x20] sm:$0xff] %vm1443, %v3575
      %3752 = vst.msk [vmem:[#allocation3 + $0x28] sm:$0xff] %vm1443, %v3576
      %3753 = vst.msk [vmem:[#allocation3 + $0x30] sm:$0xff] %vm1443, %v3577
      %3754 = vst.msk [vmem:[#allocation3 + $0x38] sm:$0xff] %vm1443, %v3578
      %3755 = vst.msk [vmem:[#allocation3 + $0x40] sm:$0xff] %vm1443, %v3579
      %3756 = vst.msk [vmem:[#allocation3 + $0x48] sm:$0xff] %vm1443, %v3580
      %3757 = vst.msk [vmem:[#allocation3 + $0x50] sm:$0xff] %vm1443, %v3581
      %3758 = vst.msk [vmem:[#allocation3 + $0x58] sm:$0xff] %vm1443, %v3582
      %3759 = vst.msk [vmem:[#allocation3 + $0x60] sm:$0xff] %vm1443, %v3583
      %3760 = vst.msk [vmem:[#allocation3 + $0x68] sm:$0xff] %vm1443, %v3584
      %3761 = vst.msk [vmem:[#allocation3 + $0x70] sm:$0xff] %vm1443, %v3585
      %3762 = vst.msk [vmem:[#allocation3 + $0x78] sm:$0xff] %vm1443, %v3586
      %3779 = vrot.lane.b32.xlu0 %v3587, 16
      %v3780 = vpop.permute.xlu0 %3779
      %3781 = vrot.lane.b32.xlu0 %v3588, 16
      %v3782 = vpop.permute.xlu0 %3781
      %3783 = vrot.lane.b32.xlu0 %v3589, 16
      %v3784 = vpop.permute.xlu0 %3783
      %3785 = vrot.lane.b32.xlu0 %v3590, 16
      %v3786 = vpop.permute.xlu0 %3785
      %3787 = vrot.lane.b32.xlu0 %v3591, 16
      %v3788 = vpop.permute.xlu0 %3787
      %3789 = vrot.lane.b32.xlu0 %v3592, 16
      %v3790 = vpop.permute.xlu0 %3789
      %3791 = vrot.lane.b32.xlu0 %v3593, 16
      %v3792 = vpop.permute.xlu0 %3791
      %3793 = vrot.lane.b32.xlu0 %v3594, 16
      %v3794 = vpop.permute.xlu0 %3793
      %3795 = vrot.lane.b32.xlu0 %v3595, 16
      %v3796 = vpop.permute.xlu0 %3795
      %3797 = vrot.lane.b32.xlu0 %v3596, 16
      %v3798 = vpop.permute.xlu0 %3797
      %3799 = vrot.lane.b32.xlu0 %v3597, 16
      %v3800 = vpop.permute.xlu0 %3799
      %3801 = vrot.lane.b32.xlu0 %v3598, 16
      %v3802 = vpop.permute.xlu0 %3801
      %3803 = vrot.lane.b32.xlu0 %v3599, 16
      %v3804 = vpop.permute.xlu0 %3803
      %3805 = vrot.lane.b32.xlu0 %v3600, 16
      %v3806 = vpop.permute.xlu0 %3805
      %3807 = vrot.lane.b32.xlu0 %v3601, 16
      %v3808 = vpop.permute.xlu0 %3807
      %3809 = vrot.lane.b32.xlu0 %v3602, 16
      %v3810 = vpop.permute.xlu0 %3809
      %3827 = vst.msk [vmem:[#allocation3] sm:$0xff] %vm1524, %v3780
      %3828 = vst.msk [vmem:[#allocation3 + $0x8] sm:$0xff] %vm1524, %v3782
      %3829 = vst.msk [vmem:[#allocation3 + $0x10] sm:$0xff] %vm1524, %v3784
      %3830 = vst.msk [vmem:[#allocation3 + $0x18] sm:$0xff] %vm1524, %v3786
      %3831 = vst.msk [vmem:[#allocation3 + $0x20] sm:$0xff] %vm1524, %v3788
      %3832 = vst.msk [vmem:[#allocation3 + $0x28] sm:$0xff] %vm1524, %v3790
      %3833 = vst.msk [vmem:[#allocation3 + $0x30] sm:$0xff] %vm1524, %v3792
      %3834 = vst.msk [vmem:[#allocation3 + $0x38] sm:$0xff] %vm1524, %v3794
      %3835 = vst.msk [vmem:[#allocation3 + $0x40] sm:$0xff] %vm1524, %v3796
      %3836 = vst.msk [vmem:[#allocation3 + $0x48] sm:$0xff] %vm1524, %v3798
      %3837 = vst.msk [vmem:[#allocation3 + $0x50] sm:$0xff] %vm1524, %v3800
      %3838 = vst.msk [vmem:[#allocation3 + $0x58] sm:$0xff] %vm1524, %v3802
      %3839 = vst.msk [vmem:[#allocation3 + $0x60] sm:$0xff] %vm1524, %v3804
      %3840 = vst.msk [vmem:[#allocation3 + $0x68] sm:$0xff] %vm1524, %v3806
      %3841 = vst.msk [vmem:[#allocation3 + $0x70] sm:$0xff] %vm1524, %v3808
      %3842 = vst.msk [vmem:[#allocation3 + $0x78] sm:$0xff] %vm1524, %v3810
      %3859 = vrot.lane.b32.xlu0 %v3603, 32
      %v3860 = vpop.permute.xlu0 %3859
      %3861 = vrot.lane.b32.xlu0 %v3604, 32
      %v3862 = vpop.permute.xlu0 %3861
      %3863 = vrot.lane.b32.xlu0 %v3605, 32
      %v3864 = vpop.permute.xlu0 %3863
      %3865 = vrot.lane.b32.xlu0 %v3606, 32
      %v3866 = vpop.permute.xlu0 %3865
      %3867 = vrot.lane.b32.xlu0 %v3607, 32
      %v3868 = vpop.permute.xlu0 %3867
      %3869 = vrot.lane.b32.xlu0 %v3608, 32
      %v3870 = vpop.permute.xlu0 %3869
      %3871 = vrot.lane.b32.xlu0 %v3609, 32
      %v3872 = vpop.permute.xlu0 %3871
      %3873 = vrot.lane.b32.xlu0 %v3610, 32
      %v3874 = vpop.permute.xlu0 %3873
      %3875 = vrot.lane.b32.xlu0 %v3611, 32
      %v3876 = vpop.permute.xlu0 %3875
      %3877 = vrot.lane.b32.xlu0 %v3612, 32
      %v3878 = vpop.permute.xlu0 %3877
      %3879 = vrot.lane.b32.xlu0 %v3613, 32
      %v3880 = vpop.permute.xlu0 %3879
      %3881 = vrot.lane.b32.xlu0 %v3614, 32
      %v3882 = vpop.permute.xlu0 %3881
      %3883 = vrot.lane.b32.xlu0 %v3615, 32
      %v3884 = vpop.permute.xlu0 %3883
      %3885 = vrot.lane.b32.xlu0 %v3616, 32
      %v3886 = vpop.permute.xlu0 %3885
      %3887 = vrot.lane.b32.xlu0 %v3617, 32
      %v3888 = vpop.permute.xlu0 %3887
      %3889 = vrot.lane.b32.xlu0 %v3618, 32
      %v3890 = vpop.permute.xlu0 %3889
      %3907 = vst.msk [vmem:[#allocation3] sm:$0xff] %vm1605, %v3860
      %3908 = vst.msk [vmem:[#allocation3 + $0x8] sm:$0xff] %vm1605, %v3862
      %3909 = vst.msk [vmem:[#allocation3 + $0x10] sm:$0xff] %vm1605, %v3864
      %3910 = vst.msk [vmem:[#allocation3 + $0x18] sm:$0xff] %vm1605, %v3866
      %3911 = vst.msk [vmem:[#allocation3 + $0x20] sm:$0xff] %vm1605, %v3868
      %3912 = vst.msk [vmem:[#allocation3 + $0x28] sm:$0xff] %vm1605, %v3870
      %3913 = vst.msk [vmem:[#allocation3 + $0x30] sm:$0xff] %vm1605, %v3872
      %3914 = vst.msk [vmem:[#allocation3 + $0x38] sm:$0xff] %vm1605, %v3874
      %3915 = vst.msk [vmem:[#allocation3 + $0x40] sm:$0xff] %vm1605, %v3876
      %3916 = vst.msk [vmem:[#allocation3 + $0x48] sm:$0xff] %vm1605, %v3878
      %3917 = vst.msk [vmem:[#allocation3 + $0x50] sm:$0xff] %vm1605, %v3880
      %3918 = vst.msk [vmem:[#allocation3 + $0x58] sm:$0xff] %vm1605, %v3882
      %3919 = vst.msk [vmem:[#allocation3 + $0x60] sm:$0xff] %vm1605, %v3884
      %3920 = vst.msk [vmem:[#allocation3 + $0x68] sm:$0xff] %vm1605, %v3886
      %3921 = vst.msk [vmem:[#allocation3 + $0x70] sm:$0xff] %vm1605, %v3888
      %3922 = vst.msk [vmem:[#allocation3 + $0x78] sm:$0xff] %vm1605, %v3890
      %3939 = vrot.lane.b32.xlu0 %v3619, 48
      %v3940 = vpop.permute.xlu0 %3939
      %3941 = vrot.lane.b32.xlu0 %v3620, 48
      %v3942 = vpop.permute.xlu0 %3941
      %3943 = vrot.lane.b32.xlu0 %v3621, 48
      %v3944 = vpop.permute.xlu0 %3943
      %3945 = vrot.lane.b32.xlu0 %v3622, 48
      %v3946 = vpop.permute.xlu0 %3945
      %3947 = vrot.lane.b32.xlu0 %v3623, 48
      %v3948 = vpop.permute.xlu0 %3947
      %3949 = vrot.lane.b32.xlu0 %v3624, 48
      %v3950 = vpop.permute.xlu0 %3949
      %3951 = vrot.lane.b32.xlu0 %v3625, 48
      %v3952 = vpop.permute.xlu0 %3951
      %3953 = vrot.lane.b32.xlu0 %v3626, 48
      %v3954 = vpop.permute.xlu0 %3953
      %3955 = vrot.lane.b32.xlu0 %v3627, 48
      %v3956 = vpop.permute.xlu0 %3955
      %3957 = vrot.lane.b32.xlu0 %v3628, 48
      %v3958 = vpop.permute.xlu0 %3957
      %3959 = vrot.lane.b32.xlu0 %v3629, 48
      %v3960 = vpop.permute.xlu0 %3959
      %3961 = vrot.lane.b32.xlu0 %v3630, 48
      %v3962 = vpop.permute.xlu0 %3961
      %3963 = vrot.lane.b32.xlu0 %v3631, 48
      %v3964 = vpop.permute.xlu0 %3963
      %3965 = vrot.lane.b32.xlu0 %v3632, 48
      %v3966 = vpop.permute.xlu0 %3965
      %3967 = vrot.lane.b32.xlu0 %v3633, 48
      %v3968 = vpop.permute.xlu0 %3967
      %3969 = vrot.lane.b32.xlu0 %v3634, 48
      %v3970 = vpop.permute.xlu0 %3969
      %3987 = vst.msk [vmem:[#allocation3] sm:$0xff] %vm1686, %v3940
      %3988 = vst.msk [vmem:[#allocation3 + $0x8] sm:$0xff] %vm1686, %v3942
      %3989 = vst.msk [vmem:[#allocation3 + $0x10] sm:$0xff] %vm1686, %v3944
      %3990 = vst.msk [vmem:[#allocation3 + $0x18] sm:$0xff] %vm1686, %v3946
      %3991 = vst.msk [vmem:[#allocation3 + $0x20] sm:$0xff] %vm1686, %v3948
      %3992 = vst.msk [vmem:[#allocation3 + $0x28] sm:$0xff] %vm1686, %v3950
      %3993 = vst.msk [vmem:[#allocation3 + $0x30] sm:$0xff] %vm1686, %v3952
      %3994 = vst.msk [vmem:[#allocation3 + $0x38] sm:$0xff] %vm1686, %v3954
      %3995 = vst.msk [vmem:[#allocation3 + $0x40] sm:$0xff] %vm1686, %v3956
      %3996 = vst.msk [vmem:[#allocation3 + $0x48] sm:$0xff] %vm1686, %v3958
      %3997 = vst.msk [vmem:[#allocation3 + $0x50] sm:$0xff] %vm1686, %v3960
      %3998 = vst.msk [vmem:[#allocation3 + $0x58] sm:$0xff] %vm1686, %v3962
      %3999 = vst.msk [vmem:[#allocation3 + $0x60] sm:$0xff] %vm1686, %v3964
      %4000 = vst.msk [vmem:[#allocation3 + $0x68] sm:$0xff] %vm1686, %v3966
      %4001 = vst.msk [vmem:[#allocation3 + $0x70] sm:$0xff] %vm1686, %v3968
      %4002 = vst.msk [vmem:[#allocation3 + $0x78] sm:$0xff] %vm1686, %v3970
      %4019 = vrot.lane.b32.xlu0 %v3683, 64
      %v4020 = vpop.permute.xlu0 %4019
      %4021 = vrot.lane.b32.xlu0 %v3684, 64
      %v4022 = vpop.permute.xlu0 %4021
      %4023 = vrot.lane.b32.xlu0 %v3685, 64
      %v4024 = vpop.permute.xlu0 %4023
      %4025 = vrot.lane.b32.xlu0 %v3686, 64
      %v4026 = vpop.permute.xlu0 %4025
      %4027 = vrot.lane.b32.xlu0 %v3687, 64
      %v4028 = vpop.permute.xlu0 %4027
      %4029 = vrot.lane.b32.xlu0 %v3688, 64
      %v4030 = vpop.permute.xlu0 %4029
      %4031 = vrot.lane.b32.xlu0 %v3689, 64
      %v4032 = vpop.permute.xlu0 %4031
      %4033 = vrot.lane.b32.xlu0 %v3690, 64
      %v4034 = vpop.permute.xlu0 %4033
      %4035 = vrot.lane.b32.xlu0 %v3691, 64
      %v4036 = vpop.permute.xlu0 %4035
      %4037 = vrot.lane.b32.xlu0 %v3692, 64
      %v4038 = vpop.permute.xlu0 %4037
      %4039 = vrot.lane.b32.xlu0 %v3693, 64
      %v4040 = vpop.permute.xlu0 %4039
      %4041 = vrot.lane.b32.xlu0 %v3694, 64
      %v4042 = vpop.permute.xlu0 %4041
      %4043 = vrot.lane.b32.xlu0 %v3695, 64
      %v4044 = vpop.permute.xlu0 %4043
      %4045 = vrot.lane.b32.xlu0 %v3696, 64
      %v4046 = vpop.permute.xlu0 %4045
      %4047 = vrot.lane.b32.xlu0 %v3697, 64
      %v4048 = vpop.permute.xlu0 %4047
      %4049 = vrot.lane.b32.xlu0 %v3698, 64
      %v4050 = vpop.permute.xlu0 %4049
      %4067 = vst.msk [vmem:[#allocation3] sm:$0xff] %vm1767, %v4020
      %4068 = vst.msk [vmem:[#allocation3 + $0x8] sm:$0xff] %vm1767, %v4022
      %4069 = vst.msk [vmem:[#allocation3 + $0x10] sm:$0xff] %vm1767, %v4024
      %4070 = vst.msk [vmem:[#allocation3 + $0x18] sm:$0xff] %vm1767, %v4026
      %4071 = vst.msk [vmem:[#allocation3 + $0x20] sm:$0xff] %vm1767, %v4028
      %4072 = vst.msk [vmem:[#allocation3 + $0x28] sm:$0xff] %vm1767, %v4030
      %4073 = vst.msk [vmem:[#allocation3 + $0x30] sm:$0xff] %vm1767, %v4032
      %4074 = vst.msk [vmem:[#allocation3 + $0x38] sm:$0xff] %vm1767, %v4034
      %4075 = vst.msk [vmem:[#allocation3 + $0x40] sm:$0xff] %vm1767, %v4036
      %4076 = vst.msk [vmem:[#allocation3 + $0x48] sm:$0xff] %vm1767, %v4038
      %4077 = vst.msk [vmem:[#allocation3 + $0x50] sm:$0xff] %vm1767, %v4040
      %4078 = vst.msk [vmem:[#allocation3 + $0x58] sm:$0xff] %vm1767, %v4042
      %4079 = vst.msk [vmem:[#allocation3 + $0x60] sm:$0xff] %vm1767, %v4044
      %4080 = vst.msk [vmem:[#allocation3 + $0x68] sm:$0xff] %vm1767, %v4046
      %4081 = vst.msk [vmem:[#allocation3 + $0x70] sm:$0xff] %vm1767, %v4048
      %4082 = vst.msk [vmem:[#allocation3 + $0x78] sm:$0xff] %vm1767, %v4050
      %4099 = vrot.lane.b32.xlu0 %v3699, 80
      %v4100 = vpop.permute.xlu0 %4099
      %4101 = vrot.lane.b32.xlu0 %v3700, 80
      %v4102 = vpop.permute.xlu0 %4101
      %4103 = vrot.lane.b32.xlu0 %v3701, 80
      %v4104 = vpop.permute.xlu0 %4103
      %4105 = vrot.lane.b32.xlu0 %v3702, 80
      %v4106 = vpop.permute.xlu0 %4105
      %4107 = vrot.lane.b32.xlu0 %v3703, 80
      %v4108 = vpop.permute.xlu0 %4107
      %4109 = vrot.lane.b32.xlu0 %v3704, 80
      %v4110 = vpop.permute.xlu0 %4109
      %4111 = vrot.lane.b32.xlu0 %v3705, 80
      %v4112 = vpop.permute.xlu0 %4111
      %4113 = vrot.lane.b32.xlu0 %v3706, 80
      %v4114 = vpop.permute.xlu0 %4113
      %4115 = vrot.lane.b32.xlu0 %v3707, 80
      %v4116 = vpop.permute.xlu0 %4115
      %4117 = vrot.lane.b32.xlu0 %v3708, 80
      %v4118 = vpop.permute.xlu0 %4117
      %4119 = vrot.lane.b32.xlu0 %v3709, 80
      %v4120 = vpop.permute.xlu0 %4119
      %4121 = vrot.lane.b32.xlu0 %v3710, 80
      %v4122 = vpop.permute.xlu0 %4121
      %4123 = vrot.lane.b32.xlu0 %v3711, 80
      %v4124 = vpop.permute.xlu0 %4123
      %4125 = vrot.lane.b32.xlu0 %v3712, 80
      %v4126 = vpop.permute.xlu0 %4125
      %4127 = vrot.lane.b32.xlu0 %v3713, 80
      %v4128 = vpop.permute.xlu0 %4127
      %4129 = vrot.lane.b32.xlu0 %v3714, 80
      %v4130 = vpop.permute.xlu0 %4129
      %4147 = vst.msk [vmem:[#allocation3] sm:$0xff] %vm1848, %v4100
      %4148 = vst.msk [vmem:[#allocation3 + $0x8] sm:$0xff] %vm1848, %v4102
      %4149 = vst.msk [vmem:[#allocation3 + $0x10] sm:$0xff] %vm1848, %v4104
      %4150 = vst.msk [vmem:[#allocation3 + $0x18] sm:$0xff] %vm1848, %v4106
      %4151 = vst.msk [vmem:[#allocation3 + $0x20] sm:$0xff] %vm1848, %v4108
      %4152 = vst.msk [vmem:[#allocation3 + $0x28] sm:$0xff] %vm1848, %v4110
      %4153 = vst.msk [vmem:[#allocation3 + $0x30] sm:$0xff] %vm1848, %v4112
      %4154 = vst.msk [vmem:[#allocation3 + $0x38] sm:$0xff] %vm1848, %v4114
      %4155 = vst.msk [vmem:[#allocation3 + $0x40] sm:$0xff] %vm1848, %v4116
      %4156 = vst.msk [vmem:[#allocation3 + $0x48] sm:$0xff] %vm1848, %v4118
      %4157 = vst.msk [vmem:[#allocation3 + $0x50] sm:$0xff] %vm1848, %v4120
      %4158 = vst.msk [vmem:[#allocation3 + $0x58] sm:$0xff] %vm1848, %v4122
      %4159 = vst.msk [vmem:[#allocation3 + $0x60] sm:$0xff] %vm1848, %v4124
      %4160 = vst.msk [vmem:[#allocation3 + $0x68] sm:$0xff] %vm1848, %v4126
      %4161 = vst.msk [vmem:[#allocation3 + $0x70] sm:$0xff] %vm1848, %v4128
      %4162 = vst.msk [vmem:[#allocation3 + $0x78] sm:$0xff] %vm1848, %v4130
      %4179 = vrot.lane.b32.xlu0 %v3715, 96
      %v4180 = vpop.permute.xlu0 %4179
      %4181 = vrot.lane.b32.xlu0 %v3716, 96
      %v4182 = vpop.permute.xlu0 %4181
      %4183 = vrot.lane.b32.xlu0 %v3717, 96
      %v4184 = vpop.permute.xlu0 %4183
      %4185 = vrot.lane.b32.xlu0 %v3718, 96
      %v4186 = vpop.permute.xlu0 %4185
      %4187 = vrot.lane.b32.xlu0 %v3719, 96
      %v4188 = vpop.permute.xlu0 %4187
      %4189 = vrot.lane.b32.xlu0 %v3720, 96
      %v4190 = vpop.permute.xlu0 %4189
      %4191 = vrot.lane.b32.xlu0 %v3721, 96
      %v4192 = vpop.permute.xlu0 %4191
      %4193 = vrot.lane.b32.xlu0 %v3722, 96
      %v4194 = vpop.permute.xlu0 %4193
      %4195 = vrot.lane.b32.xlu0 %v3723, 96
      %v4196 = vpop.permute.xlu0 %4195
      %4197 = vrot.lane.b32.xlu0 %v3724, 96
      %v4198 = vpop.permute.xlu0 %4197
      %4199 = vrot.lane.b32.xlu0 %v3725, 96
      %v4200 = vpop.permute.xlu0 %4199
      %4201 = vrot.lane.b32.xlu0 %v3726, 96
      %v4202 = vpop.permute.xlu0 %4201
      %4203 = vrot.lane.b32.xlu0 %v3727, 96
      %v4204 = vpop.permute.xlu0 %4203
      %4205 = vrot.lane.b32.xlu0 %v3728, 96
      %v4206 = vpop.permute.xlu0 %4205
      %4207 = vrot.lane.b32.xlu0 %v3729, 96
      %v4208 = vpop.permute.xlu0 %4207
      %4209 = vrot.lane.b32.xlu0 %v3730, 96
      %v4210 = vpop.permute.xlu0 %4209
      %4227 = vst.msk [vmem:[#allocation3] sm:$0xff] %vm1929, %v4180
      %4228 = vst.msk [vmem:[#allocation3 + $0x8] sm:$0xff] %vm1929, %v4182
      %4229 = vst.msk [vmem:[#allocation3 + $0x10] sm:$0xff] %vm1929, %v4184
      %4230 = vst.msk [vmem:[#allocation3 + $0x18] sm:$0xff] %vm1929, %v4186
      %4231 = vst.msk [vmem:[#allocation3 + $0x20] sm:$0xff] %vm1929, %v4188
      %4232 = vst.msk [vmem:[#allocation3 + $0x28] sm:$0xff] %vm1929, %v4190
      %4233 = vst.msk [vmem:[#allocation3 + $0x30] sm:$0xff] %vm1929, %v4192
      %4234 = vst.msk [vmem:[#allocation3 + $0x38] sm:$0xff] %vm1929, %v4194
      %4235 = vst.msk [vmem:[#allocation3 + $0x40] sm:$0xff] %vm1929, %v4196
      %4236 = vst.msk [vmem:[#allocation3 + $0x48] sm:$0xff] %vm1929, %v4198
      %4237 = vst.msk [vmem:[#allocation3 + $0x50] sm:$0xff] %vm1929, %v4200
      %4238 = vst.msk [vmem:[#allocation3 + $0x58] sm:$0xff] %vm1929, %v4202
      %4239 = vst.msk [vmem:[#allocation3 + $0x60] sm:$0xff] %vm1929, %v4204
      %4240 = vst.msk [vmem:[#allocation3 + $0x68] sm:$0xff] %vm1929, %v4206
      %4241 = vst.msk [vmem:[#allocation3 + $0x70] sm:$0xff] %vm1929, %v4208
      %4242 = vst.msk [vmem:[#allocation3 + $0x78] sm:$0xff] %vm1929, %v4210
      %4259 = vrot.lane.b32.xlu0 %v3731, 112
      %v4260 = vpop.permute.xlu0 %4259
      %4261 = vrot.lane.b32.xlu0 %v3732, 112
      %v4262 = vpop.permute.xlu0 %4261
      %4263 = vrot.lane.b32.xlu0 %v3733, 112
      %v4264 = vpop.permute.xlu0 %4263
      %4265 = vrot.lane.b32.xlu0 %v3734, 112
      %v4266 = vpop.permute.xlu0 %4265
      %4267 = vrot.lane.b32.xlu0 %v3735, 112
      %v4268 = vpop.permute.xlu0 %4267
      %4269 = vrot.lane.b32.xlu0 %v3736, 112
      %v4270 = vpop.permute.xlu0 %4269
      %4271 = vrot.lane.b32.xlu0 %v3737, 112
      %v4272 = vpop.permute.xlu0 %4271
      %4273 = vrot.lane.b32.xlu0 %v3738, 112
      %v4274 = vpop.permute.xlu0 %4273
      %4275 = vrot.lane.b32.xlu0 %v3739, 112
      %v4276 = vpop.permute.xlu0 %4275
      %4277 = vrot.lane.b32.xlu0 %v3740, 112
      %v4278 = vpop.permute.xlu0 %4277
      %4279 = vrot.lane.b32.xlu0 %v3741, 112
      %v4280 = vpop.permute.xlu0 %4279
      %4281 = vrot.lane.b32.xlu0 %v3742, 112
      %v4282 = vpop.permute.xlu0 %4281
      %4283 = vrot.lane.b32.xlu0 %v3743, 112
      %v4284 = vpop.permute.xlu0 %4283
      %4285 = vrot.lane.b32.xlu0 %v3744, 112
      %v4286 = vpop.permute.xlu0 %4285
      %4287 = vrot.lane.b32.xlu0 %v3745, 112
      %v4288 = vpop.permute.xlu0 %4287
      %4289 = vrot.lane.b32.xlu0 %v3746, 112
      %v4290 = vpop.permute.xlu0 %4289
      %4307 = vst.msk [vmem:[#allocation3] sm:$0xff] %vm2010, %v4260
      %4308 = vst.msk [vmem:[#allocation3 + $0x8] sm:$0xff] %vm2010, %v4262
      %4309 = vst.msk [vmem:[#allocation3 + $0x10] sm:$0xff] %vm2010, %v4264
      %4310 = vst.msk [vmem:[#allocation3 + $0x18] sm:$0xff] %vm2010, %v4266
      %4311 = vst.msk [vmem:[#allocation3 + $0x20] sm:$0xff] %vm2010, %v4268
      %4312 = vst.msk [vmem:[#allocation3 + $0x28] sm:$0xff] %vm2010, %v4270
      %4313 = vst.msk [vmem:[#allocation3 + $0x30] sm:$0xff] %vm2010, %v4272
      %4314 = vst.msk [vmem:[#allocation3 + $0x38] sm:$0xff] %vm2010, %v4274
      %4315 = vst.msk [vmem:[#allocation3 + $0x40] sm:$0xff] %vm2010, %v4276
      %4316 = vst.msk [vmem:[#allocation3 + $0x48] sm:$0xff] %vm2010, %v4278
      %4317 = vst.msk [vmem:[#allocation3 + $0x50] sm:$0xff] %vm2010, %v4280
      %4318 = vst.msk [vmem:[#allocation3 + $0x58] sm:$0xff] %vm2010, %v4282
      %4319 = vst.msk [vmem:[#allocation3 + $0x60] sm:$0xff] %vm2010, %v4284
      %4320 = vst.msk [vmem:[#allocation3 + $0x68] sm:$0xff] %vm2010, %v4286
      %4321 = vst.msk [vmem:[#allocation3 + $0x70] sm:$0xff] %vm2010, %v4288
      %4322 = vst.msk [vmem:[#allocation3 + $0x78] sm:$0xff] %vm2010, %v4290
      %4339 = vrot.lane.b32.xlu0 %v3571, 80
      %v4340 = vpop.permute.xlu0 %4339
      %4341 = vrot.lane.b32.xlu0 %v3572, 80
      %v4342 = vpop.permute.xlu0 %4341
      %4343 = vrot.lane.b32.xlu0 %v3573, 80
      %v4344 = vpop.permute.xlu0 %4343
      %4345 = vrot.lane.b32.xlu0 %v3574, 80
      %v4346 = vpop.permute.xlu0 %4345
      %4347 = vrot.lane.b32.xlu0 %v3575, 80
      %v4348 = vpop.permute.xlu0 %4347
      %4349 = vrot.lane.b32.xlu0 %v3576, 80
      %v4350 = vpop.permute.xlu0 %4349
      %4351 = vrot.lane.b32.xlu0 %v3577, 80
      %v4352 = vpop.permute.xlu0 %4351
      %4353 = vrot.lane.b32.xlu0 %v3578, 80
      %v4354 = vpop.permute.xlu0 %4353
      %4355 = vrot.lane.b32.xlu0 %v3579, 80
      %v4356 = vpop.permute.xlu0 %4355
      %4357 = vrot.lane.b32.xlu0 %v3580, 80
      %v4358 = vpop.permute.xlu0 %4357
      %4359 = vrot.lane.b32.xlu0 %v3581, 80
      %v4360 = vpop.permute.xlu0 %4359
      %4361 = vrot.lane.b32.xlu0 %v3582, 80
      %v4362 = vpop.permute.xlu0 %4361
      %4363 = vrot.lane.b32.xlu0 %v3583, 80
      %v4364 = vpop.permute.xlu0 %4363
      %4365 = vrot.lane.b32.xlu0 %v3584, 80
      %v4366 = vpop.permute.xlu0 %4365
      %4367 = vrot.lane.b32.xlu0 %v3585, 80
      %v4368 = vpop.permute.xlu0 %4367
      %4369 = vrot.lane.b32.xlu0 %v3586, 80
      %v4370 = vpop.permute.xlu0 %4369
      %4387 = vst.msk [vmem:[#allocation4] sm:$0xff] %vm1443, %v4340
      %4388 = vst.msk [vmem:[#allocation4 + $0x8] sm:$0xff] %vm1443, %v4342
      %4389 = vst.msk [vmem:[#allocation4 + $0x10] sm:$0xff] %vm1443, %v4344
      %4390 = vst.msk [vmem:[#allocation4 + $0x18] sm:$0xff] %vm1443, %v4346
      %4391 = vst.msk [vmem:[#allocation4 + $0x20] sm:$0xff] %vm1443, %v4348
      %4392 = vst.msk [vmem:[#allocation4 + $0x28] sm:$0xff] %vm1443, %v4350
      %4393 = vst.msk [vmem:[#allocation4 + $0x30] sm:$0xff] %vm1443, %v4352
      %4394 = vst.msk [vmem:[#allocation4 + $0x38] sm:$0xff] %vm1443, %v4354
      %4395 = vst.msk [vmem:[#allocation4 + $0x40] sm:$0xff] %vm1443, %v4356
      %4396 = vst.msk [vmem:[#allocation4 + $0x48] sm:$0xff] %vm1443, %v4358
      %4397 = vst.msk [vmem:[#allocation4 + $0x50] sm:$0xff] %vm1443, %v4360
      %4398 = vst.msk [vmem:[#allocation4 + $0x58] sm:$0xff] %vm1443, %v4362
      %4399 = vst.msk [vmem:[#allocation4 + $0x60] sm:$0xff] %vm1443, %v4364
      %4400 = vst.msk [vmem:[#allocation4 + $0x68] sm:$0xff] %vm1443, %v4366
      %4401 = vst.msk [vmem:[#allocation4 + $0x70] sm:$0xff] %vm1443, %v4368
      %4402 = vst.msk [vmem:[#allocation4 + $0x78] sm:$0xff] %vm1443, %v4370
      %4403 = vrot.lane.b32.xlu0 %v3587, 96
      %v4404 = vpop.permute.xlu0 %4403
      %4405 = vrot.lane.b32.xlu0 %v3588, 96
      %v4406 = vpop.permute.xlu0 %4405
      %4407 = vrot.lane.b32.xlu0 %v3589, 96
      %v4408 = vpop.permute.xlu0 %4407
      %4409 = vrot.lane.b32.xlu0 %v3590, 96
      %v4410 = vpop.permute.xlu0 %4409
      %4411 = vrot.lane.b32.xlu0 %v3591, 96
      %v4412 = vpop.permute.xlu0 %4411
      %4413 = vrot.lane.b32.xlu0 %v3592, 96
      %v4414 = vpop.permute.xlu0 %4413
      %4415 = vrot.lane.b32.xlu0 %v3593, 96
      %v4416 = vpop.permute.xlu0 %4415
      %4417 = vrot.lane.b32.xlu0 %v3594, 96
      %v4418 = vpop.permute.xlu0 %4417
      %4419 = vrot.lane.b32.xlu0 %v3595, 96
      %v4420 = vpop.permute.xlu0 %4419
      %4421 = vrot.lane.b32.xlu0 %v3596, 96
      %v4422 = vpop.permute.xlu0 %4421
      %4423 = vrot.lane.b32.xlu0 %v3597, 96
      %v4424 = vpop.permute.xlu0 %4423
      %4425 = vrot.lane.b32.xlu0 %v3598, 96
      %v4426 = vpop.permute.xlu0 %4425
      %4427 = vrot.lane.b32.xlu0 %v3599, 96
      %v4428 = vpop.permute.xlu0 %4427
      %4429 = vrot.lane.b32.xlu0 %v3600, 96
      %v4430 = vpop.permute.xlu0 %4429
      %4431 = vrot.lane.b32.xlu0 %v3601, 96
      %v4432 = vpop.permute.xlu0 %4431
      %4433 = vrot.lane.b32.xlu0 %v3602, 96
      %v4434 = vpop.permute.xlu0 %4433
      %4451 = vst.msk [vmem:[#allocation4] sm:$0xff] %vm1524, %v4404
      %4452 = vst.msk [vmem:[#allocation4 + $0x8] sm:$0xff] %vm1524, %v4406
      %4453 = vst.msk [vmem:[#allocation4 + $0x10] sm:$0xff] %vm1524, %v4408
      %4454 = vst.msk [vmem:[#allocation4 + $0x18] sm:$0xff] %vm1524, %v4410
      %4455 = vst.msk [vmem:[#allocation4 + $0x20] sm:$0xff] %vm1524, %v4412
      %4456 = vst.msk [vmem:[#allocation4 + $0x28] sm:$0xff] %vm1524, %v4414
      %4457 = vst.msk [vmem:[#allocation4 + $0x30] sm:$0xff] %vm1524, %v4416
      %4458 = vst.msk [vmem:[#allocation4 + $0x38] sm:$0xff] %vm1524, %v4418
      %4459 = vst.msk [vmem:[#allocation4 + $0x40] sm:$0xff] %vm1524, %v4420
      %4460 = vst.msk [vmem:[#allocation4 + $0x48] sm:$0xff] %vm1524, %v4422
      %4461 = vst.msk [vmem:[#allocation4 + $0x50] sm:$0xff] %vm1524, %v4424
      %4462 = vst.msk [vmem:[#allocation4 + $0x58] sm:$0xff] %vm1524, %v4426
      %4463 = vst.msk [vmem:[#allocation4 + $0x60] sm:$0xff] %vm1524, %v4428
      %4464 = vst.msk [vmem:[#allocation4 + $0x68] sm:$0xff] %vm1524, %v4430
      %4465 = vst.msk [vmem:[#allocation4 + $0x70] sm:$0xff] %vm1524, %v4432
      %4466 = vst.msk [vmem:[#allocation4 + $0x78] sm:$0xff] %vm1524, %v4434
      %4467 = vrot.lane.b32.xlu0 %v3603, 112
      %v4468 = vpop.permute.xlu0 %4467
      %4469 = vrot.lane.b32.xlu0 %v3604, 112
      %v4470 = vpop.permute.xlu0 %4469
      %4471 = vrot.lane.b32.xlu0 %v3605, 112
      %v4472 = vpop.permute.xlu0 %4471
      %4473 = vrot.lane.b32.xlu0 %v3606, 112
      %v4474 = vpop.permute.xlu0 %4473
      %4475 = vrot.lane.b32.xlu0 %v3607, 112
      %v4476 = vpop.permute.xlu0 %4475
      %4477 = vrot.lane.b32.xlu0 %v3608, 112
      %v4478 = vpop.permute.xlu0 %4477
      %4479 = vrot.lane.b32.xlu0 %v3609, 112
      %v4480 = vpop.permute.xlu0 %4479
      %4481 = vrot.lane.b32.xlu0 %v3610, 112
      %v4482 = vpop.permute.xlu0 %4481
      %4483 = vrot.lane.b32.xlu0 %v3611, 112
      %v4484 = vpop.permute.xlu0 %4483
      %4485 = vrot.lane.b32.xlu0 %v3612, 112
      %v4486 = vpop.permute.xlu0 %4485
      %4487 = vrot.lane.b32.xlu0 %v3613, 112
      %v4488 = vpop.permute.xlu0 %4487
      %4489 = vrot.lane.b32.xlu0 %v3614, 112
      %v4490 = vpop.permute.xlu0 %4489
      %4491 = vrot.lane.b32.xlu0 %v3615, 112
      %v4492 = vpop.permute.xlu0 %4491
      %4493 = vrot.lane.b32.xlu0 %v3616, 112
      %v4494 = vpop.permute.xlu0 %4493
      %4495 = vrot.lane.b32.xlu0 %v3617, 112
      %v4496 = vpop.permute.xlu0 %4495
      %4497 = vrot.lane.b32.xlu0 %v3618, 112
      %v4498 = vpop.permute.xlu0 %4497
      %4515 = vst.msk [vmem:[#allocation4] sm:$0xff] %vm1605, %v4468
      %4516 = vst.msk [vmem:[#allocation4 + $0x8] sm:$0xff] %vm1605, %v4470
      %4517 = vst.msk [vmem:[#allocation4 + $0x10] sm:$0xff] %vm1605, %v4472
      %4518 = vst.msk [vmem:[#allocation4 + $0x18] sm:$0xff] %vm1605, %v4474
      %4519 = vst.msk [vmem:[#allocation4 + $0x20] sm:$0xff] %vm1605, %v4476
      %4520 = vst.msk [vmem:[#allocation4 + $0x28] sm:$0xff] %vm1605, %v4478
      %4521 = vst.msk [vmem:[#allocation4 + $0x30] sm:$0xff] %vm1605, %v4480
      %4522 = vst.msk [vmem:[#allocation4 + $0x38] sm:$0xff] %vm1605, %v4482
      %4523 = vst.msk [vmem:[#allocation4 + $0x40] sm:$0xff] %vm1605, %v4484
      %4524 = vst.msk [vmem:[#allocation4 + $0x48] sm:$0xff] %vm1605, %v4486
      %4525 = vst.msk [vmem:[#allocation4 + $0x50] sm:$0xff] %vm1605, %v4488
      %4526 = vst.msk [vmem:[#allocation4 + $0x58] sm:$0xff] %vm1605, %v4490
      %4527 = vst.msk [vmem:[#allocation4 + $0x60] sm:$0xff] %vm1605, %v4492
      %4528 = vst.msk [vmem:[#allocation4 + $0x68] sm:$0xff] %vm1605, %v4494
      %4529 = vst.msk [vmem:[#allocation4 + $0x70] sm:$0xff] %vm1605, %v4496
      %4530 = vst.msk [vmem:[#allocation4 + $0x78] sm:$0xff] %vm1605, %v4498
      %4531 = vst.msk [vmem:[#allocation4] sm:$0xff] %vm1686, %v3619
      %4532 = vst.msk [vmem:[#allocation4 + $0x8] sm:$0xff] %vm1686, %v3620
      %4533 = vst.msk [vmem:[#allocation4 + $0x10] sm:$0xff] %vm1686, %v3621
      %4534 = vst.msk [vmem:[#allocation4 + $0x18] sm:$0xff] %vm1686, %v3622
      %4535 = vst.msk [vmem:[#allocation4 + $0x20] sm:$0xff] %vm1686, %v3623
      %4536 = vst.msk [vmem:[#allocation4 + $0x28] sm:$0xff] %vm1686, %v3624
      %4537 = vst.msk [vmem:[#allocation4 + $0x30] sm:$0xff] %vm1686, %v3625
      %4538 = vst.msk [vmem:[#allocation4 + $0x38] sm:$0xff] %vm1686, %v3626
      %4539 = vst.msk [vmem:[#allocation4 + $0x40] sm:$0xff] %vm1686, %v3627
      %4540 = vst.msk [vmem:[#allocation4 + $0x48] sm:$0xff] %vm1686, %v3628
      %4541 = vst.msk [vmem:[#allocation4 + $0x50] sm:$0xff] %vm1686, %v3629
      %4542 = vst.msk [vmem:[#allocation4 + $0x58] sm:$0xff] %vm1686, %v3630
      %4543 = vst.msk [vmem:[#allocation4 + $0x60] sm:$0xff] %vm1686, %v3631
      %4544 = vst.msk [vmem:[#allocation4 + $0x68] sm:$0xff] %vm1686, %v3632
      %4545 = vst.msk [vmem:[#allocation4 + $0x70] sm:$0xff] %vm1686, %v3633
      %4546 = vst.msk [vmem:[#allocation4 + $0x78] sm:$0xff] %vm1686, %v3634
      %4547 = vrot.lane.b32.xlu0 %v3683, 16
      %v4548 = vpop.permute.xlu0 %4547
      %4549 = vrot.lane.b32.xlu0 %v3684, 16
      %v4550 = vpop.permute.xlu0 %4549
      %4551 = vrot.lane.b32.xlu0 %v3685, 16
      %v4552 = vpop.permute.xlu0 %4551
      %4553 = vrot.lane.b32.xlu0 %v3686, 16
      %v4554 = vpop.permute.xlu0 %4553
      %4555 = vrot.lane.b32.xlu0 %v3687, 16
      %v4556 = vpop.permute.xlu0 %4555
      %4557 = vrot.lane.b32.xlu0 %v3688, 16
      %v4558 = vpop.permute.xlu0 %4557
      %4559 = vrot.lane.b32.xlu0 %v3689, 16
      %v4560 = vpop.permute.xlu0 %4559
      %4561 = vrot.lane.b32.xlu0 %v3690, 16
      %v4562 = vpop.permute.xlu0 %4561
      %4563 = vrot.lane.b32.xlu0 %v3691, 16
      %v4564 = vpop.permute.xlu0 %4563
      %4565 = vrot.lane.b32.xlu0 %v3692, 16
      %v4566 = vpop.permute.xlu0 %4565
      %4567 = vrot.lane.b32.xlu0 %v3693, 16
      %v4568 = vpop.permute.xlu0 %4567
      %4569 = vrot.lane.b32.xlu0 %v3694, 16
      %v4570 = vpop.permute.xlu0 %4569
      %4571 = vrot.lane.b32.xlu0 %v3695, 16
      %v4572 = vpop.permute.xlu0 %4571
      %4573 = vrot.lane.b32.xlu0 %v3696, 16
      %v4574 = vpop.permute.xlu0 %4573
      %4575 = vrot.lane.b32.xlu0 %v3697, 16
      %v4576 = vpop.permute.xlu0 %4575
      %4577 = vrot.lane.b32.xlu0 %v3698, 16
      %v4578 = vpop.permute.xlu0 %4577
      %4595 = vst.msk [vmem:[#allocation4] sm:$0xff] %vm1767, %v4548
      %4596 = vst.msk [vmem:[#allocation4 + $0x8] sm:$0xff] %vm1767, %v4550
      %4597 = vst.msk [vmem:[#allocation4 + $0x10] sm:$0xff] %vm1767, %v4552
      %4598 = vst.msk [vmem:[#allocation4 + $0x18] sm:$0xff] %vm1767, %v4554
      %4599 = vst.msk [vmem:[#allocation4 + $0x20] sm:$0xff] %vm1767, %v4556
      %4600 = vst.msk [vmem:[#allocation4 + $0x28] sm:$0xff] %vm1767, %v4558
      %4601 = vst.msk [vmem:[#allocation4 + $0x30] sm:$0xff] %vm1767, %v4560
      %4602 = vst.msk [vmem:[#allocation4 + $0x38] sm:$0xff] %vm1767, %v4562
      %4603 = vst.msk [vmem:[#allocation4 + $0x40] sm:$0xff] %vm1767, %v4564
      %4604 = vst.msk [vmem:[#allocation4 + $0x48] sm:$0xff] %vm1767, %v4566
      %4605 = vst.msk [vmem:[#allocation4 + $0x50] sm:$0xff] %vm1767, %v4568
      %4606 = vst.msk [vmem:[#allocation4 + $0x58] sm:$0xff] %vm1767, %v4570
      %4607 = vst.msk [vmem:[#allocation4 + $0x60] sm:$0xff] %vm1767, %v4572
      %4608 = vst.msk [vmem:[#allocation4 + $0x68] sm:$0xff] %vm1767, %v4574
      %4609 = vst.msk [vmem:[#allocation4 + $0x70] sm:$0xff] %vm1767, %v4576
      %4610 = vst.msk [vmem:[#allocation4 + $0x78] sm:$0xff] %vm1767, %v4578
      %4611 = vrot.lane.b32.xlu0 %v3699, 32
      %v4612 = vpop.permute.xlu0 %4611
      %4613 = vrot.lane.b32.xlu0 %v3700, 32
      %v4614 = vpop.permute.xlu0 %4613
      %4615 = vrot.lane.b32.xlu0 %v3701, 32
      %v4616 = vpop.permute.xlu0 %4615
      %4617 = vrot.lane.b32.xlu0 %v3702, 32
      %v4618 = vpop.permute.xlu0 %4617
      %4619 = vrot.lane.b32.xlu0 %v3703, 32
      %v4620 = vpop.permute.xlu0 %4619
      %4621 = vrot.lane.b32.xlu0 %v3704, 32
      %v4622 = vpop.permute.xlu0 %4621
      %4623 = vrot.lane.b32.xlu0 %v3705, 32
      %v4624 = vpop.permute.xlu0 %4623
      %4625 = vrot.lane.b32.xlu0 %v3706, 32
      %v4626 = vpop.permute.xlu0 %4625
      %4627 = vrot.lane.b32.xlu0 %v3707, 32
      %v4628 = vpop.permute.xlu0 %4627
      %4629 = vrot.lane.b32.xlu0 %v3708, 32
      %v4630 = vpop.permute.xlu0 %4629
      %4631 = vrot.lane.b32.xlu0 %v3709, 32
      %v4632 = vpop.permute.xlu0 %4631
      %4633 = vrot.lane.b32.xlu0 %v3710, 32
      %v4634 = vpop.permute.xlu0 %4633
      %4635 = vrot.lane.b32.xlu0 %v3711, 32
      %v4636 = vpop.permute.xlu0 %4635
      %4637 = vrot.lane.b32.xlu0 %v3712, 32
      %v4638 = vpop.permute.xlu0 %4637
      %4639 = vrot.lane.b32.xlu0 %v3713, 32
      %v4640 = vpop.permute.xlu0 %4639
      %4641 = vrot.lane.b32.xlu0 %v3714, 32
      %v4642 = vpop.permute.xlu0 %4641
      %4659 = vst.msk [vmem:[#allocation4] sm:$0xff] %vm1848, %v4612
      %4660 = vst.msk [vmem:[#allocation4 + $0x8] sm:$0xff] %vm1848, %v4614
      %4661 = vst.msk [vmem:[#allocation4 + $0x10] sm:$0xff] %vm1848, %v4616
      %4662 = vst.msk [vmem:[#allocation4 + $0x18] sm:$0xff] %vm1848, %v4618
      %4663 = vst.msk [vmem:[#allocation4 + $0x20] sm:$0xff] %vm1848, %v4620
      %4664 = vst.msk [vmem:[#allocation4 + $0x28] sm:$0xff] %vm1848, %v4622
      %4665 = vst.msk [vmem:[#allocation4 + $0x30] sm:$0xff] %vm1848, %v4624
      %4666 = vst.msk [vmem:[#allocation4 + $0x38] sm:$0xff] %vm1848, %v4626
      %4667 = vst.msk [vmem:[#allocation4 + $0x40] sm:$0xff] %vm1848, %v4628
      %4668 = vst.msk [vmem:[#allocation4 + $0x48] sm:$0xff] %vm1848, %v4630
      %4669 = vst.msk [vmem:[#allocation4 + $0x50] sm:$0xff] %vm1848, %v4632
      %4670 = vst.msk [vmem:[#allocation4 + $0x58] sm:$0xff] %vm1848, %v4634
      %4671 = vst.msk [vmem:[#allocation4 + $0x60] sm:$0xff] %vm1848, %v4636
      %4672 = vst.msk [vmem:[#allocation4 + $0x68] sm:$0xff] %vm1848, %v4638
      %4673 = vst.msk [vmem:[#allocation4 + $0x70] sm:$0xff] %vm1848, %v4640
      %4674 = vst.msk [vmem:[#allocation4 + $0x78] sm:$0xff] %vm1848, %v4642
      %4675 = vrot.lane.b32.xlu0 %v3715, 48
      %v4676 = vpop.permute.xlu0 %4675
      %4677 = vrot.lane.b32.xlu0 %v3716, 48
      %v4678 = vpop.permute.xlu0 %4677
      %4679 = vrot.lane.b32.xlu0 %v3717, 48
      %v4680 = vpop.permute.xlu0 %4679
      %4681 = vrot.lane.b32.xlu0 %v3718, 48
      %v4682 = vpop.permute.xlu0 %4681
      %4683 = vrot.lane.b32.xlu0 %v3719, 48
      %v4684 = vpop.permute.xlu0 %4683
      %4685 = vrot.lane.b32.xlu0 %v3720, 48
      %v4686 = vpop.permute.xlu0 %4685
      %4687 = vrot.lane.b32.xlu0 %v3721, 48
      %v4688 = vpop.permute.xlu0 %4687
      %4689 = vrot.lane.b32.xlu0 %v3722, 48
      %v4690 = vpop.permute.xlu0 %4689
      %4691 = vrot.lane.b32.xlu0 %v3723, 48
      %v4692 = vpop.permute.xlu0 %4691
      %4693 = vrot.lane.b32.xlu0 %v3724, 48
      %v4694 = vpop.permute.xlu0 %4693
      %4695 = vrot.lane.b32.xlu0 %v3725, 48
      %v4696 = vpop.permute.xlu0 %4695
      %4697 = vrot.lane.b32.xlu0 %v3726, 48
      %v4698 = vpop.permute.xlu0 %4697
      %4699 = vrot.lane.b32.xlu0 %v3727, 48
      %v4700 = vpop.permute.xlu0 %4699
      %4701 = vrot.lane.b32.xlu0 %v3728, 48
      %v4702 = vpop.permute.xlu0 %4701
      %4703 = vrot.lane.b32.xlu0 %v3729, 48
      %v4704 = vpop.permute.xlu0 %4703
      %4705 = vrot.lane.b32.xlu0 %v3730, 48
      %v4706 = vpop.permute.xlu0 %4705
      %4723 = vst.msk [vmem:[#allocation4] sm:$0xff] %vm1929, %v4676
      %4724 = vst.msk [vmem:[#allocation4 + $0x8] sm:$0xff] %vm1929, %v4678
      %4725 = vst.msk [vmem:[#allocation4 + $0x10] sm:$0xff] %vm1929, %v4680
      %4726 = vst.msk [vmem:[#allocation4 + $0x18] sm:$0xff] %vm1929, %v4682
      %4727 = vst.msk [vmem:[#allocation4 + $0x20] sm:$0xff] %vm1929, %v4684
      %4728 = vst.msk [vmem:[#allocation4 + $0x28] sm:$0xff] %vm1929, %v4686
      %4729 = vst.msk [vmem:[#allocation4 + $0x30] sm:$0xff] %vm1929, %v4688
      %4730 = vst.msk [vmem:[#allocation4 + $0x38] sm:$0xff] %vm1929, %v4690
      %4731 = vst.msk [vmem:[#allocation4 + $0x40] sm:$0xff] %vm1929, %v4692
      %4732 = vst.msk [vmem:[#allocation4 + $0x48] sm:$0xff] %vm1929, %v4694
      %4733 = vst.msk [vmem:[#allocation4 + $0x50] sm:$0xff] %vm1929, %v4696
      %4734 = vst.msk [vmem:[#allocation4 + $0x58] sm:$0xff] %vm1929, %v4698
      %4735 = vst.msk [vmem:[#allocation4 + $0x60] sm:$0xff] %vm1929, %v4700
      %4736 = vst.msk [vmem:[#allocation4 + $0x68] sm:$0xff] %vm1929, %v4702
      %4737 = vst.msk [vmem:[#allocation4 + $0x70] sm:$0xff] %vm1929, %v4704
      %4738 = vst.msk [vmem:[#allocation4 + $0x78] sm:$0xff] %vm1929, %v4706
      %4739 = vrot.lane.b32.xlu0 %v3731, 64
      %v4740 = vpop.permute.xlu0 %4739
      %4741 = vrot.lane.b32.xlu0 %v3732, 64
      %v4742 = vpop.permute.xlu0 %4741
      %4743 = vrot.lane.b32.xlu0 %v3733, 64
      %v4744 = vpop.permute.xlu0 %4743
      %4745 = vrot.lane.b32.xlu0 %v3734, 64
      %v4746 = vpop.permute.xlu0 %4745
      %4747 = vrot.lane.b32.xlu0 %v3735, 64
      %v4748 = vpop.permute.xlu0 %4747
      %4749 = vrot.lane.b32.xlu0 %v3736, 64
      %v4750 = vpop.permute.xlu0 %4749
      %4751 = vrot.lane.b32.xlu0 %v3737, 64
      %v4752 = vpop.permute.xlu0 %4751
      %4753 = vrot.lane.b32.xlu0 %v3738, 64
      %v4754 = vpop.permute.xlu0 %4753
      %4755 = vrot.lane.b32.xlu0 %v3739, 64
      %v4756 = vpop.permute.xlu0 %4755
      %4757 = vrot.lane.b32.xlu0 %v3740, 64
      %v4758 = vpop.permute.xlu0 %4757
      %4759 = vrot.lane.b32.xlu0 %v3741, 64
      %v4760 = vpop.permute.xlu0 %4759
      %4761 = vrot.lane.b32.xlu0 %v3742, 64
      %v4762 = vpop.permute.xlu0 %4761
      %4763 = vrot.lane.b32.xlu0 %v3743, 64
      %v4764 = vpop.permute.xlu0 %4763
      %4765 = vrot.lane.b32.xlu0 %v3744, 64
      %v4766 = vpop.permute.xlu0 %4765
      %4767 = vrot.lane.b32.xlu0 %v3745, 64
      %v4768 = vpop.permute.xlu0 %4767
      %4769 = vrot.lane.b32.xlu0 %v3746, 64
      %v4770 = vpop.permute.xlu0 %4769
      %4787 = vst.msk [vmem:[#allocation4] sm:$0xff] %vm2010, %v4740
      %4788 = vst.msk [vmem:[#allocation4 + $0x8] sm:$0xff] %vm2010, %v4742
      %4789 = vst.msk [vmem:[#allocation4 + $0x10] sm:$0xff] %vm2010, %v4744
      %4790 = vst.msk [vmem:[#allocation4 + $0x18] sm:$0xff] %vm2010, %v4746
      %4791 = vst.msk [vmem:[#allocation4 + $0x20] sm:$0xff] %vm2010, %v4748
      %4792 = vst.msk [vmem:[#allocation4 + $0x28] sm:$0xff] %vm2010, %v4750
      %4793 = vst.msk [vmem:[#allocation4 + $0x30] sm:$0xff] %vm2010, %v4752
      %4794 = vst.msk [vmem:[#allocation4 + $0x38] sm:$0xff] %vm2010, %v4754
      %4795 = vst.msk [vmem:[#allocation4 + $0x40] sm:$0xff] %vm2010, %v4756
      %4796 = vst.msk [vmem:[#allocation4 + $0x48] sm:$0xff] %vm2010, %v4758
      %4797 = vst.msk [vmem:[#allocation4 + $0x50] sm:$0xff] %vm2010, %v4760
      %4798 = vst.msk [vmem:[#allocation4 + $0x58] sm:$0xff] %vm2010, %v4762
      %4799 = vst.msk [vmem:[#allocation4 + $0x60] sm:$0xff] %vm2010, %v4764
      %4800 = vst.msk [vmem:[#allocation4 + $0x68] sm:$0xff] %vm2010, %v4766
      %4801 = vst.msk [vmem:[#allocation4 + $0x70] sm:$0xff] %vm2010, %v4768
      %4802 = vst.msk [vmem:[#allocation4 + $0x78] sm:$0xff] %vm2010, %v4770
      %v4803 = vld [vmem:[#allocation3] sm:$0xff]
      %v4804 = vld [vmem:[#allocation3 + $0x8] sm:$0xff]
      %v4805 = vld [vmem:[#allocation3 + $0x10] sm:$0xff]
      %v4806 = vld [vmem:[#allocation3 + $0x18] sm:$0xff]
      %v4807 = vld [vmem:[#allocation3 + $0x20] sm:$0xff]
      %v4808 = vld [vmem:[#allocation3 + $0x28] sm:$0xff]
      %v4809 = vld [vmem:[#allocation3 + $0x30] sm:$0xff]
      %v4810 = vld [vmem:[#allocation3 + $0x38] sm:$0xff]
      %v4811 = vld [vmem:[#allocation3 + $0x40] sm:$0xff]
      %v4812 = vld [vmem:[#allocation3 + $0x48] sm:$0xff]
      %v4813 = vld [vmem:[#allocation3 + $0x50] sm:$0xff]
      %v4814 = vld [vmem:[#allocation3 + $0x58] sm:$0xff]
      %v4815 = vld [vmem:[#allocation3 + $0x60] sm:$0xff]
      %v4816 = vld [vmem:[#allocation3 + $0x68] sm:$0xff]
      %v4817 = vld [vmem:[#allocation3 + $0x70] sm:$0xff]
      %v4818 = vld [vmem:[#allocation3 + $0x78] sm:$0xff]
      %s4819 = scalar_lea.vmem %s3, 128
      %v4820 = vld [vmem:[%s4819] sm:$0xff]
      %v4821 = vld [vmem:[%s4819 + $0x8] sm:$0xff]
      %v4822 = vld [vmem:[%s4819 + $0x10] sm:$0xff]
      %v4823 = vld [vmem:[%s4819 + $0x18] sm:$0xff]
      %v4824 = vld [vmem:[%s4819 + $0x20] sm:$0xff]
      %v4825 = vld [vmem:[%s4819 + $0x28] sm:$0xff]
      %v4826 = vld [vmem:[%s4819 + $0x30] sm:$0xff]
      %v4827 = vld [vmem:[%s4819 + $0x38] sm:$0xff]
      %v4828 = vld [vmem:[%s4819 + $0x40] sm:$0xff]
      %v4829 = vld [vmem:[%s4819 + $0x48] sm:$0xff]
      %v4830 = vld [vmem:[%s4819 + $0x50] sm:$0xff]
      %v4831 = vld [vmem:[%s4819 + $0x58] sm:$0xff]
      %v4832 = vld [vmem:[%s4819 + $0x60] sm:$0xff]
      %v4833 = vld [vmem:[%s4819 + $0x68] sm:$0xff]
      %v4834 = vld [vmem:[%s4819 + $0x70] sm:$0xff]
      %v4835 = vld [vmem:[%s4819 + $0x78] sm:$0xff]
      %4836 = vmatpush.msra.mxu0 %v4835
      %4837 = vmatpush.msra.mxu0 %v4834
      %4838 = vmatpush.msra.mxu0 %v4833
      %4839 = vmatpush.msra.mxu0 %v4832
      %4840 = vmatpush.msra.mxu0 %v4831
      %4841 = vmatpush.msra.mxu0 %v4830
      %4842 = vmatpush.msra.mxu0 %v4829
      %4843 = vmatpush.msra.mxu0 %v4828
      %4844 = vmatpush.msra.mxu0 %v4827
      %4845 = vmatpush.msra.mxu0 %v4826
      %4846 = vmatpush.msra.mxu0 %v4825
      %4847 = vmatpush.msra.mxu0 %v4824
      %4848 = vmatpush.msra.mxu0 %v4823
      %4849 = vmatpush.msra.mxu0 %v4822
      %4850 = vmatpush.msra.mxu0 %v4821
      %4851 = vmatpush.msra.mxu0 %v4820
      %4852 = vmatmul.f32.gmra.mxu0 %v4803
      %v4853 = vpop.f32.mrf.mxu0
      %v4854 = vadd.f32 0.0, %v4853
      %4855 = vmatmul.f32.gmra.mxu0 %v4804
      %v4856 = vpop.f32.mrf.mxu0
      %v4857 = vadd.f32 0.0, %v4856
      %4858 = vmatmul.f32.gmra.mxu0 %v4805
      %v4859 = vpop.f32.mrf.mxu0
      %v4860 = vadd.f32 0.0, %v4859
      %4861 = vmatmul.f32.gmra.mxu0 %v4806
      %v4862 = vpop.f32.mrf.mxu0
      %v4863 = vadd.f32 0.0, %v4862
      %4864 = vmatmul.f32.gmra.mxu0 %v4807
      %v4865 = vpop.f32.mrf.mxu0
      %v4866 = vadd.f32 0.0, %v4865
      %4867 = vmatmul.f32.gmra.mxu0 %v4808
      %v4868 = vpop.f32.mrf.mxu0
      %v4869 = vadd.f32 0.0, %v4868
      %4870 = vmatmul.f32.gmra.mxu0 %v4809
      %v4871 = vpop.f32.mrf.mxu0
      %v4872 = vadd.f32 0.0, %v4871
      %4873 = vmatmul.f32.gmra.mxu0 %v4810
      %v4874 = vpop.f32.mrf.mxu0
      %v4875 = vadd.f32 0.0, %v4874
      %4876 = vmatmul.f32.gmra.mxu0 %v4811
      %v4877 = vpop.f32.mrf.mxu0
      %v4878 = vadd.f32 0.0, %v4877
      %4879 = vmatmul.f32.gmra.mxu0 %v4812
      %v4880 = vpop.f32.mrf.mxu0
      %v4881 = vadd.f32 0.0, %v4880
      %4882 = vmatmul.f32.gmra.mxu0 %v4813
      %v4883 = vpop.f32.mrf.mxu0
      %v4884 = vadd.f32 0.0, %v4883
      %4885 = vmatmul.f32.gmra.mxu0 %v4814
      %v4886 = vpop.f32.mrf.mxu0
      %v4887 = vadd.f32 0.0, %v4886
      %4888 = vmatmul.f32.gmra.mxu0 %v4815
      %v4889 = vpop.f32.mrf.mxu0
      %v4890 = vadd.f32 0.0, %v4889
      %4891 = vmatmul.f32.gmra.mxu0 %v4816
      %v4892 = vpop.f32.mrf.mxu0
      %v4893 = vadd.f32 0.0, %v4892
      %4894 = vmatmul.f32.gmra.mxu0 %v4817
      %v4895 = vpop.f32.mrf.mxu0
      %v4896 = vadd.f32 0.0, %v4895
      %4897 = vmatmul.f32.gmra.mxu0 %v4818
      %v4898 = vpop.f32.mrf.mxu0
      %v4899 = vadd.f32 0.0, %v4898
      %4900 = vdwg.mxu0
      %v4901 = vld [vmem:[#allocation4] sm:$0xff]
      %v4902 = vld [vmem:[#allocation4 + $0x8] sm:$0xff]
      %v4903 = vld [vmem:[#allocation4 + $0x10] sm:$0xff]
      %v4904 = vld [vmem:[#allocation4 + $0x18] sm:$0xff]
      %v4905 = vld [vmem:[#allocation4 + $0x20] sm:$0xff]
      %v4906 = vld [vmem:[#allocation4 + $0x28] sm:$0xff]
      %v4907 = vld [vmem:[#allocation4 + $0x30] sm:$0xff]
      %v4908 = vld [vmem:[#allocation4 + $0x38] sm:$0xff]
      %v4909 = vld [vmem:[#allocation4 + $0x40] sm:$0xff]
      %v4910 = vld [vmem:[#allocation4 + $0x48] sm:$0xff]
      %v4911 = vld [vmem:[#allocation4 + $0x50] sm:$0xff]
      %v4912 = vld [vmem:[#allocation4 + $0x58] sm:$0xff]
      %v4913 = vld [vmem:[#allocation4 + $0x60] sm:$0xff]
      %v4914 = vld [vmem:[#allocation4 + $0x68] sm:$0xff]
      %v4915 = vld [vmem:[#allocation4 + $0x70] sm:$0xff]
      %v4916 = vld [vmem:[#allocation4 + $0x78] sm:$0xff]
      %v4917 = vmul.f32 %v4901, %v4854
      %v4918 = vmul.f32 %v4902, %v4857
      %v4919 = vmul.f32 %v4903, %v4860
      %v4920 = vmul.f32 %v4904, %v4863
      %v4921 = vmul.f32 %v4905, %v4866
      %v4922 = vmul.f32 %v4906, %v4869
      %v4923 = vmul.f32 %v4907, %v4872
      %v4924 = vmul.f32 %v4908, %v4875
      %v4925 = vmul.f32 %v4909, %v4878
      %v4926 = vmul.f32 %v4910, %v4881
      %v4927 = vmul.f32 %v4911, %v4884
      %v4928 = vmul.f32 %v4912, %v4887
      %v4929 = vmul.f32 %v4913, %v4890
      %v4930 = vmul.f32 %v4914, %v4893
      %v4931 = vmul.f32 %v4915, %v4896
      %v4932 = vmul.f32 %v4916, %v4899
      %4933 = vmatpush.msra.mxu0 %v412
      %4934 = vmatpush.msra.mxu0 %v411
      %4935 = vmatpush.msra.mxu0 %v410
      %4936 = vmatpush.msra.mxu0 %v409
      %4937 = vmatpush.msra.mxu0 %v408
      %4938 = vmatpush.msra.mxu0 %v407
      %4939 = vmatpush.msra.mxu0 %v406
      %4940 = vmatpush.msra.mxu0 %v405
      %4941 = vmatpush.msra.mxu0 %v404
      %4942 = vmatpush.msra.mxu0 %v403
      %4943 = vmatpush.msra.mxu0 %v402
      %4944 = vmatpush.msra.mxu0 %v401
      %4945 = vmatpush.msra.mxu0 %v400
      %4946 = vmatpush.msra.mxu0 %v399
      %4947 = vmatpush.msra.mxu0 %v398
      %4948 = vmatpush.msra.mxu0 %v397
      %4949 = vmatmul.f32.gmra.mxu0 %v4917
      %v4950 = vpop.f32.mrf.mxu0
      %v4951 = vadd.f32 0.0, %v4950
      %4952 = vmatmul.f32.gmra.mxu0 %v4918
      %v4953 = vpop.f32.mrf.mxu0
      %v4954 = vadd.f32 0.0, %v4953
      %4955 = vmatmul.f32.gmra.mxu0 %v4919
      %v4956 = vpop.f32.mrf.mxu0
      %v4957 = vadd.f32 0.0, %v4956
      %4958 = vmatmul.f32.gmra.mxu0 %v4920
      %v4959 = vpop.f32.mrf.mxu0
      %v4960 = vadd.f32 0.0, %v4959
      %4961 = vmatmul.f32.gmra.mxu0 %v4921
      %v4962 = vpop.f32.mrf.mxu0
      %v4963 = vadd.f32 0.0, %v4962
      %4964 = vmatmul.f32.gmra.mxu0 %v4922
      %v4965 = vpop.f32.mrf.mxu0
      %v4966 = vadd.f32 0.0, %v4965
      %4967 = vmatmul.f32.gmra.mxu0 %v4923
      %v4968 = vpop.f32.mrf.mxu0
      %v4969 = vadd.f32 0.0, %v4968
      %4970 = vmatmul.f32.gmra.mxu0 %v4924
      %v4971 = vpop.f32.mrf.mxu0
      %v4972 = vadd.f32 0.0, %v4971
      %4973 = vmatmul.f32.gmra.mxu0 %v4925
      %v4974 = vpop.f32.mrf.mxu0
      %v4975 = vadd.f32 0.0, %v4974
      %4976 = vmatmul.f32.gmra.mxu0 %v4926
      %v4977 = vpop.f32.mrf.mxu0
      %v4978 = vadd.f32 0.0, %v4977
      %4979 = vmatmul.f32.gmra.mxu0 %v4927
      %v4980 = vpop.f32.mrf.mxu0
      %v4981 = vadd.f32 0.0, %v4980
      %4982 = vmatmul.f32.gmra.mxu0 %v4928
      %v4983 = vpop.f32.mrf.mxu0
      %v4984 = vadd.f32 0.0, %v4983
      %4985 = vmatmul.f32.gmra.mxu0 %v4929
      %v4986 = vpop.f32.mrf.mxu0
      %v4987 = vadd.f32 0.0, %v4986
      %4988 = vmatmul.f32.gmra.mxu0 %v4930
      %v4989 = vpop.f32.mrf.mxu0
      %v4990 = vadd.f32 0.0, %v4989
      %4991 = vmatmul.f32.gmra.mxu0 %v4931
      %v4992 = vpop.f32.mrf.mxu0
      %v4993 = vadd.f32 0.0, %v4992
      %4994 = vmatmul.f32.gmra.mxu0 %v4932
      %v4995 = vpop.f32.mrf.mxu0
      %v4996 = vadd.f32 0.0, %v4995
      %4997 = vdwg.mxu0
      %5014 = vrot.lane.b32.xlu0 %v4951, 16
      %v5015 = vpop.permute.xlu0 %5014
      %5016 = vrot.lane.b32.xlu0 %v4954, 16
      %v5017 = vpop.permute.xlu0 %5016
      %5018 = vrot.lane.b32.xlu0 %v4957, 16
      %v5019 = vpop.permute.xlu0 %5018
      %5020 = vrot.lane.b32.xlu0 %v4960, 16
      %v5021 = vpop.permute.xlu0 %5020
      %5022 = vrot.lane.b32.xlu0 %v4963, 16
      %v5023 = vpop.permute.xlu0 %5022
      %5024 = vrot.lane.b32.xlu0 %v4966, 16
      %v5025 = vpop.permute.xlu0 %5024
      %5026 = vrot.lane.b32.xlu0 %v4969, 16
      %v5027 = vpop.permute.xlu0 %5026
      %5028 = vrot.lane.b32.xlu0 %v4972, 16
      %v5029 = vpop.permute.xlu0 %5028
      %5030 = vrot.lane.b32.xlu0 %v4975, 16
      %v5031 = vpop.permute.xlu0 %5030
      %5032 = vrot.lane.b32.xlu0 %v4978, 16
      %v5033 = vpop.permute.xlu0 %5032
      %5034 = vrot.lane.b32.xlu0 %v4981, 16
      %v5035 = vpop.permute.xlu0 %5034
      %5036 = vrot.lane.b32.xlu0 %v4984, 16
      %v5037 = vpop.permute.xlu0 %5036
      %5038 = vrot.lane.b32.xlu0 %v4987, 16
      %v5039 = vpop.permute.xlu0 %5038
      %5040 = vrot.lane.b32.xlu0 %v4990, 16
      %v5041 = vpop.permute.xlu0 %5040
      %5042 = vrot.lane.b32.xlu0 %v4993, 16
      %v5043 = vpop.permute.xlu0 %5042
      %5044 = vrot.lane.b32.xlu0 %v4996, 16
      %v5045 = vpop.permute.xlu0 %5044
      %5062 = vst.msk [vmem:[#allocation2] sm:$0xff] %vm1524, %v5015
      %5063 = vst.msk [vmem:[#allocation2 + $0x8] sm:$0xff] %vm1524, %v5017
      %5064 = vst.msk [vmem:[#allocation2 + $0x10] sm:$0xff] %vm1524, %v5019
      %5065 = vst.msk [vmem:[#allocation2 + $0x18] sm:$0xff] %vm1524, %v5021
      %5066 = vst.msk [vmem:[#allocation2 + $0x20] sm:$0xff] %vm1524, %v5023
      %5067 = vst.msk [vmem:[#allocation2 + $0x28] sm:$0xff] %vm1524, %v5025
      %5068 = vst.msk [vmem:[#allocation2 + $0x30] sm:$0xff] %vm1524, %v5027
      %5069 = vst.msk [vmem:[#allocation2 + $0x38] sm:$0xff] %vm1524, %v5029
      %5070 = vst.msk [vmem:[#allocation2 + $0x40] sm:$0xff] %vm1524, %v5031
      %5071 = vst.msk [vmem:[#allocation2 + $0x48] sm:$0xff] %vm1524, %v5033
      %5072 = vst.msk [vmem:[#allocation2 + $0x50] sm:$0xff] %vm1524, %v5035
      %5073 = vst.msk [vmem:[#allocation2 + $0x58] sm:$0xff] %vm1524, %v5037
      %5074 = vst.msk [vmem:[#allocation2 + $0x60] sm:$0xff] %vm1524, %v5039
      %5075 = vst.msk [vmem:[#allocation2 + $0x68] sm:$0xff] %vm1524, %v5041
      %5076 = vst.msk [vmem:[#allocation2 + $0x70] sm:$0xff] %vm1524, %v5043
      %5077 = vst.msk [vmem:[#allocation2 + $0x78] sm:$0xff] %vm1524, %v5045
      %v5078 = vld [vmem:[#allocation2] sm:$0xff]
      %v5079 = vld [vmem:[#allocation2 + $0x8] sm:$0xff]
      %v5080 = vld [vmem:[#allocation2 + $0x10] sm:$0xff]
      %v5081 = vld [vmem:[#allocation2 + $0x18] sm:$0xff]
      %v5082 = vld [vmem:[#allocation2 + $0x20] sm:$0xff]
      %v5083 = vld [vmem:[#allocation2 + $0x28] sm:$0xff]
      %v5084 = vld [vmem:[#allocation2 + $0x30] sm:$0xff]
      %v5085 = vld [vmem:[#allocation2 + $0x38] sm:$0xff]
      %v5086 = vld [vmem:[#allocation2 + $0x40] sm:$0xff]
      %v5087 = vld [vmem:[#allocation2 + $0x48] sm:$0xff]
      %v5088 = vld [vmem:[#allocation2 + $0x50] sm:$0xff]
      %v5089 = vld [vmem:[#allocation2 + $0x58] sm:$0xff]
      %v5090 = vld [vmem:[#allocation2 + $0x60] sm:$0xff]
      %v5091 = vld [vmem:[#allocation2 + $0x68] sm:$0xff]
      %v5092 = vld [vmem:[#allocation2 + $0x70] sm:$0xff]
      %v5093 = vld [vmem:[#allocation2 + $0x78] sm:$0xff]
      %v5094 = vpack.c.bf16 %v5079, %v5078
      %v5095 = vpack.c.bf16 %v5081, %v5080
      %v5096 = vpack.c.bf16 %v5083, %v5082
      %v5097 = vpack.c.bf16 %v5085, %v5084
      %v5098 = vpack.c.bf16 %v5087, %v5086
      %v5099 = vpack.c.bf16 %v5089, %v5088
      %v5100 = vpack.c.bf16 %v5091, %v5090
      %v5101 = vpack.c.bf16 %v5093, %v5092
      %s5102 = scalar_lea.vmem %s1, 88
      %v5103 = vld [vmem:[%s5102] sm:$0xf]
      %v5104 = vld [vmem:[%s5102 + $0x4] sm:$0xf]
      %v5105 = vld [vmem:[%s5102 + $0x8] sm:$0xf]
      %v5106 = vld [vmem:[%s5102 + $0xc] sm:$0xf]
      %v5107 = vld [vmem:[%s5102 + $0x10] sm:$0xf]
      %v5108 = vld [vmem:[%s5102 + $0x14] sm:$0xf]
      %v5109 = vld [vmem:[%s5102 + $0x18] sm:$0xf]
      %v5110 = vld [vmem:[%s5102 + $0x1c] sm:$0xf]
      %v5111 = vld [vmem:[%s5102 + $0x20] sm:$0xf]
      %v5112 = vld [vmem:[%s5102 + $0x24] sm:$0xf]
      %v5113 = vld [vmem:[%s5102 + $0x28] sm:$0xf]
      %v5125 = vunpack.c.l.b16 %v5103
      %v5126 = vunpack.c.l.b16 %v5104
      %v5127 = vunpack.c.l.b16 %v5105
      %v5128 = vunpack.c.l.b16 %v5106
      %v5129 = vunpack.c.l.b16 %v5107
      %v5130 = vunpack.c.l.b16 %v5108
      %v5131 = vunpack.c.l.b16 %v5109
      %v5132 = vunpack.c.l.b16 %v5110
      %v5133 = vunpack.c.l.b16 %v5111
      %v5134 = vunpack.c.l.b16 %v5112
      %v5135 = vunpack.c.l.b16 %v5113
      %v5136 = vpack.c.b16 %v5126, %v5125
      %v5137 = vpack.c.b16 %v5128, %v5127
      %v5138 = vpack.c.b16 %v5130, %v5129
      %v5139 = vpack.c.b16 %v5132, %v5131
      %v5140 = vpack.c.b16 %v5134, %v5133
      %v5141 = vpack.c.b16 %v5135, %v5135
      %v5148 = vsel %vm481, %v5094, 0
      %v5151 = vsel %vm481, %v5095, 0
      %v5154 = vsel %vm481, %v5096, 0
      %v5157 = vsel %vm481, %v5097, 0
      %v5160 = vsel %vm481, %v5098, 0
      %v5163 = vsel %vm481, %v5099, 0
      %v5166 = vsel %vm481, %v5100, 0
      %v5169 = vsel %vm481, %v5101, 0
      %v5172 = vsel %vm506, %v5141, 0
      %5174 = vmatpush.bf16.msra.mxu0 0
      %5175 = vmatpush.bf16.msra.mxu0 0
      %5176 = vmatpush.bf16.msra.mxu0 %v5172
      %5177 = vmatpush.bf16.msra.mxu0 %v5140
      %5178 = vmatpush.bf16.msra.mxu0 %v5139
      %5179 = vmatpush.bf16.msra.mxu0 %v5138
      %5180 = vmatpush.bf16.msra.mxu0 %v5137
      %5181 = vmatpush.bf16.msra.mxu0 %v5136
      %5182 = vmatmul.bf16.gmra.mxu0 %v5148
      %v5183 = vpop.f32.mrf.mxu0
      %v5184 = vadd.f32 0.0, %v5183
      %v5185 = vpop.f32.mrf.mxu0
      %v5186 = vadd.f32 0.0, %v5185
      %5187 = vmatmul.bf16.gmra.mxu0 %v5151
      %v5188 = vpop.f32.mrf.mxu0
      %v5189 = vadd.f32 0.0, %v5188
      %v5190 = vpop.f32.mrf.mxu0
      %v5191 = vadd.f32 0.0, %v5190
      %5192 = vmatmul.bf16.gmra.mxu0 %v5154
      %v5193 = vpop.f32.mrf.mxu0
      %v5194 = vadd.f32 0.0, %v5193
      %v5195 = vpop.f32.mrf.mxu0
      %v5196 = vadd.f32 0.0, %v5195
      %5197 = vmatmul.bf16.gmra.mxu0 %v5157
      %v5198 = vpop.f32.mrf.mxu0
      %v5199 = vadd.f32 0.0, %v5198
      %v5200 = vpop.f32.mrf.mxu0
      %v5201 = vadd.f32 0.0, %v5200
      %5202 = vmatmul.bf16.gmra.mxu0 %v5160
      %v5203 = vpop.f32.mrf.mxu0
      %v5204 = vadd.f32 0.0, %v5203
      %v5205 = vpop.f32.mrf.mxu0
      %v5206 = vadd.f32 0.0, %v5205
      %5207 = vmatmul.bf16.gmra.mxu0 %v5163
      %v5208 = vpop.f32.mrf.mxu0
      %v5209 = vadd.f32 0.0, %v5208
      %v5210 = vpop.f32.mrf.mxu0
      %v5211 = vadd.f32 0.0, %v5210
      %5212 = vmatmul.bf16.gmra.mxu0 %v5166
      %v5213 = vpop.f32.mrf.mxu0
      %v5214 = vadd.f32 0.0, %v5213
      %v5215 = vpop.f32.mrf.mxu0
      %v5216 = vadd.f32 0.0, %v5215
      %5217 = vmatmul.bf16.gmra.mxu0 %v5169
      %v5218 = vpop.f32.mrf.mxu0
      %v5219 = vadd.f32 0.0, %v5218
      %v5220 = vpop.f32.mrf.mxu0
      %v5221 = vadd.f32 0.0, %v5220
      %5222 = vdwg.mxu0
      %s5223 = scalar_lea.vmem %s2, 2
      %v5224 = vld [vmem:[%s5223] sm:$0x1]
      %v5226 = vperm.slane %v5224, 0
      %v5228 = vsub.f32 %v5184, %v5226
      %v5229 = vsub.f32 %v5186, %v5226
      %v5230 = vsub.f32 %v5189, %v5226
      %v5231 = vsub.f32 %v5191, %v5226
      %v5232 = vsub.f32 %v5194, %v5226
      %v5233 = vsub.f32 %v5196, %v5226
      %v5234 = vsub.f32 %v5199, %v5226
      %v5235 = vsub.f32 %v5201, %v5226
      %v5236 = vsub.f32 %v5204, %v5226
      %v5237 = vsub.f32 %v5206, %v5226
      %v5238 = vsub.f32 %v5209, %v5226
      %v5239 = vsub.f32 %v5211, %v5226
      %v5240 = vsub.f32 %v5214, %v5226
      %v5241 = vsub.f32 %v5216, %v5226
      %v5242 = vsub.f32 %v5219, %v5226
      %v5243 = vsub.f32 %v5221, %v5226
      %v5244 = vand.u32 2147483647, %v5228
      %v5245 = vand.u32 2147483647, %v5229
      %v5246 = vand.u32 2147483647, %v5230
      %v5247 = vand.u32 2147483647, %v5231
      %v5248 = vand.u32 2147483647, %v5232
      %v5249 = vand.u32 2147483647, %v5233
      %v5250 = vand.u32 2147483647, %v5234
      %v5251 = vand.u32 2147483647, %v5235
      %v5252 = vand.u32 2147483647, %v5236
      %v5253 = vand.u32 2147483647, %v5237
      %v5254 = vand.u32 2147483647, %v5238
      %v5255 = vand.u32 2147483647, %v5239
      %v5256 = vand.u32 2147483647, %v5240
      %v5257 = vand.u32 2147483647, %v5241
      %v5258 = vand.u32 2147483647, %v5242
      %v5259 = vand.u32 2147483647, %v5243
      %vm5260 = vcmp.ge.f32.partialorder %v5228, 0.0
      %vm5261 = vcmp.ge.f32.partialorder %v5229, 0.0
      %vm5262 = vcmp.ge.f32.partialorder %v5230, 0.0
      %vm5263 = vcmp.ge.f32.partialorder %v5231, 0.0
      %vm5264 = vcmp.ge.f32.partialorder %v5232, 0.0
      %vm5265 = vcmp.ge.f32.partialorder %v5233, 0.0
      %vm5266 = vcmp.ge.f32.partialorder %v5234, 0.0
      %vm5267 = vcmp.ge.f32.partialorder %v5235, 0.0
      %vm5268 = vcmp.ge.f32.partialorder %v5236, 0.0
      %vm5269 = vcmp.ge.f32.partialorder %v5237, 0.0
      %vm5270 = vcmp.ge.f32.partialorder %v5238, 0.0
      %vm5271 = vcmp.ge.f32.partialorder %v5239, 0.0
      %vm5272 = vcmp.ge.f32.partialorder %v5240, 0.0
      %vm5273 = vcmp.ge.f32.partialorder %v5241, 0.0
      %vm5274 = vcmp.ge.f32.partialorder %v5242, 0.0
      %vm5275 = vcmp.ge.f32.partialorder %v5243, 0.0
      %v5276 = vmul.f32 %v5244, %v5244
      %v5277 = vmul.f32 %v5245, %v5245
      %v5278 = vmul.f32 %v5246, %v5246
      %v5279 = vmul.f32 %v5247, %v5247
      %v5280 = vmul.f32 %v5248, %v5248
      %v5281 = vmul.f32 %v5249, %v5249
      %v5282 = vmul.f32 %v5250, %v5250
      %v5283 = vmul.f32 %v5251, %v5251
      %v5284 = vmul.f32 %v5252, %v5252
      %v5285 = vmul.f32 %v5253, %v5253
      %v5286 = vmul.f32 %v5254, %v5254
      %v5287 = vmul.f32 %v5255, %v5255
      %v5288 = vmul.f32 %v5256, %v5256
      %v5289 = vmul.f32 %v5257, %v5257
      %v5290 = vmul.f32 %v5258, %v5258
      %v5291 = vmul.f32 %v5259, %v5259
      %v5292 = vsub.f32 8.0, %v5276
      %v5293 = vsub.f32 8.0, %v5277
      %v5294 = vsub.f32 8.0, %v5278
      %v5295 = vsub.f32 8.0, %v5279
      %v5296 = vsub.f32 8.0, %v5280
      %v5297 = vsub.f32 8.0, %v5281
      %v5298 = vsub.f32 8.0, %v5282
      %v5299 = vsub.f32 8.0, %v5283
      %v5300 = vsub.f32 8.0, %v5284
      %v5301 = vsub.f32 8.0, %v5285
      %v5302 = vsub.f32 8.0, %v5286
      %v5303 = vsub.f32 8.0, %v5287
      %v5304 = vsub.f32 8.0, %v5288
      %v5305 = vsub.f32 8.0, %v5289
      %v5306 = vsub.f32 8.0, %v5290
      %v5307 = vsub.f32 8.0, %v5291
      %v5308 = vmax.f32 %v5292, 0.0
      %v5309 = vmax.f32 %v5293, 0.0
      %v5310 = vmax.f32 %v5294, 0.0
      %v5311 = vmax.f32 %v5295, 0.0
      %v5312 = vmax.f32 %v5296, 0.0
      %v5313 = vmax.f32 %v5297, 0.0
      %v5314 = vmax.f32 %v5298, 0.0
      %v5315 = vmax.f32 %v5299, 0.0
      %v5316 = vmax.f32 %v5300, 0.0
      %v5317 = vmax.f32 %v5301, 0.0
      %v5318 = vmax.f32 %v5302, 0.0
      %v5319 = vmax.f32 %v5303, 0.0
      %v5320 = vmax.f32 %v5304, 0.0
      %v5321 = vmax.f32 %v5305, 0.0
      %v5322 = vmax.f32 %v5306, 0.0
      %v5323 = vmax.f32 %v5307, 0.0
      %v5324 = vrsqrt.pop %v5308
      %v5325 = vmul.f32 %v5324, %v5308
      %v5326 = vmul.f32 %v5325, %v5324
      %v5327 = vmul.f32 0.5, %v5326
      %v5328 = vsub.f32 1.5, %v5327
      %v5329 = vmul.f32 %v5324, %v5328
      %v5330 = vmul.f32 %v5308, %v5329
      %vm5331 = vcmp.eq.f32.partialorder %v5308, inf
      %v5332 = vsel %vm5331, %v5308, %v5330
      %vm5333 = vcmp.eq.f32.partialorder %v5308, 0.0
      %v5334 = vand.u32 %v5308, 2147483648
      %v5335 = vsel %vm5333, %v5334, %v5332
      %v5336 = vrsqrt.pop %v5309
      %v5337 = vmul.f32 %v5336, %v5309
      %v5338 = vmul.f32 %v5337, %v5336
      %v5339 = vmul.f32 0.5, %v5338
      %v5340 = vsub.f32 1.5, %v5339
      %v5341 = vmul.f32 %v5336, %v5340
      %v5342 = vmul.f32 %v5309, %v5341
      %vm5343 = vcmp.eq.f32.partialorder %v5309, inf
      %v5344 = vsel %vm5343, %v5309, %v5342
      %vm5345 = vcmp.eq.f32.partialorder %v5309, 0.0
      %v5346 = vand.u32 %v5309, 2147483648
      %v5347 = vsel %vm5345, %v5346, %v5344
      %v5348 = vrsqrt.pop %v5310
      %v5349 = vmul.f32 %v5348, %v5310
      %v5350 = vmul.f32 %v5349, %v5348
      %v5351 = vmul.f32 0.5, %v5350
      %v5352 = vsub.f32 1.5, %v5351
      %v5353 = vmul.f32 %v5348, %v5352
      %v5354 = vmul.f32 %v5310, %v5353
      %vm5355 = vcmp.eq.f32.partialorder %v5310, inf
      %v5356 = vsel %vm5355, %v5310, %v5354
      %vm5357 = vcmp.eq.f32.partialorder %v5310, 0.0
      %v5358 = vand.u32 %v5310, 2147483648
      %v5359 = vsel %vm5357, %v5358, %v5356
      %v5360 = vrsqrt.pop %v5311
      %v5361 = vmul.f32 %v5360, %v5311
      %v5362 = vmul.f32 %v5361, %v5360
      %v5363 = vmul.f32 0.5, %v5362
      %v5364 = vsub.f32 1.5, %v5363
      %v5365 = vmul.f32 %v5360, %v5364
      %v5366 = vmul.f32 %v5311, %v5365
      %vm5367 = vcmp.eq.f32.partialorder %v5311, inf
      %v5368 = vsel %vm5367, %v5311, %v5366
      %vm5369 = vcmp.eq.f32.partialorder %v5311, 0.0
      %v5370 = vand.u32 %v5311, 2147483648
      %v5371 = vsel %vm5369, %v5370, %v5368
      %v5372 = vrsqrt.pop %v5312
      %v5373 = vmul.f32 %v5372, %v5312
      %v5374 = vmul.f32 %v5373, %v5372
      %v5375 = vmul.f32 0.5, %v5374
      %v5376 = vsub.f32 1.5, %v5375
      %v5377 = vmul.f32 %v5372, %v5376
      %v5378 = vmul.f32 %v5312, %v5377
      %vm5379 = vcmp.eq.f32.partialorder %v5312, inf
      %v5380 = vsel %vm5379, %v5312, %v5378
      %vm5381 = vcmp.eq.f32.partialorder %v5312, 0.0
      %v5382 = vand.u32 %v5312, 2147483648
      %v5383 = vsel %vm5381, %v5382, %v5380
      %v5384 = vrsqrt.pop %v5313
      %v5385 = vmul.f32 %v5384, %v5313
      %v5386 = vmul.f32 %v5385, %v5384
      %v5387 = vmul.f32 0.5, %v5386
      %v5388 = vsub.f32 1.5, %v5387
      %v5389 = vmul.f32 %v5384, %v5388
      %v5390 = vmul.f32 %v5313, %v5389
      %vm5391 = vcmp.eq.f32.partialorder %v5313, inf
      %v5392 = vsel %vm5391, %v5313, %v5390
      %vm5393 = vcmp.eq.f32.partialorder %v5313, 0.0
      %v5394 = vand.u32 %v5313, 2147483648
      %v5395 = vsel %vm5393, %v5394, %v5392
      %v5396 = vrsqrt.pop %v5314
      %v5397 = vmul.f32 %v5396, %v5314
      %v5398 = vmul.f32 %v5397, %v5396
      %v5399 = vmul.f32 0.5, %v5398
      %v5400 = vsub.f32 1.5, %v5399
      %v5401 = vmul.f32 %v5396, %v5400
      %v5402 = vmul.f32 %v5314, %v5401
      %vm5403 = vcmp.eq.f32.partialorder %v5314, inf
      %v5404 = vsel %vm5403, %v5314, %v5402
      %vm5405 = vcmp.eq.f32.partialorder %v5314, 0.0
      %v5406 = vand.u32 %v5314, 2147483648
      %v5407 = vsel %vm5405, %v5406, %v5404
      %v5408 = vrsqrt.pop %v5315
      %v5409 = vmul.f32 %v5408, %v5315
      %v5410 = vmul.f32 %v5409, %v5408
      %v5411 = vmul.f32 0.5, %v5410
      %v5412 = vsub.f32 1.5, %v5411
      %v5413 = vmul.f32 %v5408, %v5412
      %v5414 = vmul.f32 %v5315, %v5413
      %vm5415 = vcmp.eq.f32.partialorder %v5315, inf
      %v5416 = vsel %vm5415, %v5315, %v5414
      %vm5417 = vcmp.eq.f32.partialorder %v5315, 0.0
      %v5418 = vand.u32 %v5315, 2147483648
      %v5419 = vsel %vm5417, %v5418, %v5416
      %v5420 = vrsqrt.pop %v5316
      %v5421 = vmul.f32 %v5420, %v5316
      %v5422 = vmul.f32 %v5421, %v5420
      %v5423 = vmul.f32 0.5, %v5422
      %v5424 = vsub.f32 1.5, %v5423
      %v5425 = vmul.f32 %v5420, %v5424
      %v5426 = vmul.f32 %v5316, %v5425
      %vm5427 = vcmp.eq.f32.partialorder %v5316, inf
      %v5428 = vsel %vm5427, %v5316, %v5426
      %vm5429 = vcmp.eq.f32.partialorder %v5316, 0.0
      %v5430 = vand.u32 %v5316, 2147483648
      %v5431 = vsel %vm5429, %v5430, %v5428
      %v5432 = vrsqrt.pop %v5317
      %v5433 = vmul.f32 %v5432, %v5317
      %v5434 = vmul.f32 %v5433, %v5432
      %v5435 = vmul.f32 0.5, %v5434
      %v5436 = vsub.f32 1.5, %v5435
      %v5437 = vmul.f32 %v5432, %v5436
      %v5438 = vmul.f32 %v5317, %v5437
      %vm5439 = vcmp.eq.f32.partialorder %v5317, inf
      %v5440 = vsel %vm5439, %v5317, %v5438
      %vm5441 = vcmp.eq.f32.partialorder %v5317, 0.0
      %v5442 = vand.u32 %v5317, 2147483648
      %v5443 = vsel %vm5441, %v5442, %v5440
      %v5444 = vrsqrt.pop %v5318
      %v5445 = vmul.f32 %v5444, %v5318
      %v5446 = vmul.f32 %v5445, %v5444
      %v5447 = vmul.f32 0.5, %v5446
      %v5448 = vsub.f32 1.5, %v5447
      %v5449 = vmul.f32 %v5444, %v5448
      %v5450 = vmul.f32 %v5318, %v5449
      %vm5451 = vcmp.eq.f32.partialorder %v5318, inf
      %v5452 = vsel %vm5451, %v5318, %v5450
      %vm5453 = vcmp.eq.f32.partialorder %v5318, 0.0
      %v5454 = vand.u32 %v5318, 2147483648
      %v5455 = vsel %vm5453, %v5454, %v5452
      %v5456 = vrsqrt.pop %v5319
      %v5457 = vmul.f32 %v5456, %v5319
      %v5458 = vmul.f32 %v5457, %v5456
      %v5459 = vmul.f32 0.5, %v5458
      %v5460 = vsub.f32 1.5, %v5459
      %v5461 = vmul.f32 %v5456, %v5460
      %v5462 = vmul.f32 %v5319, %v5461
      %vm5463 = vcmp.eq.f32.partialorder %v5319, inf
      %v5464 = vsel %vm5463, %v5319, %v5462
      %vm5465 = vcmp.eq.f32.partialorder %v5319, 0.0
      %v5466 = vand.u32 %v5319, 2147483648
      %v5467 = vsel %vm5465, %v5466, %v5464
      %v5468 = vrsqrt.pop %v5320
      %v5469 = vmul.f32 %v5468, %v5320
      %v5470 = vmul.f32 %v5469, %v5468
      %v5471 = vmul.f32 0.5, %v5470
      %v5472 = vsub.f32 1.5, %v5471
      %v5473 = vmul.f32 %v5468, %v5472
      %v5474 = vmul.f32 %v5320, %v5473
      %vm5475 = vcmp.eq.f32.partialorder %v5320, inf
      %v5476 = vsel %vm5475, %v5320, %v5474
      %vm5477 = vcmp.eq.f32.partialorder %v5320, 0.0
      %v5478 = vand.u32 %v5320, 2147483648
      %v5479 = vsel %vm5477, %v5478, %v5476
      %v5480 = vrsqrt.pop %v5321
      %v5481 = vmul.f32 %v5480, %v5321
      %v5482 = vmul.f32 %v5481, %v5480
      %v5483 = vmul.f32 0.5, %v5482
      %v5484 = vsub.f32 1.5, %v5483
      %v5485 = vmul.f32 %v5480, %v5484
      %v5486 = vmul.f32 %v5321, %v5485
      %vm5487 = vcmp.eq.f32.partialorder %v5321, inf
      %v5488 = vsel %vm5487, %v5321, %v5486
      %vm5489 = vcmp.eq.f32.partialorder %v5321, 0.0
      %v5490 = vand.u32 %v5321, 2147483648
      %v5491 = vsel %vm5489, %v5490, %v5488
      %v5492 = vrsqrt.pop %v5322
      %v5493 = vmul.f32 %v5492, %v5322
      %v5494 = vmul.f32 %v5493, %v5492
      %v5495 = vmul.f32 0.5, %v5494
      %v5496 = vsub.f32 1.5, %v5495
      %v5497 = vmul.f32 %v5492, %v5496
      %v5498 = vmul.f32 %v5322, %v5497
      %vm5499 = vcmp.eq.f32.partialorder %v5322, inf
      %v5500 = vsel %vm5499, %v5322, %v5498
      %vm5501 = vcmp.eq.f32.partialorder %v5322, 0.0
      %v5502 = vand.u32 %v5322, 2147483648
      %v5503 = vsel %vm5501, %v5502, %v5500
      %v5504 = vrsqrt.pop %v5323
      %v5505 = vmul.f32 %v5504, %v5323
      %v5506 = vmul.f32 %v5505, %v5504
      %v5507 = vmul.f32 0.5, %v5506
      %v5508 = vsub.f32 1.5, %v5507
      %v5509 = vmul.f32 %v5504, %v5508
      %v5510 = vmul.f32 %v5323, %v5509
      %vm5511 = vcmp.eq.f32.partialorder %v5323, inf
      %v5512 = vsel %vm5511, %v5323, %v5510
      %vm5513 = vcmp.eq.f32.partialorder %v5323, 0.0
      %v5514 = vand.u32 %v5323, 2147483648
      %v5515 = vsel %vm5513, %v5514, %v5512
      %v5516 = vadd.f32 %v5244, %v5335
      %v5517 = vadd.f32 %v5245, %v5347
      %v5518 = vadd.f32 %v5246, %v5359
      %v5519 = vadd.f32 %v5247, %v5371
      %v5520 = vadd.f32 %v5248, %v5383
      %v5521 = vadd.f32 %v5249, %v5395
      %v5522 = vadd.f32 %v5250, %v5407
      %v5523 = vadd.f32 %v5251, %v5419
      %v5524 = vadd.f32 %v5252, %v5431
      %v5525 = vadd.f32 %v5253, %v5443
      %v5526 = vadd.f32 %v5254, %v5455
      %v5527 = vadd.f32 %v5255, %v5467
      %v5528 = vadd.f32 %v5256, %v5479
      %v5529 = vadd.f32 %v5257, %v5491
      %v5530 = vadd.f32 %v5258, %v5503
      %v5531 = vadd.f32 %v5259, %v5515
      %v5532 = vmul.f32 %v5516, 0.5
      %v5533 = vmul.f32 %v5517, 0.5
      %v5534 = vmul.f32 %v5518, 0.5
      %v5535 = vmul.f32 %v5519, 0.5
      %v5536 = vmul.f32 %v5520, 0.5
      %v5537 = vmul.f32 %v5521, 0.5
      %v5538 = vmul.f32 %v5522, 0.5
      %v5539 = vmul.f32 %v5523, 0.5
      %v5540 = vmul.f32 %v5524, 0.5
      %v5541 = vmul.f32 %v5525, 0.5
      %v5542 = vmul.f32 %v5526, 0.5
      %v5543 = vmul.f32 %v5527, 0.5
      %v5544 = vmul.f32 %v5528, 0.5
      %v5545 = vmul.f32 %v5529, 0.5
      %v5546 = vmul.f32 %v5530, 0.5
      %v5547 = vmul.f32 %v5531, 0.5
      %vm5548 = vcmp.le.f32.partialorder %v5532, %v5244
      %vm5549 = vcmp.le.f32.partialorder %v5533, %v5245
      %vm5550 = vcmp.le.f32.partialorder %v5534, %v5246
      %vm5551 = vcmp.le.f32.partialorder %v5535, %v5247
      %vm5552 = vcmp.le.f32.partialorder %v5536, %v5248
      %vm5553 = vcmp.le.f32.partialorder %v5537, %v5249
      %vm5554 = vcmp.le.f32.partialorder %v5538, %v5250
      %vm5555 = vcmp.le.f32.partialorder %v5539, %v5251
      %vm5556 = vcmp.le.f32.partialorder %v5540, %v5252
      %vm5557 = vcmp.le.f32.partialorder %v5541, %v5253
      %vm5558 = vcmp.le.f32.partialorder %v5542, %v5254
      %vm5559 = vcmp.le.f32.partialorder %v5543, %v5255
      %vm5560 = vcmp.le.f32.partialorder %v5544, %v5256
      %vm5561 = vcmp.le.f32.partialorder %v5545, %v5257
      %vm5562 = vcmp.le.f32.partialorder %v5546, %v5258
      %vm5563 = vcmp.le.f32.partialorder %v5547, %v5259
      %v5564 = vsel %vm5548, 2.0, %v5532
      %v5565 = vsel %vm5549, 2.0, %v5533
      %v5566 = vsel %vm5550, 2.0, %v5534
      %v5567 = vsel %vm5551, 2.0, %v5535
      %v5568 = vsel %vm5552, 2.0, %v5536
      %v5569 = vsel %vm5553, 2.0, %v5537
      %v5570 = vsel %vm5554, 2.0, %v5538
      %v5571 = vsel %vm5555, 2.0, %v5539
      %v5572 = vsel %vm5556, 2.0, %v5540
      %v5573 = vsel %vm5557, 2.0, %v5541
      %v5574 = vsel %vm5558, 2.0, %v5542
      %v5575 = vsel %vm5559, 2.0, %v5543
      %v5576 = vsel %vm5560, 2.0, %v5544
      %v5577 = vsel %vm5561, 2.0, %v5545
      %v5578 = vsel %vm5562, 2.0, %v5546
      %v5579 = vsel %vm5563, 2.0, %v5547
      %v5580 = vsub.f32 %v5564, %v5244
      %v5581 = vsub.f32 %v5565, %v5245
      %v5582 = vsub.f32 %v5566, %v5246
      %v5583 = vsub.f32 %v5567, %v5247
      %v5584 = vsub.f32 %v5568, %v5248
      %v5585 = vsub.f32 %v5569, %v5249
      %v5586 = vsub.f32 %v5570, %v5250
      %v5587 = vsub.f32 %v5571, %v5251
      %v5588 = vsub.f32 %v5572, %v5252
      %v5589 = vsub.f32 %v5573, %v5253
      %v5590 = vsub.f32 %v5574, %v5254
      %v5591 = vsub.f32 %v5575, %v5255
      %v5592 = vsub.f32 %v5576, %v5256
      %v5593 = vsub.f32 %v5577, %v5257
      %v5594 = vsub.f32 %v5578, %v5258
      %v5595 = vsub.f32 %v5579, %v5259
      %v5596 = vmax.f32 %v5580, 0.0
      %v5597 = vmax.f32 %v5581, 0.0
      %v5598 = vmax.f32 %v5582, 0.0
      %v5599 = vmax.f32 %v5583, 0.0
      %v5600 = vmax.f32 %v5584, 0.0
      %v5601 = vmax.f32 %v5585, 0.0
      %v5602 = vmax.f32 %v5586, 0.0
      %v5603 = vmax.f32 %v5587, 0.0
      %v5604 = vmax.f32 %v5588, 0.0
      %v5605 = vmax.f32 %v5589, 0.0
      %v5606 = vmax.f32 %v5590, 0.0
      %v5607 = vmax.f32 %v5591, 0.0
      %v5608 = vmax.f32 %v5592, 0.0
      %v5609 = vmax.f32 %v5593, 0.0
      %v5610 = vmax.f32 %v5594, 0.0
      %v5611 = vmax.f32 %v5595, 0.0
      %v5612 = vmul.f32 %v5596, %v5596
      %v5613 = vmul.f32 %v5597, %v5597
      %v5614 = vmul.f32 %v5598, %v5598
      %v5615 = vmul.f32 %v5599, %v5599
      %v5616 = vmul.f32 %v5600, %v5600
      %v5617 = vmul.f32 %v5601, %v5601
      %v5618 = vmul.f32 %v5602, %v5602
      %v5619 = vmul.f32 %v5603, %v5603
      %v5620 = vmul.f32 %v5604, %v5604
      %v5621 = vmul.f32 %v5605, %v5605
      %v5622 = vmul.f32 %v5606, %v5606
      %v5623 = vmul.f32 %v5607, %v5607
      %v5624 = vmul.f32 %v5608, %v5608
      %v5625 = vmul.f32 %v5609, %v5609
      %v5626 = vmul.f32 %v5610, %v5610
      %v5627 = vmul.f32 %v5611, %v5611
      %v5628 = vmul.f32 %v5612, 0.25
      %v5629 = vmul.f32 %v5613, 0.25
      %v5630 = vmul.f32 %v5614, 0.25
      %v5631 = vmul.f32 %v5615, 0.25
      %v5632 = vmul.f32 %v5616, 0.25
      %v5633 = vmul.f32 %v5617, 0.25
      %v5634 = vmul.f32 %v5618, 0.25
      %v5635 = vmul.f32 %v5619, 0.25
      %v5636 = vmul.f32 %v5620, 0.25
      %v5637 = vmul.f32 %v5621, 0.25
      %v5638 = vmul.f32 %v5622, 0.25
      %v5639 = vmul.f32 %v5623, 0.25
      %v5640 = vmul.f32 %v5624, 0.25
      %v5641 = vmul.f32 %v5625, 0.25
      %v5642 = vmul.f32 %v5626, 0.25
      %v5643 = vmul.f32 %v5627, 0.25
      %v5644 = vsub.f32 1.0, %v5628
      %v5645 = vsub.f32 1.0, %v5629
      %v5646 = vsub.f32 1.0, %v5630
      %v5647 = vsub.f32 1.0, %v5631
      %v5648 = vsub.f32 1.0, %v5632
      %v5649 = vsub.f32 1.0, %v5633
      %v5650 = vsub.f32 1.0, %v5634
      %v5651 = vsub.f32 1.0, %v5635
      %v5652 = vsub.f32 1.0, %v5636
      %v5653 = vsub.f32 1.0, %v5637
      %v5654 = vsub.f32 1.0, %v5638
      %v5655 = vsub.f32 1.0, %v5639
      %v5656 = vsub.f32 1.0, %v5640
      %v5657 = vsub.f32 1.0, %v5641
      %v5658 = vsub.f32 1.0, %v5642
      %v5659 = vsub.f32 1.0, %v5643
      %v5660 = vsel %vm5260, %v5644, %v5628
      %v5661 = vsel %vm5261, %v5645, %v5629
      %v5662 = vsel %vm5262, %v5646, %v5630
      %v5663 = vsel %vm5263, %v5647, %v5631
      %v5664 = vsel %vm5264, %v5648, %v5632
      %v5665 = vsel %vm5265, %v5649, %v5633
      %v5666 = vsel %vm5266, %v5650, %v5634
      %v5667 = vsel %vm5267, %v5651, %v5635
      %v5668 = vsel %vm5268, %v5652, %v5636
      %v5669 = vsel %vm5269, %v5653, %v5637
      %v5670 = vsel %vm5270, %v5654, %v5638
      %v5671 = vsel %vm5271, %v5655, %v5639
      %v5672 = vsel %vm5272, %v5656, %v5640
      %v5673 = vsel %vm5273, %v5657, %v5641
      %v5674 = vsel %vm5274, %v5658, %v5642
      %v5675 = vsel %vm5275, %v5659, %v5643
      %v5676 = vsub.f32 1.0, %v5660
      %v5677 = vsub.f32 1.0, %v5661
      %v5678 = vsub.f32 1.0, %v5662
      %v5679 = vsub.f32 1.0, %v5663
      %v5680 = vsub.f32 1.0, %v5664
      %v5681 = vsub.f32 1.0, %v5665
      %v5682 = vsub.f32 1.0, %v5666
      %v5683 = vsub.f32 1.0, %v5667
      %v5684 = vsub.f32 1.0, %v5668
      %v5685 = vsub.f32 1.0, %v5669
      %v5686 = vsub.f32 1.0, %v5670
      %v5687 = vsub.f32 1.0, %v5671
      %v5688 = vsub.f32 1.0, %v5672
      %v5689 = vsub.f32 1.0, %v5673
      %v5690 = vsub.f32 1.0, %v5674
      %v5691 = vsub.f32 1.0, %v5675
      %5708 = vrot.lane.b32.xlu0 %v5660, 112
      %v5709 = vpop.permute.xlu0 %5708
      %5710 = vrot.lane.b32.xlu0 %v5661, 112
      %v5711 = vpop.permute.xlu0 %5710
      %5712 = vrot.lane.b32.xlu0 %v5662, 112
      %v5713 = vpop.permute.xlu0 %5712
      %5714 = vrot.lane.b32.xlu0 %v5663, 112
      %v5715 = vpop.permute.xlu0 %5714
      %5716 = vrot.lane.b32.xlu0 %v5664, 112
      %v5717 = vpop.permute.xlu0 %5716
      %5718 = vrot.lane.b32.xlu0 %v5665, 112
      %v5719 = vpop.permute.xlu0 %5718
      %5720 = vrot.lane.b32.xlu0 %v5666, 112
      %v5721 = vpop.permute.xlu0 %5720
      %5722 = vrot.lane.b32.xlu0 %v5667, 112
      %v5723 = vpop.permute.xlu0 %5722
      %5724 = vrot.lane.b32.xlu0 %v5668, 112
      %v5725 = vpop.permute.xlu0 %5724
      %5726 = vrot.lane.b32.xlu0 %v5669, 112
      %v5727 = vpop.permute.xlu0 %5726
      %5728 = vrot.lane.b32.xlu0 %v5670, 112
      %v5729 = vpop.permute.xlu0 %5728
      %5730 = vrot.lane.b32.xlu0 %v5671, 112
      %v5731 = vpop.permute.xlu0 %5730
      %5732 = vrot.lane.b32.xlu0 %v5672, 112
      %v5733 = vpop.permute.xlu0 %5732
      %5734 = vrot.lane.b32.xlu0 %v5673, 112
      %v5735 = vpop.permute.xlu0 %5734
      %5736 = vrot.lane.b32.xlu0 %v5674, 112
      %v5737 = vpop.permute.xlu0 %5736
      %5738 = vrot.lane.b32.xlu0 %v5675, 112
      %v5739 = vpop.permute.xlu0 %5738
      %v5756 = vmul.f32 %v5660, %v5709
      %v5757 = vmul.f32 %v5661, %v5711
      %v5758 = vmul.f32 %v5662, %v5713
      %v5759 = vmul.f32 %v5663, %v5715
      %v5760 = vmul.f32 %v5664, %v5717
      %v5761 = vmul.f32 %v5665, %v5719
      %v5762 = vmul.f32 %v5666, %v5721
      %v5763 = vmul.f32 %v5667, %v5723
      %v5764 = vmul.f32 %v5668, %v5725
      %v5765 = vmul.f32 %v5669, %v5727
      %v5766 = vmul.f32 %v5670, %v5729
      %v5767 = vmul.f32 %v5671, %v5731
      %v5768 = vmul.f32 %v5672, %v5733
      %v5769 = vmul.f32 %v5673, %v5735
      %v5770 = vmul.f32 %v5674, %v5737
      %v5771 = vmul.f32 %v5675, %v5739
      %v5772 = vmul.f32 %v5676, %v5709
      %v5773 = vmul.f32 %v5677, %v5711
      %v5774 = vmul.f32 %v5678, %v5713
      %v5775 = vmul.f32 %v5679, %v5715
      %v5776 = vmul.f32 %v5680, %v5717
      %v5777 = vmul.f32 %v5681, %v5719
      %v5778 = vmul.f32 %v5682, %v5721
      %v5779 = vmul.f32 %v5683, %v5723
      %v5780 = vmul.f32 %v5684, %v5725
      %v5781 = vmul.f32 %v5685, %v5727
      %v5782 = vmul.f32 %v5686, %v5729
      %v5783 = vmul.f32 %v5687, %v5731
      %v5784 = vmul.f32 %v5688, %v5733
      %v5785 = vmul.f32 %v5689, %v5735
      %v5786 = vmul.f32 %v5690, %v5737
      %v5787 = vmul.f32 %v5691, %v5739
      %5804 = vrot.lane.b32.xlu0 %v5676, 112
      %v5805 = vpop.permute.xlu0 %5804
      %5806 = vrot.lane.b32.xlu0 %v5677, 112
      %v5807 = vpop.permute.xlu0 %5806
      %5808 = vrot.lane.b32.xlu0 %v5678, 112
      %v5809 = vpop.permute.xlu0 %5808
      %5810 = vrot.lane.b32.xlu0 %v5679, 112
      %v5811 = vpop.permute.xlu0 %5810
      %5812 = vrot.lane.b32.xlu0 %v5680, 112
      %v5813 = vpop.permute.xlu0 %5812
      %5814 = vrot.lane.b32.xlu0 %v5681, 112
      %v5815 = vpop.permute.xlu0 %5814
      %5816 = vrot.lane.b32.xlu0 %v5682, 112
      %v5817 = vpop.permute.xlu0 %5816
      %5818 = vrot.lane.b32.xlu0 %v5683, 112
      %v5819 = vpop.permute.xlu0 %5818
      %5820 = vrot.lane.b32.xlu0 %v5684, 112
      %v5821 = vpop.permute.xlu0 %5820
      %5822 = vrot.lane.b32.xlu0 %v5685, 112
      %v5823 = vpop.permute.xlu0 %5822
      %5824 = vrot.lane.b32.xlu0 %v5686, 112
      %v5825 = vpop.permute.xlu0 %5824
      %5826 = vrot.lane.b32.xlu0 %v5687, 112
      %v5827 = vpop.permute.xlu0 %5826
      %5828 = vrot.lane.b32.xlu0 %v5688, 112
      %v5829 = vpop.permute.xlu0 %5828
      %5830 = vrot.lane.b32.xlu0 %v5689, 112
      %v5831 = vpop.permute.xlu0 %5830
      %5832 = vrot.lane.b32.xlu0 %v5690, 112
      %v5833 = vpop.permute.xlu0 %5832
      %5834 = vrot.lane.b32.xlu0 %v5691, 112
      %v5835 = vpop.permute.xlu0 %5834
      %v5852 = vmul.f32 %v5660, %v5805
      %v5853 = vmul.f32 %v5661, %v5807
      %v5854 = vmul.f32 %v5662, %v5809
      %v5855 = vmul.f32 %v5663, %v5811
      %v5856 = vmul.f32 %v5664, %v5813
      %v5857 = vmul.f32 %v5665, %v5815
      %v5858 = vmul.f32 %v5666, %v5817
      %v5859 = vmul.f32 %v5667, %v5819
      %v5860 = vmul.f32 %v5668, %v5821
      %v5861 = vmul.f32 %v5669, %v5823
      %v5862 = vmul.f32 %v5670, %v5825
      %v5863 = vmul.f32 %v5671, %v5827
      %v5864 = vmul.f32 %v5672, %v5829
      %v5865 = vmul.f32 %v5673, %v5831
      %v5866 = vmul.f32 %v5674, %v5833
      %v5867 = vmul.f32 %v5675, %v5835
      %v5868 = vmul.f32 %v5676, %v5805
      %v5869 = vmul.f32 %v5677, %v5807
      %v5870 = vmul.f32 %v5678, %v5809
      %v5871 = vmul.f32 %v5679, %v5811
      %v5872 = vmul.f32 %v5680, %v5813
      %v5873 = vmul.f32 %v5681, %v5815
      %v5874 = vmul.f32 %v5682, %v5817
      %v5875 = vmul.f32 %v5683, %v5819
      %v5876 = vmul.f32 %v5684, %v5821
      %v5877 = vmul.f32 %v5685, %v5823
      %v5878 = vmul.f32 %v5686, %v5825
      %v5879 = vmul.f32 %v5687, %v5827
      %v5880 = vmul.f32 %v5688, %v5829
      %v5881 = vmul.f32 %v5689, %v5831
      %v5882 = vmul.f32 %v5690, %v5833
      %v5883 = vmul.f32 %v5691, %v5835
      %5884 = vrot.lane.b32.xlu0 %v5660, 96
      %v5885 = vpop.permute.xlu0 %5884
      %5886 = vrot.lane.b32.xlu0 %v5661, 96
      %v5887 = vpop.permute.xlu0 %5886
      %5888 = vrot.lane.b32.xlu0 %v5662, 96
      %v5889 = vpop.permute.xlu0 %5888
      %5890 = vrot.lane.b32.xlu0 %v5663, 96
      %v5891 = vpop.permute.xlu0 %5890
      %5892 = vrot.lane.b32.xlu0 %v5664, 96
      %v5893 = vpop.permute.xlu0 %5892
      %5894 = vrot.lane.b32.xlu0 %v5665, 96
      %v5895 = vpop.permute.xlu0 %5894
      %5896 = vrot.lane.b32.xlu0 %v5666, 96
      %v5897 = vpop.permute.xlu0 %5896
      %5898 = vrot.lane.b32.xlu0 %v5667, 96
      %v5899 = vpop.permute.xlu0 %5898
      %5900 = vrot.lane.b32.xlu0 %v5668, 96
      %v5901 = vpop.permute.xlu0 %5900
      %5902 = vrot.lane.b32.xlu0 %v5669, 96
      %v5903 = vpop.permute.xlu0 %5902
      %5904 = vrot.lane.b32.xlu0 %v5670, 96
      %v5905 = vpop.permute.xlu0 %5904
      %5906 = vrot.lane.b32.xlu0 %v5671, 96
      %v5907 = vpop.permute.xlu0 %5906
      %5908 = vrot.lane.b32.xlu0 %v5672, 96
      %v5909 = vpop.permute.xlu0 %5908
      %5910 = vrot.lane.b32.xlu0 %v5673, 96
      %v5911 = vpop.permute.xlu0 %5910
      %5912 = vrot.lane.b32.xlu0 %v5674, 96
      %v5913 = vpop.permute.xlu0 %5912
      %5914 = vrot.lane.b32.xlu0 %v5675, 96
      %v5915 = vpop.permute.xlu0 %5914
      %v5932 = vmul.f32 %v5756, %v5885
      %v5933 = vmul.f32 %v5757, %v5887
      %v5934 = vmul.f32 %v5758, %v5889
      %v5935 = vmul.f32 %v5759, %v5891
      %v5936 = vmul.f32 %v5760, %v5893
      %v5937 = vmul.f32 %v5761, %v5895
      %v5938 = vmul.f32 %v5762, %v5897
      %v5939 = vmul.f32 %v5763, %v5899
      %v5940 = vmul.f32 %v5764, %v5901
      %v5941 = vmul.f32 %v5765, %v5903
      %v5942 = vmul.f32 %v5766, %v5905
      %v5943 = vmul.f32 %v5767, %v5907
      %v5944 = vmul.f32 %v5768, %v5909
      %v5945 = vmul.f32 %v5769, %v5911
      %v5946 = vmul.f32 %v5770, %v5913
      %v5947 = vmul.f32 %v5771, %v5915
      %v5948 = vmul.f32 %v5772, %v5885
      %v5949 = vmul.f32 %v5773, %v5887
      %v5950 = vmul.f32 %v5774, %v5889
      %v5951 = vmul.f32 %v5775, %v5891
      %v5952 = vmul.f32 %v5776, %v5893
      %v5953 = vmul.f32 %v5777, %v5895
      %v5954 = vmul.f32 %v5778, %v5897
      %v5955 = vmul.f32 %v5779, %v5899
      %v5956 = vmul.f32 %v5780, %v5901
      %v5957 = vmul.f32 %v5781, %v5903
      %v5958 = vmul.f32 %v5782, %v5905
      %v5959 = vmul.f32 %v5783, %v5907
      %v5960 = vmul.f32 %v5784, %v5909
      %v5961 = vmul.f32 %v5785, %v5911
      %v5962 = vmul.f32 %v5786, %v5913
      %v5963 = vmul.f32 %v5787, %v5915
      %v5964 = vmul.f32 %v5852, %v5885
      %v5965 = vmul.f32 %v5853, %v5887
      %v5966 = vmul.f32 %v5854, %v5889
      %v5967 = vmul.f32 %v5855, %v5891
      %v5968 = vmul.f32 %v5856, %v5893
      %v5969 = vmul.f32 %v5857, %v5895
      %v5970 = vmul.f32 %v5858, %v5897
      %v5971 = vmul.f32 %v5859, %v5899
      %v5972 = vmul.f32 %v5860, %v5901
      %v5973 = vmul.f32 %v5861, %v5903
      %v5974 = vmul.f32 %v5862, %v5905
      %v5975 = vmul.f32 %v5863, %v5907
      %v5976 = vmul.f32 %v5864, %v5909
      %v5977 = vmul.f32 %v5865, %v5911
      %v5978 = vmul.f32 %v5866, %v5913
      %v5979 = vmul.f32 %v5867, %v5915
      %v5980 = vmul.f32 %v5868, %v5885
      %v5981 = vmul.f32 %v5869, %v5887
      %v5982 = vmul.f32 %v5870, %v5889
      %v5983 = vmul.f32 %v5871, %v5891
      %v5984 = vmul.f32 %v5872, %v5893
      %v5985 = vmul.f32 %v5873, %v5895
      %v5986 = vmul.f32 %v5874, %v5897
      %v5987 = vmul.f32 %v5875, %v5899
      %v5988 = vmul.f32 %v5876, %v5901
      %v5989 = vmul.f32 %v5877, %v5903
      %v5990 = vmul.f32 %v5878, %v5905
      %v5991 = vmul.f32 %v5879, %v5907
      %v5992 = vmul.f32 %v5880, %v5909
      %v5993 = vmul.f32 %v5881, %v5911
      %v5994 = vmul.f32 %v5882, %v5913
      %v5995 = vmul.f32 %v5883, %v5915
      %5996 = vrot.lane.b32.xlu0 %v5676, 96
      %v5997 = vpop.permute.xlu0 %5996
      %5998 = vrot.lane.b32.xlu0 %v5677, 96
      %v5999 = vpop.permute.xlu0 %5998
      %6000 = vrot.lane.b32.xlu0 %v5678, 96
      %v6001 = vpop.permute.xlu0 %6000
      %6002 = vrot.lane.b32.xlu0 %v5679, 96
      %v6003 = vpop.permute.xlu0 %6002
      %6004 = vrot.lane.b32.xlu0 %v5680, 96
      %v6005 = vpop.permute.xlu0 %6004
      %6006 = vrot.lane.b32.xlu0 %v5681, 96
      %v6007 = vpop.permute.xlu0 %6006
      %6008 = vrot.lane.b32.xlu0 %v5682, 96
      %v6009 = vpop.permute.xlu0 %6008
      %6010 = vrot.lane.b32.xlu0 %v5683, 96
      %v6011 = vpop.permute.xlu0 %6010
      %6012 = vrot.lane.b32.xlu0 %v5684, 96
      %v6013 = vpop.permute.xlu0 %6012
      %6014 = vrot.lane.b32.xlu0 %v5685, 96
      %v6015 = vpop.permute.xlu0 %6014
      %6016 = vrot.lane.b32.xlu0 %v5686, 96
      %v6017 = vpop.permute.xlu0 %6016
      %6018 = vrot.lane.b32.xlu0 %v5687, 96
      %v6019 = vpop.permute.xlu0 %6018
      %6020 = vrot.lane.b32.xlu0 %v5688, 96
      %v6021 = vpop.permute.xlu0 %6020
      %6022 = vrot.lane.b32.xlu0 %v5689, 96
      %v6023 = vpop.permute.xlu0 %6022
      %6024 = vrot.lane.b32.xlu0 %v5690, 96
      %v6025 = vpop.permute.xlu0 %6024
      %6026 = vrot.lane.b32.xlu0 %v5691, 96
      %v6027 = vpop.permute.xlu0 %6026
      %v6044 = vmul.f32 %v5756, %v5997
      %v6045 = vmul.f32 %v5757, %v5999
      %v6046 = vmul.f32 %v5758, %v6001
      %v6047 = vmul.f32 %v5759, %v6003
      %v6048 = vmul.f32 %v5760, %v6005
      %v6049 = vmul.f32 %v5761, %v6007
      %v6050 = vmul.f32 %v5762, %v6009
      %v6051 = vmul.f32 %v5763, %v6011
      %v6052 = vmul.f32 %v5764, %v6013
      %v6053 = vmul.f32 %v5765, %v6015
      %v6054 = vmul.f32 %v5766, %v6017
      %v6055 = vmul.f32 %v5767, %v6019
      %v6056 = vmul.f32 %v5768, %v6021
      %v6057 = vmul.f32 %v5769, %v6023
      %v6058 = vmul.f32 %v5770, %v6025
      %v6059 = vmul.f32 %v5771, %v6027
      %v6060 = vmul.f32 %v5772, %v5997
      %v6061 = vmul.f32 %v5773, %v5999
      %v6062 = vmul.f32 %v5774, %v6001
      %v6063 = vmul.f32 %v5775, %v6003
      %v6064 = vmul.f32 %v5776, %v6005
      %v6065 = vmul.f32 %v5777, %v6007
      %v6066 = vmul.f32 %v5778, %v6009
      %v6067 = vmul.f32 %v5779, %v6011
      %v6068 = vmul.f32 %v5780, %v6013
      %v6069 = vmul.f32 %v5781, %v6015
      %v6070 = vmul.f32 %v5782, %v6017
      %v6071 = vmul.f32 %v5783, %v6019
      %v6072 = vmul.f32 %v5784, %v6021
      %v6073 = vmul.f32 %v5785, %v6023
      %v6074 = vmul.f32 %v5786, %v6025
      %v6075 = vmul.f32 %v5787, %v6027
      %v6076 = vmul.f32 %v5852, %v5997
      %v6077 = vmul.f32 %v5853, %v5999
      %v6078 = vmul.f32 %v5854, %v6001
      %v6079 = vmul.f32 %v5855, %v6003
      %v6080 = vmul.f32 %v5856, %v6005
      %v6081 = vmul.f32 %v5857, %v6007
      %v6082 = vmul.f32 %v5858, %v6009
      %v6083 = vmul.f32 %v5859, %v6011
      %v6084 = vmul.f32 %v5860, %v6013
      %v6085 = vmul.f32 %v5861, %v6015
      %v6086 = vmul.f32 %v5862, %v6017
      %v6087 = vmul.f32 %v5863, %v6019
      %v6088 = vmul.f32 %v5864, %v6021
      %v6089 = vmul.f32 %v5865, %v6023
      %v6090 = vmul.f32 %v5866, %v6025
      %v6091 = vmul.f32 %v5867, %v6027
      %v6092 = vmul.f32 %v5868, %v5997
      %v6093 = vmul.f32 %v5869, %v5999
      %v6094 = vmul.f32 %v5870, %v6001
      %v6095 = vmul.f32 %v5871, %v6003
      %v6096 = vmul.f32 %v5872, %v6005
      %v6097 = vmul.f32 %v5873, %v6007
      %v6098 = vmul.f32 %v5874, %v6009
      %v6099 = vmul.f32 %v5875, %v6011
      %v6100 = vmul.f32 %v5876, %v6013
      %v6101 = vmul.f32 %v5877, %v6015
      %v6102 = vmul.f32 %v5878, %v6017
      %v6103 = vmul.f32 %v5879, %v6019
      %v6104 = vmul.f32 %v5880, %v6021
      %v6105 = vmul.f32 %v5881, %v6023
      %v6106 = vmul.f32 %v5882, %v6025
      %v6107 = vmul.f32 %v5883, %v6027
      %6108 = vst.msk [vmem:[#allocation3] sm:$0xff] %vm1443, %v5932
      %6109 = vst.msk [vmem:[#allocation3 + $0x8] sm:$0xff] %vm1443, %v5933
      %6110 = vst.msk [vmem:[#allocation3 + $0x10] sm:$0xff] %vm1443, %v5934
      %6111 = vst.msk [vmem:[#allocation3 + $0x18] sm:$0xff] %vm1443, %v5935
      %6112 = vst.msk [vmem:[#allocation3 + $0x20] sm:$0xff] %vm1443, %v5936
      %6113 = vst.msk [vmem:[#allocation3 + $0x28] sm:$0xff] %vm1443, %v5937
      %6114 = vst.msk [vmem:[#allocation3 + $0x30] sm:$0xff] %vm1443, %v5938
      %6115 = vst.msk [vmem:[#allocation3 + $0x38] sm:$0xff] %vm1443, %v5939
      %6116 = vst.msk [vmem:[#allocation3 + $0x40] sm:$0xff] %vm1443, %v5940
      %6117 = vst.msk [vmem:[#allocation3 + $0x48] sm:$0xff] %vm1443, %v5941
      %6118 = vst.msk [vmem:[#allocation3 + $0x50] sm:$0xff] %vm1443, %v5942
      %6119 = vst.msk [vmem:[#allocation3 + $0x58] sm:$0xff] %vm1443, %v5943
      %6120 = vst.msk [vmem:[#allocation3 + $0x60] sm:$0xff] %vm1443, %v5944
      %6121 = vst.msk [vmem:[#allocation3 + $0x68] sm:$0xff] %vm1443, %v5945
      %6122 = vst.msk [vmem:[#allocation3 + $0x70] sm:$0xff] %vm1443, %v5946
      %6123 = vst.msk [vmem:[#allocation3 + $0x78] sm:$0xff] %vm1443, %v5947
      %6140 = vrot.lane.b32.xlu0 %v5948, 16
      %v6141 = vpop.permute.xlu0 %6140
      %6142 = vrot.lane.b32.xlu0 %v5949, 16
      %v6143 = vpop.permute.xlu0 %6142
      %6144 = vrot.lane.b32.xlu0 %v5950, 16
      %v6145 = vpop.permute.xlu0 %6144
      %6146 = vrot.lane.b32.xlu0 %v5951, 16
      %v6147 = vpop.permute.xlu0 %6146
      %6148 = vrot.lane.b32.xlu0 %v5952, 16
      %v6149 = vpop.permute.xlu0 %6148
      %6150 = vrot.lane.b32.xlu0 %v5953, 16
      %v6151 = vpop.permute.xlu0 %6150
      %6152 = vrot.lane.b32.xlu0 %v5954, 16
      %v6153 = vpop.permute.xlu0 %6152
      %6154 = vrot.lane.b32.xlu0 %v5955, 16
      %v6155 = vpop.permute.xlu0 %6154
      %6156 = vrot.lane.b32.xlu0 %v5956, 16
      %v6157 = vpop.permute.xlu0 %6156
      %6158 = vrot.lane.b32.xlu0 %v5957, 16
      %v6159 = vpop.permute.xlu0 %6158
      %6160 = vrot.lane.b32.xlu0 %v5958, 16
      %v6161 = vpop.permute.xlu0 %6160
      %6162 = vrot.lane.b32.xlu0 %v5959, 16
      %v6163 = vpop.permute.xlu0 %6162
      %6164 = vrot.lane.b32.xlu0 %v5960, 16
      %v6165 = vpop.permute.xlu0 %6164
      %6166 = vrot.lane.b32.xlu0 %v5961, 16
      %v6167 = vpop.permute.xlu0 %6166
      %6168 = vrot.lane.b32.xlu0 %v5962, 16
      %v6169 = vpop.permute.xlu0 %6168
      %6170 = vrot.lane.b32.xlu0 %v5963, 16
      %v6171 = vpop.permute.xlu0 %6170
      %6188 = vst.msk [vmem:[#allocation3] sm:$0xff] %vm1524, %v6141
      %6189 = vst.msk [vmem:[#allocation3 + $0x8] sm:$0xff] %vm1524, %v6143
      %6190 = vst.msk [vmem:[#allocation3 + $0x10] sm:$0xff] %vm1524, %v6145
      %6191 = vst.msk [vmem:[#allocation3 + $0x18] sm:$0xff] %vm1524, %v6147
      %6192 = vst.msk [vmem:[#allocation3 + $0x20] sm:$0xff] %vm1524, %v6149
      %6193 = vst.msk [vmem:[#allocation3 + $0x28] sm:$0xff] %vm1524, %v6151
      %6194 = vst.msk [vmem:[#allocation3 + $0x30] sm:$0xff] %vm1524, %v6153
      %6195 = vst.msk [vmem:[#allocation3 + $0x38] sm:$0xff] %vm1524, %v6155
      %6196 = vst.msk [vmem:[#allocation3 + $0x40] sm:$0xff] %vm1524, %v6157
      %6197 = vst.msk [vmem:[#allocation3 + $0x48] sm:$0xff] %vm1524, %v6159
      %6198 = vst.msk [vmem:[#allocation3 + $0x50] sm:$0xff] %vm1524, %v6161
      %6199 = vst.msk [vmem:[#allocation3 + $0x58] sm:$0xff] %vm1524, %v6163
      %6200 = vst.msk [vmem:[#allocation3 + $0x60] sm:$0xff] %vm1524, %v6165
      %6201 = vst.msk [vmem:[#allocation3 + $0x68] sm:$0xff] %vm1524, %v6167
      %6202 = vst.msk [vmem:[#allocation3 + $0x70] sm:$0xff] %vm1524, %v6169
      %6203 = vst.msk [vmem:[#allocation3 + $0x78] sm:$0xff] %vm1524, %v6171
      %6220 = vrot.lane.b32.xlu0 %v5964, 32
      %v6221 = vpop.permute.xlu0 %6220
      %6222 = vrot.lane.b32.xlu0 %v5965, 32
      %v6223 = vpop.permute.xlu0 %6222
      %6224 = vrot.lane.b32.xlu0 %v5966, 32
      %v6225 = vpop.permute.xlu0 %6224
      %6226 = vrot.lane.b32.xlu0 %v5967, 32
      %v6227 = vpop.permute.xlu0 %6226
      %6228 = vrot.lane.b32.xlu0 %v5968, 32
      %v6229 = vpop.permute.xlu0 %6228
      %6230 = vrot.lane.b32.xlu0 %v5969, 32
      %v6231 = vpop.permute.xlu0 %6230
      %6232 = vrot.lane.b32.xlu0 %v5970, 32
      %v6233 = vpop.permute.xlu0 %6232
      %6234 = vrot.lane.b32.xlu0 %v5971, 32
      %v6235 = vpop.permute.xlu0 %6234
      %6236 = vrot.lane.b32.xlu0 %v5972, 32
      %v6237 = vpop.permute.xlu0 %6236
      %6238 = vrot.lane.b32.xlu0 %v5973, 32
      %v6239 = vpop.permute.xlu0 %6238
      %6240 = vrot.lane.b32.xlu0 %v5974, 32
      %v6241 = vpop.permute.xlu0 %6240
      %6242 = vrot.lane.b32.xlu0 %v5975, 32
      %v6243 = vpop.permute.xlu0 %6242
      %6244 = vrot.lane.b32.xlu0 %v5976, 32
      %v6245 = vpop.permute.xlu0 %6244
      %6246 = vrot.lane.b32.xlu0 %v5977, 32
      %v6247 = vpop.permute.xlu0 %6246
      %6248 = vrot.lane.b32.xlu0 %v5978, 32
      %v6249 = vpop.permute.xlu0 %6248
      %6250 = vrot.lane.b32.xlu0 %v5979, 32
      %v6251 = vpop.permute.xlu0 %6250
      %6268 = vst.msk [vmem:[#allocation3] sm:$0xff] %vm1605, %v6221
      %6269 = vst.msk [vmem:[#allocation3 + $0x8] sm:$0xff] %vm1605, %v6223
      %6270 = vst.msk [vmem:[#allocation3 + $0x10] sm:$0xff] %vm1605, %v6225
      %6271 = vst.msk [vmem:[#allocation3 + $0x18] sm:$0xff] %vm1605, %v6227
      %6272 = vst.msk [vmem:[#allocation3 + $0x20] sm:$0xff] %vm1605, %v6229
      %6273 = vst.msk [vmem:[#allocation3 + $0x28] sm:$0xff] %vm1605, %v6231
      %6274 = vst.msk [vmem:[#allocation3 + $0x30] sm:$0xff] %vm1605, %v6233
      %6275 = vst.msk [vmem:[#allocation3 + $0x38] sm:$0xff] %vm1605, %v6235
      %6276 = vst.msk [vmem:[#allocation3 + $0x40] sm:$0xff] %vm1605, %v6237
      %6277 = vst.msk [vmem:[#allocation3 + $0x48] sm:$0xff] %vm1605, %v6239
      %6278 = vst.msk [vmem:[#allocation3 + $0x50] sm:$0xff] %vm1605, %v6241
      %6279 = vst.msk [vmem:[#allocation3 + $0x58] sm:$0xff] %vm1605, %v6243
      %6280 = vst.msk [vmem:[#allocation3 + $0x60] sm:$0xff] %vm1605, %v6245
      %6281 = vst.msk [vmem:[#allocation3 + $0x68] sm:$0xff] %vm1605, %v6247
      %6282 = vst.msk [vmem:[#allocation3 + $0x70] sm:$0xff] %vm1605, %v6249
      %6283 = vst.msk [vmem:[#allocation3 + $0x78] sm:$0xff] %vm1605, %v6251
      %6300 = vrot.lane.b32.xlu0 %v5980, 48
      %v6301 = vpop.permute.xlu0 %6300
      %6302 = vrot.lane.b32.xlu0 %v5981, 48
      %v6303 = vpop.permute.xlu0 %6302
      %6304 = vrot.lane.b32.xlu0 %v5982, 48
      %v6305 = vpop.permute.xlu0 %6304
      %6306 = vrot.lane.b32.xlu0 %v5983, 48
      %v6307 = vpop.permute.xlu0 %6306
      %6308 = vrot.lane.b32.xlu0 %v5984, 48
      %v6309 = vpop.permute.xlu0 %6308
      %6310 = vrot.lane.b32.xlu0 %v5985, 48
      %v6311 = vpop.permute.xlu0 %6310
      %6312 = vrot.lane.b32.xlu0 %v5986, 48
      %v6313 = vpop.permute.xlu0 %6312
      %6314 = vrot.lane.b32.xlu0 %v5987, 48
      %v6315 = vpop.permute.xlu0 %6314
      %6316 = vrot.lane.b32.xlu0 %v5988, 48
      %v6317 = vpop.permute.xlu0 %6316
      %6318 = vrot.lane.b32.xlu0 %v5989, 48
      %v6319 = vpop.permute.xlu0 %6318
      %6320 = vrot.lane.b32.xlu0 %v5990, 48
      %v6321 = vpop.permute.xlu0 %6320
      %6322 = vrot.lane.b32.xlu0 %v5991, 48
      %v6323 = vpop.permute.xlu0 %6322
      %6324 = vrot.lane.b32.xlu0 %v5992, 48
      %v6325 = vpop.permute.xlu0 %6324
      %6326 = vrot.lane.b32.xlu0 %v5993, 48
      %v6327 = vpop.permute.xlu0 %6326
      %6328 = vrot.lane.b32.xlu0 %v5994, 48
      %v6329 = vpop.permute.xlu0 %6328
      %6330 = vrot.lane.b32.xlu0 %v5995, 48
      %v6331 = vpop.permute.xlu0 %6330
      %6348 = vst.msk [vmem:[#allocation3] sm:$0xff] %vm1686, %v6301
      %6349 = vst.msk [vmem:[#allocation3 + $0x8] sm:$0xff] %vm1686, %v6303
      %6350 = vst.msk [vmem:[#allocation3 + $0x10] sm:$0xff] %vm1686, %v6305
      %6351 = vst.msk [vmem:[#allocation3 + $0x18] sm:$0xff] %vm1686, %v6307
      %6352 = vst.msk [vmem:[#allocation3 + $0x20] sm:$0xff] %vm1686, %v6309
      %6353 = vst.msk [vmem:[#allocation3 + $0x28] sm:$0xff] %vm1686, %v6311
      %6354 = vst.msk [vmem:[#allocation3 + $0x30] sm:$0xff] %vm1686, %v6313
      %6355 = vst.msk [vmem:[#allocation3 + $0x38] sm:$0xff] %vm1686, %v6315
      %6356 = vst.msk [vmem:[#allocation3 + $0x40] sm:$0xff] %vm1686, %v6317
      %6357 = vst.msk [vmem:[#allocation3 + $0x48] sm:$0xff] %vm1686, %v6319
      %6358 = vst.msk [vmem:[#allocation3 + $0x50] sm:$0xff] %vm1686, %v6321
      %6359 = vst.msk [vmem:[#allocation3 + $0x58] sm:$0xff] %vm1686, %v6323
      %6360 = vst.msk [vmem:[#allocation3 + $0x60] sm:$0xff] %vm1686, %v6325
      %6361 = vst.msk [vmem:[#allocation3 + $0x68] sm:$0xff] %vm1686, %v6327
      %6362 = vst.msk [vmem:[#allocation3 + $0x70] sm:$0xff] %vm1686, %v6329
      %6363 = vst.msk [vmem:[#allocation3 + $0x78] sm:$0xff] %vm1686, %v6331
      %6380 = vrot.lane.b32.xlu0 %v6044, 64
      %v6381 = vpop.permute.xlu0 %6380
      %6382 = vrot.lane.b32.xlu0 %v6045, 64
      %v6383 = vpop.permute.xlu0 %6382
      %6384 = vrot.lane.b32.xlu0 %v6046, 64
      %v6385 = vpop.permute.xlu0 %6384
      %6386 = vrot.lane.b32.xlu0 %v6047, 64
      %v6387 = vpop.permute.xlu0 %6386
      %6388 = vrot.lane.b32.xlu0 %v6048, 64
      %v6389 = vpop.permute.xlu0 %6388
      %6390 = vrot.lane.b32.xlu0 %v6049, 64
      %v6391 = vpop.permute.xlu0 %6390
      %6392 = vrot.lane.b32.xlu0 %v6050, 64
      %v6393 = vpop.permute.xlu0 %6392
      %6394 = vrot.lane.b32.xlu0 %v6051, 64
      %v6395 = vpop.permute.xlu0 %6394
      %6396 = vrot.lane.b32.xlu0 %v6052, 64
      %v6397 = vpop.permute.xlu0 %6396
      %6398 = vrot.lane.b32.xlu0 %v6053, 64
      %v6399 = vpop.permute.xlu0 %6398
      %6400 = vrot.lane.b32.xlu0 %v6054, 64
      %v6401 = vpop.permute.xlu0 %6400
      %6402 = vrot.lane.b32.xlu0 %v6055, 64
      %v6403 = vpop.permute.xlu0 %6402
      %6404 = vrot.lane.b32.xlu0 %v6056, 64
      %v6405 = vpop.permute.xlu0 %6404
      %6406 = vrot.lane.b32.xlu0 %v6057, 64
      %v6407 = vpop.permute.xlu0 %6406
      %6408 = vrot.lane.b32.xlu0 %v6058, 64
      %v6409 = vpop.permute.xlu0 %6408
      %6410 = vrot.lane.b32.xlu0 %v6059, 64
      %v6411 = vpop.permute.xlu0 %6410
      %6428 = vst.msk [vmem:[#allocation3] sm:$0xff] %vm1767, %v6381
      %6429 = vst.msk [vmem:[#allocation3 + $0x8] sm:$0xff] %vm1767, %v6383
      %6430 = vst.msk [vmem:[#allocation3 + $0x10] sm:$0xff] %vm1767, %v6385
      %6431 = vst.msk [vmem:[#allocation3 + $0x18] sm:$0xff] %vm1767, %v6387
      %6432 = vst.msk [vmem:[#allocation3 + $0x20] sm:$0xff] %vm1767, %v6389
      %6433 = vst.msk [vmem:[#allocation3 + $0x28] sm:$0xff] %vm1767, %v6391
      %6434 = vst.msk [vmem:[#allocation3 + $0x30] sm:$0xff] %vm1767, %v6393
      %6435 = vst.msk [vmem:[#allocation3 + $0x38] sm:$0xff] %vm1767, %v6395
      %6436 = vst.msk [vmem:[#allocation3 + $0x40] sm:$0xff] %vm1767, %v6397
      %6437 = vst.msk [vmem:[#allocation3 + $0x48] sm:$0xff] %vm1767, %v6399
      %6438 = vst.msk [vmem:[#allocation3 + $0x50] sm:$0xff] %vm1767, %v6401
      %6439 = vst.msk [vmem:[#allocation3 + $0x58] sm:$0xff] %vm1767, %v6403
      %6440 = vst.msk [vmem:[#allocation3 + $0x60] sm:$0xff] %vm1767, %v6405
      %6441 = vst.msk [vmem:[#allocation3 + $0x68] sm:$0xff] %vm1767, %v6407
      %6442 = vst.msk [vmem:[#allocation3 + $0x70] sm:$0xff] %vm1767, %v6409
      %6443 = vst.msk [vmem:[#allocation3 + $0x78] sm:$0xff] %vm1767, %v6411
      %6460 = vrot.lane.b32.xlu0 %v6060, 80
      %v6461 = vpop.permute.xlu0 %6460
      %6462 = vrot.lane.b32.xlu0 %v6061, 80
      %v6463 = vpop.permute.xlu0 %6462
      %6464 = vrot.lane.b32.xlu0 %v6062, 80
      %v6465 = vpop.permute.xlu0 %6464
      %6466 = vrot.lane.b32.xlu0 %v6063, 80
      %v6467 = vpop.permute.xlu0 %6466
      %6468 = vrot.lane.b32.xlu0 %v6064, 80
      %v6469 = vpop.permute.xlu0 %6468
      %6470 = vrot.lane.b32.xlu0 %v6065, 80
      %v6471 = vpop.permute.xlu0 %6470
      %6472 = vrot.lane.b32.xlu0 %v6066, 80
      %v6473 = vpop.permute.xlu0 %6472
      %6474 = vrot.lane.b32.xlu0 %v6067, 80
      %v6475 = vpop.permute.xlu0 %6474
      %6476 = vrot.lane.b32.xlu0 %v6068, 80
      %v6477 = vpop.permute.xlu0 %6476
      %6478 = vrot.lane.b32.xlu0 %v6069, 80
      %v6479 = vpop.permute.xlu0 %6478
      %6480 = vrot.lane.b32.xlu0 %v6070, 80
      %v6481 = vpop.permute.xlu0 %6480
      %6482 = vrot.lane.b32.xlu0 %v6071, 80
      %v6483 = vpop.permute.xlu0 %6482
      %6484 = vrot.lane.b32.xlu0 %v6072, 80
      %v6485 = vpop.permute.xlu0 %6484
      %6486 = vrot.lane.b32.xlu0 %v6073, 80
      %v6487 = vpop.permute.xlu0 %6486
      %6488 = vrot.lane.b32.xlu0 %v6074, 80
      %v6489 = vpop.permute.xlu0 %6488
      %6490 = vrot.lane.b32.xlu0 %v6075, 80
      %v6491 = vpop.permute.xlu0 %6490
      %6508 = vst.msk [vmem:[#allocation3] sm:$0xff] %vm1848, %v6461
      %6509 = vst.msk [vmem:[#allocation3 + $0x8] sm:$0xff] %vm1848, %v6463
      %6510 = vst.msk [vmem:[#allocation3 + $0x10] sm:$0xff] %vm1848, %v6465
      %6511 = vst.msk [vmem:[#allocation3 + $0x18] sm:$0xff] %vm1848, %v6467
      %6512 = vst.msk [vmem:[#allocation3 + $0x20] sm:$0xff] %vm1848, %v6469
      %6513 = vst.msk [vmem:[#allocation3 + $0x28] sm:$0xff] %vm1848, %v6471
      %6514 = vst.msk [vmem:[#allocation3 + $0x30] sm:$0xff] %vm1848, %v6473
      %6515 = vst.msk [vmem:[#allocation3 + $0x38] sm:$0xff] %vm1848, %v6475
      %6516 = vst.msk [vmem:[#allocation3 + $0x40] sm:$0xff] %vm1848, %v6477
      %6517 = vst.msk [vmem:[#allocation3 + $0x48] sm:$0xff] %vm1848, %v6479
      %6518 = vst.msk [vmem:[#allocation3 + $0x50] sm:$0xff] %vm1848, %v6481
      %6519 = vst.msk [vmem:[#allocation3 + $0x58] sm:$0xff] %vm1848, %v6483
      %6520 = vst.msk [vmem:[#allocation3 + $0x60] sm:$0xff] %vm1848, %v6485
      %6521 = vst.msk [vmem:[#allocation3 + $0x68] sm:$0xff] %vm1848, %v6487
      %6522 = vst.msk [vmem:[#allocation3 + $0x70] sm:$0xff] %vm1848, %v6489
      %6523 = vst.msk [vmem:[#allocation3 + $0x78] sm:$0xff] %vm1848, %v6491
      %6540 = vrot.lane.b32.xlu0 %v6076, 96
      %v6541 = vpop.permute.xlu0 %6540
      %6542 = vrot.lane.b32.xlu0 %v6077, 96
      %v6543 = vpop.permute.xlu0 %6542
      %6544 = vrot.lane.b32.xlu0 %v6078, 96
      %v6545 = vpop.permute.xlu0 %6544
      %6546 = vrot.lane.b32.xlu0 %v6079, 96
      %v6547 = vpop.permute.xlu0 %6546
      %6548 = vrot.lane.b32.xlu0 %v6080, 96
      %v6549 = vpop.permute.xlu0 %6548
      %6550 = vrot.lane.b32.xlu0 %v6081, 96
      %v6551 = vpop.permute.xlu0 %6550
      %6552 = vrot.lane.b32.xlu0 %v6082, 96
      %v6553 = vpop.permute.xlu0 %6552
      %6554 = vrot.lane.b32.xlu0 %v6083, 96
      %v6555 = vpop.permute.xlu0 %6554
      %6556 = vrot.lane.b32.xlu0 %v6084, 96
      %v6557 = vpop.permute.xlu0 %6556
      %6558 = vrot.lane.b32.xlu0 %v6085, 96
      %v6559 = vpop.permute.xlu0 %6558
      %6560 = vrot.lane.b32.xlu0 %v6086, 96
      %v6561 = vpop.permute.xlu0 %6560
      %6562 = vrot.lane.b32.xlu0 %v6087, 96
      %v6563 = vpop.permute.xlu0 %6562
      %6564 = vrot.lane.b32.xlu0 %v6088, 96
      %v6565 = vpop.permute.xlu0 %6564
      %6566 = vrot.lane.b32.xlu0 %v6089, 96
      %v6567 = vpop.permute.xlu0 %6566
      %6568 = vrot.lane.b32.xlu0 %v6090, 96
      %v6569 = vpop.permute.xlu0 %6568
      %6570 = vrot.lane.b32.xlu0 %v6091, 96
      %v6571 = vpop.permute.xlu0 %6570
      %6588 = vst.msk [vmem:[#allocation3] sm:$0xff] %vm1929, %v6541
      %6589 = vst.msk [vmem:[#allocation3 + $0x8] sm:$0xff] %vm1929, %v6543
      %6590 = vst.msk [vmem:[#allocation3 + $0x10] sm:$0xff] %vm1929, %v6545
      %6591 = vst.msk [vmem:[#allocation3 + $0x18] sm:$0xff] %vm1929, %v6547
      %6592 = vst.msk [vmem:[#allocation3 + $0x20] sm:$0xff] %vm1929, %v6549
      %6593 = vst.msk [vmem:[#allocation3 + $0x28] sm:$0xff] %vm1929, %v6551
      %6594 = vst.msk [vmem:[#allocation3 + $0x30] sm:$0xff] %vm1929, %v6553
      %6595 = vst.msk [vmem:[#allocation3 + $0x38] sm:$0xff] %vm1929, %v6555
      %6596 = vst.msk [vmem:[#allocation3 + $0x40] sm:$0xff] %vm1929, %v6557
      %6597 = vst.msk [vmem:[#allocation3 + $0x48] sm:$0xff] %vm1929, %v6559
      %6598 = vst.msk [vmem:[#allocation3 + $0x50] sm:$0xff] %vm1929, %v6561
      %6599 = vst.msk [vmem:[#allocation3 + $0x58] sm:$0xff] %vm1929, %v6563
      %6600 = vst.msk [vmem:[#allocation3 + $0x60] sm:$0xff] %vm1929, %v6565
      %6601 = vst.msk [vmem:[#allocation3 + $0x68] sm:$0xff] %vm1929, %v6567
      %6602 = vst.msk [vmem:[#allocation3 + $0x70] sm:$0xff] %vm1929, %v6569
      %6603 = vst.msk [vmem:[#allocation3 + $0x78] sm:$0xff] %vm1929, %v6571
      %6620 = vrot.lane.b32.xlu0 %v6092, 112
      %v6621 = vpop.permute.xlu0 %6620
      %6622 = vrot.lane.b32.xlu0 %v6093, 112
      %v6623 = vpop.permute.xlu0 %6622
      %6624 = vrot.lane.b32.xlu0 %v6094, 112
      %v6625 = vpop.permute.xlu0 %6624
      %6626 = vrot.lane.b32.xlu0 %v6095, 112
      %v6627 = vpop.permute.xlu0 %6626
      %6628 = vrot.lane.b32.xlu0 %v6096, 112
      %v6629 = vpop.permute.xlu0 %6628
      %6630 = vrot.lane.b32.xlu0 %v6097, 112
      %v6631 = vpop.permute.xlu0 %6630
      %6632 = vrot.lane.b32.xlu0 %v6098, 112
      %v6633 = vpop.permute.xlu0 %6632
      %6634 = vrot.lane.b32.xlu0 %v6099, 112
      %v6635 = vpop.permute.xlu0 %6634
      %6636 = vrot.lane.b32.xlu0 %v6100, 112
      %v6637 = vpop.permute.xlu0 %6636
      %6638 = vrot.lane.b32.xlu0 %v6101, 112
      %v6639 = vpop.permute.xlu0 %6638
      %6640 = vrot.lane.b32.xlu0 %v6102, 112
      %v6641 = vpop.permute.xlu0 %6640
      %6642 = vrot.lane.b32.xlu0 %v6103, 112
      %v6643 = vpop.permute.xlu0 %6642
      %6644 = vrot.lane.b32.xlu0 %v6104, 112
      %v6645 = vpop.permute.xlu0 %6644
      %6646 = vrot.lane.b32.xlu0 %v6105, 112
      %v6647 = vpop.permute.xlu0 %6646
      %6648 = vrot.lane.b32.xlu0 %v6106, 112
      %v6649 = vpop.permute.xlu0 %6648
      %6650 = vrot.lane.b32.xlu0 %v6107, 112
      %v6651 = vpop.permute.xlu0 %6650
      %6668 = vst.msk [vmem:[#allocation3] sm:$0xff] %vm2010, %v6621
      %6669 = vst.msk [vmem:[#allocation3 + $0x8] sm:$0xff] %vm2010, %v6623
      %6670 = vst.msk [vmem:[#allocation3 + $0x10] sm:$0xff] %vm2010, %v6625
      %6671 = vst.msk [vmem:[#allocation3 + $0x18] sm:$0xff] %vm2010, %v6627
      %6672 = vst.msk [vmem:[#allocation3 + $0x20] sm:$0xff] %vm2010, %v6629
      %6673 = vst.msk [vmem:[#allocation3 + $0x28] sm:$0xff] %vm2010, %v6631
      %6674 = vst.msk [vmem:[#allocation3 + $0x30] sm:$0xff] %vm2010, %v6633
      %6675 = vst.msk [vmem:[#allocation3 + $0x38] sm:$0xff] %vm2010, %v6635
      %6676 = vst.msk [vmem:[#allocation3 + $0x40] sm:$0xff] %vm2010, %v6637
      %6677 = vst.msk [vmem:[#allocation3 + $0x48] sm:$0xff] %vm2010, %v6639
      %6678 = vst.msk [vmem:[#allocation3 + $0x50] sm:$0xff] %vm2010, %v6641
      %6679 = vst.msk [vmem:[#allocation3 + $0x58] sm:$0xff] %vm2010, %v6643
      %6680 = vst.msk [vmem:[#allocation3 + $0x60] sm:$0xff] %vm2010, %v6645
      %6681 = vst.msk [vmem:[#allocation3 + $0x68] sm:$0xff] %vm2010, %v6647
      %6682 = vst.msk [vmem:[#allocation3 + $0x70] sm:$0xff] %vm2010, %v6649
      %6683 = vst.msk [vmem:[#allocation3 + $0x78] sm:$0xff] %vm2010, %v6651
      %6700 = vrot.lane.b32.xlu0 %v5932, 80
      %v6701 = vpop.permute.xlu0 %6700
      %6702 = vrot.lane.b32.xlu0 %v5933, 80
      %v6703 = vpop.permute.xlu0 %6702
      %6704 = vrot.lane.b32.xlu0 %v5934, 80
      %v6705 = vpop.permute.xlu0 %6704
      %6706 = vrot.lane.b32.xlu0 %v5935, 80
      %v6707 = vpop.permute.xlu0 %6706
      %6708 = vrot.lane.b32.xlu0 %v5936, 80
      %v6709 = vpop.permute.xlu0 %6708
      %6710 = vrot.lane.b32.xlu0 %v5937, 80
      %v6711 = vpop.permute.xlu0 %6710
      %6712 = vrot.lane.b32.xlu0 %v5938, 80
      %v6713 = vpop.permute.xlu0 %6712
      %6714 = vrot.lane.b32.xlu0 %v5939, 80
      %v6715 = vpop.permute.xlu0 %6714
      %6716 = vrot.lane.b32.xlu0 %v5940, 80
      %v6717 = vpop.permute.xlu0 %6716
      %6718 = vrot.lane.b32.xlu0 %v5941, 80
      %v6719 = vpop.permute.xlu0 %6718
      %6720 = vrot.lane.b32.xlu0 %v5942, 80
      %v6721 = vpop.permute.xlu0 %6720
      %6722 = vrot.lane.b32.xlu0 %v5943, 80
      %v6723 = vpop.permute.xlu0 %6722
      %6724 = vrot.lane.b32.xlu0 %v5944, 80
      %v6725 = vpop.permute.xlu0 %6724
      %6726 = vrot.lane.b32.xlu0 %v5945, 80
      %v6727 = vpop.permute.xlu0 %6726
      %6728 = vrot.lane.b32.xlu0 %v5946, 80
      %v6729 = vpop.permute.xlu0 %6728
      %6730 = vrot.lane.b32.xlu0 %v5947, 80
      %v6731 = vpop.permute.xlu0 %6730
      %6748 = vst.msk [vmem:[#allocation4] sm:$0xff] %vm1443, %v6701
      %6749 = vst.msk [vmem:[#allocation4 + $0x8] sm:$0xff] %vm1443, %v6703
      %6750 = vst.msk [vmem:[#allocation4 + $0x10] sm:$0xff] %vm1443, %v6705
      %6751 = vst.msk [vmem:[#allocation4 + $0x18] sm:$0xff] %vm1443, %v6707
      %6752 = vst.msk [vmem:[#allocation4 + $0x20] sm:$0xff] %vm1443, %v6709
      %6753 = vst.msk [vmem:[#allocation4 + $0x28] sm:$0xff] %vm1443, %v6711
      %6754 = vst.msk [vmem:[#allocation4 + $0x30] sm:$0xff] %vm1443, %v6713
      %6755 = vst.msk [vmem:[#allocation4 + $0x38] sm:$0xff] %vm1443, %v6715
      %6756 = vst.msk [vmem:[#allocation4 + $0x40] sm:$0xff] %vm1443, %v6717
      %6757 = vst.msk [vmem:[#allocation4 + $0x48] sm:$0xff] %vm1443, %v6719
      %6758 = vst.msk [vmem:[#allocation4 + $0x50] sm:$0xff] %vm1443, %v6721
      %6759 = vst.msk [vmem:[#allocation4 + $0x58] sm:$0xff] %vm1443, %v6723
      %6760 = vst.msk [vmem:[#allocation4 + $0x60] sm:$0xff] %vm1443, %v6725
      %6761 = vst.msk [vmem:[#allocation4 + $0x68] sm:$0xff] %vm1443, %v6727
      %6762 = vst.msk [vmem:[#allocation4 + $0x70] sm:$0xff] %vm1443, %v6729
      %6763 = vst.msk [vmem:[#allocation4 + $0x78] sm:$0xff] %vm1443, %v6731
      %6764 = vrot.lane.b32.xlu0 %v5948, 96
      %v6765 = vpop.permute.xlu0 %6764
      %6766 = vrot.lane.b32.xlu0 %v5949, 96
      %v6767 = vpop.permute.xlu0 %6766
      %6768 = vrot.lane.b32.xlu0 %v5950, 96
      %v6769 = vpop.permute.xlu0 %6768
      %6770 = vrot.lane.b32.xlu0 %v5951, 96
      %v6771 = vpop.permute.xlu0 %6770
      %6772 = vrot.lane.b32.xlu0 %v5952, 96
      %v6773 = vpop.permute.xlu0 %6772
      %6774 = vrot.lane.b32.xlu0 %v5953, 96
      %v6775 = vpop.permute.xlu0 %6774
      %6776 = vrot.lane.b32.xlu0 %v5954, 96
      %v6777 = vpop.permute.xlu0 %6776
      %6778 = vrot.lane.b32.xlu0 %v5955, 96
      %v6779 = vpop.permute.xlu0 %6778
      %6780 = vrot.lane.b32.xlu0 %v5956, 96
      %v6781 = vpop.permute.xlu0 %6780
      %6782 = vrot.lane.b32.xlu0 %v5957, 96
      %v6783 = vpop.permute.xlu0 %6782
      %6784 = vrot.lane.b32.xlu0 %v5958, 96
      %v6785 = vpop.permute.xlu0 %6784
      %6786 = vrot.lane.b32.xlu0 %v5959, 96
      %v6787 = vpop.permute.xlu0 %6786
      %6788 = vrot.lane.b32.xlu0 %v5960, 96
      %v6789 = vpop.permute.xlu0 %6788
      %6790 = vrot.lane.b32.xlu0 %v5961, 96
      %v6791 = vpop.permute.xlu0 %6790
      %6792 = vrot.lane.b32.xlu0 %v5962, 96
      %v6793 = vpop.permute.xlu0 %6792
      %6794 = vrot.lane.b32.xlu0 %v5963, 96
      %v6795 = vpop.permute.xlu0 %6794
      %6812 = vst.msk [vmem:[#allocation4] sm:$0xff] %vm1524, %v6765
      %6813 = vst.msk [vmem:[#allocation4 + $0x8] sm:$0xff] %vm1524, %v6767
      %6814 = vst.msk [vmem:[#allocation4 + $0x10] sm:$0xff] %vm1524, %v6769
      %6815 = vst.msk [vmem:[#allocation4 + $0x18] sm:$0xff] %vm1524, %v6771
      %6816 = vst.msk [vmem:[#allocation4 + $0x20] sm:$0xff] %vm1524, %v6773
      %6817 = vst.msk [vmem:[#allocation4 + $0x28] sm:$0xff] %vm1524, %v6775
      %6818 = vst.msk [vmem:[#allocation4 + $0x30] sm:$0xff] %vm1524, %v6777
      %6819 = vst.msk [vmem:[#allocation4 + $0x38] sm:$0xff] %vm1524, %v6779
      %6820 = vst.msk [vmem:[#allocation4 + $0x40] sm:$0xff] %vm1524, %v6781
      %6821 = vst.msk [vmem:[#allocation4 + $0x48] sm:$0xff] %vm1524, %v6783
      %6822 = vst.msk [vmem:[#allocation4 + $0x50] sm:$0xff] %vm1524, %v6785
      %6823 = vst.msk [vmem:[#allocation4 + $0x58] sm:$0xff] %vm1524, %v6787
      %6824 = vst.msk [vmem:[#allocation4 + $0x60] sm:$0xff] %vm1524, %v6789
      %6825 = vst.msk [vmem:[#allocation4 + $0x68] sm:$0xff] %vm1524, %v6791
      %6826 = vst.msk [vmem:[#allocation4 + $0x70] sm:$0xff] %vm1524, %v6793
      %6827 = vst.msk [vmem:[#allocation4 + $0x78] sm:$0xff] %vm1524, %v6795
      %6828 = vrot.lane.b32.xlu0 %v5964, 112
      %v6829 = vpop.permute.xlu0 %6828
      %6830 = vrot.lane.b32.xlu0 %v5965, 112
      %v6831 = vpop.permute.xlu0 %6830
      %6832 = vrot.lane.b32.xlu0 %v5966, 112
      %v6833 = vpop.permute.xlu0 %6832
      %6834 = vrot.lane.b32.xlu0 %v5967, 112
      %v6835 = vpop.permute.xlu0 %6834
      %6836 = vrot.lane.b32.xlu0 %v5968, 112
      %v6837 = vpop.permute.xlu0 %6836
      %6838 = vrot.lane.b32.xlu0 %v5969, 112
      %v6839 = vpop.permute.xlu0 %6838
      %6840 = vrot.lane.b32.xlu0 %v5970, 112
      %v6841 = vpop.permute.xlu0 %6840
      %6842 = vrot.lane.b32.xlu0 %v5971, 112
      %v6843 = vpop.permute.xlu0 %6842
      %6844 = vrot.lane.b32.xlu0 %v5972, 112
      %v6845 = vpop.permute.xlu0 %6844
      %6846 = vrot.lane.b32.xlu0 %v5973, 112
      %v6847 = vpop.permute.xlu0 %6846
      %6848 = vrot.lane.b32.xlu0 %v5974, 112
      %v6849 = vpop.permute.xlu0 %6848
      %6850 = vrot.lane.b32.xlu0 %v5975, 112
      %v6851 = vpop.permute.xlu0 %6850
      %6852 = vrot.lane.b32.xlu0 %v5976, 112
      %v6853 = vpop.permute.xlu0 %6852
      %6854 = vrot.lane.b32.xlu0 %v5977, 112
      %v6855 = vpop.permute.xlu0 %6854
      %6856 = vrot.lane.b32.xlu0 %v5978, 112
      %v6857 = vpop.permute.xlu0 %6856
      %6858 = vrot.lane.b32.xlu0 %v5979, 112
      %v6859 = vpop.permute.xlu0 %6858
      %6876 = vst.msk [vmem:[#allocation4] sm:$0xff] %vm1605, %v6829
      %6877 = vst.msk [vmem:[#allocation4 + $0x8] sm:$0xff] %vm1605, %v6831
      %6878 = vst.msk [vmem:[#allocation4 + $0x10] sm:$0xff] %vm1605, %v6833
      %6879 = vst.msk [vmem:[#allocation4 + $0x18] sm:$0xff] %vm1605, %v6835
      %6880 = vst.msk [vmem:[#allocation4 + $0x20] sm:$0xff] %vm1605, %v6837
      %6881 = vst.msk [vmem:[#allocation4 + $0x28] sm:$0xff] %vm1605, %v6839
      %6882 = vst.msk [vmem:[#allocation4 + $0x30] sm:$0xff] %vm1605, %v6841
      %6883 = vst.msk [vmem:[#allocation4 + $0x38] sm:$0xff] %vm1605, %v6843
      %6884 = vst.msk [vmem:[#allocation4 + $0x40] sm:$0xff] %vm1605, %v6845
      %6885 = vst.msk [vmem:[#allocation4 + $0x48] sm:$0xff] %vm1605, %v6847
      %6886 = vst.msk [vmem:[#allocation4 + $0x50] sm:$0xff] %vm1605, %v6849
      %6887 = vst.msk [vmem:[#allocation4 + $0x58] sm:$0xff] %vm1605, %v6851
      %6888 = vst.msk [vmem:[#allocation4 + $0x60] sm:$0xff] %vm1605, %v6853
      %6889 = vst.msk [vmem:[#allocation4 + $0x68] sm:$0xff] %vm1605, %v6855
      %6890 = vst.msk [vmem:[#allocation4 + $0x70] sm:$0xff] %vm1605, %v6857
      %6891 = vst.msk [vmem:[#allocation4 + $0x78] sm:$0xff] %vm1605, %v6859
      %6892 = vst.msk [vmem:[#allocation4] sm:$0xff] %vm1686, %v5980
      %6893 = vst.msk [vmem:[#allocation4 + $0x8] sm:$0xff] %vm1686, %v5981
      %6894 = vst.msk [vmem:[#allocation4 + $0x10] sm:$0xff] %vm1686, %v5982
      %6895 = vst.msk [vmem:[#allocation4 + $0x18] sm:$0xff] %vm1686, %v5983
      %6896 = vst.msk [vmem:[#allocation4 + $0x20] sm:$0xff] %vm1686, %v5984
      %6897 = vst.msk [vmem:[#allocation4 + $0x28] sm:$0xff] %vm1686, %v5985
      %6898 = vst.msk [vmem:[#allocation4 + $0x30] sm:$0xff] %vm1686, %v5986
      %6899 = vst.msk [vmem:[#allocation4 + $0x38] sm:$0xff] %vm1686, %v5987
      %6900 = vst.msk [vmem:[#allocation4 + $0x40] sm:$0xff] %vm1686, %v5988
      %6901 = vst.msk [vmem:[#allocation4 + $0x48] sm:$0xff] %vm1686, %v5989
      %6902 = vst.msk [vmem:[#allocation4 + $0x50] sm:$0xff] %vm1686, %v5990
      %6903 = vst.msk [vmem:[#allocation4 + $0x58] sm:$0xff] %vm1686, %v5991
      %6904 = vst.msk [vmem:[#allocation4 + $0x60] sm:$0xff] %vm1686, %v5992
      %6905 = vst.msk [vmem:[#allocation4 + $0x68] sm:$0xff] %vm1686, %v5993
      %6906 = vst.msk [vmem:[#allocation4 + $0x70] sm:$0xff] %vm1686, %v5994
      %6907 = vst.msk [vmem:[#allocation4 + $0x78] sm:$0xff] %vm1686, %v5995
      %6908 = vrot.lane.b32.xlu0 %v6044, 16
      %v6909 = vpop.permute.xlu0 %6908
      %6910 = vrot.lane.b32.xlu0 %v6045, 16
      %v6911 = vpop.permute.xlu0 %6910
      %6912 = vrot.lane.b32.xlu0 %v6046, 16
      %v6913 = vpop.permute.xlu0 %6912
      %6914 = vrot.lane.b32.xlu0 %v6047, 16
      %v6915 = vpop.permute.xlu0 %6914
      %6916 = vrot.lane.b32.xlu0 %v6048, 16
      %v6917 = vpop.permute.xlu0 %6916
      %6918 = vrot.lane.b32.xlu0 %v6049, 16
      %v6919 = vpop.permute.xlu0 %6918
      %6920 = vrot.lane.b32.xlu0 %v6050, 16
      %v6921 = vpop.permute.xlu0 %6920
      %6922 = vrot.lane.b32.xlu0 %v6051, 16
      %v6923 = vpop.permute.xlu0 %6922
      %6924 = vrot.lane.b32.xlu0 %v6052, 16
      %v6925 = vpop.permute.xlu0 %6924
      %6926 = vrot.lane.b32.xlu0 %v6053, 16
      %v6927 = vpop.permute.xlu0 %6926
      %6928 = vrot.lane.b32.xlu0 %v6054, 16
      %v6929 = vpop.permute.xlu0 %6928
      %6930 = vrot.lane.b32.xlu0 %v6055, 16
      %v6931 = vpop.permute.xlu0 %6930
      %6932 = vrot.lane.b32.xlu0 %v6056, 16
      %v6933 = vpop.permute.xlu0 %6932
      %6934 = vrot.lane.b32.xlu0 %v6057, 16
      %v6935 = vpop.permute.xlu0 %6934
      %6936 = vrot.lane.b32.xlu0 %v6058, 16
      %v6937 = vpop.permute.xlu0 %6936
      %6938 = vrot.lane.b32.xlu0 %v6059, 16
      %v6939 = vpop.permute.xlu0 %6938
      %6956 = vst.msk [vmem:[#allocation4] sm:$0xff] %vm1767, %v6909
      %6957 = vst.msk [vmem:[#allocation4 + $0x8] sm:$0xff] %vm1767, %v6911
      %6958 = vst.msk [vmem:[#allocation4 + $0x10] sm:$0xff] %vm1767, %v6913
      %6959 = vst.msk [vmem:[#allocation4 + $0x18] sm:$0xff] %vm1767, %v6915
      %6960 = vst.msk [vmem:[#allocation4 + $0x20] sm:$0xff] %vm1767, %v6917
      %6961 = vst.msk [vmem:[#allocation4 + $0x28] sm:$0xff] %vm1767, %v6919
      %6962 = vst.msk [vmem:[#allocation4 + $0x30] sm:$0xff] %vm1767, %v6921
      %6963 = vst.msk [vmem:[#allocation4 + $0x38] sm:$0xff] %vm1767, %v6923
      %6964 = vst.msk [vmem:[#allocation4 + $0x40] sm:$0xff] %vm1767, %v6925
      %6965 = vst.msk [vmem:[#allocation4 + $0x48] sm:$0xff] %vm1767, %v6927
      %6966 = vst.msk [vmem:[#allocation4 + $0x50] sm:$0xff] %vm1767, %v6929
      %6967 = vst.msk [vmem:[#allocation4 + $0x58] sm:$0xff] %vm1767, %v6931
      %6968 = vst.msk [vmem:[#allocation4 + $0x60] sm:$0xff] %vm1767, %v6933
      %6969 = vst.msk [vmem:[#allocation4 + $0x68] sm:$0xff] %vm1767, %v6935
      %6970 = vst.msk [vmem:[#allocation4 + $0x70] sm:$0xff] %vm1767, %v6937
      %6971 = vst.msk [vmem:[#allocation4 + $0x78] sm:$0xff] %vm1767, %v6939
      %6972 = vrot.lane.b32.xlu0 %v6060, 32
      %v6973 = vpop.permute.xlu0 %6972
      %6974 = vrot.lane.b32.xlu0 %v6061, 32
      %v6975 = vpop.permute.xlu0 %6974
      %6976 = vrot.lane.b32.xlu0 %v6062, 32
      %v6977 = vpop.permute.xlu0 %6976
      %6978 = vrot.lane.b32.xlu0 %v6063, 32
      %v6979 = vpop.permute.xlu0 %6978
      %6980 = vrot.lane.b32.xlu0 %v6064, 32
      %v6981 = vpop.permute.xlu0 %6980
      %6982 = vrot.lane.b32.xlu0 %v6065, 32
      %v6983 = vpop.permute.xlu0 %6982
      %6984 = vrot.lane.b32.xlu0 %v6066, 32
      %v6985 = vpop.permute.xlu0 %6984
      %6986 = vrot.lane.b32.xlu0 %v6067, 32
      %v6987 = vpop.permute.xlu0 %6986
      %6988 = vrot.lane.b32.xlu0 %v6068, 32
      %v6989 = vpop.permute.xlu0 %6988
      %6990 = vrot.lane.b32.xlu0 %v6069, 32
      %v6991 = vpop.permute.xlu0 %6990
      %6992 = vrot.lane.b32.xlu0 %v6070, 32
      %v6993 = vpop.permute.xlu0 %6992
      %6994 = vrot.lane.b32.xlu0 %v6071, 32
      %v6995 = vpop.permute.xlu0 %6994
      %6996 = vrot.lane.b32.xlu0 %v6072, 32
      %v6997 = vpop.permute.xlu0 %6996
      %6998 = vrot.lane.b32.xlu0 %v6073, 32
      %v6999 = vpop.permute.xlu0 %6998
      %7000 = vrot.lane.b32.xlu0 %v6074, 32
      %v7001 = vpop.permute.xlu0 %7000
      %7002 = vrot.lane.b32.xlu0 %v6075, 32
      %v7003 = vpop.permute.xlu0 %7002
      %7020 = vst.msk [vmem:[#allocation4] sm:$0xff] %vm1848, %v6973
      %7021 = vst.msk [vmem:[#allocation4 + $0x8] sm:$0xff] %vm1848, %v6975
      %7022 = vst.msk [vmem:[#allocation4 + $0x10] sm:$0xff] %vm1848, %v6977
      %7023 = vst.msk [vmem:[#allocation4 + $0x18] sm:$0xff] %vm1848, %v6979
      %7024 = vst.msk [vmem:[#allocation4 + $0x20] sm:$0xff] %vm1848, %v6981
      %7025 = vst.msk [vmem:[#allocation4 + $0x28] sm:$0xff] %vm1848, %v6983
      %7026 = vst.msk [vmem:[#allocation4 + $0x30] sm:$0xff] %vm1848, %v6985
      %7027 = vst.msk [vmem:[#allocation4 + $0x38] sm:$0xff] %vm1848, %v6987
      %7028 = vst.msk [vmem:[#allocation4 + $0x40] sm:$0xff] %vm1848, %v6989
      %7029 = vst.msk [vmem:[#allocation4 + $0x48] sm:$0xff] %vm1848, %v6991
      %7030 = vst.msk [vmem:[#allocation4 + $0x50] sm:$0xff] %vm1848, %v6993
      %7031 = vst.msk [vmem:[#allocation4 + $0x58] sm:$0xff] %vm1848, %v6995
      %7032 = vst.msk [vmem:[#allocation4 + $0x60] sm:$0xff] %vm1848, %v6997
      %7033 = vst.msk [vmem:[#allocation4 + $0x68] sm:$0xff] %vm1848, %v6999
      %7034 = vst.msk [vmem:[#allocation4 + $0x70] sm:$0xff] %vm1848, %v7001
      %7035 = vst.msk [vmem:[#allocation4 + $0x78] sm:$0xff] %vm1848, %v7003
      %7036 = vrot.lane.b32.xlu0 %v6076, 48
      %v7037 = vpop.permute.xlu0 %7036
      %7038 = vrot.lane.b32.xlu0 %v6077, 48
      %v7039 = vpop.permute.xlu0 %7038
      %7040 = vrot.lane.b32.xlu0 %v6078, 48
      %v7041 = vpop.permute.xlu0 %7040
      %7042 = vrot.lane.b32.xlu0 %v6079, 48
      %v7043 = vpop.permute.xlu0 %7042
      %7044 = vrot.lane.b32.xlu0 %v6080, 48
      %v7045 = vpop.permute.xlu0 %7044
      %7046 = vrot.lane.b32.xlu0 %v6081, 48
      %v7047 = vpop.permute.xlu0 %7046
      %7048 = vrot.lane.b32.xlu0 %v6082, 48
      %v7049 = vpop.permute.xlu0 %7048
      %7050 = vrot.lane.b32.xlu0 %v6083, 48
      %v7051 = vpop.permute.xlu0 %7050
      %7052 = vrot.lane.b32.xlu0 %v6084, 48
      %v7053 = vpop.permute.xlu0 %7052
      %7054 = vrot.lane.b32.xlu0 %v6085, 48
      %v7055 = vpop.permute.xlu0 %7054
      %7056 = vrot.lane.b32.xlu0 %v6086, 48
      %v7057 = vpop.permute.xlu0 %7056
      %7058 = vrot.lane.b32.xlu0 %v6087, 48
      %v7059 = vpop.permute.xlu0 %7058
      %7060 = vrot.lane.b32.xlu0 %v6088, 48
      %v7061 = vpop.permute.xlu0 %7060
      %7062 = vrot.lane.b32.xlu0 %v6089, 48
      %v7063 = vpop.permute.xlu0 %7062
      %7064 = vrot.lane.b32.xlu0 %v6090, 48
      %v7065 = vpop.permute.xlu0 %7064
      %7066 = vrot.lane.b32.xlu0 %v6091, 48
      %v7067 = vpop.permute.xlu0 %7066
      %7084 = vst.msk [vmem:[#allocation4] sm:$0xff] %vm1929, %v7037
      %7085 = vst.msk [vmem:[#allocation4 + $0x8] sm:$0xff] %vm1929, %v7039
      %7086 = vst.msk [vmem:[#allocation4 + $0x10] sm:$0xff] %vm1929, %v7041
      %7087 = vst.msk [vmem:[#allocation4 + $0x18] sm:$0xff] %vm1929, %v7043
      %7088 = vst.msk [vmem:[#allocation4 + $0x20] sm:$0xff] %vm1929, %v7045
      %7089 = vst.msk [vmem:[#allocation4 + $0x28] sm:$0xff] %vm1929, %v7047
      %7090 = vst.msk [vmem:[#allocation4 + $0x30] sm:$0xff] %vm1929, %v7049
      %7091 = vst.msk [vmem:[#allocation4 + $0x38] sm:$0xff] %vm1929, %v7051
      %7092 = vst.msk [vmem:[#allocation4 + $0x40] sm:$0xff] %vm1929, %v7053
      %7093 = vst.msk [vmem:[#allocation4 + $0x48] sm:$0xff] %vm1929, %v7055
      %7094 = vst.msk [vmem:[#allocation4 + $0x50] sm:$0xff] %vm1929, %v7057
      %7095 = vst.msk [vmem:[#allocation4 + $0x58] sm:$0xff] %vm1929, %v7059
      %7096 = vst.msk [vmem:[#allocation4 + $0x60] sm:$0xff] %vm1929, %v7061
      %7097 = vst.msk [vmem:[#allocation4 + $0x68] sm:$0xff] %vm1929, %v7063
      %7098 = vst.msk [vmem:[#allocation4 + $0x70] sm:$0xff] %vm1929, %v7065
      %7099 = vst.msk [vmem:[#allocation4 + $0x78] sm:$0xff] %vm1929, %v7067
      %7100 = vrot.lane.b32.xlu0 %v6092, 64
      %v7101 = vpop.permute.xlu0 %7100
      %7102 = vrot.lane.b32.xlu0 %v6093, 64
      %v7103 = vpop.permute.xlu0 %7102
      %7104 = vrot.lane.b32.xlu0 %v6094, 64
      %v7105 = vpop.permute.xlu0 %7104
      %7106 = vrot.lane.b32.xlu0 %v6095, 64
      %v7107 = vpop.permute.xlu0 %7106
      %7108 = vrot.lane.b32.xlu0 %v6096, 64
      %v7109 = vpop.permute.xlu0 %7108
      %7110 = vrot.lane.b32.xlu0 %v6097, 64
      %v7111 = vpop.permute.xlu0 %7110
      %7112 = vrot.lane.b32.xlu0 %v6098, 64
      %v7113 = vpop.permute.xlu0 %7112
      %7114 = vrot.lane.b32.xlu0 %v6099, 64
      %v7115 = vpop.permute.xlu0 %7114
      %7116 = vrot.lane.b32.xlu0 %v6100, 64
      %v7117 = vpop.permute.xlu0 %7116
      %7118 = vrot.lane.b32.xlu0 %v6101, 64
      %v7119 = vpop.permute.xlu0 %7118
      %7120 = vrot.lane.b32.xlu0 %v6102, 64
      %v7121 = vpop.permute.xlu0 %7120
      %7122 = vrot.lane.b32.xlu0 %v6103, 64
      %v7123 = vpop.permute.xlu0 %7122
      %7124 = vrot.lane.b32.xlu0 %v6104, 64
      %v7125 = vpop.permute.xlu0 %7124
      %7126 = vrot.lane.b32.xlu0 %v6105, 64
      %v7127 = vpop.permute.xlu0 %7126
      %7128 = vrot.lane.b32.xlu0 %v6106, 64
      %v7129 = vpop.permute.xlu0 %7128
      %7130 = vrot.lane.b32.xlu0 %v6107, 64
      %v7131 = vpop.permute.xlu0 %7130
      %7148 = vst.msk [vmem:[#allocation4] sm:$0xff] %vm2010, %v7101
      %7149 = vst.msk [vmem:[#allocation4 + $0x8] sm:$0xff] %vm2010, %v7103
      %7150 = vst.msk [vmem:[#allocation4 + $0x10] sm:$0xff] %vm2010, %v7105
      %7151 = vst.msk [vmem:[#allocation4 + $0x18] sm:$0xff] %vm2010, %v7107
      %7152 = vst.msk [vmem:[#allocation4 + $0x20] sm:$0xff] %vm2010, %v7109
      %7153 = vst.msk [vmem:[#allocation4 + $0x28] sm:$0xff] %vm2010, %v7111
      %7154 = vst.msk [vmem:[#allocation4 + $0x30] sm:$0xff] %vm2010, %v7113
      %7155 = vst.msk [vmem:[#allocation4 + $0x38] sm:$0xff] %vm2010, %v7115
      %7156 = vst.msk [vmem:[#allocation4 + $0x40] sm:$0xff] %vm2010, %v7117
      %7157 = vst.msk [vmem:[#allocation4 + $0x48] sm:$0xff] %vm2010, %v7119
      %7158 = vst.msk [vmem:[#allocation4 + $0x50] sm:$0xff] %vm2010, %v7121
      %7159 = vst.msk [vmem:[#allocation4 + $0x58] sm:$0xff] %vm2010, %v7123
      %7160 = vst.msk [vmem:[#allocation4 + $0x60] sm:$0xff] %vm2010, %v7125
      %7161 = vst.msk [vmem:[#allocation4 + $0x68] sm:$0xff] %vm2010, %v7127
      %7162 = vst.msk [vmem:[#allocation4 + $0x70] sm:$0xff] %vm2010, %v7129
      %7163 = vst.msk [vmem:[#allocation4 + $0x78] sm:$0xff] %vm2010, %v7131
      %v7164 = vld [vmem:[#allocation3] sm:$0xff]
      %v7165 = vld [vmem:[#allocation3 + $0x8] sm:$0xff]
      %v7166 = vld [vmem:[#allocation3 + $0x10] sm:$0xff]
      %v7167 = vld [vmem:[#allocation3 + $0x18] sm:$0xff]
      %v7168 = vld [vmem:[#allocation3 + $0x20] sm:$0xff]
      %v7169 = vld [vmem:[#allocation3 + $0x28] sm:$0xff]
      %v7170 = vld [vmem:[#allocation3 + $0x30] sm:$0xff]
      %v7171 = vld [vmem:[#allocation3 + $0x38] sm:$0xff]
      %v7172 = vld [vmem:[#allocation3 + $0x40] sm:$0xff]
      %v7173 = vld [vmem:[#allocation3 + $0x48] sm:$0xff]
      %v7174 = vld [vmem:[#allocation3 + $0x50] sm:$0xff]
      %v7175 = vld [vmem:[#allocation3 + $0x58] sm:$0xff]
      %v7176 = vld [vmem:[#allocation3 + $0x60] sm:$0xff]
      %v7177 = vld [vmem:[#allocation3 + $0x68] sm:$0xff]
      %v7178 = vld [vmem:[#allocation3 + $0x70] sm:$0xff]
      %v7179 = vld [vmem:[#allocation3 + $0x78] sm:$0xff]
      %s7180 = scalar_lea.vmem %s3, 256
      %v7181 = vld [vmem:[%s7180] sm:$0xff]
      %v7182 = vld [vmem:[%s7180 + $0x8] sm:$0xff]
      %v7183 = vld [vmem:[%s7180 + $0x10] sm:$0xff]
      %v7184 = vld [vmem:[%s7180 + $0x18] sm:$0xff]
      %v7185 = vld [vmem:[%s7180 + $0x20] sm:$0xff]
      %v7186 = vld [vmem:[%s7180 + $0x28] sm:$0xff]
      %v7187 = vld [vmem:[%s7180 + $0x30] sm:$0xff]
      %v7188 = vld [vmem:[%s7180 + $0x38] sm:$0xff]
      %v7189 = vld [vmem:[%s7180 + $0x40] sm:$0xff]
      %v7190 = vld [vmem:[%s7180 + $0x48] sm:$0xff]
      %v7191 = vld [vmem:[%s7180 + $0x50] sm:$0xff]
      %v7192 = vld [vmem:[%s7180 + $0x58] sm:$0xff]
      %v7193 = vld [vmem:[%s7180 + $0x60] sm:$0xff]
      %v7194 = vld [vmem:[%s7180 + $0x68] sm:$0xff]
      %v7195 = vld [vmem:[%s7180 + $0x70] sm:$0xff]
      %v7196 = vld [vmem:[%s7180 + $0x78] sm:$0xff]
      %7197 = vmatpush.msra.mxu0 %v7196
      %7198 = vmatpush.msra.mxu0 %v7195
      %7199 = vmatpush.msra.mxu0 %v7194
      %7200 = vmatpush.msra.mxu0 %v7193
      %7201 = vmatpush.msra.mxu0 %v7192
      %7202 = vmatpush.msra.mxu0 %v7191
      %7203 = vmatpush.msra.mxu0 %v7190
      %7204 = vmatpush.msra.mxu0 %v7189
      %7205 = vmatpush.msra.mxu0 %v7188
      %7206 = vmatpush.msra.mxu0 %v7187
      %7207 = vmatpush.msra.mxu0 %v7186
      %7208 = vmatpush.msra.mxu0 %v7185
      %7209 = vmatpush.msra.mxu0 %v7184
      %7210 = vmatpush.msra.mxu0 %v7183
      %7211 = vmatpush.msra.mxu0 %v7182
      %7212 = vmatpush.msra.mxu0 %v7181
      %7213 = vmatmul.f32.gmra.mxu0 %v7164
      %v7214 = vpop.f32.mrf.mxu0
      %v7215 = vadd.f32 0.0, %v7214
      %7216 = vmatmul.f32.gmra.mxu0 %v7165
      %v7217 = vpop.f32.mrf.mxu0
      %v7218 = vadd.f32 0.0, %v7217
      %7219 = vmatmul.f32.gmra.mxu0 %v7166
      %v7220 = vpop.f32.mrf.mxu0
      %v7221 = vadd.f32 0.0, %v7220
      %7222 = vmatmul.f32.gmra.mxu0 %v7167
      %v7223 = vpop.f32.mrf.mxu0
      %v7224 = vadd.f32 0.0, %v7223
      %7225 = vmatmul.f32.gmra.mxu0 %v7168
      %v7226 = vpop.f32.mrf.mxu0
      %v7227 = vadd.f32 0.0, %v7226
      %7228 = vmatmul.f32.gmra.mxu0 %v7169
      %v7229 = vpop.f32.mrf.mxu0
      %v7230 = vadd.f32 0.0, %v7229
      %7231 = vmatmul.f32.gmra.mxu0 %v7170
      %v7232 = vpop.f32.mrf.mxu0
      %v7233 = vadd.f32 0.0, %v7232
      %7234 = vmatmul.f32.gmra.mxu0 %v7171
      %v7235 = vpop.f32.mrf.mxu0
      %v7236 = vadd.f32 0.0, %v7235
      %7237 = vmatmul.f32.gmra.mxu0 %v7172
      %v7238 = vpop.f32.mrf.mxu0
      %v7239 = vadd.f32 0.0, %v7238
      %7240 = vmatmul.f32.gmra.mxu0 %v7173
      %v7241 = vpop.f32.mrf.mxu0
      %v7242 = vadd.f32 0.0, %v7241
      %7243 = vmatmul.f32.gmra.mxu0 %v7174
      %v7244 = vpop.f32.mrf.mxu0
      %v7245 = vadd.f32 0.0, %v7244
      %7246 = vmatmul.f32.gmra.mxu0 %v7175
      %v7247 = vpop.f32.mrf.mxu0
      %v7248 = vadd.f32 0.0, %v7247
      %7249 = vmatmul.f32.gmra.mxu0 %v7176
      %v7250 = vpop.f32.mrf.mxu0
      %v7251 = vadd.f32 0.0, %v7250
      %7252 = vmatmul.f32.gmra.mxu0 %v7177
      %v7253 = vpop.f32.mrf.mxu0
      %v7254 = vadd.f32 0.0, %v7253
      %7255 = vmatmul.f32.gmra.mxu0 %v7178
      %v7256 = vpop.f32.mrf.mxu0
      %v7257 = vadd.f32 0.0, %v7256
      %7258 = vmatmul.f32.gmra.mxu0 %v7179
      %v7259 = vpop.f32.mrf.mxu0
      %v7260 = vadd.f32 0.0, %v7259
      %7261 = vdwg.mxu0
      %v7262 = vld [vmem:[#allocation4] sm:$0xff]
      %v7263 = vld [vmem:[#allocation4 + $0x8] sm:$0xff]
      %v7264 = vld [vmem:[#allocation4 + $0x10] sm:$0xff]
      %v7265 = vld [vmem:[#allocation4 + $0x18] sm:$0xff]
      %v7266 = vld [vmem:[#allocation4 + $0x20] sm:$0xff]
      %v7267 = vld [vmem:[#allocation4 + $0x28] sm:$0xff]
      %v7268 = vld [vmem:[#allocation4 + $0x30] sm:$0xff]
      %v7269 = vld [vmem:[#allocation4 + $0x38] sm:$0xff]
      %v7270 = vld [vmem:[#allocation4 + $0x40] sm:$0xff]
      %v7271 = vld [vmem:[#allocation4 + $0x48] sm:$0xff]
      %v7272 = vld [vmem:[#allocation4 + $0x50] sm:$0xff]
      %v7273 = vld [vmem:[#allocation4 + $0x58] sm:$0xff]
      %v7274 = vld [vmem:[#allocation4 + $0x60] sm:$0xff]
      %v7275 = vld [vmem:[#allocation4 + $0x68] sm:$0xff]
      %v7276 = vld [vmem:[#allocation4 + $0x70] sm:$0xff]
      %v7277 = vld [vmem:[#allocation4 + $0x78] sm:$0xff]
      %v7278 = vmul.f32 %v7262, %v7215
      %v7279 = vmul.f32 %v7263, %v7218
      %v7280 = vmul.f32 %v7264, %v7221
      %v7281 = vmul.f32 %v7265, %v7224
      %v7282 = vmul.f32 %v7266, %v7227
      %v7283 = vmul.f32 %v7267, %v7230
      %v7284 = vmul.f32 %v7268, %v7233
      %v7285 = vmul.f32 %v7269, %v7236
      %v7286 = vmul.f32 %v7270, %v7239
      %v7287 = vmul.f32 %v7271, %v7242
      %v7288 = vmul.f32 %v7272, %v7245
      %v7289 = vmul.f32 %v7273, %v7248
      %v7290 = vmul.f32 %v7274, %v7251
      %v7291 = vmul.f32 %v7275, %v7254
      %v7292 = vmul.f32 %v7276, %v7257
      %v7293 = vmul.f32 %v7277, %v7260
      %7294 = vmatpush.msra.mxu0 %v412
      %7295 = vmatpush.msra.mxu0 %v411
      %7296 = vmatpush.msra.mxu0 %v410
      %7297 = vmatpush.msra.mxu0 %v409
      %7298 = vmatpush.msra.mxu0 %v408
      %7299 = vmatpush.msra.mxu0 %v407
      %7300 = vmatpush.msra.mxu0 %v406
      %7301 = vmatpush.msra.mxu0 %v405
      %7302 = vmatpush.msra.mxu0 %v404
      %7303 = vmatpush.msra.mxu0 %v403
      %7304 = vmatpush.msra.mxu0 %v402
      %7305 = vmatpush.msra.mxu0 %v401
      %7306 = vmatpush.msra.mxu0 %v400
      %7307 = vmatpush.msra.mxu0 %v399
      %7308 = vmatpush.msra.mxu0 %v398
      %7309 = vmatpush.msra.mxu0 %v397
      %7310 = vmatmul.f32.gmra.mxu0 %v7278
      %v7311 = vpop.f32.mrf.mxu0
      %v7312 = vadd.f32 0.0, %v7311
      %7313 = vmatmul.f32.gmra.mxu0 %v7279
      %v7314 = vpop.f32.mrf.mxu0
      %v7315 = vadd.f32 0.0, %v7314
      %7316 = vmatmul.f32.gmra.mxu0 %v7280
      %v7317 = vpop.f32.mrf.mxu0
      %v7318 = vadd.f32 0.0, %v7317
      %7319 = vmatmul.f32.gmra.mxu0 %v7281
      %v7320 = vpop.f32.mrf.mxu0
      %v7321 = vadd.f32 0.0, %v7320
      %7322 = vmatmul.f32.gmra.mxu0 %v7282
      %v7323 = vpop.f32.mrf.mxu0
      %v7324 = vadd.f32 0.0, %v7323
      %7325 = vmatmul.f32.gmra.mxu0 %v7283
      %v7326 = vpop.f32.mrf.mxu0
      %v7327 = vadd.f32 0.0, %v7326
      %7328 = vmatmul.f32.gmra.mxu0 %v7284
      %v7329 = vpop.f32.mrf.mxu0
      %v7330 = vadd.f32 0.0, %v7329
      %7331 = vmatmul.f32.gmra.mxu0 %v7285
      %v7332 = vpop.f32.mrf.mxu0
      %v7333 = vadd.f32 0.0, %v7332
      %7334 = vmatmul.f32.gmra.mxu0 %v7286
      %v7335 = vpop.f32.mrf.mxu0
      %v7336 = vadd.f32 0.0, %v7335
      %7337 = vmatmul.f32.gmra.mxu0 %v7287
      %v7338 = vpop.f32.mrf.mxu0
      %v7339 = vadd.f32 0.0, %v7338
      %7340 = vmatmul.f32.gmra.mxu0 %v7288
      %v7341 = vpop.f32.mrf.mxu0
      %v7342 = vadd.f32 0.0, %v7341
      %7343 = vmatmul.f32.gmra.mxu0 %v7289
      %v7344 = vpop.f32.mrf.mxu0
      %v7345 = vadd.f32 0.0, %v7344
      %7346 = vmatmul.f32.gmra.mxu0 %v7290
      %v7347 = vpop.f32.mrf.mxu0
      %v7348 = vadd.f32 0.0, %v7347
      %7349 = vmatmul.f32.gmra.mxu0 %v7291
      %v7350 = vpop.f32.mrf.mxu0
      %v7351 = vadd.f32 0.0, %v7350
      %7352 = vmatmul.f32.gmra.mxu0 %v7292
      %v7353 = vpop.f32.mrf.mxu0
      %v7354 = vadd.f32 0.0, %v7353
      %7355 = vmatmul.f32.gmra.mxu0 %v7293
      %v7356 = vpop.f32.mrf.mxu0
      %v7357 = vadd.f32 0.0, %v7356
      %7358 = vdwg.mxu0
      %7375 = vrot.lane.b32.xlu0 %v7312, 32
      %v7376 = vpop.permute.xlu0 %7375
      %7377 = vrot.lane.b32.xlu0 %v7315, 32
      %v7378 = vpop.permute.xlu0 %7377
      %7379 = vrot.lane.b32.xlu0 %v7318, 32
      %v7380 = vpop.permute.xlu0 %7379
      %7381 = vrot.lane.b32.xlu0 %v7321, 32
      %v7382 = vpop.permute.xlu0 %7381
      %7383 = vrot.lane.b32.xlu0 %v7324, 32
      %v7384 = vpop.permute.xlu0 %7383
      %7385 = vrot.lane.b32.xlu0 %v7327, 32
      %v7386 = vpop.permute.xlu0 %7385
      %7387 = vrot.lane.b32.xlu0 %v7330, 32
      %v7388 = vpop.permute.xlu0 %7387
      %7389 = vrot.lane.b32.xlu0 %v7333, 32
      %v7390 = vpop.permute.xlu0 %7389
      %7391 = vrot.lane.b32.xlu0 %v7336, 32
      %v7392 = vpop.permute.xlu0 %7391
      %7393 = vrot.lane.b32.xlu0 %v7339, 32
      %v7394 = vpop.permute.xlu0 %7393
      %7395 = vrot.lane.b32.xlu0 %v7342, 32
      %v7396 = vpop.permute.xlu0 %7395
      %7397 = vrot.lane.b32.xlu0 %v7345, 32
      %v7398 = vpop.permute.xlu0 %7397
      %7399 = vrot.lane.b32.xlu0 %v7348, 32
      %v7400 = vpop.permute.xlu0 %7399
      %7401 = vrot.lane.b32.xlu0 %v7351, 32
      %v7402 = vpop.permute.xlu0 %7401
      %7403 = vrot.lane.b32.xlu0 %v7354, 32
      %v7404 = vpop.permute.xlu0 %7403
      %7405 = vrot.lane.b32.xlu0 %v7357, 32
      %v7406 = vpop.permute.xlu0 %7405
      %7423 = vst.msk [vmem:[#allocation2] sm:$0xff] %vm1605, %v7376
      %7424 = vst.msk [vmem:[#allocation2 + $0x8] sm:$0xff] %vm1605, %v7378
      %7425 = vst.msk [vmem:[#allocation2 + $0x10] sm:$0xff] %vm1605, %v7380
      %7426 = vst.msk [vmem:[#allocation2 + $0x18] sm:$0xff] %vm1605, %v7382
      %7427 = vst.msk [vmem:[#allocation2 + $0x20] sm:$0xff] %vm1605, %v7384
      %7428 = vst.msk [vmem:[#allocation2 + $0x28] sm:$0xff] %vm1605, %v7386
      %7429 = vst.msk [vmem:[#allocation2 + $0x30] sm:$0xff] %vm1605, %v7388
      %7430 = vst.msk [vmem:[#allocation2 + $0x38] sm:$0xff] %vm1605, %v7390
      %7431 = vst.msk [vmem:[#allocation2 + $0x40] sm:$0xff] %vm1605, %v7392
      %7432 = vst.msk [vmem:[#allocation2 + $0x48] sm:$0xff] %vm1605, %v7394
      %7433 = vst.msk [vmem:[#allocation2 + $0x50] sm:$0xff] %vm1605, %v7396
      %7434 = vst.msk [vmem:[#allocation2 + $0x58] sm:$0xff] %vm1605, %v7398
      %7435 = vst.msk [vmem:[#allocation2 + $0x60] sm:$0xff] %vm1605, %v7400
      %7436 = vst.msk [vmem:[#allocation2 + $0x68] sm:$0xff] %vm1605, %v7402
      %7437 = vst.msk [vmem:[#allocation2 + $0x70] sm:$0xff] %vm1605, %v7404
      %7438 = vst.msk [vmem:[#allocation2 + $0x78] sm:$0xff] %vm1605, %v7406
      %v7439 = vld [vmem:[#allocation2] sm:$0xff]
      %v7440 = vld [vmem:[#allocation2 + $0x8] sm:$0xff]
      %v7441 = vld [vmem:[#allocation2 + $0x10] sm:$0xff]
      %v7442 = vld [vmem:[#allocation2 + $0x18] sm:$0xff]
      %v7443 = vld [vmem:[#allocation2 + $0x20] sm:$0xff]
      %v7444 = vld [vmem:[#allocation2 + $0x28] sm:$0xff]
      %v7445 = vld [vmem:[#allocation2 + $0x30] sm:$0xff]
      %v7446 = vld [vmem:[#allocation2 + $0x38] sm:$0xff]
      %v7447 = vld [vmem:[#allocation2 + $0x40] sm:$0xff]
      %v7448 = vld [vmem:[#allocation2 + $0x48] sm:$0xff]
      %v7449 = vld [vmem:[#allocation2 + $0x50] sm:$0xff]
      %v7450 = vld [vmem:[#allocation2 + $0x58] sm:$0xff]
      %v7451 = vld [vmem:[#allocation2 + $0x60] sm:$0xff]
      %v7452 = vld [vmem:[#allocation2 + $0x68] sm:$0xff]
      %v7453 = vld [vmem:[#allocation2 + $0x70] sm:$0xff]
      %v7454 = vld [vmem:[#allocation2 + $0x78] sm:$0xff]
      %v7455 = vpack.c.bf16 %v7440, %v7439
      %v7456 = vpack.c.bf16 %v7442, %v7441
      %v7457 = vpack.c.bf16 %v7444, %v7443
      %v7458 = vpack.c.bf16 %v7446, %v7445
      %v7459 = vpack.c.bf16 %v7448, %v7447
      %v7460 = vpack.c.bf16 %v7450, %v7449
      %v7461 = vpack.c.bf16 %v7452, %v7451
      %v7462 = vpack.c.bf16 %v7454, %v7453
      %s7463 = scalar_lea.vmem %s1, 132
      %v7464 = vld [vmem:[%s7463] sm:$0xf]
      %v7465 = vld [vmem:[%s7463 + $0x4] sm:$0xf]
      %v7466 = vld [vmem:[%s7463 + $0x8] sm:$0xf]
      %v7467 = vld [vmem:[%s7463 + $0xc] sm:$0xf]
      %v7468 = vld [vmem:[%s7463 + $0x10] sm:$0xf]
      %v7469 = vld [vmem:[%s7463 + $0x14] sm:$0xf]
      %v7470 = vld [vmem:[%s7463 + $0x18] sm:$0xf]
      %v7471 = vld [vmem:[%s7463 + $0x1c] sm:$0xf]
      %v7472 = vld [vmem:[%s7463 + $0x20] sm:$0xf]
      %v7473 = vld [vmem:[%s7463 + $0x24] sm:$0xf]
      %v7474 = vld [vmem:[%s7463 + $0x28] sm:$0xf]
      %v7486 = vunpack.c.l.b16 %v7464
      %v7487 = vunpack.c.l.b16 %v7465
      %v7488 = vunpack.c.l.b16 %v7466
      %v7489 = vunpack.c.l.b16 %v7467
      %v7490 = vunpack.c.l.b16 %v7468
      %v7491 = vunpack.c.l.b16 %v7469
      %v7492 = vunpack.c.l.b16 %v7470
      %v7493 = vunpack.c.l.b16 %v7471
      %v7494 = vunpack.c.l.b16 %v7472
      %v7495 = vunpack.c.l.b16 %v7473
      %v7496 = vunpack.c.l.b16 %v7474
      %v7497 = vpack.c.b16 %v7487, %v7486
      %v7498 = vpack.c.b16 %v7489, %v7488
      %v7499 = vpack.c.b16 %v7491, %v7490
      %v7500 = vpack.c.b16 %v7493, %v7492
      %v7501 = vpack.c.b16 %v7495, %v7494
      %v7502 = vpack.c.b16 %v7496, %v7496
      %v7509 = vsel %vm481, %v7455, 0
      %v7512 = vsel %vm481, %v7456, 0
      %v7515 = vsel %vm481, %v7457, 0
      %v7518 = vsel %vm481, %v7458, 0
      %v7521 = vsel %vm481, %v7459, 0
      %v7524 = vsel %vm481, %v7460, 0
      %v7527 = vsel %vm481, %v7461, 0
      %v7530 = vsel %vm481, %v7462, 0
      %v7533 = vsel %vm506, %v7502, 0
      %7535 = vmatpush.bf16.msra.mxu0 0
      %7536 = vmatpush.bf16.msra.mxu0 0
      %7537 = vmatpush.bf16.msra.mxu0 %v7533
      %7538 = vmatpush.bf16.msra.mxu0 %v7501
      %7539 = vmatpush.bf16.msra.mxu0 %v7500
      %7540 = vmatpush.bf16.msra.mxu0 %v7499
      %7541 = vmatpush.bf16.msra.mxu0 %v7498
      %7542 = vmatpush.bf16.msra.mxu0 %v7497
      %7543 = vmatmul.bf16.gmra.mxu0 %v7509
      %v7544 = vpop.f32.mrf.mxu0
      %v7545 = vadd.f32 0.0, %v7544
      %v7546 = vpop.f32.mrf.mxu0
      %v7547 = vadd.f32 0.0, %v7546
      %7548 = vmatmul.bf16.gmra.mxu0 %v7512
      %v7549 = vpop.f32.mrf.mxu0
      %v7550 = vadd.f32 0.0, %v7549
      %v7551 = vpop.f32.mrf.mxu0
      %v7552 = vadd.f32 0.0, %v7551
      %7553 = vmatmul.bf16.gmra.mxu0 %v7515
      %v7554 = vpop.f32.mrf.mxu0
      %v7555 = vadd.f32 0.0, %v7554
      %v7556 = vpop.f32.mrf.mxu0
      %v7557 = vadd.f32 0.0, %v7556
      %7558 = vmatmul.bf16.gmra.mxu0 %v7518
      %v7559 = vpop.f32.mrf.mxu0
      %v7560 = vadd.f32 0.0, %v7559
      %v7561 = vpop.f32.mrf.mxu0
      %v7562 = vadd.f32 0.0, %v7561
      %7563 = vmatmul.bf16.gmra.mxu0 %v7521
      %v7564 = vpop.f32.mrf.mxu0
      %v7565 = vadd.f32 0.0, %v7564
      %v7566 = vpop.f32.mrf.mxu0
      %v7567 = vadd.f32 0.0, %v7566
      %7568 = vmatmul.bf16.gmra.mxu0 %v7524
      %v7569 = vpop.f32.mrf.mxu0
      %v7570 = vadd.f32 0.0, %v7569
      %v7571 = vpop.f32.mrf.mxu0
      %v7572 = vadd.f32 0.0, %v7571
      %7573 = vmatmul.bf16.gmra.mxu0 %v7527
      %v7574 = vpop.f32.mrf.mxu0
      %v7575 = vadd.f32 0.0, %v7574
      %v7576 = vpop.f32.mrf.mxu0
      %v7577 = vadd.f32 0.0, %v7576
      %7578 = vmatmul.bf16.gmra.mxu0 %v7530
      %v7579 = vpop.f32.mrf.mxu0
      %v7580 = vadd.f32 0.0, %v7579
      %v7581 = vpop.f32.mrf.mxu0
      %v7582 = vadd.f32 0.0, %v7581
      %7583 = vdwg.mxu0
      %s7584 = scalar_lea.vmem %s2, 3
      %v7585 = vld [vmem:[%s7584] sm:$0x1]
      %v7587 = vperm.slane %v7585, 0
      %v7589 = vsub.f32 %v7545, %v7587
      %v7590 = vsub.f32 %v7547, %v7587
      %v7591 = vsub.f32 %v7550, %v7587
      %v7592 = vsub.f32 %v7552, %v7587
      %v7593 = vsub.f32 %v7555, %v7587
      %v7594 = vsub.f32 %v7557, %v7587
      %v7595 = vsub.f32 %v7560, %v7587
      %v7596 = vsub.f32 %v7562, %v7587
      %v7597 = vsub.f32 %v7565, %v7587
      %v7598 = vsub.f32 %v7567, %v7587
      %v7599 = vsub.f32 %v7570, %v7587
      %v7600 = vsub.f32 %v7572, %v7587
      %v7601 = vsub.f32 %v7575, %v7587
      %v7602 = vsub.f32 %v7577, %v7587
      %v7603 = vsub.f32 %v7580, %v7587
      %v7604 = vsub.f32 %v7582, %v7587
      %v7605 = vand.u32 2147483647, %v7589
      %v7606 = vand.u32 2147483647, %v7590
      %v7607 = vand.u32 2147483647, %v7591
      %v7608 = vand.u32 2147483647, %v7592
      %v7609 = vand.u32 2147483647, %v7593
      %v7610 = vand.u32 2147483647, %v7594
      %v7611 = vand.u32 2147483647, %v7595
      %v7612 = vand.u32 2147483647, %v7596
      %v7613 = vand.u32 2147483647, %v7597
      %v7614 = vand.u32 2147483647, %v7598
      %v7615 = vand.u32 2147483647, %v7599
      %v7616 = vand.u32 2147483647, %v7600
      %v7617 = vand.u32 2147483647, %v7601
      %v7618 = vand.u32 2147483647, %v7602
      %v7619 = vand.u32 2147483647, %v7603
      %v7620 = vand.u32 2147483647, %v7604
      %vm7621 = vcmp.ge.f32.partialorder %v7589, 0.0
      %vm7622 = vcmp.ge.f32.partialorder %v7590, 0.0
      %vm7623 = vcmp.ge.f32.partialorder %v7591, 0.0
      %vm7624 = vcmp.ge.f32.partialorder %v7592, 0.0
      %vm7625 = vcmp.ge.f32.partialorder %v7593, 0.0
      %vm7626 = vcmp.ge.f32.partialorder %v7594, 0.0
      %vm7627 = vcmp.ge.f32.partialorder %v7595, 0.0
      %vm7628 = vcmp.ge.f32.partialorder %v7596, 0.0
      %vm7629 = vcmp.ge.f32.partialorder %v7597, 0.0
      %vm7630 = vcmp.ge.f32.partialorder %v7598, 0.0
      %vm7631 = vcmp.ge.f32.partialorder %v7599, 0.0
      %vm7632 = vcmp.ge.f32.partialorder %v7600, 0.0
      %vm7633 = vcmp.ge.f32.partialorder %v7601, 0.0
      %vm7634 = vcmp.ge.f32.partialorder %v7602, 0.0
      %vm7635 = vcmp.ge.f32.partialorder %v7603, 0.0
      %vm7636 = vcmp.ge.f32.partialorder %v7604, 0.0
      %v7637 = vmul.f32 %v7605, %v7605
      %v7638 = vmul.f32 %v7606, %v7606
      %v7639 = vmul.f32 %v7607, %v7607
      %v7640 = vmul.f32 %v7608, %v7608
      %v7641 = vmul.f32 %v7609, %v7609
      %v7642 = vmul.f32 %v7610, %v7610
      %v7643 = vmul.f32 %v7611, %v7611
      %v7644 = vmul.f32 %v7612, %v7612
      %v7645 = vmul.f32 %v7613, %v7613
      %v7646 = vmul.f32 %v7614, %v7614
      %v7647 = vmul.f32 %v7615, %v7615
      %v7648 = vmul.f32 %v7616, %v7616
      %v7649 = vmul.f32 %v7617, %v7617
      %v7650 = vmul.f32 %v7618, %v7618
      %v7651 = vmul.f32 %v7619, %v7619
      %v7652 = vmul.f32 %v7620, %v7620
      %v7653 = vsub.f32 8.0, %v7637
      %v7654 = vsub.f32 8.0, %v7638
      %v7655 = vsub.f32 8.0, %v7639
      %v7656 = vsub.f32 8.0, %v7640
      %v7657 = vsub.f32 8.0, %v7641
      %v7658 = vsub.f32 8.0, %v7642
      %v7659 = vsub.f32 8.0, %v7643
      %v7660 = vsub.f32 8.0, %v7644
      %v7661 = vsub.f32 8.0, %v7645
      %v7662 = vsub.f32 8.0, %v7646
      %v7663 = vsub.f32 8.0, %v7647
      %v7664 = vsub.f32 8.0, %v7648
      %v7665 = vsub.f32 8.0, %v7649
      %v7666 = vsub.f32 8.0, %v7650
      %v7667 = vsub.f32 8.0, %v7651
      %v7668 = vsub.f32 8.0, %v7652
      %v7669 = vmax.f32 %v7653, 0.0
      %v7670 = vmax.f32 %v7654, 0.0
      %v7671 = vmax.f32 %v7655, 0.0
      %v7672 = vmax.f32 %v7656, 0.0
      %v7673 = vmax.f32 %v7657, 0.0
      %v7674 = vmax.f32 %v7658, 0.0
      %v7675 = vmax.f32 %v7659, 0.0
      %v7676 = vmax.f32 %v7660, 0.0
      %v7677 = vmax.f32 %v7661, 0.0
      %v7678 = vmax.f32 %v7662, 0.0
      %v7679 = vmax.f32 %v7663, 0.0
      %v7680 = vmax.f32 %v7664, 0.0
      %v7681 = vmax.f32 %v7665, 0.0
      %v7682 = vmax.f32 %v7666, 0.0
      %v7683 = vmax.f32 %v7667, 0.0
      %v7684 = vmax.f32 %v7668, 0.0
      %v7685 = vrsqrt.pop %v7669
      %v7686 = vmul.f32 %v7685, %v7669
      %v7687 = vmul.f32 %v7686, %v7685
      %v7688 = vmul.f32 0.5, %v7687
      %v7689 = vsub.f32 1.5, %v7688
      %v7690 = vmul.f32 %v7685, %v7689
      %v7691 = vmul.f32 %v7669, %v7690
      %vm7692 = vcmp.eq.f32.partialorder %v7669, inf
      %v7693 = vsel %vm7692, %v7669, %v7691
      %vm7694 = vcmp.eq.f32.partialorder %v7669, 0.0
      %v7695 = vand.u32 %v7669, 2147483648
      %v7696 = vsel %vm7694, %v7695, %v7693
      %v7697 = vrsqrt.pop %v7670
      %v7698 = vmul.f32 %v7697, %v7670
      %v7699 = vmul.f32 %v7698, %v7697
      %v7700 = vmul.f32 0.5, %v7699
      %v7701 = vsub.f32 1.5, %v7700
      %v7702 = vmul.f32 %v7697, %v7701
      %v7703 = vmul.f32 %v7670, %v7702
      %vm7704 = vcmp.eq.f32.partialorder %v7670, inf
      %v7705 = vsel %vm7704, %v7670, %v7703
      %vm7706 = vcmp.eq.f32.partialorder %v7670, 0.0
      %v7707 = vand.u32 %v7670, 2147483648
      %v7708 = vsel %vm7706, %v7707, %v7705
      %v7709 = vrsqrt.pop %v7671
      %v7710 = vmul.f32 %v7709, %v7671
      %v7711 = vmul.f32 %v7710, %v7709
      %v7712 = vmul.f32 0.5, %v7711
      %v7713 = vsub.f32 1.5, %v7712
      %v7714 = vmul.f32 %v7709, %v7713
      %v7715 = vmul.f32 %v7671, %v7714
      %vm7716 = vcmp.eq.f32.partialorder %v7671, inf
      %v7717 = vsel %vm7716, %v7671, %v7715
      %vm7718 = vcmp.eq.f32.partialorder %v7671, 0.0
      %v7719 = vand.u32 %v7671, 2147483648
      %v7720 = vsel %vm7718, %v7719, %v7717
      %v7721 = vrsqrt.pop %v7672
      %v7722 = vmul.f32 %v7721, %v7672
      %v7723 = vmul.f32 %v7722, %v7721
      %v7724 = vmul.f32 0.5, %v7723
      %v7725 = vsub.f32 1.5, %v7724
      %v7726 = vmul.f32 %v7721, %v7725
      %v7727 = vmul.f32 %v7672, %v7726
      %vm7728 = vcmp.eq.f32.partialorder %v7672, inf
      %v7729 = vsel %vm7728, %v7672, %v7727
      %vm7730 = vcmp.eq.f32.partialorder %v7672, 0.0
      %v7731 = vand.u32 %v7672, 2147483648
      %v7732 = vsel %vm7730, %v7731, %v7729
      %v7733 = vrsqrt.pop %v7673
      %v7734 = vmul.f32 %v7733, %v7673
      %v7735 = vmul.f32 %v7734, %v7733
      %v7736 = vmul.f32 0.5, %v7735
      %v7737 = vsub.f32 1.5, %v7736
      %v7738 = vmul.f32 %v7733, %v7737
      %v7739 = vmul.f32 %v7673, %v7738
      %vm7740 = vcmp.eq.f32.partialorder %v7673, inf
      %v7741 = vsel %vm7740, %v7673, %v7739
      %vm7742 = vcmp.eq.f32.partialorder %v7673, 0.0
      %v7743 = vand.u32 %v7673, 2147483648
      %v7744 = vsel %vm7742, %v7743, %v7741
      %v7745 = vrsqrt.pop %v7674
      %v7746 = vmul.f32 %v7745, %v7674
      %v7747 = vmul.f32 %v7746, %v7745
      %v7748 = vmul.f32 0.5, %v7747
      %v7749 = vsub.f32 1.5, %v7748
      %v7750 = vmul.f32 %v7745, %v7749
      %v7751 = vmul.f32 %v7674, %v7750
      %vm7752 = vcmp.eq.f32.partialorder %v7674, inf
      %v7753 = vsel %vm7752, %v7674, %v7751
      %vm7754 = vcmp.eq.f32.partialorder %v7674, 0.0
      %v7755 = vand.u32 %v7674, 2147483648
      %v7756 = vsel %vm7754, %v7755, %v7753
      %v7757 = vrsqrt.pop %v7675
      %v7758 = vmul.f32 %v7757, %v7675
      %v7759 = vmul.f32 %v7758, %v7757
      %v7760 = vmul.f32 0.5, %v7759
      %v7761 = vsub.f32 1.5, %v7760
      %v7762 = vmul.f32 %v7757, %v7761
      %v7763 = vmul.f32 %v7675, %v7762
      %vm7764 = vcmp.eq.f32.partialorder %v7675, inf
      %v7765 = vsel %vm7764, %v7675, %v7763
      %vm7766 = vcmp.eq.f32.partialorder %v7675, 0.0
      %v7767 = vand.u32 %v7675, 2147483648
      %v7768 = vsel %vm7766, %v7767, %v7765
      %v7769 = vrsqrt.pop %v7676
      %v7770 = vmul.f32 %v7769, %v7676
      %v7771 = vmul.f32 %v7770, %v7769
      %v7772 = vmul.f32 0.5, %v7771
      %v7773 = vsub.f32 1.5, %v7772
      %v7774 = vmul.f32 %v7769, %v7773
      %v7775 = vmul.f32 %v7676, %v7774
      %vm7776 = vcmp.eq.f32.partialorder %v7676, inf
      %v7777 = vsel %vm7776, %v7676, %v7775
      %vm7778 = vcmp.eq.f32.partialorder %v7676, 0.0
      %v7779 = vand.u32 %v7676, 2147483648
      %v7780 = vsel %vm7778, %v7779, %v7777
      %v7781 = vrsqrt.pop %v7677
      %v7782 = vmul.f32 %v7781, %v7677
      %v7783 = vmul.f32 %v7782, %v7781
      %v7784 = vmul.f32 0.5, %v7783
      %v7785 = vsub.f32 1.5, %v7784
      %v7786 = vmul.f32 %v7781, %v7785
      %v7787 = vmul.f32 %v7677, %v7786
      %vm7788 = vcmp.eq.f32.partialorder %v7677, inf
      %v7789 = vsel %vm7788, %v7677, %v7787
      %vm7790 = vcmp.eq.f32.partialorder %v7677, 0.0
      %v7791 = vand.u32 %v7677, 2147483648
      %v7792 = vsel %vm7790, %v7791, %v7789
      %v7793 = vrsqrt.pop %v7678
      %v7794 = vmul.f32 %v7793, %v7678
      %v7795 = vmul.f32 %v7794, %v7793
      %v7796 = vmul.f32 0.5, %v7795
      %v7797 = vsub.f32 1.5, %v7796
      %v7798 = vmul.f32 %v7793, %v7797
      %v7799 = vmul.f32 %v7678, %v7798
      %vm7800 = vcmp.eq.f32.partialorder %v7678, inf
      %v7801 = vsel %vm7800, %v7678, %v7799
      %vm7802 = vcmp.eq.f32.partialorder %v7678, 0.0
      %v7803 = vand.u32 %v7678, 2147483648
      %v7804 = vsel %vm7802, %v7803, %v7801
      %v7805 = vrsqrt.pop %v7679
      %v7806 = vmul.f32 %v7805, %v7679
      %v7807 = vmul.f32 %v7806, %v7805
      %v7808 = vmul.f32 0.5, %v7807
      %v7809 = vsub.f32 1.5, %v7808
      %v7810 = vmul.f32 %v7805, %v7809
      %v7811 = vmul.f32 %v7679, %v7810
      %vm7812 = vcmp.eq.f32.partialorder %v7679, inf
      %v7813 = vsel %vm7812, %v7679, %v7811
      %vm7814 = vcmp.eq.f32.partialorder %v7679, 0.0
      %v7815 = vand.u32 %v7679, 2147483648
      %v7816 = vsel %vm7814, %v7815, %v7813
      %v7817 = vrsqrt.pop %v7680
      %v7818 = vmul.f32 %v7817, %v7680
      %v7819 = vmul.f32 %v7818, %v7817
      %v7820 = vmul.f32 0.5, %v7819
      %v7821 = vsub.f32 1.5, %v7820
      %v7822 = vmul.f32 %v7817, %v7821
      %v7823 = vmul.f32 %v7680, %v7822
      %vm7824 = vcmp.eq.f32.partialorder %v7680, inf
      %v7825 = vsel %vm7824, %v7680, %v7823
      %vm7826 = vcmp.eq.f32.partialorder %v7680, 0.0
      %v7827 = vand.u32 %v7680, 2147483648
      %v7828 = vsel %vm7826, %v7827, %v7825
      %v7829 = vrsqrt.pop %v7681
      %v7830 = vmul.f32 %v7829, %v7681
      %v7831 = vmul.f32 %v7830, %v7829
      %v7832 = vmul.f32 0.5, %v7831
      %v7833 = vsub.f32 1.5, %v7832
      %v7834 = vmul.f32 %v7829, %v7833
      %v7835 = vmul.f32 %v7681, %v7834
      %vm7836 = vcmp.eq.f32.partialorder %v7681, inf
      %v7837 = vsel %vm7836, %v7681, %v7835
      %vm7838 = vcmp.eq.f32.partialorder %v7681, 0.0
      %v7839 = vand.u32 %v7681, 2147483648
      %v7840 = vsel %vm7838, %v7839, %v7837
      %v7841 = vrsqrt.pop %v7682
      %v7842 = vmul.f32 %v7841, %v7682
      %v7843 = vmul.f32 %v7842, %v7841
      %v7844 = vmul.f32 0.5, %v7843
      %v7845 = vsub.f32 1.5, %v7844
      %v7846 = vmul.f32 %v7841, %v7845
      %v7847 = vmul.f32 %v7682, %v7846
      %vm7848 = vcmp.eq.f32.partialorder %v7682, inf
      %v7849 = vsel %vm7848, %v7682, %v7847
      %vm7850 = vcmp.eq.f32.partialorder %v7682, 0.0
      %v7851 = vand.u32 %v7682, 2147483648
      %v7852 = vsel %vm7850, %v7851, %v7849
      %v7853 = vrsqrt.pop %v7683
      %v7854 = vmul.f32 %v7853, %v7683
      %v7855 = vmul.f32 %v7854, %v7853
      %v7856 = vmul.f32 0.5, %v7855
      %v7857 = vsub.f32 1.5, %v7856
      %v7858 = vmul.f32 %v7853, %v7857
      %v7859 = vmul.f32 %v7683, %v7858
      %vm7860 = vcmp.eq.f32.partialorder %v7683, inf
      %v7861 = vsel %vm7860, %v7683, %v7859
      %vm7862 = vcmp.eq.f32.partialorder %v7683, 0.0
      %v7863 = vand.u32 %v7683, 2147483648
      %v7864 = vsel %vm7862, %v7863, %v7861
      %v7865 = vrsqrt.pop %v7684
      %v7866 = vmul.f32 %v7865, %v7684
      %v7867 = vmul.f32 %v7866, %v7865
      %v7868 = vmul.f32 0.5, %v7867
      %v7869 = vsub.f32 1.5, %v7868
      %v7870 = vmul.f32 %v7865, %v7869
      %v7871 = vmul.f32 %v7684, %v7870
      %vm7872 = vcmp.eq.f32.partialorder %v7684, inf
      %v7873 = vsel %vm7872, %v7684, %v7871
      %vm7874 = vcmp.eq.f32.partialorder %v7684, 0.0
      %v7875 = vand.u32 %v7684, 2147483648
      %v7876 = vsel %vm7874, %v7875, %v7873
      %v7877 = vadd.f32 %v7605, %v7696
      %v7878 = vadd.f32 %v7606, %v7708
      %v7879 = vadd.f32 %v7607, %v7720
      %v7880 = vadd.f32 %v7608, %v7732
      %v7881 = vadd.f32 %v7609, %v7744
      %v7882 = vadd.f32 %v7610, %v7756
      %v7883 = vadd.f32 %v7611, %v7768
      %v7884 = vadd.f32 %v7612, %v7780
      %v7885 = vadd.f32 %v7613, %v7792
      %v7886 = vadd.f32 %v7614, %v7804
      %v7887 = vadd.f32 %v7615, %v7816
      %v7888 = vadd.f32 %v7616, %v7828
      %v7889 = vadd.f32 %v7617, %v7840
      %v7890 = vadd.f32 %v7618, %v7852
      %v7891 = vadd.f32 %v7619, %v7864
      %v7892 = vadd.f32 %v7620, %v7876
      %v7893 = vmul.f32 %v7877, 0.5
      %v7894 = vmul.f32 %v7878, 0.5
      %v7895 = vmul.f32 %v7879, 0.5
      %v7896 = vmul.f32 %v7880, 0.5
      %v7897 = vmul.f32 %v7881, 0.5
      %v7898 = vmul.f32 %v7882, 0.5
      %v7899 = vmul.f32 %v7883, 0.5
      %v7900 = vmul.f32 %v7884, 0.5
      %v7901 = vmul.f32 %v7885, 0.5
      %v7902 = vmul.f32 %v7886, 0.5
      %v7903 = vmul.f32 %v7887, 0.5
      %v7904 = vmul.f32 %v7888, 0.5
      %v7905 = vmul.f32 %v7889, 0.5
      %v7906 = vmul.f32 %v7890, 0.5
      %v7907 = vmul.f32 %v7891, 0.5
      %v7908 = vmul.f32 %v7892, 0.5
      %vm7909 = vcmp.le.f32.partialorder %v7893, %v7605
      %vm7910 = vcmp.le.f32.partialorder %v7894, %v7606
      %vm7911 = vcmp.le.f32.partialorder %v7895, %v7607
      %vm7912 = vcmp.le.f32.partialorder %v7896, %v7608
      %vm7913 = vcmp.le.f32.partialorder %v7897, %v7609
      %vm7914 = vcmp.le.f32.partialorder %v7898, %v7610
      %vm7915 = vcmp.le.f32.partialorder %v7899, %v7611
      %vm7916 = vcmp.le.f32.partialorder %v7900, %v7612
      %vm7917 = vcmp.le.f32.partialorder %v7901, %v7613
      %vm7918 = vcmp.le.f32.partialorder %v7902, %v7614
      %vm7919 = vcmp.le.f32.partialorder %v7903, %v7615
      %vm7920 = vcmp.le.f32.partialorder %v7904, %v7616
      %vm7921 = vcmp.le.f32.partialorder %v7905, %v7617
      %vm7922 = vcmp.le.f32.partialorder %v7906, %v7618
      %vm7923 = vcmp.le.f32.partialorder %v7907, %v7619
      %vm7924 = vcmp.le.f32.partialorder %v7908, %v7620
      %v7925 = vsel %vm7909, 2.0, %v7893
      %v7926 = vsel %vm7910, 2.0, %v7894
      %v7927 = vsel %vm7911, 2.0, %v7895
      %v7928 = vsel %vm7912, 2.0, %v7896
      %v7929 = vsel %vm7913, 2.0, %v7897
      %v7930 = vsel %vm7914, 2.0, %v7898
      %v7931 = vsel %vm7915, 2.0, %v7899
      %v7932 = vsel %vm7916, 2.0, %v7900
      %v7933 = vsel %vm7917, 2.0, %v7901
      %v7934 = vsel %vm7918, 2.0, %v7902
      %v7935 = vsel %vm7919, 2.0, %v7903
      %v7936 = vsel %vm7920, 2.0, %v7904
      %v7937 = vsel %vm7921, 2.0, %v7905
      %v7938 = vsel %vm7922, 2.0, %v7906
      %v7939 = vsel %vm7923, 2.0, %v7907
      %v7940 = vsel %vm7924, 2.0, %v7908
      %v7941 = vsub.f32 %v7925, %v7605
      %v7942 = vsub.f32 %v7926, %v7606
      %v7943 = vsub.f32 %v7927, %v7607
      %v7944 = vsub.f32 %v7928, %v7608
      %v7945 = vsub.f32 %v7929, %v7609
      %v7946 = vsub.f32 %v7930, %v7610
      %v7947 = vsub.f32 %v7931, %v7611
      %v7948 = vsub.f32 %v7932, %v7612
      %v7949 = vsub.f32 %v7933, %v7613
      %v7950 = vsub.f32 %v7934, %v7614
      %v7951 = vsub.f32 %v7935, %v7615
      %v7952 = vsub.f32 %v7936, %v7616
      %v7953 = vsub.f32 %v7937, %v7617
      %v7954 = vsub.f32 %v7938, %v7618
      %v7955 = vsub.f32 %v7939, %v7619
      %v7956 = vsub.f32 %v7940, %v7620
      %v7957 = vmax.f32 %v7941, 0.0
      %v7958 = vmax.f32 %v7942, 0.0
      %v7959 = vmax.f32 %v7943, 0.0
      %v7960 = vmax.f32 %v7944, 0.0
      %v7961 = vmax.f32 %v7945, 0.0
      %v7962 = vmax.f32 %v7946, 0.0
      %v7963 = vmax.f32 %v7947, 0.0
      %v7964 = vmax.f32 %v7948, 0.0
      %v7965 = vmax.f32 %v7949, 0.0
      %v7966 = vmax.f32 %v7950, 0.0
      %v7967 = vmax.f32 %v7951, 0.0
      %v7968 = vmax.f32 %v7952, 0.0
      %v7969 = vmax.f32 %v7953, 0.0
      %v7970 = vmax.f32 %v7954, 0.0
      %v7971 = vmax.f32 %v7955, 0.0
      %v7972 = vmax.f32 %v7956, 0.0
      %v7973 = vmul.f32 %v7957, %v7957
      %v7974 = vmul.f32 %v7958, %v7958
      %v7975 = vmul.f32 %v7959, %v7959
      %v7976 = vmul.f32 %v7960, %v7960
      %v7977 = vmul.f32 %v7961, %v7961
      %v7978 = vmul.f32 %v7962, %v7962
      %v7979 = vmul.f32 %v7963, %v7963
      %v7980 = vmul.f32 %v7964, %v7964
      %v7981 = vmul.f32 %v7965, %v7965
      %v7982 = vmul.f32 %v7966, %v7966
      %v7983 = vmul.f32 %v7967, %v7967
      %v7984 = vmul.f32 %v7968, %v7968
      %v7985 = vmul.f32 %v7969, %v7969
      %v7986 = vmul.f32 %v7970, %v7970
      %v7987 = vmul.f32 %v7971, %v7971
      %v7988 = vmul.f32 %v7972, %v7972
      %v7989 = vmul.f32 %v7973, 0.25
      %v7990 = vmul.f32 %v7974, 0.25
      %v7991 = vmul.f32 %v7975, 0.25
      %v7992 = vmul.f32 %v7976, 0.25
      %v7993 = vmul.f32 %v7977, 0.25
      %v7994 = vmul.f32 %v7978, 0.25
      %v7995 = vmul.f32 %v7979, 0.25
      %v7996 = vmul.f32 %v7980, 0.25
      %v7997 = vmul.f32 %v7981, 0.25
      %v7998 = vmul.f32 %v7982, 0.25
      %v7999 = vmul.f32 %v7983, 0.25
      %v8000 = vmul.f32 %v7984, 0.25
      %v8001 = vmul.f32 %v7985, 0.25
      %v8002 = vmul.f32 %v7986, 0.25
      %v8003 = vmul.f32 %v7987, 0.25
      %v8004 = vmul.f32 %v7988, 0.25
      %v8005 = vsub.f32 1.0, %v7989
      %v8006 = vsub.f32 1.0, %v7990
      %v8007 = vsub.f32 1.0, %v7991
      %v8008 = vsub.f32 1.0, %v7992
      %v8009 = vsub.f32 1.0, %v7993
      %v8010 = vsub.f32 1.0, %v7994
      %v8011 = vsub.f32 1.0, %v7995
      %v8012 = vsub.f32 1.0, %v7996
      %v8013 = vsub.f32 1.0, %v7997
      %v8014 = vsub.f32 1.0, %v7998
      %v8015 = vsub.f32 1.0, %v7999
      %v8016 = vsub.f32 1.0, %v8000
      %v8017 = vsub.f32 1.0, %v8001
      %v8018 = vsub.f32 1.0, %v8002
      %v8019 = vsub.f32 1.0, %v8003
      %v8020 = vsub.f32 1.0, %v8004
      %v8021 = vsel %vm7621, %v8005, %v7989
      %v8022 = vsel %vm7622, %v8006, %v7990
      %v8023 = vsel %vm7623, %v8007, %v7991
      %v8024 = vsel %vm7624, %v8008, %v7992
      %v8025 = vsel %vm7625, %v8009, %v7993
      %v8026 = vsel %vm7626, %v8010, %v7994
      %v8027 = vsel %vm7627, %v8011, %v7995
      %v8028 = vsel %vm7628, %v8012, %v7996
      %v8029 = vsel %vm7629, %v8013, %v7997
      %v8030 = vsel %vm7630, %v8014, %v7998
      %v8031 = vsel %vm7631, %v8015, %v7999
      %v8032 = vsel %vm7632, %v8016, %v8000
      %v8033 = vsel %vm7633, %v8017, %v8001
      %v8034 = vsel %vm7634, %v8018, %v8002
      %v8035 = vsel %vm7635, %v8019, %v8003
      %v8036 = vsel %vm7636, %v8020, %v8004
      %v8037 = vsub.f32 1.0, %v8021
      %v8038 = vsub.f32 1.0, %v8022
      %v8039 = vsub.f32 1.0, %v8023
      %v8040 = vsub.f32 1.0, %v8024
      %v8041 = vsub.f32 1.0, %v8025
      %v8042 = vsub.f32 1.0, %v8026
      %v8043 = vsub.f32 1.0, %v8027
      %v8044 = vsub.f32 1.0, %v8028
      %v8045 = vsub.f32 1.0, %v8029
      %v8046 = vsub.f32 1.0, %v8030
      %v8047 = vsub.f32 1.0, %v8031
      %v8048 = vsub.f32 1.0, %v8032
      %v8049 = vsub.f32 1.0, %v8033
      %v8050 = vsub.f32 1.0, %v8034
      %v8051 = vsub.f32 1.0, %v8035
      %v8052 = vsub.f32 1.0, %v8036
      %8069 = vrot.lane.b32.xlu0 %v8021, 112
      %v8070 = vpop.permute.xlu0 %8069
      %8071 = vrot.lane.b32.xlu0 %v8022, 112
      %v8072 = vpop.permute.xlu0 %8071
      %8073 = vrot.lane.b32.xlu0 %v8023, 112
      %v8074 = vpop.permute.xlu0 %8073
      %8075 = vrot.lane.b32.xlu0 %v8024, 112
      %v8076 = vpop.permute.xlu0 %8075
      %8077 = vrot.lane.b32.xlu0 %v8025, 112
      %v8078 = vpop.permute.xlu0 %8077
      %8079 = vrot.lane.b32.xlu0 %v8026, 112
      %v8080 = vpop.permute.xlu0 %8079
      %8081 = vrot.lane.b32.xlu0 %v8027, 112
      %v8082 = vpop.permute.xlu0 %8081
      %8083 = vrot.lane.b32.xlu0 %v8028, 112
      %v8084 = vpop.permute.xlu0 %8083
      %8085 = vrot.lane.b32.xlu0 %v8029, 112
      %v8086 = vpop.permute.xlu0 %8085
      %8087 = vrot.lane.b32.xlu0 %v8030, 112
      %v8088 = vpop.permute.xlu0 %8087
      %8089 = vrot.lane.b32.xlu0 %v8031, 112
      %v8090 = vpop.permute.xlu0 %8089
      %8091 = vrot.lane.b32.xlu0 %v8032, 112
      %v8092 = vpop.permute.xlu0 %8091
      %8093 = vrot.lane.b32.xlu0 %v8033, 112
      %v8094 = vpop.permute.xlu0 %8093
      %8095 = vrot.lane.b32.xlu0 %v8034, 112
      %v8096 = vpop.permute.xlu0 %8095
      %8097 = vrot.lane.b32.xlu0 %v8035, 112
      %v8098 = vpop.permute.xlu0 %8097
      %8099 = vrot.lane.b32.xlu0 %v8036, 112
      %v8100 = vpop.permute.xlu0 %8099
      %v8117 = vmul.f32 %v8021, %v8070
      %v8118 = vmul.f32 %v8022, %v8072
      %v8119 = vmul.f32 %v8023, %v8074
      %v8120 = vmul.f32 %v8024, %v8076
      %v8121 = vmul.f32 %v8025, %v8078
      %v8122 = vmul.f32 %v8026, %v8080
      %v8123 = vmul.f32 %v8027, %v8082
      %v8124 = vmul.f32 %v8028, %v8084
      %v8125 = vmul.f32 %v8029, %v8086
      %v8126 = vmul.f32 %v8030, %v8088
      %v8127 = vmul.f32 %v8031, %v8090
      %v8128 = vmul.f32 %v8032, %v8092
      %v8129 = vmul.f32 %v8033, %v8094
      %v8130 = vmul.f32 %v8034, %v8096
      %v8131 = vmul.f32 %v8035, %v8098
      %v8132 = vmul.f32 %v8036, %v8100
      %v8133 = vmul.f32 %v8037, %v8070
      %v8134 = vmul.f32 %v8038, %v8072
      %v8135 = vmul.f32 %v8039, %v8074
      %v8136 = vmul.f32 %v8040, %v8076
      %v8137 = vmul.f32 %v8041, %v8078
      %v8138 = vmul.f32 %v8042, %v8080
      %v8139 = vmul.f32 %v8043, %v8082
      %v8140 = vmul.f32 %v8044, %v8084
      %v8141 = vmul.f32 %v8045, %v8086
      %v8142 = vmul.f32 %v8046, %v8088
      %v8143 = vmul.f32 %v8047, %v8090
      %v8144 = vmul.f32 %v8048, %v8092
      %v8145 = vmul.f32 %v8049, %v8094
      %v8146 = vmul.f32 %v8050, %v8096
      %v8147 = vmul.f32 %v8051, %v8098
      %v8148 = vmul.f32 %v8052, %v8100
      %8165 = vrot.lane.b32.xlu0 %v8037, 112
      %v8166 = vpop.permute.xlu0 %8165
      %8167 = vrot.lane.b32.xlu0 %v8038, 112
      %v8168 = vpop.permute.xlu0 %8167
      %8169 = vrot.lane.b32.xlu0 %v8039, 112
      %v8170 = vpop.permute.xlu0 %8169
      %8171 = vrot.lane.b32.xlu0 %v8040, 112
      %v8172 = vpop.permute.xlu0 %8171
      %8173 = vrot.lane.b32.xlu0 %v8041, 112
      %v8174 = vpop.permute.xlu0 %8173
      %8175 = vrot.lane.b32.xlu0 %v8042, 112
      %v8176 = vpop.permute.xlu0 %8175
      %8177 = vrot.lane.b32.xlu0 %v8043, 112
      %v8178 = vpop.permute.xlu0 %8177
      %8179 = vrot.lane.b32.xlu0 %v8044, 112
      %v8180 = vpop.permute.xlu0 %8179
      %8181 = vrot.lane.b32.xlu0 %v8045, 112
      %v8182 = vpop.permute.xlu0 %8181
      %8183 = vrot.lane.b32.xlu0 %v8046, 112
      %v8184 = vpop.permute.xlu0 %8183
      %8185 = vrot.lane.b32.xlu0 %v8047, 112
      %v8186 = vpop.permute.xlu0 %8185
      %8187 = vrot.lane.b32.xlu0 %v8048, 112
      %v8188 = vpop.permute.xlu0 %8187
      %8189 = vrot.lane.b32.xlu0 %v8049, 112
      %v8190 = vpop.permute.xlu0 %8189
      %8191 = vrot.lane.b32.xlu0 %v8050, 112
      %v8192 = vpop.permute.xlu0 %8191
      %8193 = vrot.lane.b32.xlu0 %v8051, 112
      %v8194 = vpop.permute.xlu0 %8193
      %8195 = vrot.lane.b32.xlu0 %v8052, 112
      %v8196 = vpop.permute.xlu0 %8195
      %v8213 = vmul.f32 %v8021, %v8166
      %v8214 = vmul.f32 %v8022, %v8168
      %v8215 = vmul.f32 %v8023, %v8170
      %v8216 = vmul.f32 %v8024, %v8172
      %v8217 = vmul.f32 %v8025, %v8174
      %v8218 = vmul.f32 %v8026, %v8176
      %v8219 = vmul.f32 %v8027, %v8178
      %v8220 = vmul.f32 %v8028, %v8180
      %v8221 = vmul.f32 %v8029, %v8182
      %v8222 = vmul.f32 %v8030, %v8184
      %v8223 = vmul.f32 %v8031, %v8186
      %v8224 = vmul.f32 %v8032, %v8188
      %v8225 = vmul.f32 %v8033, %v8190
      %v8226 = vmul.f32 %v8034, %v8192
      %v8227 = vmul.f32 %v8035, %v8194
      %v8228 = vmul.f32 %v8036, %v8196
      %v8229 = vmul.f32 %v8037, %v8166
      %v8230 = vmul.f32 %v8038, %v8168
      %v8231 = vmul.f32 %v8039, %v8170
      %v8232 = vmul.f32 %v8040, %v8172
      %v8233 = vmul.f32 %v8041, %v8174
      %v8234 = vmul.f32 %v8042, %v8176
      %v8235 = vmul.f32 %v8043, %v8178
      %v8236 = vmul.f32 %v8044, %v8180
      %v8237 = vmul.f32 %v8045, %v8182
      %v8238 = vmul.f32 %v8046, %v8184
      %v8239 = vmul.f32 %v8047, %v8186
      %v8240 = vmul.f32 %v8048, %v8188
      %v8241 = vmul.f32 %v8049, %v8190
      %v8242 = vmul.f32 %v8050, %v8192
      %v8243 = vmul.f32 %v8051, %v8194
      %v8244 = vmul.f32 %v8052, %v8196
      %8245 = vrot.lane.b32.xlu0 %v8021, 96
      %v8246 = vpop.permute.xlu0 %8245
      %8247 = vrot.lane.b32.xlu0 %v8022, 96
      %v8248 = vpop.permute.xlu0 %8247
      %8249 = vrot.lane.b32.xlu0 %v8023, 96
      %v8250 = vpop.permute.xlu0 %8249
      %8251 = vrot.lane.b32.xlu0 %v8024, 96
      %v8252 = vpop.permute.xlu0 %8251
      %8253 = vrot.lane.b32.xlu0 %v8025, 96
      %v8254 = vpop.permute.xlu0 %8253
      %8255 = vrot.lane.b32.xlu0 %v8026, 96
      %v8256 = vpop.permute.xlu0 %8255
      %8257 = vrot.lane.b32.xlu0 %v8027, 96
      %v8258 = vpop.permute.xlu0 %8257
      %8259 = vrot.lane.b32.xlu0 %v8028, 96
      %v8260 = vpop.permute.xlu0 %8259
      %8261 = vrot.lane.b32.xlu0 %v8029, 96
      %v8262 = vpop.permute.xlu0 %8261
      %8263 = vrot.lane.b32.xlu0 %v8030, 96
      %v8264 = vpop.permute.xlu0 %8263
      %8265 = vrot.lane.b32.xlu0 %v8031, 96
      %v8266 = vpop.permute.xlu0 %8265
      %8267 = vrot.lane.b32.xlu0 %v8032, 96
      %v8268 = vpop.permute.xlu0 %8267
      %8269 = vrot.lane.b32.xlu0 %v8033, 96
      %v8270 = vpop.permute.xlu0 %8269
      %8271 = vrot.lane.b32.xlu0 %v8034, 96
      %v8272 = vpop.permute.xlu0 %8271
      %8273 = vrot.lane.b32.xlu0 %v8035, 96
      %v8274 = vpop.permute.xlu0 %8273
      %8275 = vrot.lane.b32.xlu0 %v8036, 96
      %v8276 = vpop.permute.xlu0 %8275
      %v8293 = vmul.f32 %v8117, %v8246
      %v8294 = vmul.f32 %v8118, %v8248
      %v8295 = vmul.f32 %v8119, %v8250
      %v8296 = vmul.f32 %v8120, %v8252
      %v8297 = vmul.f32 %v8121, %v8254
      %v8298 = vmul.f32 %v8122, %v8256
      %v8299 = vmul.f32 %v8123, %v8258
      %v8300 = vmul.f32 %v8124, %v8260
      %v8301 = vmul.f32 %v8125, %v8262
      %v8302 = vmul.f32 %v8126, %v8264
      %v8303 = vmul.f32 %v8127, %v8266
      %v8304 = vmul.f32 %v8128, %v8268
      %v8305 = vmul.f32 %v8129, %v8270
      %v8306 = vmul.f32 %v8130, %v8272
      %v8307 = vmul.f32 %v8131, %v8274
      %v8308 = vmul.f32 %v8132, %v8276
      %v8309 = vmul.f32 %v8133, %v8246
      %v8310 = vmul.f32 %v8134, %v8248
      %v8311 = vmul.f32 %v8135, %v8250
      %v8312 = vmul.f32 %v8136, %v8252
      %v8313 = vmul.f32 %v8137, %v8254
      %v8314 = vmul.f32 %v8138, %v8256
      %v8315 = vmul.f32 %v8139, %v8258
      %v8316 = vmul.f32 %v8140, %v8260
      %v8317 = vmul.f32 %v8141, %v8262
      %v8318 = vmul.f32 %v8142, %v8264
      %v8319 = vmul.f32 %v8143, %v8266
      %v8320 = vmul.f32 %v8144, %v8268
      %v8321 = vmul.f32 %v8145, %v8270
      %v8322 = vmul.f32 %v8146, %v8272
      %v8323 = vmul.f32 %v8147, %v8274
      %v8324 = vmul.f32 %v8148, %v8276
      %v8325 = vmul.f32 %v8213, %v8246
      %v8326 = vmul.f32 %v8214, %v8248
      %v8327 = vmul.f32 %v8215, %v8250
      %v8328 = vmul.f32 %v8216, %v8252
      %v8329 = vmul.f32 %v8217, %v8254
      %v8330 = vmul.f32 %v8218, %v8256
      %v8331 = vmul.f32 %v8219, %v8258
      %v8332 = vmul.f32 %v8220, %v8260
      %v8333 = vmul.f32 %v8221, %v8262
      %v8334 = vmul.f32 %v8222, %v8264
      %v8335 = vmul.f32 %v8223, %v8266
      %v8336 = vmul.f32 %v8224, %v8268
      %v8337 = vmul.f32 %v8225, %v8270
      %v8338 = vmul.f32 %v8226, %v8272
      %v8339 = vmul.f32 %v8227, %v8274
      %v8340 = vmul.f32 %v8228, %v8276
      %v8341 = vmul.f32 %v8229, %v8246
      %v8342 = vmul.f32 %v8230, %v8248
      %v8343 = vmul.f32 %v8231, %v8250
      %v8344 = vmul.f32 %v8232, %v8252
      %v8345 = vmul.f32 %v8233, %v8254
      %v8346 = vmul.f32 %v8234, %v8256
      %v8347 = vmul.f32 %v8235, %v8258
      %v8348 = vmul.f32 %v8236, %v8260
      %v8349 = vmul.f32 %v8237, %v8262
      %v8350 = vmul.f32 %v8238, %v8264
      %v8351 = vmul.f32 %v8239, %v8266
      %v8352 = vmul.f32 %v8240, %v8268
      %v8353 = vmul.f32 %v8241, %v8270
      %v8354 = vmul.f32 %v8242, %v8272
      %v8355 = vmul.f32 %v8243, %v8274
      %v8356 = vmul.f32 %v8244, %v8276
      %8357 = vrot.lane.b32.xlu0 %v8037, 96
      %v8358 = vpop.permute.xlu0 %8357
      %8359 = vrot.lane.b32.xlu0 %v8038, 96
      %v8360 = vpop.permute.xlu0 %8359
      %8361 = vrot.lane.b32.xlu0 %v8039, 96
      %v8362 = vpop.permute.xlu0 %8361
      %8363 = vrot.lane.b32.xlu0 %v8040, 96
      %v8364 = vpop.permute.xlu0 %8363
      %8365 = vrot.lane.b32.xlu0 %v8041, 96
      %v8366 = vpop.permute.xlu0 %8365
      %8367 = vrot.lane.b32.xlu0 %v8042, 96
      %v8368 = vpop.permute.xlu0 %8367
      %8369 = vrot.lane.b32.xlu0 %v8043, 96
      %v8370 = vpop.permute.xlu0 %8369
      %8371 = vrot.lane.b32.xlu0 %v8044, 96
      %v8372 = vpop.permute.xlu0 %8371
      %8373 = vrot.lane.b32.xlu0 %v8045, 96
      %v8374 = vpop.permute.xlu0 %8373
      %8375 = vrot.lane.b32.xlu0 %v8046, 96
      %v8376 = vpop.permute.xlu0 %8375
      %8377 = vrot.lane.b32.xlu0 %v8047, 96
      %v8378 = vpop.permute.xlu0 %8377
      %8379 = vrot.lane.b32.xlu0 %v8048, 96
      %v8380 = vpop.permute.xlu0 %8379
      %8381 = vrot.lane.b32.xlu0 %v8049, 96
      %v8382 = vpop.permute.xlu0 %8381
      %8383 = vrot.lane.b32.xlu0 %v8050, 96
      %v8384 = vpop.permute.xlu0 %8383
      %8385 = vrot.lane.b32.xlu0 %v8051, 96
      %v8386 = vpop.permute.xlu0 %8385
      %8387 = vrot.lane.b32.xlu0 %v8052, 96
      %v8388 = vpop.permute.xlu0 %8387
      %v8405 = vmul.f32 %v8117, %v8358
      %v8406 = vmul.f32 %v8118, %v8360
      %v8407 = vmul.f32 %v8119, %v8362
      %v8408 = vmul.f32 %v8120, %v8364
      %v8409 = vmul.f32 %v8121, %v8366
      %v8410 = vmul.f32 %v8122, %v8368
      %v8411 = vmul.f32 %v8123, %v8370
      %v8412 = vmul.f32 %v8124, %v8372
      %v8413 = vmul.f32 %v8125, %v8374
      %v8414 = vmul.f32 %v8126, %v8376
      %v8415 = vmul.f32 %v8127, %v8378
      %v8416 = vmul.f32 %v8128, %v8380
      %v8417 = vmul.f32 %v8129, %v8382
      %v8418 = vmul.f32 %v8130, %v8384
      %v8419 = vmul.f32 %v8131, %v8386
      %v8420 = vmul.f32 %v8132, %v8388
      %v8421 = vmul.f32 %v8133, %v8358
      %v8422 = vmul.f32 %v8134, %v8360
      %v8423 = vmul.f32 %v8135, %v8362
      %v8424 = vmul.f32 %v8136, %v8364
      %v8425 = vmul.f32 %v8137, %v8366
      %v8426 = vmul.f32 %v8138, %v8368
      %v8427 = vmul.f32 %v8139, %v8370
      %v8428 = vmul.f32 %v8140, %v8372
      %v8429 = vmul.f32 %v8141, %v8374
      %v8430 = vmul.f32 %v8142, %v8376
      %v8431 = vmul.f32 %v8143, %v8378
      %v8432 = vmul.f32 %v8144, %v8380
      %v8433 = vmul.f32 %v8145, %v8382
      %v8434 = vmul.f32 %v8146, %v8384
      %v8435 = vmul.f32 %v8147, %v8386
      %v8436 = vmul.f32 %v8148, %v8388
      %v8437 = vmul.f32 %v8213, %v8358
      %v8438 = vmul.f32 %v8214, %v8360
      %v8439 = vmul.f32 %v8215, %v8362
      %v8440 = vmul.f32 %v8216, %v8364
      %v8441 = vmul.f32 %v8217, %v8366
      %v8442 = vmul.f32 %v8218, %v8368
      %v8443 = vmul.f32 %v8219, %v8370
      %v8444 = vmul.f32 %v8220, %v8372
      %v8445 = vmul.f32 %v8221, %v8374
      %v8446 = vmul.f32 %v8222, %v8376
      %v8447 = vmul.f32 %v8223, %v8378
      %v8448 = vmul.f32 %v8224, %v8380
      %v8449 = vmul.f32 %v8225, %v8382
      %v8450 = vmul.f32 %v8226, %v8384
      %v8451 = vmul.f32 %v8227, %v8386
      %v8452 = vmul.f32 %v8228, %v8388
      %v8453 = vmul.f32 %v8229, %v8358
      %v8454 = vmul.f32 %v8230, %v8360
      %v8455 = vmul.f32 %v8231, %v8362
      %v8456 = vmul.f32 %v8232, %v8364
      %v8457 = vmul.f32 %v8233, %v8366
      %v8458 = vmul.f32 %v8234, %v8368
      %v8459 = vmul.f32 %v8235, %v8370
      %v8460 = vmul.f32 %v8236, %v8372
      %v8461 = vmul.f32 %v8237, %v8374
      %v8462 = vmul.f32 %v8238, %v8376
      %v8463 = vmul.f32 %v8239, %v8378
      %v8464 = vmul.f32 %v8240, %v8380
      %v8465 = vmul.f32 %v8241, %v8382
      %v8466 = vmul.f32 %v8242, %v8384
      %v8467 = vmul.f32 %v8243, %v8386
      %v8468 = vmul.f32 %v8244, %v8388
      %8469 = vst.msk [vmem:[#allocation3] sm:$0xff] %vm1443, %v8293
      %8470 = vst.msk [vmem:[#allocation3 + $0x8] sm:$0xff] %vm1443, %v8294
      %8471 = vst.msk [vmem:[#allocation3 + $0x10] sm:$0xff] %vm1443, %v8295
      %8472 = vst.msk [vmem:[#allocation3 + $0x18] sm:$0xff] %vm1443, %v8296
      %8473 = vst.msk [vmem:[#allocation3 + $0x20] sm:$0xff] %vm1443, %v8297
      %8474 = vst.msk [vmem:[#allocation3 + $0x28] sm:$0xff] %vm1443, %v8298
      %8475 = vst.msk [vmem:[#allocation3 + $0x30] sm:$0xff] %vm1443, %v8299
      %8476 = vst.msk [vmem:[#allocation3 + $0x38] sm:$0xff] %vm1443, %v8300
      %8477 = vst.msk [vmem:[#allocation3 + $0x40] sm:$0xff] %vm1443, %v8301
      %8478 = vst.msk [vmem:[#allocation3 + $0x48] sm:$0xff] %vm1443, %v8302
      %8479 = vst.msk [vmem:[#allocation3 + $0x50] sm:$0xff] %vm1443, %v8303
      %8480 = vst.msk [vmem:[#allocation3 + $0x58] sm:$0xff] %vm1443, %v8304
      %8481 = vst.msk [vmem:[#allocation3 + $0x60] sm:$0xff] %vm1443, %v8305
      %8482 = vst.msk [vmem:[#allocation3 + $0x68] sm:$0xff] %vm1443, %v8306
      %8483 = vst.msk [vmem:[#allocation3 + $0x70] sm:$0xff] %vm1443, %v8307
      %8484 = vst.msk [vmem:[#allocation3 + $0x78] sm:$0xff] %vm1443, %v8308
      %8501 = vrot.lane.b32.xlu0 %v8309, 16
      %v8502 = vpop.permute.xlu0 %8501
      %8503 = vrot.lane.b32.xlu0 %v8310, 16
      %v8504 = vpop.permute.xlu0 %8503
      %8505 = vrot.lane.b32.xlu0 %v8311, 16
      %v8506 = vpop.permute.xlu0 %8505
      %8507 = vrot.lane.b32.xlu0 %v8312, 16
      %v8508 = vpop.permute.xlu0 %8507
      %8509 = vrot.lane.b32.xlu0 %v8313, 16
      %v8510 = vpop.permute.xlu0 %8509
      %8511 = vrot.lane.b32.xlu0 %v8314, 16
      %v8512 = vpop.permute.xlu0 %8511
      %8513 = vrot.lane.b32.xlu0 %v8315, 16
      %v8514 = vpop.permute.xlu0 %8513
      %8515 = vrot.lane.b32.xlu0 %v8316, 16
      %v8516 = vpop.permute.xlu0 %8515
      %8517 = vrot.lane.b32.xlu0 %v8317, 16
      %v8518 = vpop.permute.xlu0 %8517
      %8519 = vrot.lane.b32.xlu0 %v8318, 16
      %v8520 = vpop.permute.xlu0 %8519
      %8521 = vrot.lane.b32.xlu0 %v8319, 16
      %v8522 = vpop.permute.xlu0 %8521
      %8523 = vrot.lane.b32.xlu0 %v8320, 16
      %v8524 = vpop.permute.xlu0 %8523
      %8525 = vrot.lane.b32.xlu0 %v8321, 16
      %v8526 = vpop.permute.xlu0 %8525
      %8527 = vrot.lane.b32.xlu0 %v8322, 16
      %v8528 = vpop.permute.xlu0 %8527
      %8529 = vrot.lane.b32.xlu0 %v8323, 16
      %v8530 = vpop.permute.xlu0 %8529
      %8531 = vrot.lane.b32.xlu0 %v8324, 16
      %v8532 = vpop.permute.xlu0 %8531
      %8549 = vst.msk [vmem:[#allocation3] sm:$0xff] %vm1524, %v8502
      %8550 = vst.msk [vmem:[#allocation3 + $0x8] sm:$0xff] %vm1524, %v8504
      %8551 = vst.msk [vmem:[#allocation3 + $0x10] sm:$0xff] %vm1524, %v8506
      %8552 = vst.msk [vmem:[#allocation3 + $0x18] sm:$0xff] %vm1524, %v8508
      %8553 = vst.msk [vmem:[#allocation3 + $0x20] sm:$0xff] %vm1524, %v8510
      %8554 = vst.msk [vmem:[#allocation3 + $0x28] sm:$0xff] %vm1524, %v8512
      %8555 = vst.msk [vmem:[#allocation3 + $0x30] sm:$0xff] %vm1524, %v8514
      %8556 = vst.msk [vmem:[#allocation3 + $0x38] sm:$0xff] %vm1524, %v8516
      %8557 = vst.msk [vmem:[#allocation3 + $0x40] sm:$0xff] %vm1524, %v8518
      %8558 = vst.msk [vmem:[#allocation3 + $0x48] sm:$0xff] %vm1524, %v8520
      %8559 = vst.msk [vmem:[#allocation3 + $0x50] sm:$0xff] %vm1524, %v8522
      %8560 = vst.msk [vmem:[#allocation3 + $0x58] sm:$0xff] %vm1524, %v8524
      %8561 = vst.msk [vmem:[#allocation3 + $0x60] sm:$0xff] %vm1524, %v8526
      %8562 = vst.msk [vmem:[#allocation3 + $0x68] sm:$0xff] %vm1524, %v8528
      %8563 = vst.msk [vmem:[#allocation3 + $0x70] sm:$0xff] %vm1524, %v8530
      %8564 = vst.msk [vmem:[#allocation3 + $0x78] sm:$0xff] %vm1524, %v8532
      %8581 = vrot.lane.b32.xlu0 %v8325, 32
      %v8582 = vpop.permute.xlu0 %8581
      %8583 = vrot.lane.b32.xlu0 %v8326, 32
      %v8584 = vpop.permute.xlu0 %8583
      %8585 = vrot.lane.b32.xlu0 %v8327, 32
      %v8586 = vpop.permute.xlu0 %8585
      %8587 = vrot.lane.b32.xlu0 %v8328, 32
      %v8588 = vpop.permute.xlu0 %8587
      %8589 = vrot.lane.b32.xlu0 %v8329, 32
      %v8590 = vpop.permute.xlu0 %8589
      %8591 = vrot.lane.b32.xlu0 %v8330, 32
      %v8592 = vpop.permute.xlu0 %8591
      %8593 = vrot.lane.b32.xlu0 %v8331, 32
      %v8594 = vpop.permute.xlu0 %8593
      %8595 = vrot.lane.b32.xlu0 %v8332, 32
      %v8596 = vpop.permute.xlu0 %8595
      %8597 = vrot.lane.b32.xlu0 %v8333, 32
      %v8598 = vpop.permute.xlu0 %8597
      %8599 = vrot.lane.b32.xlu0 %v8334, 32
      %v8600 = vpop.permute.xlu0 %8599
      %8601 = vrot.lane.b32.xlu0 %v8335, 32
      %v8602 = vpop.permute.xlu0 %8601
      %8603 = vrot.lane.b32.xlu0 %v8336, 32
      %v8604 = vpop.permute.xlu0 %8603
      %8605 = vrot.lane.b32.xlu0 %v8337, 32
      %v8606 = vpop.permute.xlu0 %8605
      %8607 = vrot.lane.b32.xlu0 %v8338, 32
      %v8608 = vpop.permute.xlu0 %8607
      %8609 = vrot.lane.b32.xlu0 %v8339, 32
      %v8610 = vpop.permute.xlu0 %8609
      %8611 = vrot.lane.b32.xlu0 %v8340, 32
      %v8612 = vpop.permute.xlu0 %8611
      %8629 = vst.msk [vmem:[#allocation3] sm:$0xff] %vm1605, %v8582
      %8630 = vst.msk [vmem:[#allocation3 + $0x8] sm:$0xff] %vm1605, %v8584
      %8631 = vst.msk [vmem:[#allocation3 + $0x10] sm:$0xff] %vm1605, %v8586
      %8632 = vst.msk [vmem:[#allocation3 + $0x18] sm:$0xff] %vm1605, %v8588
      %8633 = vst.msk [vmem:[#allocation3 + $0x20] sm:$0xff] %vm1605, %v8590
      %8634 = vst.msk [vmem:[#allocation3 + $0x28] sm:$0xff] %vm1605, %v8592
      %8635 = vst.msk [vmem:[#allocation3 + $0x30] sm:$0xff] %vm1605, %v8594
      %8636 = vst.msk [vmem:[#allocation3 + $0x38] sm:$0xff] %vm1605, %v8596
      %8637 = vst.msk [vmem:[#allocation3 + $0x40] sm:$0xff] %vm1605, %v8598
      %8638 = vst.msk [vmem:[#allocation3 + $0x48] sm:$0xff] %vm1605, %v8600
      %8639 = vst.msk [vmem:[#allocation3 + $0x50] sm:$0xff] %vm1605, %v8602
      %8640 = vst.msk [vmem:[#allocation3 + $0x58] sm:$0xff] %vm1605, %v8604
      %8641 = vst.msk [vmem:[#allocation3 + $0x60] sm:$0xff] %vm1605, %v8606
      %8642 = vst.msk [vmem:[#allocation3 + $0x68] sm:$0xff] %vm1605, %v8608
      %8643 = vst.msk [vmem:[#allocation3 + $0x70] sm:$0xff] %vm1605, %v8610
      %8644 = vst.msk [vmem:[#allocation3 + $0x78] sm:$0xff] %vm1605, %v8612
      %8661 = vrot.lane.b32.xlu0 %v8341, 48
      %v8662 = vpop.permute.xlu0 %8661
      %8663 = vrot.lane.b32.xlu0 %v8342, 48
      %v8664 = vpop.permute.xlu0 %8663
      %8665 = vrot.lane.b32.xlu0 %v8343, 48
      %v8666 = vpop.permute.xlu0 %8665
      %8667 = vrot.lane.b32.xlu0 %v8344, 48
      %v8668 = vpop.permute.xlu0 %8667
      %8669 = vrot.lane.b32.xlu0 %v8345, 48
      %v8670 = vpop.permute.xlu0 %8669
      %8671 = vrot.lane.b32.xlu0 %v8346, 48
      %v8672 = vpop.permute.xlu0 %8671
      %8673 = vrot.lane.b32.xlu0 %v8347, 48
      %v8674 = vpop.permute.xlu0 %8673
      %8675 = vrot.lane.b32.xlu0 %v8348, 48
      %v8676 = vpop.permute.xlu0 %8675
      %8677 = vrot.lane.b32.xlu0 %v8349, 48
      %v8678 = vpop.permute.xlu0 %8677
      %8679 = vrot.lane.b32.xlu0 %v8350, 48
      %v8680 = vpop.permute.xlu0 %8679
      %8681 = vrot.lane.b32.xlu0 %v8351, 48
      %v8682 = vpop.permute.xlu0 %8681
      %8683 = vrot.lane.b32.xlu0 %v8352, 48
      %v8684 = vpop.permute.xlu0 %8683
      %8685 = vrot.lane.b32.xlu0 %v8353, 48
      %v8686 = vpop.permute.xlu0 %8685
      %8687 = vrot.lane.b32.xlu0 %v8354, 48
      %v8688 = vpop.permute.xlu0 %8687
      %8689 = vrot.lane.b32.xlu0 %v8355, 48
      %v8690 = vpop.permute.xlu0 %8689
      %8691 = vrot.lane.b32.xlu0 %v8356, 48
      %v8692 = vpop.permute.xlu0 %8691
      %8709 = vst.msk [vmem:[#allocation3] sm:$0xff] %vm1686, %v8662
      %8710 = vst.msk [vmem:[#allocation3 + $0x8] sm:$0xff] %vm1686, %v8664
      %8711 = vst.msk [vmem:[#allocation3 + $0x10] sm:$0xff] %vm1686, %v8666
      %8712 = vst.msk [vmem:[#allocation3 + $0x18] sm:$0xff] %vm1686, %v8668
      %8713 = vst.msk [vmem:[#allocation3 + $0x20] sm:$0xff] %vm1686, %v8670
      %8714 = vst.msk [vmem:[#allocation3 + $0x28] sm:$0xff] %vm1686, %v8672
      %8715 = vst.msk [vmem:[#allocation3 + $0x30] sm:$0xff] %vm1686, %v8674
      %8716 = vst.msk [vmem:[#allocation3 + $0x38] sm:$0xff] %vm1686, %v8676
      %8717 = vst.msk [vmem:[#allocation3 + $0x40] sm:$0xff] %vm1686, %v8678
      %8718 = vst.msk [vmem:[#allocation3 + $0x48] sm:$0xff] %vm1686, %v8680
      %8719 = vst.msk [vmem:[#allocation3 + $0x50] sm:$0xff] %vm1686, %v8682
      %8720 = vst.msk [vmem:[#allocation3 + $0x58] sm:$0xff] %vm1686, %v8684
      %8721 = vst.msk [vmem:[#allocation3 + $0x60] sm:$0xff] %vm1686, %v8686
      %8722 = vst.msk [vmem:[#allocation3 + $0x68] sm:$0xff] %vm1686, %v8688
      %8723 = vst.msk [vmem:[#allocation3 + $0x70] sm:$0xff] %vm1686, %v8690
      %8724 = vst.msk [vmem:[#allocation3 + $0x78] sm:$0xff] %vm1686, %v8692
      %8741 = vrot.lane.b32.xlu0 %v8405, 64
      %v8742 = vpop.permute.xlu0 %8741
      %8743 = vrot.lane.b32.xlu0 %v8406, 64
      %v8744 = vpop.permute.xlu0 %8743
      %8745 = vrot.lane.b32.xlu0 %v8407, 64
      %v8746 = vpop.permute.xlu0 %8745
      %8747 = vrot.lane.b32.xlu0 %v8408, 64
      %v8748 = vpop.permute.xlu0 %8747
      %8749 = vrot.lane.b32.xlu0 %v8409, 64
      %v8750 = vpop.permute.xlu0 %8749
      %8751 = vrot.lane.b32.xlu0 %v8410, 64
      %v8752 = vpop.permute.xlu0 %8751
      %8753 = vrot.lane.b32.xlu0 %v8411, 64
      %v8754 = vpop.permute.xlu0 %8753
      %8755 = vrot.lane.b32.xlu0 %v8412, 64
      %v8756 = vpop.permute.xlu0 %8755
      %8757 = vrot.lane.b32.xlu0 %v8413, 64
      %v8758 = vpop.permute.xlu0 %8757
      %8759 = vrot.lane.b32.xlu0 %v8414, 64
      %v8760 = vpop.permute.xlu0 %8759
      %8761 = vrot.lane.b32.xlu0 %v8415, 64
      %v8762 = vpop.permute.xlu0 %8761
      %8763 = vrot.lane.b32.xlu0 %v8416, 64
      %v8764 = vpop.permute.xlu0 %8763
      %8765 = vrot.lane.b32.xlu0 %v8417, 64
      %v8766 = vpop.permute.xlu0 %8765
      %8767 = vrot.lane.b32.xlu0 %v8418, 64
      %v8768 = vpop.permute.xlu0 %8767
      %8769 = vrot.lane.b32.xlu0 %v8419, 64
      %v8770 = vpop.permute.xlu0 %8769
      %8771 = vrot.lane.b32.xlu0 %v8420, 64
      %v8772 = vpop.permute.xlu0 %8771
      %8789 = vst.msk [vmem:[#allocation3] sm:$0xff] %vm1767, %v8742
      %8790 = vst.msk [vmem:[#allocation3 + $0x8] sm:$0xff] %vm1767, %v8744
      %8791 = vst.msk [vmem:[#allocation3 + $0x10] sm:$0xff] %vm1767, %v8746
      %8792 = vst.msk [vmem:[#allocation3 + $0x18] sm:$0xff] %vm1767, %v8748
      %8793 = vst.msk [vmem:[#allocation3 + $0x20] sm:$0xff] %vm1767, %v8750
      %8794 = vst.msk [vmem:[#allocation3 + $0x28] sm:$0xff] %vm1767, %v8752
      %8795 = vst.msk [vmem:[#allocation3 + $0x30] sm:$0xff] %vm1767, %v8754
      %8796 = vst.msk [vmem:[#allocation3 + $0x38] sm:$0xff] %vm1767, %v8756
      %8797 = vst.msk [vmem:[#allocation3 + $0x40] sm:$0xff] %vm1767, %v8758
      %8798 = vst.msk [vmem:[#allocation3 + $0x48] sm:$0xff] %vm1767, %v8760
      %8799 = vst.msk [vmem:[#allocation3 + $0x50] sm:$0xff] %vm1767, %v8762
      %8800 = vst.msk [vmem:[#allocation3 + $0x58] sm:$0xff] %vm1767, %v8764
      %8801 = vst.msk [vmem:[#allocation3 + $0x60] sm:$0xff] %vm1767, %v8766
      %8802 = vst.msk [vmem:[#allocation3 + $0x68] sm:$0xff] %vm1767, %v8768
      %8803 = vst.msk [vmem:[#allocation3 + $0x70] sm:$0xff] %vm1767, %v8770
      %8804 = vst.msk [vmem:[#allocation3 + $0x78] sm:$0xff] %vm1767, %v8772
      %8821 = vrot.lane.b32.xlu0 %v8421, 80
      %v8822 = vpop.permute.xlu0 %8821
      %8823 = vrot.lane.b32.xlu0 %v8422, 80
      %v8824 = vpop.permute.xlu0 %8823
      %8825 = vrot.lane.b32.xlu0 %v8423, 80
      %v8826 = vpop.permute.xlu0 %8825
      %8827 = vrot.lane.b32.xlu0 %v8424, 80
      %v8828 = vpop.permute.xlu0 %8827
      %8829 = vrot.lane.b32.xlu0 %v8425, 80
      %v8830 = vpop.permute.xlu0 %8829
      %8831 = vrot.lane.b32.xlu0 %v8426, 80
      %v8832 = vpop.permute.xlu0 %8831
      %8833 = vrot.lane.b32.xlu0 %v8427, 80
      %v8834 = vpop.permute.xlu0 %8833
      %8835 = vrot.lane.b32.xlu0 %v8428, 80
      %v8836 = vpop.permute.xlu0 %8835
      %8837 = vrot.lane.b32.xlu0 %v8429, 80
      %v8838 = vpop.permute.xlu0 %8837
      %8839 = vrot.lane.b32.xlu0 %v8430, 80
      %v8840 = vpop.permute.xlu0 %8839
      %8841 = vrot.lane.b32.xlu0 %v8431, 80
      %v8842 = vpop.permute.xlu0 %8841
      %8843 = vrot.lane.b32.xlu0 %v8432, 80
      %v8844 = vpop.permute.xlu0 %8843
      %8845 = vrot.lane.b32.xlu0 %v8433, 80
      %v8846 = vpop.permute.xlu0 %8845
      %8847 = vrot.lane.b32.xlu0 %v8434, 80
      %v8848 = vpop.permute.xlu0 %8847
      %8849 = vrot.lane.b32.xlu0 %v8435, 80
      %v8850 = vpop.permute.xlu0 %8849
      %8851 = vrot.lane.b32.xlu0 %v8436, 80
      %v8852 = vpop.permute.xlu0 %8851
      %8869 = vst.msk [vmem:[#allocation3] sm:$0xff] %vm1848, %v8822
      %8870 = vst.msk [vmem:[#allocation3 + $0x8] sm:$0xff] %vm1848, %v8824
      %8871 = vst.msk [vmem:[#allocation3 + $0x10] sm:$0xff] %vm1848, %v8826
      %8872 = vst.msk [vmem:[#allocation3 + $0x18] sm:$0xff] %vm1848, %v8828
      %8873 = vst.msk [vmem:[#allocation3 + $0x20] sm:$0xff] %vm1848, %v8830
      %8874 = vst.msk [vmem:[#allocation3 + $0x28] sm:$0xff] %vm1848, %v8832
      %8875 = vst.msk [vmem:[#allocation3 + $0x30] sm:$0xff] %vm1848, %v8834
      %8876 = vst.msk [vmem:[#allocation3 + $0x38] sm:$0xff] %vm1848, %v8836
      %8877 = vst.msk [vmem:[#allocation3 + $0x40] sm:$0xff] %vm1848, %v8838
      %8878 = vst.msk [vmem:[#allocation3 + $0x48] sm:$0xff] %vm1848, %v8840
      %8879 = vst.msk [vmem:[#allocation3 + $0x50] sm:$0xff] %vm1848, %v8842
      %8880 = vst.msk [vmem:[#allocation3 + $0x58] sm:$0xff] %vm1848, %v8844
      %8881 = vst.msk [vmem:[#allocation3 + $0x60] sm:$0xff] %vm1848, %v8846
      %8882 = vst.msk [vmem:[#allocation3 + $0x68] sm:$0xff] %vm1848, %v8848
      %8883 = vst.msk [vmem:[#allocation3 + $0x70] sm:$0xff] %vm1848, %v8850
      %8884 = vst.msk [vmem:[#allocation3 + $0x78] sm:$0xff] %vm1848, %v8852
      %8901 = vrot.lane.b32.xlu0 %v8437, 96
      %v8902 = vpop.permute.xlu0 %8901
      %8903 = vrot.lane.b32.xlu0 %v8438, 96
      %v8904 = vpop.permute.xlu0 %8903
      %8905 = vrot.lane.b32.xlu0 %v8439, 96
      %v8906 = vpop.permute.xlu0 %8905
      %8907 = vrot.lane.b32.xlu0 %v8440, 96
      %v8908 = vpop.permute.xlu0 %8907
      %8909 = vrot.lane.b32.xlu0 %v8441, 96
      %v8910 = vpop.permute.xlu0 %8909
      %8911 = vrot.lane.b32.xlu0 %v8442, 96
      %v8912 = vpop.permute.xlu0 %8911
      %8913 = vrot.lane.b32.xlu0 %v8443, 96
      %v8914 = vpop.permute.xlu0 %8913
      %8915 = vrot.lane.b32.xlu0 %v8444, 96
      %v8916 = vpop.permute.xlu0 %8915
      %8917 = vrot.lane.b32.xlu0 %v8445, 96
      %v8918 = vpop.permute.xlu0 %8917
      %8919 = vrot.lane.b32.xlu0 %v8446, 96
      %v8920 = vpop.permute.xlu0 %8919
      %8921 = vrot.lane.b32.xlu0 %v8447, 96
      %v8922 = vpop.permute.xlu0 %8921
      %8923 = vrot.lane.b32.xlu0 %v8448, 96
      %v8924 = vpop.permute.xlu0 %8923
      %8925 = vrot.lane.b32.xlu0 %v8449, 96
      %v8926 = vpop.permute.xlu0 %8925
      %8927 = vrot.lane.b32.xlu0 %v8450, 96
      %v8928 = vpop.permute.xlu0 %8927
      %8929 = vrot.lane.b32.xlu0 %v8451, 96
      %v8930 = vpop.permute.xlu0 %8929
      %8931 = vrot.lane.b32.xlu0 %v8452, 96
      %v8932 = vpop.permute.xlu0 %8931
      %8949 = vst.msk [vmem:[#allocation3] sm:$0xff] %vm1929, %v8902
      %8950 = vst.msk [vmem:[#allocation3 + $0x8] sm:$0xff] %vm1929, %v8904
      %8951 = vst.msk [vmem:[#allocation3 + $0x10] sm:$0xff] %vm1929, %v8906
      %8952 = vst.msk [vmem:[#allocation3 + $0x18] sm:$0xff] %vm1929, %v8908
      %8953 = vst.msk [vmem:[#allocation3 + $0x20] sm:$0xff] %vm1929, %v8910
      %8954 = vst.msk [vmem:[#allocation3 + $0x28] sm:$0xff] %vm1929, %v8912
      %8955 = vst.msk [vmem:[#allocation3 + $0x30] sm:$0xff] %vm1929, %v8914
      %8956 = vst.msk [vmem:[#allocation3 + $0x38] sm:$0xff] %vm1929, %v8916
      %8957 = vst.msk [vmem:[#allocation3 + $0x40] sm:$0xff] %vm1929, %v8918
      %8958 = vst.msk [vmem:[#allocation3 + $0x48] sm:$0xff] %vm1929, %v8920
      %8959 = vst.msk [vmem:[#allocation3 + $0x50] sm:$0xff] %vm1929, %v8922
      %8960 = vst.msk [vmem:[#allocation3 + $0x58] sm:$0xff] %vm1929, %v8924
      %8961 = vst.msk [vmem:[#allocation3 + $0x60] sm:$0xff] %vm1929, %v8926
      %8962 = vst.msk [vmem:[#allocation3 + $0x68] sm:$0xff] %vm1929, %v8928
      %8963 = vst.msk [vmem:[#allocation3 + $0x70] sm:$0xff] %vm1929, %v8930
      %8964 = vst.msk [vmem:[#allocation3 + $0x78] sm:$0xff] %vm1929, %v8932
      %8981 = vrot.lane.b32.xlu0 %v8453, 112
      %v8982 = vpop.permute.xlu0 %8981
      %8983 = vrot.lane.b32.xlu0 %v8454, 112
      %v8984 = vpop.permute.xlu0 %8983
      %8985 = vrot.lane.b32.xlu0 %v8455, 112
      %v8986 = vpop.permute.xlu0 %8985
      %8987 = vrot.lane.b32.xlu0 %v8456, 112
      %v8988 = vpop.permute.xlu0 %8987
      %8989 = vrot.lane.b32.xlu0 %v8457, 112
      %v8990 = vpop.permute.xlu0 %8989
      %8991 = vrot.lane.b32.xlu0 %v8458, 112
      %v8992 = vpop.permute.xlu0 %8991
      %8993 = vrot.lane.b32.xlu0 %v8459, 112
      %v8994 = vpop.permute.xlu0 %8993
      %8995 = vrot.lane.b32.xlu0 %v8460, 112
      %v8996 = vpop.permute.xlu0 %8995
      %8997 = vrot.lane.b32.xlu0 %v8461, 112
      %v8998 = vpop.permute.xlu0 %8997
      %8999 = vrot.lane.b32.xlu0 %v8462, 112
      %v9000 = vpop.permute.xlu0 %8999
      %9001 = vrot.lane.b32.xlu0 %v8463, 112
      %v9002 = vpop.permute.xlu0 %9001
      %9003 = vrot.lane.b32.xlu0 %v8464, 112
      %v9004 = vpop.permute.xlu0 %9003
      %9005 = vrot.lane.b32.xlu0 %v8465, 112
      %v9006 = vpop.permute.xlu0 %9005
      %9007 = vrot.lane.b32.xlu0 %v8466, 112
      %v9008 = vpop.permute.xlu0 %9007
      %9009 = vrot.lane.b32.xlu0 %v8467, 112
      %v9010 = vpop.permute.xlu0 %9009
      %9011 = vrot.lane.b32.xlu0 %v8468, 112
      %v9012 = vpop.permute.xlu0 %9011
      %9029 = vst.msk [vmem:[#allocation3] sm:$0xff] %vm2010, %v8982
      %9030 = vst.msk [vmem:[#allocation3 + $0x8] sm:$0xff] %vm2010, %v8984
      %9031 = vst.msk [vmem:[#allocation3 + $0x10] sm:$0xff] %vm2010, %v8986
      %9032 = vst.msk [vmem:[#allocation3 + $0x18] sm:$0xff] %vm2010, %v8988
      %9033 = vst.msk [vmem:[#allocation3 + $0x20] sm:$0xff] %vm2010, %v8990
      %9034 = vst.msk [vmem:[#allocation3 + $0x28] sm:$0xff] %vm2010, %v8992
      %9035 = vst.msk [vmem:[#allocation3 + $0x30] sm:$0xff] %vm2010, %v8994
      %9036 = vst.msk [vmem:[#allocation3 + $0x38] sm:$0xff] %vm2010, %v8996
      %9037 = vst.msk [vmem:[#allocation3 + $0x40] sm:$0xff] %vm2010, %v8998
      %9038 = vst.msk [vmem:[#allocation3 + $0x48] sm:$0xff] %vm2010, %v9000
      %9039 = vst.msk [vmem:[#allocation3 + $0x50] sm:$0xff] %vm2010, %v9002
      %9040 = vst.msk [vmem:[#allocation3 + $0x58] sm:$0xff] %vm2010, %v9004
      %9041 = vst.msk [vmem:[#allocation3 + $0x60] sm:$0xff] %vm2010, %v9006
      %9042 = vst.msk [vmem:[#allocation3 + $0x68] sm:$0xff] %vm2010, %v9008
      %9043 = vst.msk [vmem:[#allocation3 + $0x70] sm:$0xff] %vm2010, %v9010
      %9044 = vst.msk [vmem:[#allocation3 + $0x78] sm:$0xff] %vm2010, %v9012
      %9061 = vrot.lane.b32.xlu0 %v8293, 80
      %v9062 = vpop.permute.xlu0 %9061
      %9063 = vrot.lane.b32.xlu0 %v8294, 80
      %v9064 = vpop.permute.xlu0 %9063
      %9065 = vrot.lane.b32.xlu0 %v8295, 80
      %v9066 = vpop.permute.xlu0 %9065
      %9067 = vrot.lane.b32.xlu0 %v8296, 80
      %v9068 = vpop.permute.xlu0 %9067
      %9069 = vrot.lane.b32.xlu0 %v8297, 80
      %v9070 = vpop.permute.xlu0 %9069
      %9071 = vrot.lane.b32.xlu0 %v8298, 80
      %v9072 = vpop.permute.xlu0 %9071
      %9073 = vrot.lane.b32.xlu0 %v8299, 80
      %v9074 = vpop.permute.xlu0 %9073
      %9075 = vrot.lane.b32.xlu0 %v8300, 80
      %v9076 = vpop.permute.xlu0 %9075
      %9077 = vrot.lane.b32.xlu0 %v8301, 80
      %v9078 = vpop.permute.xlu0 %9077
      %9079 = vrot.lane.b32.xlu0 %v8302, 80
      %v9080 = vpop.permute.xlu0 %9079
      %9081 = vrot.lane.b32.xlu0 %v8303, 80
      %v9082 = vpop.permute.xlu0 %9081
      %9083 = vrot.lane.b32.xlu0 %v8304, 80
      %v9084 = vpop.permute.xlu0 %9083
      %9085 = vrot.lane.b32.xlu0 %v8305, 80
      %v9086 = vpop.permute.xlu0 %9085
      %9087 = vrot.lane.b32.xlu0 %v8306, 80
      %v9088 = vpop.permute.xlu0 %9087
      %9089 = vrot.lane.b32.xlu0 %v8307, 80
      %v9090 = vpop.permute.xlu0 %9089
      %9091 = vrot.lane.b32.xlu0 %v8308, 80
      %v9092 = vpop.permute.xlu0 %9091
      %9109 = vst.msk [vmem:[#allocation4] sm:$0xff] %vm1443, %v9062
      %9110 = vst.msk [vmem:[#allocation4 + $0x8] sm:$0xff] %vm1443, %v9064
      %9111 = vst.msk [vmem:[#allocation4 + $0x10] sm:$0xff] %vm1443, %v9066
      %9112 = vst.msk [vmem:[#allocation4 + $0x18] sm:$0xff] %vm1443, %v9068
      %9113 = vst.msk [vmem:[#allocation4 + $0x20] sm:$0xff] %vm1443, %v9070
      %9114 = vst.msk [vmem:[#allocation4 + $0x28] sm:$0xff] %vm1443, %v9072
      %9115 = vst.msk [vmem:[#allocation4 + $0x30] sm:$0xff] %vm1443, %v9074
      %9116 = vst.msk [vmem:[#allocation4 + $0x38] sm:$0xff] %vm1443, %v9076
      %9117 = vst.msk [vmem:[#allocation4 + $0x40] sm:$0xff] %vm1443, %v9078
      %9118 = vst.msk [vmem:[#allocation4 + $0x48] sm:$0xff] %vm1443, %v9080
      %9119 = vst.msk [vmem:[#allocation4 + $0x50] sm:$0xff] %vm1443, %v9082
      %9120 = vst.msk [vmem:[#allocation4 + $0x58] sm:$0xff] %vm1443, %v9084
      %9121 = vst.msk [vmem:[#allocation4 + $0x60] sm:$0xff] %vm1443, %v9086
      %9122 = vst.msk [vmem:[#allocation4 + $0x68] sm:$0xff] %vm1443, %v9088
      %9123 = vst.msk [vmem:[#allocation4 + $0x70] sm:$0xff] %vm1443, %v9090
      %9124 = vst.msk [vmem:[#allocation4 + $0x78] sm:$0xff] %vm1443, %v9092
      %9125 = vrot.lane.b32.xlu0 %v8309, 96
      %v9126 = vpop.permute.xlu0 %9125
      %9127 = vrot.lane.b32.xlu0 %v8310, 96
      %v9128 = vpop.permute.xlu0 %9127
      %9129 = vrot.lane.b32.xlu0 %v8311, 96
      %v9130 = vpop.permute.xlu0 %9129
      %9131 = vrot.lane.b32.xlu0 %v8312, 96
      %v9132 = vpop.permute.xlu0 %9131
      %9133 = vrot.lane.b32.xlu0 %v8313, 96
      %v9134 = vpop.permute.xlu0 %9133
      %9135 = vrot.lane.b32.xlu0 %v8314, 96
      %v9136 = vpop.permute.xlu0 %9135
      %9137 = vrot.lane.b32.xlu0 %v8315, 96
      %v9138 = vpop.permute.xlu0 %9137
      %9139 = vrot.lane.b32.xlu0 %v8316, 96
      %v9140 = vpop.permute.xlu0 %9139
      %9141 = vrot.lane.b32.xlu0 %v8317, 96
      %v9142 = vpop.permute.xlu0 %9141
      %9143 = vrot.lane.b32.xlu0 %v8318, 96
      %v9144 = vpop.permute.xlu0 %9143
      %9145 = vrot.lane.b32.xlu0 %v8319, 96
      %v9146 = vpop.permute.xlu0 %9145
      %9147 = vrot.lane.b32.xlu0 %v8320, 96
      %v9148 = vpop.permute.xlu0 %9147
      %9149 = vrot.lane.b32.xlu0 %v8321, 96
      %v9150 = vpop.permute.xlu0 %9149
      %9151 = vrot.lane.b32.xlu0 %v8322, 96
      %v9152 = vpop.permute.xlu0 %9151
      %9153 = vrot.lane.b32.xlu0 %v8323, 96
      %v9154 = vpop.permute.xlu0 %9153
      %9155 = vrot.lane.b32.xlu0 %v8324, 96
      %v9156 = vpop.permute.xlu0 %9155
      %9173 = vst.msk [vmem:[#allocation4] sm:$0xff] %vm1524, %v9126
      %9174 = vst.msk [vmem:[#allocation4 + $0x8] sm:$0xff] %vm1524, %v9128
      %9175 = vst.msk [vmem:[#allocation4 + $0x10] sm:$0xff] %vm1524, %v9130
      %9176 = vst.msk [vmem:[#allocation4 + $0x18] sm:$0xff] %vm1524, %v9132
      %9177 = vst.msk [vmem:[#allocation4 + $0x20] sm:$0xff] %vm1524, %v9134
      %9178 = vst.msk [vmem:[#allocation4 + $0x28] sm:$0xff] %vm1524, %v9136
      %9179 = vst.msk [vmem:[#allocation4 + $0x30] sm:$0xff] %vm1524, %v9138
      %9180 = vst.msk [vmem:[#allocation4 + $0x38] sm:$0xff] %vm1524, %v9140
      %9181 = vst.msk [vmem:[#allocation4 + $0x40] sm:$0xff] %vm1524, %v9142
      %9182 = vst.msk [vmem:[#allocation4 + $0x48] sm:$0xff] %vm1524, %v9144
      %9183 = vst.msk [vmem:[#allocation4 + $0x50] sm:$0xff] %vm1524, %v9146
      %9184 = vst.msk [vmem:[#allocation4 + $0x58] sm:$0xff] %vm1524, %v9148
      %9185 = vst.msk [vmem:[#allocation4 + $0x60] sm:$0xff] %vm1524, %v9150
      %9186 = vst.msk [vmem:[#allocation4 + $0x68] sm:$0xff] %vm1524, %v9152
      %9187 = vst.msk [vmem:[#allocation4 + $0x70] sm:$0xff] %vm1524, %v9154
      %9188 = vst.msk [vmem:[#allocation4 + $0x78] sm:$0xff] %vm1524, %v9156
      %9189 = vrot.lane.b32.xlu0 %v8325, 112
      %v9190 = vpop.permute.xlu0 %9189
      %9191 = vrot.lane.b32.xlu0 %v8326, 112
      %v9192 = vpop.permute.xlu0 %9191
      %9193 = vrot.lane.b32.xlu0 %v8327, 112
      %v9194 = vpop.permute.xlu0 %9193
      %9195 = vrot.lane.b32.xlu0 %v8328, 112
      %v9196 = vpop.permute.xlu0 %9195
      %9197 = vrot.lane.b32.xlu0 %v8329, 112
      %v9198 = vpop.permute.xlu0 %9197
      %9199 = vrot.lane.b32.xlu0 %v8330, 112
      %v9200 = vpop.permute.xlu0 %9199
      %9201 = vrot.lane.b32.xlu0 %v8331, 112
      %v9202 = vpop.permute.xlu0 %9201
      %9203 = vrot.lane.b32.xlu0 %v8332, 112
      %v9204 = vpop.permute.xlu0 %9203
      %9205 = vrot.lane.b32.xlu0 %v8333, 112
      %v9206 = vpop.permute.xlu0 %9205
      %9207 = vrot.lane.b32.xlu0 %v8334, 112
      %v9208 = vpop.permute.xlu0 %9207
      %9209 = vrot.lane.b32.xlu0 %v8335, 112
      %v9210 = vpop.permute.xlu0 %9209
      %9211 = vrot.lane.b32.xlu0 %v8336, 112
      %v9212 = vpop.permute.xlu0 %9211
      %9213 = vrot.lane.b32.xlu0 %v8337, 112
      %v9214 = vpop.permute.xlu0 %9213
      %9215 = vrot.lane.b32.xlu0 %v8338, 112
      %v9216 = vpop.permute.xlu0 %9215
      %9217 = vrot.lane.b32.xlu0 %v8339, 112
      %v9218 = vpop.permute.xlu0 %9217
      %9219 = vrot.lane.b32.xlu0 %v8340, 112
      %v9220 = vpop.permute.xlu0 %9219
      %9237 = vst.msk [vmem:[#allocation4] sm:$0xff] %vm1605, %v9190
      %9238 = vst.msk [vmem:[#allocation4 + $0x8] sm:$0xff] %vm1605, %v9192
      %9239 = vst.msk [vmem:[#allocation4 + $0x10] sm:$0xff] %vm1605, %v9194
      %9240 = vst.msk [vmem:[#allocation4 + $0x18] sm:$0xff] %vm1605, %v9196
      %9241 = vst.msk [vmem:[#allocation4 + $0x20] sm:$0xff] %vm1605, %v9198
      %9242 = vst.msk [vmem:[#allocation4 + $0x28] sm:$0xff] %vm1605, %v9200
      %9243 = vst.msk [vmem:[#allocation4 + $0x30] sm:$0xff] %vm1605, %v9202
      %9244 = vst.msk [vmem:[#allocation4 + $0x38] sm:$0xff] %vm1605, %v9204
      %9245 = vst.msk [vmem:[#allocation4 + $0x40] sm:$0xff] %vm1605, %v9206
      %9246 = vst.msk [vmem:[#allocation4 + $0x48] sm:$0xff] %vm1605, %v9208
      %9247 = vst.msk [vmem:[#allocation4 + $0x50] sm:$0xff] %vm1605, %v9210
      %9248 = vst.msk [vmem:[#allocation4 + $0x58] sm:$0xff] %vm1605, %v9212
      %9249 = vst.msk [vmem:[#allocation4 + $0x60] sm:$0xff] %vm1605, %v9214
      %9250 = vst.msk [vmem:[#allocation4 + $0x68] sm:$0xff] %vm1605, %v9216
      %9251 = vst.msk [vmem:[#allocation4 + $0x70] sm:$0xff] %vm1605, %v9218
      %9252 = vst.msk [vmem:[#allocation4 + $0x78] sm:$0xff] %vm1605, %v9220
      %9253 = vst.msk [vmem:[#allocation4] sm:$0xff] %vm1686, %v8341
      %9254 = vst.msk [vmem:[#allocation4 + $0x8] sm:$0xff] %vm1686, %v8342
      %9255 = vst.msk [vmem:[#allocation4 + $0x10] sm:$0xff] %vm1686, %v8343
      %9256 = vst.msk [vmem:[#allocation4 + $0x18] sm:$0xff] %vm1686, %v8344
      %9257 = vst.msk [vmem:[#allocation4 + $0x20] sm:$0xff] %vm1686, %v8345
      %9258 = vst.msk [vmem:[#allocation4 + $0x28] sm:$0xff] %vm1686, %v8346
      %9259 = vst.msk [vmem:[#allocation4 + $0x30] sm:$0xff] %vm1686, %v8347
      %9260 = vst.msk [vmem:[#allocation4 + $0x38] sm:$0xff] %vm1686, %v8348
      %9261 = vst.msk [vmem:[#allocation4 + $0x40] sm:$0xff] %vm1686, %v8349
      %9262 = vst.msk [vmem:[#allocation4 + $0x48] sm:$0xff] %vm1686, %v8350
      %9263 = vst.msk [vmem:[#allocation4 + $0x50] sm:$0xff] %vm1686, %v8351
      %9264 = vst.msk [vmem:[#allocation4 + $0x58] sm:$0xff] %vm1686, %v8352
      %9265 = vst.msk [vmem:[#allocation4 + $0x60] sm:$0xff] %vm1686, %v8353
      %9266 = vst.msk [vmem:[#allocation4 + $0x68] sm:$0xff] %vm1686, %v8354
      %9267 = vst.msk [vmem:[#allocation4 + $0x70] sm:$0xff] %vm1686, %v8355
      %9268 = vst.msk [vmem:[#allocation4 + $0x78] sm:$0xff] %vm1686, %v8356
      %9269 = vrot.lane.b32.xlu0 %v8405, 16
      %v9270 = vpop.permute.xlu0 %9269
      %9271 = vrot.lane.b32.xlu0 %v8406, 16
      %v9272 = vpop.permute.xlu0 %9271
      %9273 = vrot.lane.b32.xlu0 %v8407, 16
      %v9274 = vpop.permute.xlu0 %9273
      %9275 = vrot.lane.b32.xlu0 %v8408, 16
      %v9276 = vpop.permute.xlu0 %9275
      %9277 = vrot.lane.b32.xlu0 %v8409, 16
      %v9278 = vpop.permute.xlu0 %9277
      %9279 = vrot.lane.b32.xlu0 %v8410, 16
      %v9280 = vpop.permute.xlu0 %9279
      %9281 = vrot.lane.b32.xlu0 %v8411, 16
      %v9282 = vpop.permute.xlu0 %9281
      %9283 = vrot.lane.b32.xlu0 %v8412, 16
      %v9284 = vpop.permute.xlu0 %9283
      %9285 = vrot.lane.b32.xlu0 %v8413, 16
      %v9286 = vpop.permute.xlu0 %9285
      %9287 = vrot.lane.b32.xlu0 %v8414, 16
      %v9288 = vpop.permute.xlu0 %9287
      %9289 = vrot.lane.b32.xlu0 %v8415, 16
      %v9290 = vpop.permute.xlu0 %9289
      %9291 = vrot.lane.b32.xlu0 %v8416, 16
      %v9292 = vpop.permute.xlu0 %9291
      %9293 = vrot.lane.b32.xlu0 %v8417, 16
      %v9294 = vpop.permute.xlu0 %9293
      %9295 = vrot.lane.b32.xlu0 %v8418, 16
      %v9296 = vpop.permute.xlu0 %9295
      %9297 = vrot.lane.b32.xlu0 %v8419, 16
      %v9298 = vpop.permute.xlu0 %9297
      %9299 = vrot.lane.b32.xlu0 %v8420, 16
      %v9300 = vpop.permute.xlu0 %9299
      %9317 = vst.msk [vmem:[#allocation4] sm:$0xff] %vm1767, %v9270
      %9318 = vst.msk [vmem:[#allocation4 + $0x8] sm:$0xff] %vm1767, %v9272
      %9319 = vst.msk [vmem:[#allocation4 + $0x10] sm:$0xff] %vm1767, %v9274
      %9320 = vst.msk [vmem:[#allocation4 + $0x18] sm:$0xff] %vm1767, %v9276
      %9321 = vst.msk [vmem:[#allocation4 + $0x20] sm:$0xff] %vm1767, %v9278
      %9322 = vst.msk [vmem:[#allocation4 + $0x28] sm:$0xff] %vm1767, %v9280
      %9323 = vst.msk [vmem:[#allocation4 + $0x30] sm:$0xff] %vm1767, %v9282
      %9324 = vst.msk [vmem:[#allocation4 + $0x38] sm:$0xff] %vm1767, %v9284
      %9325 = vst.msk [vmem:[#allocation4 + $0x40] sm:$0xff] %vm1767, %v9286
      %9326 = vst.msk [vmem:[#allocation4 + $0x48] sm:$0xff] %vm1767, %v9288
      %9327 = vst.msk [vmem:[#allocation4 + $0x50] sm:$0xff] %vm1767, %v9290
      %9328 = vst.msk [vmem:[#allocation4 + $0x58] sm:$0xff] %vm1767, %v9292
      %9329 = vst.msk [vmem:[#allocation4 + $0x60] sm:$0xff] %vm1767, %v9294
      %9330 = vst.msk [vmem:[#allocation4 + $0x68] sm:$0xff] %vm1767, %v9296
      %9331 = vst.msk [vmem:[#allocation4 + $0x70] sm:$0xff] %vm1767, %v9298
      %9332 = vst.msk [vmem:[#allocation4 + $0x78] sm:$0xff] %vm1767, %v9300
      %9333 = vrot.lane.b32.xlu0 %v8421, 32
      %v9334 = vpop.permute.xlu0 %9333
      %9335 = vrot.lane.b32.xlu0 %v8422, 32
      %v9336 = vpop.permute.xlu0 %9335
      %9337 = vrot.lane.b32.xlu0 %v8423, 32
      %v9338 = vpop.permute.xlu0 %9337
      %9339 = vrot.lane.b32.xlu0 %v8424, 32
      %v9340 = vpop.permute.xlu0 %9339
      %9341 = vrot.lane.b32.xlu0 %v8425, 32
      %v9342 = vpop.permute.xlu0 %9341
      %9343 = vrot.lane.b32.xlu0 %v8426, 32
      %v9344 = vpop.permute.xlu0 %9343
      %9345 = vrot.lane.b32.xlu0 %v8427, 32
      %v9346 = vpop.permute.xlu0 %9345
      %9347 = vrot.lane.b32.xlu0 %v8428, 32
      %v9348 = vpop.permute.xlu0 %9347
      %9349 = vrot.lane.b32.xlu0 %v8429, 32
      %v9350 = vpop.permute.xlu0 %9349
      %9351 = vrot.lane.b32.xlu0 %v8430, 32
      %v9352 = vpop.permute.xlu0 %9351
      %9353 = vrot.lane.b32.xlu0 %v8431, 32
      %v9354 = vpop.permute.xlu0 %9353
      %9355 = vrot.lane.b32.xlu0 %v8432, 32
      %v9356 = vpop.permute.xlu0 %9355
      %9357 = vrot.lane.b32.xlu0 %v8433, 32
      %v9358 = vpop.permute.xlu0 %9357
      %9359 = vrot.lane.b32.xlu0 %v8434, 32
      %v9360 = vpop.permute.xlu0 %9359
      %9361 = vrot.lane.b32.xlu0 %v8435, 32
      %v9362 = vpop.permute.xlu0 %9361
      %9363 = vrot.lane.b32.xlu0 %v8436, 32
      %v9364 = vpop.permute.xlu0 %9363
      %9381 = vst.msk [vmem:[#allocation4] sm:$0xff] %vm1848, %v9334
      %9382 = vst.msk [vmem:[#allocation4 + $0x8] sm:$0xff] %vm1848, %v9336
      %9383 = vst.msk [vmem:[#allocation4 + $0x10] sm:$0xff] %vm1848, %v9338
      %9384 = vst.msk [vmem:[#allocation4 + $0x18] sm:$0xff] %vm1848, %v9340
      %9385 = vst.msk [vmem:[#allocation4 + $0x20] sm:$0xff] %vm1848, %v9342
      %9386 = vst.msk [vmem:[#allocation4 + $0x28] sm:$0xff] %vm1848, %v9344
      %9387 = vst.msk [vmem:[#allocation4 + $0x30] sm:$0xff] %vm1848, %v9346
      %9388 = vst.msk [vmem:[#allocation4 + $0x38] sm:$0xff] %vm1848, %v9348
      %9389 = vst.msk [vmem:[#allocation4 + $0x40] sm:$0xff] %vm1848, %v9350
      %9390 = vst.msk [vmem:[#allocation4 + $0x48] sm:$0xff] %vm1848, %v9352
      %9391 = vst.msk [vmem:[#allocation4 + $0x50] sm:$0xff] %vm1848, %v9354
      %9392 = vst.msk [vmem:[#allocation4 + $0x58] sm:$0xff] %vm1848, %v9356
      %9393 = vst.msk [vmem:[#allocation4 + $0x60] sm:$0xff] %vm1848, %v9358
      %9394 = vst.msk [vmem:[#allocation4 + $0x68] sm:$0xff] %vm1848, %v9360
      %9395 = vst.msk [vmem:[#allocation4 + $0x70] sm:$0xff] %vm1848, %v9362
      %9396 = vst.msk [vmem:[#allocation4 + $0x78] sm:$0xff] %vm1848, %v9364
      %9397 = vrot.lane.b32.xlu0 %v8437, 48
      %v9398 = vpop.permute.xlu0 %9397
      %9399 = vrot.lane.b32.xlu0 %v8438, 48
      %v9400 = vpop.permute.xlu0 %9399
      %9401 = vrot.lane.b32.xlu0 %v8439, 48
      %v9402 = vpop.permute.xlu0 %9401
      %9403 = vrot.lane.b32.xlu0 %v8440, 48
      %v9404 = vpop.permute.xlu0 %9403
      %9405 = vrot.lane.b32.xlu0 %v8441, 48
      %v9406 = vpop.permute.xlu0 %9405
      %9407 = vrot.lane.b32.xlu0 %v8442, 48
      %v9408 = vpop.permute.xlu0 %9407
      %9409 = vrot.lane.b32.xlu0 %v8443, 48
      %v9410 = vpop.permute.xlu0 %9409
      %9411 = vrot.lane.b32.xlu0 %v8444, 48
      %v9412 = vpop.permute.xlu0 %9411
      %9413 = vrot.lane.b32.xlu0 %v8445, 48
      %v9414 = vpop.permute.xlu0 %9413
      %9415 = vrot.lane.b32.xlu0 %v8446, 48
      %v9416 = vpop.permute.xlu0 %9415
      %9417 = vrot.lane.b32.xlu0 %v8447, 48
      %v9418 = vpop.permute.xlu0 %9417
      %9419 = vrot.lane.b32.xlu0 %v8448, 48
      %v9420 = vpop.permute.xlu0 %9419
      %9421 = vrot.lane.b32.xlu0 %v8449, 48
      %v9422 = vpop.permute.xlu0 %9421
      %9423 = vrot.lane.b32.xlu0 %v8450, 48
      %v9424 = vpop.permute.xlu0 %9423
      %9425 = vrot.lane.b32.xlu0 %v8451, 48
      %v9426 = vpop.permute.xlu0 %9425
      %9427 = vrot.lane.b32.xlu0 %v8452, 48
      %v9428 = vpop.permute.xlu0 %9427
      %9445 = vst.msk [vmem:[#allocation4] sm:$0xff] %vm1929, %v9398
      %9446 = vst.msk [vmem:[#allocation4 + $0x8] sm:$0xff] %vm1929, %v9400
      %9447 = vst.msk [vmem:[#allocation4 + $0x10] sm:$0xff] %vm1929, %v9402
      %9448 = vst.msk [vmem:[#allocation4 + $0x18] sm:$0xff] %vm1929, %v9404
      %9449 = vst.msk [vmem:[#allocation4 + $0x20] sm:$0xff] %vm1929, %v9406
      %9450 = vst.msk [vmem:[#allocation4 + $0x28] sm:$0xff] %vm1929, %v9408
      %9451 = vst.msk [vmem:[#allocation4 + $0x30] sm:$0xff] %vm1929, %v9410
      %9452 = vst.msk [vmem:[#allocation4 + $0x38] sm:$0xff] %vm1929, %v9412
      %9453 = vst.msk [vmem:[#allocation4 + $0x40] sm:$0xff] %vm1929, %v9414
      %9454 = vst.msk [vmem:[#allocation4 + $0x48] sm:$0xff] %vm1929, %v9416
      %9455 = vst.msk [vmem:[#allocation4 + $0x50] sm:$0xff] %vm1929, %v9418
      %9456 = vst.msk [vmem:[#allocation4 + $0x58] sm:$0xff] %vm1929, %v9420
      %9457 = vst.msk [vmem:[#allocation4 + $0x60] sm:$0xff] %vm1929, %v9422
      %9458 = vst.msk [vmem:[#allocation4 + $0x68] sm:$0xff] %vm1929, %v9424
      %9459 = vst.msk [vmem:[#allocation4 + $0x70] sm:$0xff] %vm1929, %v9426
      %9460 = vst.msk [vmem:[#allocation4 + $0x78] sm:$0xff] %vm1929, %v9428
      %9461 = vrot.lane.b32.xlu0 %v8453, 64
      %v9462 = vpop.permute.xlu0 %9461
      %9463 = vrot.lane.b32.xlu0 %v8454, 64
      %v9464 = vpop.permute.xlu0 %9463
      %9465 = vrot.lane.b32.xlu0 %v8455, 64
      %v9466 = vpop.permute.xlu0 %9465
      %9467 = vrot.lane.b32.xlu0 %v8456, 64
      %v9468 = vpop.permute.xlu0 %9467
      %9469 = vrot.lane.b32.xlu0 %v8457, 64
      %v9470 = vpop.permute.xlu0 %9469
      %9471 = vrot.lane.b32.xlu0 %v8458, 64
      %v9472 = vpop.permute.xlu0 %9471
      %9473 = vrot.lane.b32.xlu0 %v8459, 64
      %v9474 = vpop.permute.xlu0 %9473
      %9475 = vrot.lane.b32.xlu0 %v8460, 64
      %v9476 = vpop.permute.xlu0 %9475
      %9477 = vrot.lane.b32.xlu0 %v8461, 64
      %v9478 = vpop.permute.xlu0 %9477
      %9479 = vrot.lane.b32.xlu0 %v8462, 64
      %v9480 = vpop.permute.xlu0 %9479
      %9481 = vrot.lane.b32.xlu0 %v8463, 64
      %v9482 = vpop.permute.xlu0 %9481
      %9483 = vrot.lane.b32.xlu0 %v8464, 64
      %v9484 = vpop.permute.xlu0 %9483
      %9485 = vrot.lane.b32.xlu0 %v8465, 64
      %v9486 = vpop.permute.xlu0 %9485
      %9487 = vrot.lane.b32.xlu0 %v8466, 64
      %v9488 = vpop.permute.xlu0 %9487
      %9489 = vrot.lane.b32.xlu0 %v8467, 64
      %v9490 = vpop.permute.xlu0 %9489
      %9491 = vrot.lane.b32.xlu0 %v8468, 64
      %v9492 = vpop.permute.xlu0 %9491
      %9509 = vst.msk [vmem:[#allocation4] sm:$0xff] %vm2010, %v9462
      %9510 = vst.msk [vmem:[#allocation4 + $0x8] sm:$0xff] %vm2010, %v9464
      %9511 = vst.msk [vmem:[#allocation4 + $0x10] sm:$0xff] %vm2010, %v9466
      %9512 = vst.msk [vmem:[#allocation4 + $0x18] sm:$0xff] %vm2010, %v9468
      %9513 = vst.msk [vmem:[#allocation4 + $0x20] sm:$0xff] %vm2010, %v9470
      %9514 = vst.msk [vmem:[#allocation4 + $0x28] sm:$0xff] %vm2010, %v9472
      %9515 = vst.msk [vmem:[#allocation4 + $0x30] sm:$0xff] %vm2010, %v9474
      %9516 = vst.msk [vmem:[#allocation4 + $0x38] sm:$0xff] %vm2010, %v9476
      %9517 = vst.msk [vmem:[#allocation4 + $0x40] sm:$0xff] %vm2010, %v9478
      %9518 = vst.msk [vmem:[#allocation4 + $0x48] sm:$0xff] %vm2010, %v9480
      %9519 = vst.msk [vmem:[#allocation4 + $0x50] sm:$0xff] %vm2010, %v9482
      %9520 = vst.msk [vmem:[#allocation4 + $0x58] sm:$0xff] %vm2010, %v9484
      %9521 = vst.msk [vmem:[#allocation4 + $0x60] sm:$0xff] %vm2010, %v9486
      %9522 = vst.msk [vmem:[#allocation4 + $0x68] sm:$0xff] %vm2010, %v9488
      %9523 = vst.msk [vmem:[#allocation4 + $0x70] sm:$0xff] %vm2010, %v9490
      %9524 = vst.msk [vmem:[#allocation4 + $0x78] sm:$0xff] %vm2010, %v9492
      %v9525 = vld [vmem:[#allocation3] sm:$0xff]
      %v9526 = vld [vmem:[#allocation3 + $0x8] sm:$0xff]
      %v9527 = vld [vmem:[#allocation3 + $0x10] sm:$0xff]
      %v9528 = vld [vmem:[#allocation3 + $0x18] sm:$0xff]
      %v9529 = vld [vmem:[#allocation3 + $0x20] sm:$0xff]
      %v9530 = vld [vmem:[#allocation3 + $0x28] sm:$0xff]
      %v9531 = vld [vmem:[#allocation3 + $0x30] sm:$0xff]
      %v9532 = vld [vmem:[#allocation3 + $0x38] sm:$0xff]
      %v9533 = vld [vmem:[#allocation3 + $0x40] sm:$0xff]
      %v9534 = vld [vmem:[#allocation3 + $0x48] sm:$0xff]
      %v9535 = vld [vmem:[#allocation3 + $0x50] sm:$0xff]
      %v9536 = vld [vmem:[#allocation3 + $0x58] sm:$0xff]
      %v9537 = vld [vmem:[#allocation3 + $0x60] sm:$0xff]
      %v9538 = vld [vmem:[#allocation3 + $0x68] sm:$0xff]
      %v9539 = vld [vmem:[#allocation3 + $0x70] sm:$0xff]
      %v9540 = vld [vmem:[#allocation3 + $0x78] sm:$0xff]
      %s9541 = scalar_lea.vmem %s3, 384
      %v9542 = vld [vmem:[%s9541] sm:$0xff]
      %v9543 = vld [vmem:[%s9541 + $0x8] sm:$0xff]
      %v9544 = vld [vmem:[%s9541 + $0x10] sm:$0xff]
      %v9545 = vld [vmem:[%s9541 + $0x18] sm:$0xff]
      %v9546 = vld [vmem:[%s9541 + $0x20] sm:$0xff]
      %v9547 = vld [vmem:[%s9541 + $0x28] sm:$0xff]
      %v9548 = vld [vmem:[%s9541 + $0x30] sm:$0xff]
      %v9549 = vld [vmem:[%s9541 + $0x38] sm:$0xff]
      %v9550 = vld [vmem:[%s9541 + $0x40] sm:$0xff]
      %v9551 = vld [vmem:[%s9541 + $0x48] sm:$0xff]
      %v9552 = vld [vmem:[%s9541 + $0x50] sm:$0xff]
      %v9553 = vld [vmem:[%s9541 + $0x58] sm:$0xff]
      %v9554 = vld [vmem:[%s9541 + $0x60] sm:$0xff]
      %v9555 = vld [vmem:[%s9541 + $0x68] sm:$0xff]
      %v9556 = vld [vmem:[%s9541 + $0x70] sm:$0xff]
      %v9557 = vld [vmem:[%s9541 + $0x78] sm:$0xff]
      %9558 = vmatpush.msra.mxu0 %v9557
      %9559 = vmatpush.msra.mxu0 %v9556
      %9560 = vmatpush.msra.mxu0 %v9555
      %9561 = vmatpush.msra.mxu0 %v9554
      %9562 = vmatpush.msra.mxu0 %v9553
      %9563 = vmatpush.msra.mxu0 %v9552
      %9564 = vmatpush.msra.mxu0 %v9551
      %9565 = vmatpush.msra.mxu0 %v9550
      %9566 = vmatpush.msra.mxu0 %v9549
      %9567 = vmatpush.msra.mxu0 %v9548
      %9568 = vmatpush.msra.mxu0 %v9547
      %9569 = vmatpush.msra.mxu0 %v9546
      %9570 = vmatpush.msra.mxu0 %v9545
      %9571 = vmatpush.msra.mxu0 %v9544
      %9572 = vmatpush.msra.mxu0 %v9543
      %9573 = vmatpush.msra.mxu0 %v9542
      %9574 = vmatmul.f32.gmra.mxu0 %v9525
      %v9575 = vpop.f32.mrf.mxu0
      %v9576 = vadd.f32 0.0, %v9575
      %9577 = vmatmul.f32.gmra.mxu0 %v9526
      %v9578 = vpop.f32.mrf.mxu0
      %v9579 = vadd.f32 0.0, %v9578
      %9580 = vmatmul.f32.gmra.mxu0 %v9527
      %v9581 = vpop.f32.mrf.mxu0
      %v9582 = vadd.f32 0.0, %v9581
      %9583 = vmatmul.f32.gmra.mxu0 %v9528
      %v9584 = vpop.f32.mrf.mxu0
      %v9585 = vadd.f32 0.0, %v9584
      %9586 = vmatmul.f32.gmra.mxu0 %v9529
      %v9587 = vpop.f32.mrf.mxu0
      %v9588 = vadd.f32 0.0, %v9587
      %9589 = vmatmul.f32.gmra.mxu0 %v9530
      %v9590 = vpop.f32.mrf.mxu0
      %v9591 = vadd.f32 0.0, %v9590
      %9592 = vmatmul.f32.gmra.mxu0 %v9531
      %v9593 = vpop.f32.mrf.mxu0
      %v9594 = vadd.f32 0.0, %v9593
      %9595 = vmatmul.f32.gmra.mxu0 %v9532
      %v9596 = vpop.f32.mrf.mxu0
      %v9597 = vadd.f32 0.0, %v9596
      %9598 = vmatmul.f32.gmra.mxu0 %v9533
      %v9599 = vpop.f32.mrf.mxu0
      %v9600 = vadd.f32 0.0, %v9599
      %9601 = vmatmul.f32.gmra.mxu0 %v9534
      %v9602 = vpop.f32.mrf.mxu0
      %v9603 = vadd.f32 0.0, %v9602
      %9604 = vmatmul.f32.gmra.mxu0 %v9535
      %v9605 = vpop.f32.mrf.mxu0
      %v9606 = vadd.f32 0.0, %v9605
      %9607 = vmatmul.f32.gmra.mxu0 %v9536
      %v9608 = vpop.f32.mrf.mxu0
      %v9609 = vadd.f32 0.0, %v9608
      %9610 = vmatmul.f32.gmra.mxu0 %v9537
      %v9611 = vpop.f32.mrf.mxu0
      %v9612 = vadd.f32 0.0, %v9611
      %9613 = vmatmul.f32.gmra.mxu0 %v9538
      %v9614 = vpop.f32.mrf.mxu0
      %v9615 = vadd.f32 0.0, %v9614
      %9616 = vmatmul.f32.gmra.mxu0 %v9539
      %v9617 = vpop.f32.mrf.mxu0
      %v9618 = vadd.f32 0.0, %v9617
      %9619 = vmatmul.f32.gmra.mxu0 %v9540
      %v9620 = vpop.f32.mrf.mxu0
      %v9621 = vadd.f32 0.0, %v9620
      %9622 = vdwg.mxu0
      %v9623 = vld [vmem:[#allocation4] sm:$0xff]
      %v9624 = vld [vmem:[#allocation4 + $0x8] sm:$0xff]
      %v9625 = vld [vmem:[#allocation4 + $0x10] sm:$0xff]
      %v9626 = vld [vmem:[#allocation4 + $0x18] sm:$0xff]
      %v9627 = vld [vmem:[#allocation4 + $0x20] sm:$0xff]
      %v9628 = vld [vmem:[#allocation4 + $0x28] sm:$0xff]
      %v9629 = vld [vmem:[#allocation4 + $0x30] sm:$0xff]
      %v9630 = vld [vmem:[#allocation4 + $0x38] sm:$0xff]
      %v9631 = vld [vmem:[#allocation4 + $0x40] sm:$0xff]
      %v9632 = vld [vmem:[#allocation4 + $0x48] sm:$0xff]
      %v9633 = vld [vmem:[#allocation4 + $0x50] sm:$0xff]
      %v9634 = vld [vmem:[#allocation4 + $0x58] sm:$0xff]
      %v9635 = vld [vmem:[#allocation4 + $0x60] sm:$0xff]
      %v9636 = vld [vmem:[#allocation4 + $0x68] sm:$0xff]
      %v9637 = vld [vmem:[#allocation4 + $0x70] sm:$0xff]
      %v9638 = vld [vmem:[#allocation4 + $0x78] sm:$0xff]
      %v9639 = vmul.f32 %v9623, %v9576
      %v9640 = vmul.f32 %v9624, %v9579
      %v9641 = vmul.f32 %v9625, %v9582
      %v9642 = vmul.f32 %v9626, %v9585
      %v9643 = vmul.f32 %v9627, %v9588
      %v9644 = vmul.f32 %v9628, %v9591
      %v9645 = vmul.f32 %v9629, %v9594
      %v9646 = vmul.f32 %v9630, %v9597
      %v9647 = vmul.f32 %v9631, %v9600
      %v9648 = vmul.f32 %v9632, %v9603
      %v9649 = vmul.f32 %v9633, %v9606
      %v9650 = vmul.f32 %v9634, %v9609
      %v9651 = vmul.f32 %v9635, %v9612
      %v9652 = vmul.f32 %v9636, %v9615
      %v9653 = vmul.f32 %v9637, %v9618
      %v9654 = vmul.f32 %v9638, %v9621
      %9655 = vmatpush.msra.mxu0 %v412
      %9656 = vmatpush.msra.mxu0 %v411
      %9657 = vmatpush.msra.mxu0 %v410
      %9658 = vmatpush.msra.mxu0 %v409
      %9659 = vmatpush.msra.mxu0 %v408
      %9660 = vmatpush.msra.mxu0 %v407
      %9661 = vmatpush.msra.mxu0 %v406
      %9662 = vmatpush.msra.mxu0 %v405
      %9663 = vmatpush.msra.mxu0 %v404
      %9664 = vmatpush.msra.mxu0 %v403
      %9665 = vmatpush.msra.mxu0 %v402
      %9666 = vmatpush.msra.mxu0 %v401
      %9667 = vmatpush.msra.mxu0 %v400
      %9668 = vmatpush.msra.mxu0 %v399
      %9669 = vmatpush.msra.mxu0 %v398
      %9670 = vmatpush.msra.mxu0 %v397
      %9671 = vmatmul.f32.gmra.mxu0 %v9639
      %v9672 = vpop.f32.mrf.mxu0
      %v9673 = vadd.f32 0.0, %v9672
      %9674 = vmatmul.f32.gmra.mxu0 %v9640
      %v9675 = vpop.f32.mrf.mxu0
      %v9676 = vadd.f32 0.0, %v9675
      %9677 = vmatmul.f32.gmra.mxu0 %v9641
      %v9678 = vpop.f32.mrf.mxu0
      %v9679 = vadd.f32 0.0, %v9678
      %9680 = vmatmul.f32.gmra.mxu0 %v9642
      %v9681 = vpop.f32.mrf.mxu0
      %v9682 = vadd.f32 0.0, %v9681
      %9683 = vmatmul.f32.gmra.mxu0 %v9643
      %v9684 = vpop.f32.mrf.mxu0
      %v9685 = vadd.f32 0.0, %v9684
      %9686 = vmatmul.f32.gmra.mxu0 %v9644
      %v9687 = vpop.f32.mrf.mxu0
      %v9688 = vadd.f32 0.0, %v9687
      %9689 = vmatmul.f32.gmra.mxu0 %v9645
      %v9690 = vpop.f32.mrf.mxu0
      %v9691 = vadd.f32 0.0, %v9690
      %9692 = vmatmul.f32.gmra.mxu0 %v9646
      %v9693 = vpop.f32.mrf.mxu0
      %v9694 = vadd.f32 0.0, %v9693
      %9695 = vmatmul.f32.gmra.mxu0 %v9647
      %v9696 = vpop.f32.mrf.mxu0
      %v9697 = vadd.f32 0.0, %v9696
      %9698 = vmatmul.f32.gmra.mxu0 %v9648
      %v9699 = vpop.f32.mrf.mxu0
      %v9700 = vadd.f32 0.0, %v9699
      %9701 = vmatmul.f32.gmra.mxu0 %v9649
      %v9702 = vpop.f32.mrf.mxu0
      %v9703 = vadd.f32 0.0, %v9702
      %9704 = vmatmul.f32.gmra.mxu0 %v9650
      %v9705 = vpop.f32.mrf.mxu0
      %v9706 = vadd.f32 0.0, %v9705
      %9707 = vmatmul.f32.gmra.mxu0 %v9651
      %v9708 = vpop.f32.mrf.mxu0
      %v9709 = vadd.f32 0.0, %v9708
      %9710 = vmatmul.f32.gmra.mxu0 %v9652
      %v9711 = vpop.f32.mrf.mxu0
      %v9712 = vadd.f32 0.0, %v9711
      %9713 = vmatmul.f32.gmra.mxu0 %v9653
      %v9714 = vpop.f32.mrf.mxu0
      %v9715 = vadd.f32 0.0, %v9714
      %9716 = vmatmul.f32.gmra.mxu0 %v9654
      %v9717 = vpop.f32.mrf.mxu0
      %v9718 = vadd.f32 0.0, %v9717
      %9719 = vdwg.mxu0
      %9736 = vrot.lane.b32.xlu0 %v9673, 48
      %v9737 = vpop.permute.xlu0 %9736
      %9738 = vrot.lane.b32.xlu0 %v9676, 48
      %v9739 = vpop.permute.xlu0 %9738
      %9740 = vrot.lane.b32.xlu0 %v9679, 48
      %v9741 = vpop.permute.xlu0 %9740
      %9742 = vrot.lane.b32.xlu0 %v9682, 48
      %v9743 = vpop.permute.xlu0 %9742
      %9744 = vrot.lane.b32.xlu0 %v9685, 48
      %v9745 = vpop.permute.xlu0 %9744
      %9746 = vrot.lane.b32.xlu0 %v9688, 48
      %v9747 = vpop.permute.xlu0 %9746
      %9748 = vrot.lane.b32.xlu0 %v9691, 48
      %v9749 = vpop.permute.xlu0 %9748
      %9750 = vrot.lane.b32.xlu0 %v9694, 48
      %v9751 = vpop.permute.xlu0 %9750
      %9752 = vrot.lane.b32.xlu0 %v9697, 48
      %v9753 = vpop.permute.xlu0 %9752
      %9754 = vrot.lane.b32.xlu0 %v9700, 48
      %v9755 = vpop.permute.xlu0 %9754
      %9756 = vrot.lane.b32.xlu0 %v9703, 48
      %v9757 = vpop.permute.xlu0 %9756
      %9758 = vrot.lane.b32.xlu0 %v9706, 48
      %v9759 = vpop.permute.xlu0 %9758
      %9760 = vrot.lane.b32.xlu0 %v9709, 48
      %v9761 = vpop.permute.xlu0 %9760
      %9762 = vrot.lane.b32.xlu0 %v9712, 48
      %v9763 = vpop.permute.xlu0 %9762
      %9764 = vrot.lane.b32.xlu0 %v9715, 48
      %v9765 = vpop.permute.xlu0 %9764
      %9766 = vrot.lane.b32.xlu0 %v9718, 48
      %v9767 = vpop.permute.xlu0 %9766
      %9784 = vst.msk [vmem:[#allocation2] sm:$0xff] %vm1686, %v9737
      %9785 = vst.msk [vmem:[#allocation2 + $0x8] sm:$0xff] %vm1686, %v9739
      %9786 = vst.msk [vmem:[#allocation2 + $0x10] sm:$0xff] %vm1686, %v9741
      %9787 = vst.msk [vmem:[#allocation2 + $0x18] sm:$0xff] %vm1686, %v9743
      %9788 = vst.msk [vmem:[#allocation2 + $0x20] sm:$0xff] %vm1686, %v9745
      %9789 = vst.msk [vmem:[#allocation2 + $0x28] sm:$0xff] %vm1686, %v9747
      %9790 = vst.msk [vmem:[#allocation2 + $0x30] sm:$0xff] %vm1686, %v9749
      %9791 = vst.msk [vmem:[#allocation2 + $0x38] sm:$0xff] %vm1686, %v9751
      %9792 = vst.msk [vmem:[#allocation2 + $0x40] sm:$0xff] %vm1686, %v9753
      %9793 = vst.msk [vmem:[#allocation2 + $0x48] sm:$0xff] %vm1686, %v9755
      %9794 = vst.msk [vmem:[#allocation2 + $0x50] sm:$0xff] %vm1686, %v9757
      %9795 = vst.msk [vmem:[#allocation2 + $0x58] sm:$0xff] %vm1686, %v9759
      %9796 = vst.msk [vmem:[#allocation2 + $0x60] sm:$0xff] %vm1686, %v9761
      %9797 = vst.msk [vmem:[#allocation2 + $0x68] sm:$0xff] %vm1686, %v9763
      %9798 = vst.msk [vmem:[#allocation2 + $0x70] sm:$0xff] %vm1686, %v9765
      %9799 = vst.msk [vmem:[#allocation2 + $0x78] sm:$0xff] %vm1686, %v9767
      %v9800 = vld [vmem:[#allocation2] sm:$0xff]
      %v9801 = vld [vmem:[#allocation2 + $0x8] sm:$0xff]
      %v9802 = vld [vmem:[#allocation2 + $0x10] sm:$0xff]
      %v9803 = vld [vmem:[#allocation2 + $0x18] sm:$0xff]
      %v9804 = vld [vmem:[#allocation2 + $0x20] sm:$0xff]
      %v9805 = vld [vmem:[#allocation2 + $0x28] sm:$0xff]
      %v9806 = vld [vmem:[#allocation2 + $0x30] sm:$0xff]
      %v9807 = vld [vmem:[#allocation2 + $0x38] sm:$0xff]
      %v9808 = vld [vmem:[#allocation2 + $0x40] sm:$0xff]
      %v9809 = vld [vmem:[#allocation2 + $0x48] sm:$0xff]
      %v9810 = vld [vmem:[#allocation2 + $0x50] sm:$0xff]
      %v9811 = vld [vmem:[#allocation2 + $0x58] sm:$0xff]
      %v9812 = vld [vmem:[#allocation2 + $0x60] sm:$0xff]
      %v9813 = vld [vmem:[#allocation2 + $0x68] sm:$0xff]
      %v9814 = vld [vmem:[#allocation2 + $0x70] sm:$0xff]
      %v9815 = vld [vmem:[#allocation2 + $0x78] sm:$0xff]
      %v9816 = vpack.c.bf16 %v9801, %v9800
      %v9817 = vpack.c.bf16 %v9803, %v9802
      %v9818 = vpack.c.bf16 %v9805, %v9804
      %v9819 = vpack.c.bf16 %v9807, %v9806
      %v9820 = vpack.c.bf16 %v9809, %v9808
      %v9821 = vpack.c.bf16 %v9811, %v9810
      %v9822 = vpack.c.bf16 %v9813, %v9812
      %v9823 = vpack.c.bf16 %v9815, %v9814
      %v9824 = vld [vmem:[%s5] sm:$0xf]
      %v9825 = vld [vmem:[%s5 + $0x4] sm:$0xf]
      %v9826 = vld [vmem:[%s5 + $0x8] sm:$0xf]
      %v9827 = vld [vmem:[%s5 + $0xc] sm:$0xf]
      %v9828 = vld [vmem:[%s5 + $0x10] sm:$0xf]
      %v9829 = vld [vmem:[%s5 + $0x14] sm:$0xf]
      %v9830 = vld [vmem:[%s5 + $0x18] sm:$0xf]
      %v9831 = vld [vmem:[%s5 + $0x1c] sm:$0xf]
      %v9832 = vld [vmem:[%s6] sm:$0x1]
      %v9834 = vperm.slane %v9832, 0
      %v9844 = vunpack.c.l.b16 %v9824
      %v9845 = vunpack.c.l.b16 %v9825
      %v9846 = vunpack.c.l.b16 %v9826
      %v9847 = vunpack.c.l.b16 %v9827
      %v9848 = vunpack.c.l.b16 %v9828
      %v9849 = vunpack.c.l.b16 %v9829
      %v9850 = vunpack.c.l.b16 %v9830
      %v9851 = vunpack.c.l.b16 %v9831
      %v9852 = vpack.c.b16 %v9845, %v9844
      %v9853 = vpack.c.b16 %v9847, %v9846
      %v9854 = vpack.c.b16 %v9849, %v9848
      %v9855 = vpack.c.b16 %v9851, %v9850
      %v9861 = vsel %vm283, %v9816, 0
      %v9864 = vsel %vm283, %v9817, 0
      %v9867 = vsel %vm283, %v9818, 0
      %v9870 = vsel %vm283, %v9819, 0
      %v9873 = vsel %vm283, %v9820, 0
      %v9876 = vsel %vm283, %v9821, 0
      %v9879 = vsel %vm283, %v9822, 0
      %v9882 = vsel %vm283, %v9823, 0
      %9884 = vmatpush.bf16.msra.mxu0 0
      %9885 = vmatpush.bf16.msra.mxu0 0
      %9886 = vmatpush.bf16.msra.mxu0 0
      %9887 = vmatpush.bf16.msra.mxu0 0
      %9888 = vmatpush.bf16.msra.mxu0 %v9855
      %9889 = vmatpush.bf16.msra.mxu0 %v9854
      %9890 = vmatpush.bf16.msra.mxu0 %v9853
      %9891 = vmatpush.bf16.msra.mxu0 %v9852
      %9892 = vmatmul.bf16.gmra.mxu0 %v9861
      %v9893 = vpop.f32.mrf.mxu0
      %v9894 = vadd.f32 %v9834, %v9893
      %v9895 = vpop.f32.mrf.mxu0
      %v9896 = vadd.f32 %v9834, %v9895
      %9897 = vmatmul.bf16.gmra.mxu0 %v9864
      %v9898 = vpop.f32.mrf.mxu0
      %v9899 = vadd.f32 %v9834, %v9898
      %v9900 = vpop.f32.mrf.mxu0
      %v9901 = vadd.f32 %v9834, %v9900
      %9902 = vmatmul.bf16.gmra.mxu0 %v9867
      %v9903 = vpop.f32.mrf.mxu0
      %v9904 = vadd.f32 %v9834, %v9903
      %v9905 = vpop.f32.mrf.mxu0
      %v9906 = vadd.f32 %v9834, %v9905
      %9907 = vmatmul.bf16.gmra.mxu0 %v9870
      %v9908 = vpop.f32.mrf.mxu0
      %v9909 = vadd.f32 %v9834, %v9908
      %v9910 = vpop.f32.mrf.mxu0
      %v9911 = vadd.f32 %v9834, %v9910
      %9912 = vmatmul.bf16.gmra.mxu0 %v9873
      %v9913 = vpop.f32.mrf.mxu0
      %v9914 = vadd.f32 %v9834, %v9913
      %v9915 = vpop.f32.mrf.mxu0
      %v9916 = vadd.f32 %v9834, %v9915
      %9917 = vmatmul.bf16.gmra.mxu0 %v9876
      %v9918 = vpop.f32.mrf.mxu0
      %v9919 = vadd.f32 %v9834, %v9918
      %v9920 = vpop.f32.mrf.mxu0
      %v9921 = vadd.f32 %v9834, %v9920
      %9922 = vmatmul.bf16.gmra.mxu0 %v9879
      %v9923 = vpop.f32.mrf.mxu0
      %v9924 = vadd.f32 %v9834, %v9923
      %v9925 = vpop.f32.mrf.mxu0
      %v9926 = vadd.f32 %v9834, %v9925
      %9927 = vmatmul.bf16.gmra.mxu0 %v9882
      %v9928 = vpop.f32.mrf.mxu0
      %v9929 = vadd.f32 %v9834, %v9928
      %v9930 = vpop.f32.mrf.mxu0
      %v9931 = vadd.f32 %v9834, %v9930
      %9932 = vdwg.mxu0
      %vm9933 = vcmask 64512
      %9934 = vst.msk [vmem:[%s280] sm:$0xff] %vm9933, %v9894
      %9935 = vst.msk [vmem:[%s280 + $0x8] sm:$0xff] %vm9933, %v9896
      %9936 = vst.msk [vmem:[%s280 + $0x10] sm:$0xff] %vm9933, %v9899
      %9937 = vst.msk [vmem:[%s280 + $0x18] sm:$0xff] %vm9933, %v9901
      %9938 = vst.msk [vmem:[%s280 + $0x20] sm:$0xff] %vm9933, %v9904
      %9939 = vst.msk [vmem:[%s280 + $0x28] sm:$0xff] %vm9933, %v9906
      %9940 = vst.msk [vmem:[%s280 + $0x30] sm:$0xff] %vm9933, %v9909
      %9941 = vst.msk [vmem:[%s280 + $0x38] sm:$0xff] %vm9933, %v9911
      %9942 = vst.msk [vmem:[%s280 + $0x40] sm:$0xff] %vm9933, %v9914
      %9943 = vst.msk [vmem:[%s280 + $0x48] sm:$0xff] %vm9933, %v9916
      %9944 = vst.msk [vmem:[%s280 + $0x50] sm:$0xff] %vm9933, %v9919
      %9945 = vst.msk [vmem:[%s280 + $0x58] sm:$0xff] %vm9933, %v9921
      %9946 = vst.msk [vmem:[%s280 + $0x60] sm:$0xff] %vm9933, %v9924
      %9947 = vst.msk [vmem:[%s280 + $0x68] sm:$0xff] %vm9933, %v9926
      %9948 = vst.msk [vmem:[%s280 + $0x70] sm:$0xff] %vm9933, %v9929
      %9949 = vst.msk [vmem:[%s280 + $0x78] sm:$0xff] %vm9933, %v9931
      %s9950 = smul.u32 16, %s18
      %p9951 = scmp.lt.s32.totalorder %s9950, 31
      %s9952 = scalar_select %p9951, %s9950, 31
      %s9953 = smul.addr %s9952, 8
      %s9954 = scalar_lea.vmem %s7, %s9953
      // Predicated region
      $region49: #{node_forward.1} parent=47 // pred_check
        %p9955 = pneg %p188
      $region50: #{node_forward.1} parent=47 // pred_check_branch
        %9957 = sbr.rel (%p9955) target = $region52
      $region51: #{node_forward.1} parent=47 // pred_region
        %s9958 = smul.u32 16, %s18
      $region52: #{node_forward.1} parent=47 // pred_fallthru
        _
    $region48: #{node_forward.1} parent=5 // pred_fallthru
      _
    %p9959 = scmp.le.s32.totalorder 2, %s13
    // Predicated region
    $region53: #{node_forward.1} parent=5 // pred_check
      %p9960 = pneg %p9959
    $region54: #{node_forward.1} parent=5 // pred_check_branch
      %9962 = sbr.rel (%p9960) target = $region56
    $region55: #{node_forward.1} parent=5 // pred_region
      %s9963 = ssub.s32 %s13, 2
      // Predicated region
      $region57: #{node_forward.1} parent=55 // pred_check
        %p9964 = pneg %p194
      $region58: #{node_forward.1} parent=55 // pred_check_branch
        %9966 = sbr.rel (%p9964) target = $region60
      $region59: #{node_forward.1} parent=55 // pred_region
        %s9967 = smul.u32 16, %s19
        %p9968 = scmp.lt.s32.totalorder %s9967, 31
        %s9969 = scalar_select %p9968, %s9967, 31
        %s9970 = smul.addr %s9969, 8
        %s9971 = scalar_lea.vmem %s7, %s9970
      $region60: #{node_forward.1} parent=55 // pred_fallthru
        _
    $region56: #{node_forward.1} parent=5 // pred_fallthru
      _
  $region6: #{node_forward.1} parent=0 // loop_footer
    %s17 = sadd.s32 1, %s13
  $region7: #{node_forward.1} parent=0 // loop_footer_branch
    %12 = sbr.rel target = $region3
  $region8: #{node_forward.1} parent=0 // loop_exit
    _

</llo_original>
